<compile_context>
chip_gen: v6e
topology: v6e:2x2x1
jax: 0.10.0
libtpu: 0.0.40
codegen_flags: <defaults>
</compile_context>

<pallas_src>
import math
import functools
import numpy as np
import jax
import jax.numpy as jnp
from jax.experimental import pallas as pl
from jax.experimental.pallas import tpu as pltpu


def _round_up(v, m):
    return (v + m - 1) // m * m


def _gelu(x):
    # tanh-form GELU (jax.nn.gelu approximate math).  nn.GELU() uses exact erf; the max abs
    # deviation (~3e-4) is far below this kernel's bf16-MXU noise floor, and tanh runs on the
    # EUP slot (free alongside the VPU) with fewer VALU ops than an erf polynomial.
    return 0.5 * x * (1.0 + jnp.tanh(0.7978845608028654 * (x + 0.044715 * x * x * x)))


def _decode_block_kernel(x_ref, mask_ref, g1_ref, b1_ref, w1_ref, c1_ref,
                         g2_ref, b2_ref, w2_ref, c2_ref, o_ref,
                         a1_ref, a2_ref, r1_ref, r2_ref, *, dims):
    D, H, W, Cin, Cmid, CinP, CmidP, lead = dims
    Hp, Wp = H + 2, W + 2
    HpWp = Hp * Wp
    c = HpWp + Wp + 1                     # flat offset of padded coordinate (1, 1, 1)
    org = lead + c                        # lane-aligned (multiple of 128) valid-region origin
    Qp = r1_ref.shape[1]                  # lane-dense output / matmul-N extent (multiple of 128)
    Pp = a1_ref.shape[1]                  # padded flat volume incl. lead pad + conv halo

    x = x_ref[0]                          # (CinP, Pp) f32; zero outside valid voxels/channels
    mask_p = mask_ref[...]                # (1, Pp): 1.0 on valid voxels
    mask_q = mask_ref[:, org:org + Qp]    # (1, Qp), aligned slice

    # ---- GroupNorm(1, Cin) + GELU (stats over valid voxels only; everything else is 0) ----
    cnt1 = float(Cin * D * H * W)
    mean1 = jnp.sum(x) / cnt1
    var1 = jnp.maximum(jnp.sum(x * x) / cnt1 - mean1 * mean1, 0.0)
    xn = (x - mean1) * jax.lax.rsqrt(var1 + 1e-5) * g1_ref[...] + b1_ref[...]
    a1_ref[...] = _gelu(xn) * mask_p      # re-zero halo -> real conv zero padding

    # ---- im2col: 9 window loads per conv, kw=0/2 windows derived with XLU rolls ----
    def fill_taps(src_ref, dst_ref, cpad):
        # Roll wrap-around safety: Qp > D*HpWp + H*Wp + W (the largest valid flat index), so
        #  * roll(+1) lane 0 wraps in src[base+Qp], which can never be a valid voxel (masked
        #    zero), and the true value there is the w=0 halo zero -> identical;
        #  * roll(-1) lane Qp-1 never maps to a valid output voxel (masked / cropped later).
        for kd in range(3):
            for kh in range(3):
                base = lead + kd * HpWp + kh * Wp
                k0 = (kd * 3 + kh) * 3
                w1c = src_ref[:, base + 1:base + 1 + Qp]          # kw = 1 window (one load)
                dst_ref[(k0 + 0) * cpad:(k0 + 1) * cpad, :] = \
                    pltpu.roll(w1c, shift=1, axis=1).astype(jnp.bfloat16)        # kw = 0
                dst_ref[(k0 + 1) * cpad:(k0 + 2) * cpad, :] = w1c.astype(jnp.bfloat16)
                dst_ref[(k0 + 2) * cpad:(k0 + 3) * cpad, :] = \
                    pltpu.roll(w1c, shift=Qp - 1, axis=1).astype(jnp.bfloat16)   # kw = 2 (== -1)

    # ---- ConvTranspose3d(k3,s1,p1) == flipped Conv3d: one bf16 MXU matmul, K = 27*CinP ----
    fill_taps(a1_ref, r1_ref, CinP)
    mid = jnp.dot(w1_ref[...], r1_ref[...],
                  preferred_element_type=jnp.float32) + c1_ref[...]     # (CmidP, Qp) f32

    # ---- GroupNorm(1, Cmid) + GELU (masked statistics; padded rows of mid are exactly 0) ----
    cnt2 = float(Cmid * D * H * W)
    mm = mid * mask_q
    mean2 = jnp.sum(mm) / cnt2
    var2 = jnp.maximum(jnp.sum(mid * mm) / cnt2 - mean2 * mean2, 0.0)
    a2 = _gelu((mid - mean2) * jax.lax.rsqrt(var2 + 1e-5) * g2_ref[...] + b2_ref[...])

    # Re-embed at the 128-aligned origin; only the two halo slabs need zeroing (aligned memsets),
    # the [org, org+Qp) slab is fully overwritten every step.
    a2_ref[:, 0:org] = jnp.zeros((CmidP, org), jnp.float32)
    a2_ref[:, org:org + Qp] = a2 * mask_q
    tail = Pp - (org + Qp)
    if tail > 0:
        a2_ref[:, org + Qp:Pp] = jnp.zeros((CmidP, tail), jnp.float32)

    # ---- Conv3d(k3,s1,p1): one bf16 MXU matmul, K = 27*CmidP ----
    fill_taps(a2_ref, r2_ref, CmidP)
    out = jnp.dot(w2_ref[...], r2_ref[...],
                  preferred_element_type=jnp.float32) + c2_ref[...]     # (CoutP, Qp) f32
    o_ref[0] = out.astype(o_ref.dtype)


def decode_block_forward(x, params):
    """x: (N, Cin, D, H, W) float32 (NCDHW, matching PyTorch). Returns NCDHW output."""
    N, Cin, D, H, W = x.shape
    Cmid = params["w_expand"].shape[1]
    Cout = params["w_retain"].shape[0]
    Dp, Hp, Wp = D + 2, H + 2, W + 2
    HpWp = Hp * Wp
    P = Dp * HpWp
    c = HpWp + Wp + 1
    lead = (-c) % 128                      # lane-align the valid-region origin: (lead+c)%128==0
    CinP = _round_up(Cin, 16)              # 16 so every bf16 im2col sub-block store is tile-aligned
    CmidP = _round_up(Cmid, 16)
    CoutP = _round_up(Cout, 8)             # sublane-aligned (f32) output store / dense writeback
    # Qp covers every valid output lane AND exceeds the largest valid flat index -> roll-safe.
    Qp = _round_up(D * HpWp + H * Wp + W + 1, 128)
    Pp = _round_up(lead + 2 * c + Qp, 128)  # padded flat volume incl. lead pad + full conv halo

    # Zero-padded, channel-major, flattened-spatial input (N, CinP, Pp) with `lead` leading zeros.
    # TODO(synk): fold this padding into the kernel (pl.ANY input + manual DMA + VMEM memset) to
    # save the wrapper-side HBM pass at production sizes.
    x_pad = jnp.pad(x.astype(jnp.float32),
                    ((0, 0), (0, CinP - Cin), (1, 1), (1, 1), (1, 1))).reshape(N, CinP, P)
    x_pad = jnp.pad(x_pad, ((0, 0), (0, 0), (lead, Pp - lead - P)))

    mask = jnp.zeros((Dp, Hp, Wp), jnp.float32)
    mask = mask.at[1:D + 1, 1:H + 1, 1:W + 1].set(1.0).reshape(1, P)
    mask = jnp.pad(mask, ((0, 0), (lead, Pp - lead - P)))

    # ConvTranspose3d(k3,s1,p1) == Conv3d(k3,s1,p1) with flipped kernel / swapped channel axes.
    # Pack weights tap-major along the contraction dim (col = k*Cpad + cin), channel axes
    # zero-padded to match the in-kernel im2col layout, cast to bf16 (MXU-native; f32 accum).
    w_eff1 = jnp.flip(params["w_expand"], axis=(2, 3, 4)).transpose(1, 0, 2, 3, 4)  # (Cmid,Cin,3,3,3)
    w_tap1 = w_eff1.transpose(2, 3, 4, 0, 1).reshape(27, Cmid, Cin)
    w_tap1 = jnp.pad(w_tap1, ((0, 0), (0, CmidP - Cmid), (0, CinP - Cin)))
    w1 = w_tap1.transpose(1, 0, 2).reshape(CmidP, 27 * CinP).astype(jnp.bfloat16)

    w_tap2 = params["w_retain"].transpose(2, 3, 4, 0, 1).reshape(27, Cout, Cmid)
    w_tap2 = jnp.pad(w_tap2, ((0, 0), (0, CoutP - Cout), (0, CmidP - Cmid)))
    w2 = w_tap2.transpose(1, 0, 2).reshape(CoutP, 27 * CmidP).astype(jnp.bfloat16)

    def col(v, n):
        v = v.astype(jnp.float32)
        return jnp.pad(v, (0, n - v.shape[0])).reshape(n, 1)

    g1 = col(params["g1"], CinP)
    b1 = col(params["b1"], CinP)
    c1 = col(params["c1"], CmidP)
    g2 = col(params["g2"], CmidP)
    b2 = col(params["b2"], CmidP)
    c2 = col(params["c2"], CoutP)

    kernel = functools.partial(_decode_block_kernel,
                               dims=(D, H, W, Cin, Cmid, CinP, CmidP, lead))

    def full(shape):
        return pl.BlockSpec(shape, lambda n, _s=shape: (0,) * len(_s))

    out_q = pl.pallas_call(
        kernel,
        out_shape=jax.ShapeDtypeStruct((N, CoutP, Qp), jnp.float32),
        grid_spec=pltpu.PrefetchScalarGridSpec(
            num_scalar_prefetch=0,
            grid=(N,),
            in_specs=[
                pl.BlockSpec((1, CinP, Pp), lambda n: (n, 0, 0)),
                full((1, Pp)),
                full((CinP, 1)), full((CinP, 1)),
                full((CmidP, 27 * CinP)), full((CmidP, 1)),
                full((CmidP, 1)), full((CmidP, 1)),
                full((CoutP, 27 * CmidP)), full((CoutP, 1)),
            ],
            out_specs=pl.BlockSpec((1, CoutP, Qp), lambda n: (n, 0, 0)),
            scratch_shapes=[
                pltpu.VMEM((CinP, Pp), jnp.float32),          # GELU(GN(x)), padded flat volume
                pltpu.VMEM((CmidP, Pp), jnp.float32),         # GELU(GN(mid)), padded flat volume
                pltpu.VMEM((27 * CinP, Qp), jnp.bfloat16),    # im2col RHS for conv 1
                pltpu.VMEM((27 * CmidP, Qp), jnp.bfloat16),   # im2col RHS for conv 2
            ],
        ),
        # Samples are independent and scratch is fully rewritten each step -> v7x shards the
        # batch axis across both TensorCores (no effect on v5e/v6e).
        compiler_params=pltpu.CompilerParams(
            dimension_semantics=("parallel",),
            vmem_limit_bytes=64 * 1024 * 1024),
    )(x_pad, mask, g1, b1, w1, c1, g2, b2, w2, c2)

    # Valid voxel (d, h, w) sits at lane d*Hp*Wp + h*Wp + w -> reshape + crop (channels + lanes).
    out = out_q[:, :Cout, :D * HpWp].reshape(N, Cout, D, Hp, Wp)[:, :, :, :H, :W]
    return out


def _reference_forward(x, params):
    """Plain-JAX reference of the PyTorch forward (NCDHW, exact erf GELU, f32 convs)."""
    eps = 1e-5

    def gn(v, g, b):
        mean = jnp.mean(v, axis=(1, 2, 3, 4), keepdims=True)
        var = jnp.mean((v - mean) ** 2, axis=(1, 2, 3, 4), keepdims=True)
        return ((v - mean) / jnp.sqrt(var + eps)) * g[None, :, None, None, None] \
            + b[None, :, None, None, None]

    def gelu(v):
        return 0.5 * v * (1.0 + jax.lax.erf(v / jnp.sqrt(2.0)))

    def conv3(v, w, b):
        y = jax.lax.conv_general_dilated(
            v, w, window_strides=(1, 1, 1), padding=[(1, 1)] * 3,
            dimension_numbers=("NCDHW", "OIDHW", "NCDHW"),
            precision=jax.lax.Precision.HIGHEST)
        return y + b[None, :, None, None, None]

    a = gelu(gn(x, params["g1"], params["b1"]))
    w_eff1 = jnp.flip(params["w_expand"], axis=(2, 3, 4)).transpose(1, 0, 2, 3, 4)
    m = conv3(a, w_eff1, params["c1"])          # == ConvTranspose3d(k3,s1,p1)
    a2 = gelu(gn(m, params["g2"], params["b2"]))
    return conv3(a2, params["w_retain"], params["c2"])


if __name__ == "__main__":
    key = jax.random.PRNGKey(0)
    N, Cin, Cmid, Cout = 2, 4, 8, 4
    D = H = W = 8
    ks = jax.random.split(key, 9)

    x = jax.random.normal(ks[0], (N, Cin, D, H, W), jnp.float32)
    params = {
        "g1": 1.0 + 0.1 * jax.random.normal(ks[1], (Cin,), jnp.float32),
        "b1": 0.1 * jax.random.normal(ks[2], (Cin,), jnp.float32),
        "w_expand": jax.random.normal(ks[3], (Cin, Cmid, 3, 3, 3), jnp.float32)
                    / math.sqrt(Cin * 27),
        "c1": 0.05 * jax.random.normal(ks[4], (Cmid,), jnp.float32),
        "g2": 1.0 + 0.1 * jax.random.normal(ks[5], (Cmid,), jnp.float32),
        "b2": 0.1 * jax.random.normal(ks[6], (Cmid,), jnp.float32),
        "w_retain": jax.random.normal(ks[7], (Cout, Cmid, 3, 3, 3), jnp.float32)
                    / math.sqrt(Cmid * 27),
        "c2": 0.05 * jax.random.normal(ks[8], (Cout,), jnp.float32),
    }

    out = jax.block_until_ready(decode_block_forward(x, params))
    ref = jax.block_until_ready(_reference_forward(x, params))
    assert out.shape == (N, Cout, D, H, W), out.shape
    # Tolerance is the bf16-MXU envelope (bf16 operands, f32 accumulation, two chained convs).
    np.testing.assert_allclose(np.asarray(out), np.asarray(ref), rtol=1e-2, atol=2e-2)
    print("KERNEL_OK")
</pallas_src>

<mosaic_0001>
module attributes {stable_mosaic.version = 11 : i64} {
  func.func @_decode_block_kernel(%arg0: i32, %arg1: memref<1x16x1152xf32, #tpu.memory_space<vmem>>, %arg2: memref<1x1152xf32, #tpu.memory_space<vmem>>, %arg3: memref<16x1xf32, #tpu.memory_space<vmem>>, %arg4: memref<16x1xf32, #tpu.memory_space<vmem>>, %arg5: memref<16x432xbf16, #tpu.memory_space<vmem>>, %arg6: memref<16x1xf32, #tpu.memory_space<vmem>>, %arg7: memref<16x1xf32, #tpu.memory_space<vmem>>, %arg8: memref<16x1xf32, #tpu.memory_space<vmem>>, %arg9: memref<8x432xbf16, #tpu.memory_space<vmem>>, %arg10: memref<8x1xf32, #tpu.memory_space<vmem>>, %arg11: memref<1x8x896xf32, #tpu.memory_space<vmem>>, %arg12: memref<16x1152xf32, #tpu.memory_space<vmem>>, %arg13: memref<16x1152xf32, #tpu.memory_space<vmem>>, %arg14: memref<432x896xbf16, #tpu.memory_space<vmem>>, %arg15: memref<432x896xbf16, #tpu.memory_space<vmem>>) attributes {dimension_semantics = [#tpu.dimension_semantics<parallel>], iteration_bounds = array<i64: 2>, scalar_prefetch = 0 : i64, scratch_operands = 4 : i64, tpu.core_type = #tpu.core_type<tc>, window_params = [{transform_indices = @transform_0, window_bounds = array<i64: 1, 16, 1152>}, {pipeline_mode = #tpu.pipeline_mode<synchronous>, transform_indices = @transform_1, window_bounds = array<i64: 1, 1152>}, {pipeline_mode = #tpu.pipeline_mode<synchronous>, transform_indices = @transform_2, window_bounds = array<i64: 16, 1>}, {pipeline_mode = #tpu.pipeline_mode<synchronous>, transform_indices = @transform_3, window_bounds = array<i64: 16, 1>}, {pipeline_mode = #tpu.pipeline_mode<synchronous>, transform_indices = @transform_4, window_bounds = array<i64: 16, 432>}, {pipeline_mode = #tpu.pipeline_mode<synchronous>, transform_indices = @transform_5, window_bounds = array<i64: 16, 1>}, {pipeline_mode = #tpu.pipeline_mode<synchronous>, transform_indices = @transform_6, window_bounds = array<i64: 16, 1>}, {pipeline_mode = #tpu.pipeline_mode<synchronous>, transform_indices = @transform_7, window_bounds = array<i64: 16, 1>}, {pipeline_mode = #tpu.pipeline_mode<synchronous>, transform_indices = @transform_8, window_bounds = array<i64: 8, 432>}, {pipeline_mode = #tpu.pipeline_mode<synchronous>, transform_indices = @transform_9, window_bounds = array<i64: 8, 1>}, {transform_indices = @transform_10, window_bounds = array<i64: 1, 8, 896>}]} {
    %c0 = arith.constant 0 : index
    %c0_0 = arith.constant 0 : index
    %c0_1 = arith.constant 0 : index
    %0 = vector.load %arg1[%c0, %c0_0, %c0_1] : memref<1x16x1152xf32, #tpu.memory_space<vmem>>, vector<1x16x1152xf32>
    %1 = vector.shape_cast %0 : vector<1x16x1152xf32> to vector<16x1152xf32>
    %c0_2 = arith.constant 0 : index
    %c0_3 = arith.constant 0 : index
    %2 = vector.load %arg2[%c0_2, %c0_3] : memref<1x1152xf32, #tpu.memory_space<vmem>>, vector<1x1152xf32>
    %c0_4 = arith.constant 0 : index
    %c128 = arith.constant 128 : index
    %3 = vector.load %arg2[%c0_4, %c128] : memref<1x1152xf32, #tpu.memory_space<vmem>>, vector<1x896xf32>
    %4 = vector.shape_cast %1 : vector<16x1152xf32> to vector<1x16x1152xf32>
    %cst = arith.constant dense<0.000000e+00> : vector<1xf32>
    %5 = vector.multi_reduction <add>, %4, %cst [1, 2] : vector<1x16x1152xf32> to vector<1xf32>
    %6 = vector.shape_cast %5 : vector<1xf32> to vector<1x1x1xf32>
    %7 = vector.extract %6[0, 0, 0] : f32 from vector<1x1x1xf32>
    %cst_5 = arith.constant 2.048000e+03 : f32
    %8 = arith.divf %7, %cst_5 : f32
    %9 = arith.mulf %1, %1 : vector<16x1152xf32>
    %10 = vector.shape_cast %9 : vector<16x1152xf32> to vector<1x16x1152xf32>
    %cst_6 = arith.constant dense<0.000000e+00> : vector<1xf32>
    %11 = vector.multi_reduction <add>, %10, %cst_6 [1, 2] : vector<1x16x1152xf32> to vector<1xf32>
    %12 = vector.shape_cast %11 : vector<1xf32> to vector<1x1x1xf32>
    %13 = vector.extract %12[0, 0, 0] : f32 from vector<1x1x1xf32>
    %cst_7 = arith.constant 2.048000e+03 : f32
    %14 = arith.divf %13, %cst_7 : f32
    %15 = arith.mulf %8, %8 : f32
    %16 = arith.subf %14, %15 : f32
    %cst_8 = arith.constant 0.000000e+00 : f32
    %17 = arith.maximumf %16, %cst_8 : f32
    %18 = vector.broadcast %8 : f32 to vector<16x1152xf32>
    %19 = arith.subf %1, %18 : vector<16x1152xf32>
    %cst_9 = arith.constant 9.99999974E-6 : f32
    %20 = arith.addf %17, %cst_9 : f32
    %21 = math.rsqrt %20 : f32
    %22 = vector.broadcast %21 : f32 to vector<16x1152xf32>
    %23 = arith.mulf %19, %22 : vector<16x1152xf32>
    %c0_10 = arith.constant 0 : index
    %c0_11 = arith.constant 0 : index
    %24 = vector.load %arg3[%c0_10, %c0_11] : memref<16x1xf32, #tpu.memory_space<vmem>>, vector<16x1xf32>
    %25 = vector.broadcast %24 : vector<16x1xf32> to vector<16x1152xf32>
    %26 = arith.mulf %23, %25 : vector<16x1152xf32>
    %c0_12 = arith.constant 0 : index
    %c0_13 = arith.constant 0 : index
    %27 = vector.load %arg4[%c0_12, %c0_13] : memref<16x1xf32, #tpu.memory_space<vmem>>, vector<16x1xf32>
    %28 = vector.broadcast %27 : vector<16x1xf32> to vector<16x1152xf32>
    %29 = arith.addf %26, %28 : vector<16x1152xf32>
    %cst_14 = arith.constant 5.000000e-01 : f32
    %30 = vector.broadcast %cst_14 : f32 to vector<16x1152xf32>
    %31 = arith.mulf %30, %29 : vector<16x1152xf32>
    %cst_15 = arith.constant 4.471500e-02 : f32
    %32 = vector.broadcast %cst_15 : f32 to vector<16x1152xf32>
    %33 = arith.mulf %32, %29 : vector<16x1152xf32>
    %34 = arith.mulf %33, %29 : vector<16x1152xf32>
    %35 = arith.mulf %34, %29 : vector<16x1152xf32>
    %36 = arith.addf %29, %35 : vector<16x1152xf32>
    %cst_16 = arith.constant 0.797884583 : f32
    %37 = vector.broadcast %cst_16 : f32 to vector<16x1152xf32>
    %38 = arith.mulf %37, %36 : vector<16x1152xf32>
    %39 = math.tanh %38 : vector<16x1152xf32>
    %cst_17 = arith.constant 1.000000e+00 : f32
    %40 = vector.broadcast %cst_17 : f32 to vector<16x1152xf32>
    %41 = arith.addf %40, %39 : vector<16x1152xf32>
    %42 = arith.mulf %31, %41 : vector<16x1152xf32>
    %43 = vector.broadcast %2 : vector<1x1152xf32> to vector<16x1152xf32>
    %44 = arith.mulf %42, %43 : vector<16x1152xf32>
    %c0_18 = arith.constant 0 : index
    %c0_19 = arith.constant 0 : index
    %45 = vector.load %arg12[%c0_18, %c0_19] : memref<16x1152xf32, #tpu.memory_space<vmem>>, vector<16x1152xf32>
    tpu.vector_store %arg12[%c0_18, %c0_19], %44 {strides = array<i32>} : memref<16x1152xf32, #tpu.memory_space<vmem>>, vector<16x1152xf32>,
    %c0_20 = arith.constant 0 : index
    %c18 = arith.constant 18 : index
    %46 = vector.load %arg12[%c0_20, %c18] : memref<16x1152xf32, #tpu.memory_space<vmem>>, vector<16x896xf32>
    %c1_i32 = arith.constant 1 : i32
    %47 = tpu.dynamic_rotate %46 by %c1_i32 dim 1 : vector<16x896xf32>, i32 -> vector<16x896xf32>
    %48 = arith.truncf %47 : vector<16x896xf32> to vector<16x896xbf16>
    %c0_21 = arith.constant 0 : index
    %c0_22 = arith.constant 0 : index
    %49 = vector.load %arg14[%c0_21, %c0_22] : memref<432x896xbf16, #tpu.memory_space<vmem>>, vector<16x896xbf16>
    tpu.vector_store %arg14[%c0_21, %c0_22], %48 {strides = array<i32>} : memref<432x896xbf16, #tpu.memory_space<vmem>>, vector<16x896xbf16>,
    %50 = arith.truncf %46 : vector<16x896xf32> to vector<16x896xbf16>
    %c16 = arith.constant 16 : index
    %c0_23 = arith.constant 0 : index
    %51 = vector.load %arg14[%c16, %c0_23] : memref<432x896xbf16, #tpu.memory_space<vmem>>, vector<16x896xbf16>
    tpu.vector_store %arg14[%c16, %c0_23], %50 {strides = array<i32>} : memref<432x896xbf16, #tpu.memory_space<vmem>>, vector<16x896xbf16>,
    %c895_i32 = arith.constant 895 : i32
    %52 = tpu.dynamic_rotate %46 by %c895_i32 dim 1 : vector<16x896xf32>, i32 -> vector<16x896xf32>
    %53 = arith.truncf %52 : vector<16x896xf32> to vector<16x896xbf16>
    %c32 = arith.constant 32 : index
    %c0_24 = arith.constant 0 : index
    %54 = vector.load %arg14[%c32, %c0_24] : memref<432x896xbf16, #tpu.memory_space<vmem>>, vector<16x896xbf16>
    tpu.vector_store %arg14[%c32, %c0_24], %53 {strides = array<i32>} : memref<432x896xbf16, #tpu.memory_space<vmem>>, vector<16x896xbf16>,
    %c0_25 = arith.constant 0 : index
    %c28 = arith.constant 28 : index
    %55 = vector.load %arg12[%c0_25, %c28] : memref<16x1152xf32, #tpu.memory_space<vmem>>, vector<16x896xf32>
    %c1_i32_26 = arith.constant 1 : i32
    %56 = tpu.dynamic_rotate %55 by %c1_i32_26 dim 1 : vector<16x896xf32>, i32 -> vector<16x896xf32>
    %57 = arith.truncf %56 : vector<16x896xf32> to vector<16x896xbf16>
    %c48 = arith.constant 48 : index
    %c0_27 = arith.constant 0 : index
    %58 = vector.load %arg14[%c48, %c0_27] : memref<432x896xbf16, #tpu.memory_space<vmem>>, vector<16x896xbf16>
    tpu.vector_store %arg14[%c48, %c0_27], %57 {strides = array<i32>} : memref<432x896xbf16, #tpu.memory_space<vmem>>, vector<16x896xbf16>,
    %59 = arith.truncf %55 : vector<16x896xf32> to vector<16x896xbf16>
    %c64 = arith.constant 64 : index
    %c0_28 = arith.constant 0 : index
    %60 = vector.load %arg14[%c64, %c0_28] : memref<432x896xbf16, #tpu.memory_space<vmem>>, vector<16x896xbf16>
    tpu.vector_store %arg14[%c64, %c0_28], %59 {strides = array<i32>} : memref<432x896xbf16, #tpu.memory_space<vmem>>, vector<16x896xbf16>,
    %c895_i32_29 = arith.constant 895 : i32
    %61 = tpu.dynamic_rotate %55 by %c895_i32_29 dim 1 : vector<16x896xf32>, i32 -> vector<16x896xf32>
    %62 = arith.truncf %61 : vector<16x896xf32> to vector<16x896xbf16>
    %c80 = arith.constant 80 : index
    %c0_30 = arith.constant 0 : index
    %63 = vector.load %arg14[%c80, %c0_30] : memref<432x896xbf16, #tpu.memory_space<vmem>>, vector<16x896xbf16>
    tpu.vector_store %arg14[%c80, %c0_30], %62 {strides = array<i32>} : memref<432x896xbf16, #tpu.memory_space<vmem>>, vector<16x896xbf16>,
    %c0_31 = arith.constant 0 : index
    %c38 = arith.constant 38 : index
    %64 = vector.load %arg12[%c0_31, %c38] : memref<16x1152xf32, #tpu.memory_space<vmem>>, vector<16x896xf32>
    %c1_i32_32 = arith.constant 1 : i32
    %65 = tpu.dynamic_rotate %64 by %c1_i32_32 dim 1 : vector<16x896xf32>, i32 -> vector<16x896xf32>
    %66 = arith.truncf %65 : vector<16x896xf32> to vector<16x896xbf16>
    %c96 = arith.constant 96 : index
    %c0_33 = arith.constant 0 : index
    %67 = vector.load %arg14[%c96, %c0_33] : memref<432x896xbf16, #tpu.memory_space<vmem>>, vector<16x896xbf16>
    tpu.vector_store %arg14[%c96, %c0_33], %66 {strides = array<i32>} : memref<432x896xbf16, #tpu.memory_space<vmem>>, vector<16x896xbf16>,
    %68 = arith.truncf %64 : vector<16x896xf32> to vector<16x896xbf16>
    %c112 = arith.constant 112 : index
    %c0_34 = arith.constant 0 : index
    %69 = vector.load %arg14[%c112, %c0_34] : memref<432x896xbf16, #tpu.memory_space<vmem>>, vector<16x896xbf16>
    tpu.vector_store %arg14[%c112, %c0_34], %68 {strides = array<i32>} : memref<432x896xbf16, #tpu.memory_space<vmem>>, vector<16x896xbf16>,
    %c895_i32_35 = arith.constant 895 : i32
    %70 = tpu.dynamic_rotate %64 by %c895_i32_35 dim 1 : vector<16x896xf32>, i32 -> vector<16x896xf32>
    %71 = arith.truncf %70 : vector<16x896xf32> to vector<16x896xbf16>
    %c128_36 = arith.constant 128 : index
    %c0_37 = arith.constant 0 : index
    %72 = vector.load %arg14[%c128_36, %c0_37] : memref<432x896xbf16, #tpu.memory_space<vmem>>, vector<16x896xbf16>
    tpu.vector_store %arg14[%c128_36, %c0_37], %71 {strides = array<i32>} : memref<432x896xbf16, #tpu.memory_space<vmem>>, vector<16x896xbf16>,
    %c0_38 = arith.constant 0 : index
    %c118 = arith.constant 118 : index
    %73 = vector.load %arg12[%c0_38, %c118] : memref<16x1152xf32, #tpu.memory_space<vmem>>, vector<16x896xf32>
    %c1_i32_39 = arith.constant 1 : i32
    %74 = tpu.dynamic_rotate %73 by %c1_i32_39 dim 1 : vector<16x896xf32>, i32 -> vector<16x896xf32>
    %75 = arith.truncf %74 : vector<16x896xf32> to vector<16x896xbf16>
    %c144 = arith.constant 144 : index
    %c0_40 = arith.constant 0 : index
    %76 = vector.load %arg14[%c144, %c0_40] : memref<432x896xbf16, #tpu.memory_space<vmem>>, vector<16x896xbf16>
    tpu.vector_store %arg14[%c144, %c0_40], %75 {strides = array<i32>} : memref<432x896xbf16, #tpu.memory_space<vmem>>, vector<16x896xbf16>,
    %77 = arith.truncf %73 : vector<16x896xf32> to vector<16x896xbf16>
    %c160 = arith.constant 160 : index
    %c0_41 = arith.constant 0 : index
    %78 = vector.load %arg14[%c160, %c0_41] : memref<432x896xbf16, #tpu.memory_space<vmem>>, vector<16x896xbf16>
    tpu.vector_store %arg14[%c160, %c0_41], %77 {strides = array<i32>} : memref<432x896xbf16, #tpu.memory_space<vmem>>, vector<16x896xbf16>,
    %c895_i32_42 = arith.constant 895 : i32
    %79 = tpu.dynamic_rotate %73 by %c895_i32_42 dim 1 : vector<16x896xf32>, i32 -> vector<16x896xf32>
    %80 = arith.truncf %79 : vector<16x896xf32> to vector<16x896xbf16>
    %c176 = arith.constant 176 : index
    %c0_43 = arith.constant 0 : index
    %81 = vector.load %arg14[%c176, %c0_43] : memref<432x896xbf16, #tpu.memory_space<vmem>>, vector<16x896xbf16>
    tpu.vector_store %arg14[%c176, %c0_43], %80 {strides = array<i32>} : memref<432x896xbf16, #tpu.memory_space<vmem>>, vector<16x896xbf16>,
    %c0_44 = arith.constant 0 : index
    %c128_45 = arith.constant 128 : index
    %82 = vector.load %arg12[%c0_44, %c128_45] : memref<16x1152xf32, #tpu.memory_space<vmem>>, vector<16x896xf32>
    %c1_i32_46 = arith.constant 1 : i32
    %83 = tpu.dynamic_rotate %82 by %c1_i32_46 dim 1 : vector<16x896xf32>, i32 -> vector<16x896xf32>
    %84 = arith.truncf %83 : vector<16x896xf32> to vector<16x896xbf16>
    %c192 = arith.constant 192 : index
    %c0_47 = arith.constant 0 : index
    %85 = vector.load %arg14[%c192, %c0_47] : memref<432x896xbf16, #tpu.memory_space<vmem>>, vector<16x896xbf16>
    tpu.vector_store %arg14[%c192, %c0_47], %84 {strides = array<i32>} : memref<432x896xbf16, #tpu.memory_space<vmem>>, vector<16x896xbf16>,
    %86 = arith.truncf %82 : vector<16x896xf32> to vector<16x896xbf16>
    %c208 = arith.constant 208 : index
    %c0_48 = arith.constant 0 : index
    %87 = vector.load %arg14[%c208, %c0_48] : memref<432x896xbf16, #tpu.memory_space<vmem>>, vector<16x896xbf16>
    tpu.vector_store %arg14[%c208, %c0_48], %86 {strides = array<i32>} : memref<432x896xbf16, #tpu.memory_space<vmem>>, vector<16x896xbf16>,
    %c895_i32_49 = arith.constant 895 : i32
    %88 = tpu.dynamic_rotate %82 by %c895_i32_49 dim 1 : vector<16x896xf32>, i32 -> vector<16x896xf32>
    %89 = arith.truncf %88 : vector<16x896xf32> to vector<16x896xbf16>
    %c224 = arith.constant 224 : index
    %c0_50 = arith.constant 0 : index
    %90 = vector.load %arg14[%c224, %c0_50] : memref<432x896xbf16, #tpu.memory_space<vmem>>, vector<16x896xbf16>
    tpu.vector_store %arg14[%c224, %c0_50], %89 {strides = array<i32>} : memref<432x896xbf16, #tpu.memory_space<vmem>>, vector<16x896xbf16>,
    %c0_51 = arith.constant 0 : index
    %c138 = arith.constant 138 : index
    %91 = vector.load %arg12[%c0_51, %c138] : memref<16x1152xf32, #tpu.memory_space<vmem>>, vector<16x896xf32>
    %c1_i32_52 = arith.constant 1 : i32
    %92 = tpu.dynamic_rotate %91 by %c1_i32_52 dim 1 : vector<16x896xf32>, i32 -> vector<16x896xf32>
    %93 = arith.truncf %92 : vector<16x896xf32> to vector<16x896xbf16>
    %c240 = arith.constant 240 : index
    %c0_53 = arith.constant 0 : index
    %94 = vector.load %arg14[%c240, %c0_53] : memref<432x896xbf16, #tpu.memory_space<vmem>>, vector<16x896xbf16>
    tpu.vector_store %arg14[%c240, %c0_53], %93 {strides = array<i32>} : memref<432x896xbf16, #tpu.memory_space<vmem>>, vector<16x896xbf16>,
    %95 = arith.truncf %91 : vector<16x896xf32> to vector<16x896xbf16>
    %c256 = arith.constant 256 : index
    %c0_54 = arith.constant 0 : index
    %96 = vector.load %arg14[%c256, %c0_54] : memref<432x896xbf16, #tpu.memory_space<vmem>>, vector<16x896xbf16>
    tpu.vector_store %arg14[%c256, %c0_54], %95 {strides = array<i32>} : memref<432x896xbf16, #tpu.memory_space<vmem>>, vector<16x896xbf16>,
    %c895_i32_55 = arith.constant 895 : i32
    %97 = tpu.dynamic_rotate %91 by %c895_i32_55 dim 1 : vector<16x896xf32>, i32 -> vector<16x896xf32>
    %98 = arith.truncf %97 : vector<16x896xf32> to vector<16x896xbf16>
    %c272 = arith.constant 272 : index
    %c0_56 = arith.constant 0 : index
    %99 = vector.load %arg14[%c272, %c0_56] : memref<432x896xbf16, #tpu.memory_space<vmem>>, vector<16x896xbf16>
    tpu.vector_store %arg14[%c272, %c0_56], %98 {strides = array<i32>} : memref<432x896xbf16, #tpu.memory_space<vmem>>, vector<16x896xbf16>,
    %c0_57 = arith.constant 0 : index
    %c218 = arith.constant 218 : index
    %100 = vector.load %arg12[%c0_57, %c218] : memref<16x1152xf32, #tpu.memory_space<vmem>>, vector<16x896xf32>
    %c1_i32_58 = arith.constant 1 : i32
    %101 = tpu.dynamic_rotate %100 by %c1_i32_58 dim 1 : vector<16x896xf32>, i32 -> vector<16x896xf32>
    %102 = arith.truncf %101 : vector<16x896xf32> to vector<16x896xbf16>
    %c288 = arith.constant 288 : index
    %c0_59 = arith.constant 0 : index
    %103 = vector.load %arg14[%c288, %c0_59] : memref<432x896xbf16, #tpu.memory_space<vmem>>, vector<16x896xbf16>
    tpu.vector_store %arg14[%c288, %c0_59], %102 {strides = array<i32>} : memref<432x896xbf16, #tpu.memory_space<vmem>>, vector<16x896xbf16>,
    %104 = arith.truncf %100 : vector<16x896xf32> to vector<16x896xbf16>
    %c304 = arith.constant 304 : index
    %c0_60 = arith.constant 0 : index
    %105 = vector.load %arg14[%c304, %c0_60] : memref<432x896xbf16, #tpu.memory_space<vmem>>, vector<16x896xbf16>
    tpu.vector_store %arg14[%c304, %c0_60], %104 {strides = array<i32>} : memref<432x896xbf16, #tpu.memory_space<vmem>>, vector<16x896xbf16>,
    %c895_i32_61 = arith.constant 895 : i32
    %106 = tpu.dynamic_rotate %100 by %c895_i32_61 dim 1 : vector<16x896xf32>, i32 -> vector<16x896xf32>
    %107 = arith.truncf %106 : vector<16x896xf32> to vector<16x896xbf16>
    %c320 = arith.constant 320 : index
    %c0_62 = arith.constant 0 : index
    %108 = vector.load %arg14[%c320, %c0_62] : memref<432x896xbf16, #tpu.memory_space<vmem>>, vector<16x896xbf16>
    tpu.vector_store %arg14[%c320, %c0_62], %107 {strides = array<i32>} : memref<432x896xbf16, #tpu.memory_space<vmem>>, vector<16x896xbf16>,
    %c0_63 = arith.constant 0 : index
    %c228 = arith.constant 228 : index
    %109 = vector.load %arg12[%c0_63, %c228] : memref<16x1152xf32, #tpu.memory_space<vmem>>, vector<16x896xf32>
    %c1_i32_64 = arith.constant 1 : i32
    %110 = tpu.dynamic_rotate %109 by %c1_i32_64 dim 1 : vector<16x896xf32>, i32 -> vector<16x896xf32>
    %111 = arith.truncf %110 : vector<16x896xf32> to vector<16x896xbf16>
    %c336 = arith.constant 336 : index
    %c0_65 = arith.constant 0 : index
    %112 = vector.load %arg14[%c336, %c0_65] : memref<432x896xbf16, #tpu.memory_space<vmem>>, vector<16x896xbf16>
    tpu.vector_store %arg14[%c336, %c0_65], %111 {strides = array<i32>} : memref<432x896xbf16, #tpu.memory_space<vmem>>, vector<16x896xbf16>,
    %113 = arith.truncf %109 : vector<16x896xf32> to vector<16x896xbf16>
    %c352 = arith.constant 352 : index
    %c0_66 = arith.constant 0 : index
    %114 = vector.load %arg14[%c352, %c0_66] : memref<432x896xbf16, #tpu.memory_space<vmem>>, vector<16x896xbf16>
    tpu.vector_store %arg14[%c352, %c0_66], %113 {strides = array<i32>} : memref<432x896xbf16, #tpu.memory_space<vmem>>, vector<16x896xbf16>,
    %c895_i32_67 = arith.constant 895 : i32
    %115 = tpu.dynamic_rotate %109 by %c895_i32_67 dim 1 : vector<16x896xf32>, i32 -> vector<16x896xf32>
    %116 = arith.truncf %115 : vector<16x896xf32> to vector<16x896xbf16>
    %c368 = arith.constant 368 : index
    %c0_68 = arith.constant 0 : index
    %117 = vector.load %arg14[%c368, %c0_68] : memref<432x896xbf16, #tpu.memory_space<vmem>>, vector<16x896xbf16>
    tpu.vector_store %arg14[%c368, %c0_68], %116 {strides = array<i32>} : memref<432x896xbf16, #tpu.memory_space<vmem>>, vector<16x896xbf16>,
    %c0_69 = arith.constant 0 : index
    %c238 = arith.constant 238 : index
    %118 = vector.load %arg12[%c0_69, %c238] : memref<16x1152xf32, #tpu.memory_space<vmem>>, vector<16x896xf32>
    %c1_i32_70 = arith.constant 1 : i32
    %119 = tpu.dynamic_rotate %118 by %c1_i32_70 dim 1 : vector<16x896xf32>, i32 -> vector<16x896xf32>
    %120 = arith.truncf %119 : vector<16x896xf32> to vector<16x896xbf16>
    %c384 = arith.constant 384 : index
    %c0_71 = arith.constant 0 : index
    %121 = vector.load %arg14[%c384, %c0_71] : memref<432x896xbf16, #tpu.memory_space<vmem>>, vector<16x896xbf16>
    tpu.vector_store %arg14[%c384, %c0_71], %120 {strides = array<i32>} : memref<432x896xbf16, #tpu.memory_space<vmem>>, vector<16x896xbf16>,
    %122 = arith.truncf %118 : vector<16x896xf32> to vector<16x896xbf16>
    %c400 = arith.constant 400 : index
    %c0_72 = arith.constant 0 : index
    %123 = vector.load %arg14[%c400, %c0_72] : memref<432x896xbf16, #tpu.memory_space<vmem>>, vector<16x896xbf16>
    tpu.vector_store %arg14[%c400, %c0_72], %122 {strides = array<i32>} : memref<432x896xbf16, #tpu.memory_space<vmem>>, vector<16x896xbf16>,
    %c895_i32_73 = arith.constant 895 : i32
    %124 = tpu.dynamic_rotate %118 by %c895_i32_73 dim 1 : vector<16x896xf32>, i32 -> vector<16x896xf32>
    %125 = arith.truncf %124 : vector<16x896xf32> to vector<16x896xbf16>
    %c416 = arith.constant 416 : index
    %c0_74 = arith.constant 0 : index
    %126 = vector.load %arg14[%c416, %c0_74] : memref<432x896xbf16, #tpu.memory_space<vmem>>, vector<16x896xbf16>
    tpu.vector_store %arg14[%c416, %c0_74], %125 {strides = array<i32>} : memref<432x896xbf16, #tpu.memory_space<vmem>>, vector<16x896xbf16>,
    %c0_75 = arith.constant 0 : index
    %c0_76 = arith.constant 0 : index
    %127 = vector.load %arg5[%c0_75, %c0_76] : memref<16x432xbf16, #tpu.memory_space<vmem>>, vector<16x432xbf16>
    %c0_77 = arith.constant 0 : index
    %c0_78 = arith.constant 0 : index
    %128 = vector.load %arg14[%c0_77, %c0_78] : memref<432x896xbf16, #tpu.memory_space<vmem>>, vector<432x896xbf16>
    %cst_79 = arith.constant dense<0.000000e+00> : vector<16x896xf32>
    %129 = tpu.matmul %127, %128, %cst_79 {dimension_numbers = #tpu.dot_dimension_numbers<[1], [0], [0], [1], [0, 0, 1, 1], [], []>} : vector<16x432xbf16>, vector<432x896xbf16>, vector<16x896xf32> -> vector<16x896xf32>
    %c0_80 = arith.constant 0 : index
    %c0_81 = arith.constant 0 : index
    %130 = vector.load %arg6[%c0_80, %c0_81] : memref<16x1xf32, #tpu.memory_space<vmem>>, vector<16x1xf32>
    %131 = vector.broadcast %130 : vector<16x1xf32> to vector<16x896xf32>
    %132 = arith.addf %129, %131 : vector<16x896xf32>
    %133 = vector.broadcast %3 : vector<1x896xf32> to vector<16x896xf32>
    %134 = arith.mulf %132, %133 : vector<16x896xf32>
    %135 = vector.shape_cast %134 : vector<16x896xf32> to vector<1x16x896xf32>
    %cst_82 = arith.constant dense<0.000000e+00> : vector<1xf32>
    %136 = vector.multi_reduction <add>, %135, %cst_82 [1, 2] : vector<1x16x896xf32> to vector<1xf32>
    %137 = vector.shape_cast %136 : vector<1xf32> to vector<1x1x1xf32>
    %138 = vector.extract %137[0, 0, 0] : f32 from vector<1x1x1xf32>
    %cst_83 = arith.constant 4.096000e+03 : f32
    %139 = arith.divf %138, %cst_83 : f32
    %140 = arith.mulf %132, %134 : vector<16x896xf32>
    %141 = vector.shape_cast %140 : vector<16x896xf32> to vector<1x16x896xf32>
    %cst_84 = arith.constant dense<0.000000e+00> : vector<1xf32>
    %142 = vector.multi_reduction <add>, %141, %cst_84 [1, 2] : vector<1x16x896xf32> to vector<1xf32>
    %143 = vector.shape_cast %142 : vector<1xf32> to vector<1x1x1xf32>
    %144 = vector.extract %143[0, 0, 0] : f32 from vector<1x1x1xf32>
    %cst_85 = arith.constant 4.096000e+03 : f32
    %145 = arith.divf %144, %cst_85 : f32
    %146 = arith.mulf %139, %139 : f32
    %147 = arith.subf %145, %146 : f32
    %cst_86 = arith.constant 0.000000e+00 : f32
    %148 = arith.maximumf %147, %cst_86 : f32
    %149 = vector.broadcast %139 : f32 to vector<16x896xf32>
    %150 = arith.subf %132, %149 : vector<16x896xf32>
    %cst_87 = arith.constant 9.99999974E-6 : f32
    %151 = arith.addf %148, %cst_87 : f32
    %152 = math.rsqrt %151 : f32
    %153 = vector.broadcast %152 : f32 to vector<16x896xf32>
    %154 = arith.mulf %150, %153 : vector<16x896xf32>
    %c0_88 = arith.constant 0 : index
    %c0_89 = arith.constant 0 : index
    %155 = vector.load %arg7[%c0_88, %c0_89] : memref<16x1xf32, #tpu.memory_space<vmem>>, vector<16x1xf32>
    %156 = vector.broadcast %155 : vector<16x1xf32> to vector<16x896xf32>
    %157 = arith.mulf %154, %156 : vector<16x896xf32>
    %c0_90 = arith.constant 0 : index
    %c0_91 = arith.constant 0 : index
    %158 = vector.load %arg8[%c0_90, %c0_91] : memref<16x1xf32, #tpu.memory_space<vmem>>, vector<16x1xf32>
    %159 = vector.broadcast %158 : vector<16x1xf32> to vector<16x896xf32>
    %160 = arith.addf %157, %159 : vector<16x896xf32>
    %cst_92 = arith.constant 5.000000e-01 : f32
    %161 = vector.broadcast %cst_92 : f32 to vector<16x896xf32>
    %162 = arith.mulf %161, %160 : vector<16x896xf32>
    %cst_93 = arith.constant 4.471500e-02 : f32
    %163 = vector.broadcast %cst_93 : f32 to vector<16x896xf32>
    %164 = arith.mulf %163, %160 : vector<16x896xf32>
    %165 = arith.mulf %164, %160 : vector<16x896xf32>
    %166 = arith.mulf %165, %160 : vector<16x896xf32>
    %167 = arith.addf %160, %166 : vector<16x896xf32>
    %cst_94 = arith.constant 0.797884583 : f32
    %168 = vector.broadcast %cst_94 : f32 to vector<16x896xf32>
    %169 = arith.mulf %168, %167 : vector<16x896xf32>
    %170 = math.tanh %169 : vector<16x896xf32>
    %cst_95 = arith.constant 1.000000e+00 : f32
    %171 = vector.broadcast %cst_95 : f32 to vector<16x896xf32>
    %172 = arith.addf %171, %170 : vector<16x896xf32>
    %173 = arith.mulf %162, %172 : vector<16x896xf32>
    %cst_96 = arith.constant 0.000000e+00 : f32
    %174 = vector.broadcast %cst_96 : f32 to vector<16x128xf32>
    %c0_97 = arith.constant 0 : index
    %c0_98 = arith.constant 0 : index
    %175 = vector.load %arg13[%c0_97, %c0_98] : memref<16x1152xf32, #tpu.memory_space<vmem>>, vector<16x128xf32>
    tpu.vector_store %arg13[%c0_97, %c0_98], %174 {strides = array<i32>} : memref<16x1152xf32, #tpu.memory_space<vmem>>, vector<16x128xf32>,
    %176 = vector.broadcast %3 : vector<1x896xf32> to vector<16x896xf32>
    %177 = arith.mulf %173, %176 : vector<16x896xf32>
    %c0_99 = arith.constant 0 : index
    %c128_100 = arith.constant 128 : index
    %178 = vector.load %arg13[%c0_99, %c128_100] : memref<16x1152xf32, #tpu.memory_space<vmem>>, vector<16x896xf32>
    tpu.vector_store %arg13[%c0_99, %c128_100], %177 {strides = array<i32>} : memref<16x1152xf32, #tpu.memory_space<vmem>>, vector<16x896xf32>,
    %cst_101 = arith.constant 0.000000e+00 : f32
    %179 = vector.broadcast %cst_101 : f32 to vector<16x128xf32>
    %c0_102 = arith.constant 0 : index
    %c1024 = arith.constant 1024 : index
    %180 = vector.load %arg13[%c0_102, %c1024] : memref<16x1152xf32, #tpu.memory_space<vmem>>, vector<16x128xf32>
    tpu.vector_store %arg13[%c0_102, %c1024], %179 {strides = array<i32>} : memref<16x1152xf32, #tpu.memory_space<vmem>>, vector<16x128xf32>,
    %c0_103 = arith.constant 0 : index
    %c18_104 = arith.constant 18 : index
    %181 = vector.load %arg13[%c0_103, %c18_104] : memref<16x1152xf32, #tpu.memory_space<vmem>>, vector<16x896xf32>
    %c1_i32_105 = arith.constant 1 : i32
    %182 = tpu.dynamic_rotate %181 by %c1_i32_105 dim 1 : vector<16x896xf32>, i32 -> vector<16x896xf32>
    %183 = arith.truncf %182 : vector<16x896xf32> to vector<16x896xbf16>
    %c0_106 = arith.constant 0 : index
    %c0_107 = arith.constant 0 : index
    %184 = vector.load %arg15[%c0_106, %c0_107] : memref<432x896xbf16, #tpu.memory_space<vmem>>, vector<16x896xbf16>
    tpu.vector_store %arg15[%c0_106, %c0_107], %183 {strides = array<i32>} : memref<432x896xbf16, #tpu.memory_space<vmem>>, vector<16x896xbf16>,
    %185 = arith.truncf %181 : vector<16x896xf32> to vector<16x896xbf16>
    %c16_108 = arith.constant 16 : index
    %c0_109 = arith.constant 0 : index
    %186 = vector.load %arg15[%c16_108, %c0_109] : memref<432x896xbf16, #tpu.memory_space<vmem>>, vector<16x896xbf16>
    tpu.vector_store %arg15[%c16_108, %c0_109], %185 {strides = array<i32>} : memref<432x896xbf16, #tpu.memory_space<vmem>>, vector<16x896xbf16>,
    %c895_i32_110 = arith.constant 895 : i32
    %187 = tpu.dynamic_rotate %181 by %c895_i32_110 dim 1 : vector<16x896xf32>, i32 -> vector<16x896xf32>
    %188 = arith.truncf %187 : vector<16x896xf32> to vector<16x896xbf16>
    %c32_111 = arith.constant 32 : index
    %c0_112 = arith.constant 0 : index
    %189 = vector.load %arg15[%c32_111, %c0_112] : memref<432x896xbf16, #tpu.memory_space<vmem>>, vector<16x896xbf16>
    tpu.vector_store %arg15[%c32_111, %c0_112], %188 {strides = array<i32>} : memref<432x896xbf16, #tpu.memory_space<vmem>>, vector<16x896xbf16>,
    %c0_113 = arith.constant 0 : index
    %c28_114 = arith.constant 28 : index
    %190 = vector.load %arg13[%c0_113, %c28_114] : memref<16x1152xf32, #tpu.memory_space<vmem>>, vector<16x896xf32>
    %c1_i32_115 = arith.constant 1 : i32
    %191 = tpu.dynamic_rotate %190 by %c1_i32_115 dim 1 : vector<16x896xf32>, i32 -> vector<16x896xf32>
    %192 = arith.truncf %191 : vector<16x896xf32> to vector<16x896xbf16>
    %c48_116 = arith.constant 48 : index
    %c0_117 = arith.constant 0 : index
    %193 = vector.load %arg15[%c48_116, %c0_117] : memref<432x896xbf16, #tpu.memory_space<vmem>>, vector<16x896xbf16>
    tpu.vector_store %arg15[%c48_116, %c0_117], %192 {strides = array<i32>} : memref<432x896xbf16, #tpu.memory_space<vmem>>, vector<16x896xbf16>,
    %194 = arith.truncf %190 : vector<16x896xf32> to vector<16x896xbf16>
    %c64_118 = arith.constant 64 : index
    %c0_119 = arith.constant 0 : index
    %195 = vector.load %arg15[%c64_118, %c0_119] : memref<432x896xbf16, #tpu.memory_space<vmem>>, vector<16x896xbf16>
    tpu.vector_store %arg15[%c64_118, %c0_119], %194 {strides = array<i32>} : memref<432x896xbf16, #tpu.memory_space<vmem>>, vector<16x896xbf16>,
    %c895_i32_120 = arith.constant 895 : i32
    %196 = tpu.dynamic_rotate %190 by %c895_i32_120 dim 1 : vector<16x896xf32>, i32 -> vector<16x896xf32>
    %197 = arith.truncf %196 : vector<16x896xf32> to vector<16x896xbf16>
    %c80_121 = arith.constant 80 : index
    %c0_122 = arith.constant 0 : index
    %198 = vector.load %arg15[%c80_121, %c0_122] : memref<432x896xbf16, #tpu.memory_space<vmem>>, vector<16x896xbf16>
    tpu.vector_store %arg15[%c80_121, %c0_122], %197 {strides = array<i32>} : memref<432x896xbf16, #tpu.memory_space<vmem>>, vector<16x896xbf16>,
    %c0_123 = arith.constant 0 : index
    %c38_124 = arith.constant 38 : index
    %199 = vector.load %arg13[%c0_123, %c38_124] : memref<16x1152xf32, #tpu.memory_space<vmem>>, vector<16x896xf32>
    %c1_i32_125 = arith.constant 1 : i32
    %200 = tpu.dynamic_rotate %199 by %c1_i32_125 dim 1 : vector<16x896xf32>, i32 -> vector<16x896xf32>
    %201 = arith.truncf %200 : vector<16x896xf32> to vector<16x896xbf16>
    %c96_126 = arith.constant 96 : index
    %c0_127 = arith.constant 0 : index
    %202 = vector.load %arg15[%c96_126, %c0_127] : memref<432x896xbf16, #tpu.memory_space<vmem>>, vector<16x896xbf16>
    tpu.vector_store %arg15[%c96_126, %c0_127], %201 {strides = array<i32>} : memref<432x896xbf16, #tpu.memory_space<vmem>>, vector<16x896xbf16>,
    %203 = arith.truncf %199 : vector<16x896xf32> to vector<16x896xbf16>
    %c112_128 = arith.constant 112 : index
    %c0_129 = arith.constant 0 : index
    %204 = vector.load %arg15[%c112_128, %c0_129] : memref<432x896xbf16, #tpu.memory_space<vmem>>, vector<16x896xbf16>
    tpu.vector_store %arg15[%c112_128, %c0_129], %203 {strides = array<i32>} : memref<432x896xbf16, #tpu.memory_space<vmem>>, vector<16x896xbf16>,
    %c895_i32_130 = arith.constant 895 : i32
    %205 = tpu.dynamic_rotate %199 by %c895_i32_130 dim 1 : vector<16x896xf32>, i32 -> vector<16x896xf32>
    %206 = arith.truncf %205 : vector<16x896xf32> to vector<16x896xbf16>
    %c128_131 = arith.constant 128 : index
    %c0_132 = arith.constant 0 : index
    %207 = vector.load %arg15[%c128_131, %c0_132] : memref<432x896xbf16, #tpu.memory_space<vmem>>, vector<16x896xbf16>
    tpu.vector_store %arg15[%c128_131, %c0_132], %206 {strides = array<i32>} : memref<432x896xbf16, #tpu.memory_space<vmem>>, vector<16x896xbf16>,
    %c0_133 = arith.constant 0 : index
    %c118_134 = arith.constant 118 : index
    %208 = vector.load %arg13[%c0_133, %c118_134] : memref<16x1152xf32, #tpu.memory_space<vmem>>, vector<16x896xf32>
    %c1_i32_135 = arith.constant 1 : i32
    %209 = tpu.dynamic_rotate %208 by %c1_i32_135 dim 1 : vector<16x896xf32>, i32 -> vector<16x896xf32>
    %210 = arith.truncf %209 : vector<16x896xf32> to vector<16x896xbf16>
    %c144_136 = arith.constant 144 : index
    %c0_137 = arith.constant 0 : index
    %211 = vector.load %arg15[%c144_136, %c0_137] : memref<432x896xbf16, #tpu.memory_space<vmem>>, vector<16x896xbf16>
    tpu.vector_store %arg15[%c144_136, %c0_137], %210 {strides = array<i32>} : memref<432x896xbf16, #tpu.memory_space<vmem>>, vector<16x896xbf16>,
    %212 = arith.truncf %208 : vector<16x896xf32> to vector<16x896xbf16>
    %c160_138 = arith.constant 160 : index
    %c0_139 = arith.constant 0 : index
    %213 = vector.load %arg15[%c160_138, %c0_139] : memref<432x896xbf16, #tpu.memory_space<vmem>>, vector<16x896xbf16>
    tpu.vector_store %arg15[%c160_138, %c0_139], %212 {strides = array<i32>} : memref<432x896xbf16, #tpu.memory_space<vmem>>, vector<16x896xbf16>,
    %c895_i32_140 = arith.constant 895 : i32
    %214 = tpu.dynamic_rotate %208 by %c895_i32_140 dim 1 : vector<16x896xf32>, i32 -> vector<16x896xf32>
    %215 = arith.truncf %214 : vector<16x896xf32> to vector<16x896xbf16>
    %c176_141 = arith.constant 176 : index
    %c0_142 = arith.constant 0 : index
    %216 = vector.load %arg15[%c176_141, %c0_142] : memref<432x896xbf16, #tpu.memory_space<vmem>>, vector<16x896xbf16>
    tpu.vector_store %arg15[%c176_141, %c0_142], %215 {strides = array<i32>} : memref<432x896xbf16, #tpu.memory_space<vmem>>, vector<16x896xbf16>,
    %c0_143 = arith.constant 0 : index
    %c128_144 = arith.constant 128 : index
    %217 = vector.load %arg13[%c0_143, %c128_144] : memref<16x1152xf32, #tpu.memory_space<vmem>>, vector<16x896xf32>
    %c1_i32_145 = arith.constant 1 : i32
    %218 = tpu.dynamic_rotate %217 by %c1_i32_145 dim 1 : vector<16x896xf32>, i32 -> vector<16x896xf32>
    %219 = arith.truncf %218 : vector<16x896xf32> to vector<16x896xbf16>
    %c192_146 = arith.constant 192 : index
    %c0_147 = arith.constant 0 : index
    %220 = vector.load %arg15[%c192_146, %c0_147] : memref<432x896xbf16, #tpu.memory_space<vmem>>, vector<16x896xbf16>
    tpu.vector_store %arg15[%c192_146, %c0_147], %219 {strides = array<i32>} : memref<432x896xbf16, #tpu.memory_space<vmem>>, vector<16x896xbf16>,
    %221 = arith.truncf %217 : vector<16x896xf32> to vector<16x896xbf16>
    %c208_148 = arith.constant 208 : index
    %c0_149 = arith.constant 0 : index
    %222 = vector.load %arg15[%c208_148, %c0_149] : memref<432x896xbf16, #tpu.memory_space<vmem>>, vector<16x896xbf16>
    tpu.vector_store %arg15[%c208_148, %c0_149], %221 {strides = array<i32>} : memref<432x896xbf16, #tpu.memory_space<vmem>>, vector<16x896xbf16>,
    %c895_i32_150 = arith.constant 895 : i32
    %223 = tpu.dynamic_rotate %217 by %c895_i32_150 dim 1 : vector<16x896xf32>, i32 -> vector<16x896xf32>
    %224 = arith.truncf %223 : vector<16x896xf32> to vector<16x896xbf16>
    %c224_151 = arith.constant 224 : index
    %c0_152 = arith.constant 0 : index
    %225 = vector.load %arg15[%c224_151, %c0_152] : memref<432x896xbf16, #tpu.memory_space<vmem>>, vector<16x896xbf16>
    tpu.vector_store %arg15[%c224_151, %c0_152], %224 {strides = array<i32>} : memref<432x896xbf16, #tpu.memory_space<vmem>>, vector<16x896xbf16>,
    %c0_153 = arith.constant 0 : index
    %c138_154 = arith.constant 138 : index
    %226 = vector.load %arg13[%c0_153, %c138_154] : memref<16x1152xf32, #tpu.memory_space<vmem>>, vector<16x896xf32>
    %c1_i32_155 = arith.constant 1 : i32
    %227 = tpu.dynamic_rotate %226 by %c1_i32_155 dim 1 : vector<16x896xf32>, i32 -> vector<16x896xf32>
    %228 = arith.truncf %227 : vector<16x896xf32> to vector<16x896xbf16>
    %c240_156 = arith.constant 240 : index
    %c0_157 = arith.constant 0 : index
    %229 = vector.load %arg15[%c240_156, %c0_157] : memref<432x896xbf16, #tpu.memory_space<vmem>>, vector<16x896xbf16>
    tpu.vector_store %arg15[%c240_156, %c0_157], %228 {strides = array<i32>} : memref<432x896xbf16, #tpu.memory_space<vmem>>, vector<16x896xbf16>,
    %230 = arith.truncf %226 : vector<16x896xf32> to vector<16x896xbf16>
    %c256_158 = arith.constant 256 : index
    %c0_159 = arith.constant 0 : index
    %231 = vector.load %arg15[%c256_158, %c0_159] : memref<432x896xbf16, #tpu.memory_space<vmem>>, vector<16x896xbf16>
    tpu.vector_store %arg15[%c256_158, %c0_159], %230 {strides = array<i32>} : memref<432x896xbf16, #tpu.memory_space<vmem>>, vector<16x896xbf16>,
    %c895_i32_160 = arith.constant 895 : i32
    %232 = tpu.dynamic_rotate %226 by %c895_i32_160 dim 1 : vector<16x896xf32>, i32 -> vector<16x896xf32>
    %233 = arith.truncf %232 : vector<16x896xf32> to vector<16x896xbf16>
    %c272_161 = arith.constant 272 : index
    %c0_162 = arith.constant 0 : index
    %234 = vector.load %arg15[%c272_161, %c0_162] : memref<432x896xbf16, #tpu.memory_space<vmem>>, vector<16x896xbf16>
    tpu.vector_store %arg15[%c272_161, %c0_162], %233 {strides = array<i32>} : memref<432x896xbf16, #tpu.memory_space<vmem>>, vector<16x896xbf16>,
    %c0_163 = arith.constant 0 : index
    %c218_164 = arith.constant 218 : index
    %235 = vector.load %arg13[%c0_163, %c218_164] : memref<16x1152xf32, #tpu.memory_space<vmem>>, vector<16x896xf32>
    %c1_i32_165 = arith.constant 1 : i32
    %236 = tpu.dynamic_rotate %235 by %c1_i32_165 dim 1 : vector<16x896xf32>, i32 -> vector<16x896xf32>
    %237 = arith.truncf %236 : vector<16x896xf32> to vector<16x896xbf16>
    %c288_166 = arith.constant 288 : index
    %c0_167 = arith.constant 0 : index
    %238 = vector.load %arg15[%c288_166, %c0_167] : memref<432x896xbf16, #tpu.memory_space<vmem>>, vector<16x896xbf16>
    tpu.vector_store %arg15[%c288_166, %c0_167], %237 {strides = array<i32>} : memref<432x896xbf16, #tpu.memory_space<vmem>>, vector<16x896xbf16>,
    %239 = arith.truncf %235 : vector<16x896xf32> to vector<16x896xbf16>
    %c304_168 = arith.constant 304 : index
    %c0_169 = arith.constant 0 : index
    %240 = vector.load %arg15[%c304_168, %c0_169] : memref<432x896xbf16, #tpu.memory_space<vmem>>, vector<16x896xbf16>
    tpu.vector_store %arg15[%c304_168, %c0_169], %239 {strides = array<i32>} : memref<432x896xbf16, #tpu.memory_space<vmem>>, vector<16x896xbf16>,
    %c895_i32_170 = arith.constant 895 : i32
    %241 = tpu.dynamic_rotate %235 by %c895_i32_170 dim 1 : vector<16x896xf32>, i32 -> vector<16x896xf32>
    %242 = arith.truncf %241 : vector<16x896xf32> to vector<16x896xbf16>
    %c320_171 = arith.constant 320 : index
    %c0_172 = arith.constant 0 : index
    %243 = vector.load %arg15[%c320_171, %c0_172] : memref<432x896xbf16, #tpu.memory_space<vmem>>, vector<16x896xbf16>
    tpu.vector_store %arg15[%c320_171, %c0_172], %242 {strides = array<i32>} : memref<432x896xbf16, #tpu.memory_space<vmem>>, vector<16x896xbf16>,
    %c0_173 = arith.constant 0 : index
    %c228_174 = arith.constant 228 : index
    %244 = vector.load %arg13[%c0_173, %c228_174] : memref<16x1152xf32, #tpu.memory_space<vmem>>, vector<16x896xf32>
    %c1_i32_175 = arith.constant 1 : i32
    %245 = tpu.dynamic_rotate %244 by %c1_i32_175 dim 1 : vector<16x896xf32>, i32 -> vector<16x896xf32>
    %246 = arith.truncf %245 : vector<16x896xf32> to vector<16x896xbf16>
    %c336_176 = arith.constant 336 : index
    %c0_177 = arith.constant 0 : index
    %247 = vector.load %arg15[%c336_176, %c0_177] : memref<432x896xbf16, #tpu.memory_space<vmem>>, vector<16x896xbf16>
    tpu.vector_store %arg15[%c336_176, %c0_177], %246 {strides = array<i32>} : memref<432x896xbf16, #tpu.memory_space<vmem>>, vector<16x896xbf16>,
    %248 = arith.truncf %244 : vector<16x896xf32> to vector<16x896xbf16>
    %c352_178 = arith.constant 352 : index
    %c0_179 = arith.constant 0 : index
    %249 = vector.load %arg15[%c352_178, %c0_179] : memref<432x896xbf16, #tpu.memory_space<vmem>>, vector<16x896xbf16>
    tpu.vector_store %arg15[%c352_178, %c0_179], %248 {strides = array<i32>} : memref<432x896xbf16, #tpu.memory_space<vmem>>, vector<16x896xbf16>,
    %c895_i32_180 = arith.constant 895 : i32
    %250 = tpu.dynamic_rotate %244 by %c895_i32_180 dim 1 : vector<16x896xf32>, i32 -> vector<16x896xf32>
    %251 = arith.truncf %250 : vector<16x896xf32> to vector<16x896xbf16>
    %c368_181 = arith.constant 368 : index
    %c0_182 = arith.constant 0 : index
    %252 = vector.load %arg15[%c368_181, %c0_182] : memref<432x896xbf16, #tpu.memory_space<vmem>>, vector<16x896xbf16>
    tpu.vector_store %arg15[%c368_181, %c0_182], %251 {strides = array<i32>} : memref<432x896xbf16, #tpu.memory_space<vmem>>, vector<16x896xbf16>,
    %c0_183 = arith.constant 0 : index
    %c238_184 = arith.constant 238 : index
    %253 = vector.load %arg13[%c0_183, %c238_184] : memref<16x1152xf32, #tpu.memory_space<vmem>>, vector<16x896xf32>
    %c1_i32_185 = arith.constant 1 : i32
    %254 = tpu.dynamic_rotate %253 by %c1_i32_185 dim 1 : vector<16x896xf32>, i32 -> vector<16x896xf32>
    %255 = arith.truncf %254 : vector<16x896xf32> to vector<16x896xbf16>
    %c384_186 = arith.constant 384 : index
    %c0_187 = arith.constant 0 : index
    %256 = vector.load %arg15[%c384_186, %c0_187] : memref<432x896xbf16, #tpu.memory_space<vmem>>, vector<16x896xbf16>
    tpu.vector_store %arg15[%c384_186, %c0_187], %255 {strides = array<i32>} : memref<432x896xbf16, #tpu.memory_space<vmem>>, vector<16x896xbf16>,
    %257 = arith.truncf %253 : vector<16x896xf32> to vector<16x896xbf16>
    %c400_188 = arith.constant 400 : index
    %c0_189 = arith.constant 0 : index
    %258 = vector.load %arg15[%c400_188, %c0_189] : memref<432x896xbf16, #tpu.memory_space<vmem>>, vector<16x896xbf16>
    tpu.vector_store %arg15[%c400_188, %c0_189], %257 {strides = array<i32>} : memref<432x896xbf16, #tpu.memory_space<vmem>>, vector<16x896xbf16>,
    %c895_i32_190 = arith.constant 895 : i32
    %259 = tpu.dynamic_rotate %253 by %c895_i32_190 dim 1 : vector<16x896xf32>, i32 -> vector<16x896xf32>
    %260 = arith.truncf %259 : vector<16x896xf32> to vector<16x896xbf16>
    %c416_191 = arith.constant 416 : index
    %c0_192 = arith.constant 0 : index
    %261 = vector.load %arg15[%c416_191, %c0_192] : memref<432x896xbf16, #tpu.memory_space<vmem>>, vector<16x896xbf16>
    tpu.vector_store %arg15[%c416_191, %c0_192], %260 {strides = array<i32>} : memref<432x896xbf16, #tpu.memory_space<vmem>>, vector<16x896xbf16>,
    %c0_193 = arith.constant 0 : index
    %c0_194 = arith.constant 0 : index
    %262 = vector.load %arg9[%c0_193, %c0_194] : memref<8x432xbf16, #tpu.memory_space<vmem>>, vector<8x432xbf16>
    %c0_195 = arith.constant 0 : index
    %c0_196 = arith.constant 0 : index
    %263 = vector.load %arg15[%c0_195, %c0_196] : memref<432x896xbf16, #tpu.memory_space<vmem>>, vector<432x896xbf16>
    %cst_197 = arith.constant dense<0.000000e+00> : vector<8x896xf32>
    %264 = tpu.matmul %262, %263, %cst_197 {dimension_numbers = #tpu.dot_dimension_numbers<[1], [0], [0], [1], [0, 0, 1, 1], [], []>} : vector<8x432xbf16>, vector<432x896xbf16>, vector<8x896xf32> -> vector<8x896xf32>
    %c0_198 = arith.constant 0 : index
    %c0_199 = arith.constant 0 : index
    %265 = vector.load %arg10[%c0_198, %c0_199] : memref<8x1xf32, #tpu.memory_space<vmem>>, vector<8x1xf32>
    %266 = vector.broadcast %265 : vector<8x1xf32> to vector<8x896xf32>
    %267 = arith.addf %264, %266 : vector<8x896xf32>
    %c0_200 = arith.constant 0 : index
    %c0_201 = arith.constant 0 : index
    %c0_202 = arith.constant 0 : index
    %268 = vector.load %arg11[%c0_200, %c0_201, %c0_202] : memref<1x8x896xf32, #tpu.memory_space<vmem>>, vector<1x8x896xf32>
    %269 = vector.shape_cast %268 : vector<1x8x896xf32> to vector<8x896xf32>
    %270 = vector.shape_cast %267 : vector<8x896xf32> to vector<1x8x896xf32>
    tpu.vector_store %arg11[%c0_200, %c0_201, %c0_202], %270 {strides = array<i32>} : memref<1x8x896xf32, #tpu.memory_space<vmem>>, vector<1x8x896xf32>,
    return
  }
  func.func @transform_0(%arg0: i32) -> (i32, i32, i32) {
    %c0_i32 = arith.constant 0 : i32
    %c0_i32_0 = arith.constant 0 : i32
    %c0_i32_1 = arith.constant 0 : i32
    return %arg0, %c0_i32, %c0_i32_0 : i32, i32, i32
  }
  func.func @transform_1(%arg0: i32) -> (i32, i32) {
    %c0_i32 = arith.constant 0 : i32
    %c0_i32_0 = arith.constant 0 : i32
    %c0_i32_1 = arith.constant 0 : i32
    return %c0_i32, %c0_i32_0 : i32, i32
  }
  func.func @transform_2(%arg0: i32) -> (i32, i32) {
    %c0_i32 = arith.constant 0 : i32
    %c0_i32_0 = arith.constant 0 : i32
    %c0_i32_1 = arith.constant 0 : i32
    return %c0_i32, %c0_i32_0 : i32, i32
  }
  func.func @transform_3(%arg0: i32) -> (i32, i32) {
    %c0_i32 = arith.constant 0 : i32
    %c0_i32_0 = arith.constant 0 : i32
    %c0_i32_1 = arith.constant 0 : i32
    return %c0_i32, %c0_i32_0 : i32, i32
  }
  func.func @transform_4(%arg0: i32) -> (i32, i32) {
    %c0_i32 = arith.constant 0 : i32
    %c0_i32_0 = arith.constant 0 : i32
    %c0_i32_1 = arith.constant 0 : i32
    return %c0_i32, %c0_i32_0 : i32, i32
  }
  func.func @transform_5(%arg0: i32) -> (i32, i32) {
    %c0_i32 = arith.constant 0 : i32
    %c0_i32_0 = arith.constant 0 : i32
    %c0_i32_1 = arith.constant 0 : i32
    return %c0_i32, %c0_i32_0 : i32, i32
  }
  func.func @transform_6(%arg0: i32) -> (i32, i32) {
    %c0_i32 = arith.constant 0 : i32
    %c0_i32_0 = arith.constant 0 : i32
    %c0_i32_1 = arith.constant 0 : i32
    return %c0_i32, %c0_i32_0 : i32, i32
  }
  func.func @transform_7(%arg0: i32) -> (i32, i32) {
    %c0_i32 = arith.constant 0 : i32
    %c0_i32_0 = arith.constant 0 : i32
    %c0_i32_1 = arith.constant 0 : i32
    return %c0_i32, %c0_i32_0 : i32, i32
  }
  func.func @transform_8(%arg0: i32) -> (i32, i32) {
    %c0_i32 = arith.constant 0 : i32
    %c0_i32_0 = arith.constant 0 : i32
    %c0_i32_1 = arith.constant 0 : i32
    return %c0_i32, %c0_i32_0 : i32, i32
  }
  func.func @transform_9(%arg0: i32) -> (i32, i32) {
    %c0_i32 = arith.constant 0 : i32
    %c0_i32_0 = arith.constant 0 : i32
    %c0_i32_1 = arith.constant 0 : i32
    return %c0_i32, %c0_i32_0 : i32, i32
  }
  func.func @transform_10(%arg0: i32) -> (i32, i32, i32) {
    %c0_i32 = arith.constant 0 : i32
    %c0_i32_0 = arith.constant 0 : i32
    %c0_i32_1 = arith.constant 0 : i32
    return %arg0, %c0_i32, %c0_i32_0 : i32, i32, i32
  }
}

</mosaic_0001>

<llo_original>
// kernel: tpu_custom_call.1
$region0: #{tpu_custom_call.1}
  #allocation0 [shape = 'u32[]', space=smem, size = 0x4, offset = 0x4, fixed_abs, tag = 'smem constant byte address 0x4 - core index']
  #allocation1 [shape = 'u32[144,128]{1,0:T(1,128)}', space=vmem, size = 0x12000, scoped, tag = 'internal scratch']
  #allocation2 [shape = 'f32[16,1152]{1,0:T(8,128)}', space=vmem, size = 0x12000, scoped, tag = 'scratch operand']
  #allocation3 [shape = 'f32[16,1152]{1,0:T(8,128)}', space=vmem, size = 0x12000, scoped, tag = 'scratch operand']
  #allocation4 [shape = 'bf16[432,896]{1,0:T(8,128)(2,1)}', space=vmem, size = 0xbd000, scoped, tag = 'scratch operand']
  #allocation5 [shape = 'bf16[432,896]{1,0:T(8,128)(2,1)}', space=vmem, size = 0xbd000, scoped, tag = 'scratch operand']
  %s0 = inlined_call_operand.hbm [shape: f32[2,16,1152], index: 0, kind: input, shape index: {}]
  %s1 = inlined_call_operand.vmem [shape: f32[1,1152], index: 1, kind: input, shape index: {}]
  %s2 = inlined_call_operand.vmem [shape: f32[16,1], index: 2, kind: input, shape index: {}]
  %s3 = inlined_call_operand.vmem [shape: f32[16,1], index: 3, kind: input, shape index: {}]
  %s4 = inlined_call_operand.vmem [shape: bf16[16,432], index: 4, kind: input, shape index: {}]
  %s5 = inlined_call_operand.vmem [shape: f32[16,1], index: 5, kind: input, shape index: {}]
  %s6 = inlined_call_operand.vmem [shape: f32[16,1], index: 6, kind: input, shape index: {}]
  %s7 = inlined_call_operand.vmem [shape: f32[16,1], index: 7, kind: input, shape index: {}]
  %s8 = inlined_call_operand.vmem [shape: bf16[8,432], index: 8, kind: input, shape index: {}]
  %s9 = inlined_call_operand.vmem [shape: f32[8,1], index: 9, kind: input, shape index: {}]
  %s10 = inlined_call_operand.hbm [shape: f32[2,8,896], index: 10, kind: output, shape index: {}]
  %s11 = sld [smem:[#allocation0]]
  $region77: #{tpu_custom_call.1} parent=0
    _
  %s13 = ssub.s32 1, %s11
  %s14 = scalar_select 0, %s13, %s11
  $region1: #{tpu_custom_call.1} parent=0
    #allocation6 [shape = 'u8[147456]{0}', space=vmem, size = 0x24000, scoped, tag = 'input window, operand 0']
    #allocation7 [shape = 's32[2]{0}', space=sflag, size = 0x8, scoped, tag = 'scoped memory for tpu_custom_call.1']
    #allocation8 [shape = 's32[2]{0}', space=sflag, size = 0x8, scoped, tag = 'scoped memory for tpu_custom_call.1']
    #allocation9 [shape = 'u8[57344]{0}', space=vmem, size = 0xe000, scoped, tag = 'output window, operand 0']
    %15 = vsyncpa [#allocation7], 0
    %s16 = scalar_lea.sflag [#allocation7], 1
    %17 = vsyncpa %s16, 0
    %18 = vsyncpa [#allocation8], 0
    %s19 = scalar_lea.sflag [#allocation8], 1
    %20 = vsyncpa %s19, 0
    loop: start=0, step=1, limit=4
    $region2: #{tpu_custom_call.1} parent=1 // loop_pre_header
      _
    $region3: #{tpu_custom_call.1} parent=1 // loop_header
      %s22 = sphi 0, %s26
      %p23 = scmp.ge.s32.totalorder %s22, 4
      %s32 = sphi 0, %s34
      %s35 = sphi 0, %s32
      %s36 = sphi 0, %s35
      %s52 = sphi 0, %s36
      %s56 = sphi 0, %s56
      %s58 = sphi 0, %s56
      %s59 = sphi 0, %s58
      %s73 = sphi 0, %s59
      %s77 = sphi 0, %s77
      %s79 = sphi 0, %s77
      %s80 = sphi 0, %s79
      %s94 = sphi 0, %s80
      %s98 = sphi 0, %s98
      %s100 = sphi 0, %s98
      %s101 = sphi 0, %s100
      %s115 = sphi 0, %s101
      %s119 = sphi 0, %s119
      %s121 = sphi 0, %s119
      %s122 = sphi 0, %s121
      %s136 = sphi 0, %s122
      %s140 = sphi 0, %s140
      %s142 = sphi 0, %s140
      %s143 = sphi 0, %s142
      %s157 = sphi 0, %s143
      %s161 = sphi 0, %s161
      %s163 = sphi 0, %s161
      %s164 = sphi 0, %s163
      %s178 = sphi 0, %s164
      %s182 = sphi 0, %s182
      %s184 = sphi 0, %s182
      %s185 = sphi 0, %s184
      %s199 = sphi 0, %s185
      %s203 = sphi 0, %s203
      %s205 = sphi 0, %s203
      %s206 = sphi 0, %s205
      %s220 = sphi 0, %s206
      %s224 = sphi 0, %s224
      %s226 = sphi 0, %s224
      %s227 = sphi 0, %s226
      %s241 = sphi 0, %s227
      %s247 = sphi 0, %s249
      %s250 = sphi 0, %s247
      %s251 = sphi 0, %s250
      %s267 = sphi 0, %s251
    $region4: #{tpu_custom_call.1} parent=1 // loop_header_branch
      %25 = sbr.rel (%p23) target = $region8
    $region5: #{tpu_custom_call.1} parent=1 // loop_body
      %s27 = ssub.s32 %s22, 1
      %s28 = ssub.s32 %s22, 2
      %s29 = sadd.s32 %s22, 1
      %s30 = ssub.s32 %s22, %s29
      %p31 = scmp.eq.s32.totalorder %s30, 0
      %s33 = sadd.s32 %s32, 1
      %s34 = scalar_select %p31, %s32, %s33
      %p37 = pneg %p31
      %p38 = scmp.eq.s32.totalorder %s22, 1
      %p39 = por %p37, %p38
      %p40 = scmp.ne.s32.totalorder %s32, %s35
      %p41 = scmp.eq.s32.totalorder %s22, 0
      %p42 = por %p40, %p41
      %p43 = scmp.ne.s32.totalorder %s32, %s35
      %p44 = scmp.eq.s32.totalorder %s27, 1
      %p45 = por %p43, %p44
      %p46 = scmp.ne.s32.totalorder %s35, %s36
      %p47 = scmp.eq.s32.totalorder %s27, 0
      %p48 = por %p46, %p47
      %p49 = scmp.ne.s32.totalorder %s35, %s36
      %p50 = scmp.eq.s32.totalorder %s28, 1
      %p51 = por %p49, %p50
      %p53 = scmp.ne.s32.totalorder %s36, %s52
      %p54 = scmp.eq.s32.totalorder %s28, 0
      %p55 = por %p53, %p54
      %s57 = sadd.s32 %s56, 1
      %p60 = scmp.eq.s32.totalorder %s22, 1
      %p61 = scmp.ne.s32.totalorder %s56, %s58
      %p62 = scmp.eq.s32.totalorder %s22, 0
      %p63 = por %p61, %p62
      %p64 = scmp.ne.s32.totalorder %s56, %s58
      %p65 = scmp.eq.s32.totalorder %s27, 1
      %p66 = por %p64, %p65
      %p67 = scmp.ne.s32.totalorder %s58, %s59
      %p68 = scmp.eq.s32.totalorder %s27, 0
      %p69 = por %p67, %p68
      %p70 = scmp.ne.s32.totalorder %s58, %s59
      %p71 = scmp.eq.s32.totalorder %s28, 1
      %p72 = por %p70, %p71
      %p74 = scmp.ne.s32.totalorder %s59, %s73
      %p75 = scmp.eq.s32.totalorder %s28, 0
      %p76 = por %p74, %p75
      %s78 = sadd.s32 %s77, 1
      %p81 = scmp.eq.s32.totalorder %s22, 1
      %p82 = scmp.ne.s32.totalorder %s77, %s79
      %p83 = scmp.eq.s32.totalorder %s22, 0
      %p84 = por %p82, %p83
      %p85 = scmp.ne.s32.totalorder %s77, %s79
      %p86 = scmp.eq.s32.totalorder %s27, 1
      %p87 = por %p85, %p86
      %p88 = scmp.ne.s32.totalorder %s79, %s80
      %p89 = scmp.eq.s32.totalorder %s27, 0
      %p90 = por %p88, %p89
      %p91 = scmp.ne.s32.totalorder %s79, %s80
      %p92 = scmp.eq.s32.totalorder %s28, 1
      %p93 = por %p91, %p92
      %p95 = scmp.ne.s32.totalorder %s80, %s94
      %p96 = scmp.eq.s32.totalorder %s28, 0
      %p97 = por %p95, %p96
      %s99 = sadd.s32 %s98, 1
      %p102 = scmp.eq.s32.totalorder %s22, 1
      %p103 = scmp.ne.s32.totalorder %s98, %s100
      %p104 = scmp.eq.s32.totalorder %s22, 0
      %p105 = por %p103, %p104
      %p106 = scmp.ne.s32.totalorder %s98, %s100
      %p107 = scmp.eq.s32.totalorder %s27, 1
      %p108 = por %p106, %p107
      %p109 = scmp.ne.s32.totalorder %s100, %s101
      %p110 = scmp.eq.s32.totalorder %s27, 0
      %p111 = por %p109, %p110
      %p112 = scmp.ne.s32.totalorder %s100, %s101
      %p113 = scmp.eq.s32.totalorder %s28, 1
      %p114 = por %p112, %p113
      %p116 = scmp.ne.s32.totalorder %s101, %s115
      %p117 = scmp.eq.s32.totalorder %s28, 0
      %p118 = por %p116, %p117
      %s120 = sadd.s32 %s119, 1
      %p123 = scmp.eq.s32.totalorder %s22, 1
      %p124 = scmp.ne.s32.totalorder %s119, %s121
      %p125 = scmp.eq.s32.totalorder %s22, 0
      %p126 = por %p124, %p125
      %p127 = scmp.ne.s32.totalorder %s119, %s121
      %p128 = scmp.eq.s32.totalorder %s27, 1
      %p129 = por %p127, %p128
      %p130 = scmp.ne.s32.totalorder %s121, %s122
      %p131 = scmp.eq.s32.totalorder %s27, 0
      %p132 = por %p130, %p131
      %p133 = scmp.ne.s32.totalorder %s121, %s122
      %p134 = scmp.eq.s32.totalorder %s28, 1
      %p135 = por %p133, %p134
      %p137 = scmp.ne.s32.totalorder %s122, %s136
      %p138 = scmp.eq.s32.totalorder %s28, 0
      %p139 = por %p137, %p138
      %s141 = sadd.s32 %s140, 1
      %p144 = scmp.eq.s32.totalorder %s22, 1
      %p145 = scmp.ne.s32.totalorder %s140, %s142
      %p146 = scmp.eq.s32.totalorder %s22, 0
      %p147 = por %p145, %p146
      %p148 = scmp.ne.s32.totalorder %s140, %s142
      %p149 = scmp.eq.s32.totalorder %s27, 1
      %p150 = por %p148, %p149
      %p151 = scmp.ne.s32.totalorder %s142, %s143
      %p152 = scmp.eq.s32.totalorder %s27, 0
      %p153 = por %p151, %p152
      %p154 = scmp.ne.s32.totalorder %s142, %s143
      %p155 = scmp.eq.s32.totalorder %s28, 1
      %p156 = por %p154, %p155
      %p158 = scmp.ne.s32.totalorder %s143, %s157
      %p159 = scmp.eq.s32.totalorder %s28, 0
      %p160 = por %p158, %p159
      %s162 = sadd.s32 %s161, 1
      %p165 = scmp.eq.s32.totalorder %s22, 1
      %p166 = scmp.ne.s32.totalorder %s161, %s163
      %p167 = scmp.eq.s32.totalorder %s22, 0
      %p168 = por %p166, %p167
      %p169 = scmp.ne.s32.totalorder %s161, %s163
      %p170 = scmp.eq.s32.totalorder %s27, 1
      %p171 = por %p169, %p170
      %p172 = scmp.ne.s32.totalorder %s163, %s164
      %p173 = scmp.eq.s32.totalorder %s27, 0
      %p174 = por %p172, %p173
      %p175 = scmp.ne.s32.totalorder %s163, %s164
      %p176 = scmp.eq.s32.totalorder %s28, 1
      %p177 = por %p175, %p176
      %p179 = scmp.ne.s32.totalorder %s164, %s178
      %p180 = scmp.eq.s32.totalorder %s28, 0
      %p181 = por %p179, %p180
      %s183 = sadd.s32 %s182, 1
      %p186 = scmp.eq.s32.totalorder %s22, 1
      %p187 = scmp.ne.s32.totalorder %s182, %s184
      %p188 = scmp.eq.s32.totalorder %s22, 0
      %p189 = por %p187, %p188
      %p190 = scmp.ne.s32.totalorder %s182, %s184
      %p191 = scmp.eq.s32.totalorder %s27, 1
      %p192 = por %p190, %p191
      %p193 = scmp.ne.s32.totalorder %s184, %s185
      %p194 = scmp.eq.s32.totalorder %s27, 0
      %p195 = por %p193, %p194
      %p196 = scmp.ne.s32.totalorder %s184, %s185
      %p197 = scmp.eq.s32.totalorder %s28, 1
      %p198 = por %p196, %p197
      %p200 = scmp.ne.s32.totalorder %s185, %s199
      %p201 = scmp.eq.s32.totalorder %s28, 0
      %p202 = por %p200, %p201
      %s204 = sadd.s32 %s203, 1
      %p207 = scmp.eq.s32.totalorder %s22, 1
      %p208 = scmp.ne.s32.totalorder %s203, %s205
      %p209 = scmp.eq.s32.totalorder %s22, 0
      %p210 = por %p208, %p209
      %p211 = scmp.ne.s32.totalorder %s203, %s205
      %p212 = scmp.eq.s32.totalorder %s27, 1
      %p213 = por %p211, %p212
      %p214 = scmp.ne.s32.totalorder %s205, %s206
      %p215 = scmp.eq.s32.totalorder %s27, 0
      %p216 = por %p214, %p215
      %p217 = scmp.ne.s32.totalorder %s205, %s206
      %p218 = scmp.eq.s32.totalorder %s28, 1
      %p219 = por %p217, %p218
      %p221 = scmp.ne.s32.totalorder %s206, %s220
      %p222 = scmp.eq.s32.totalorder %s28, 0
      %p223 = por %p221, %p222
      %s225 = sadd.s32 %s224, 1
      %p228 = scmp.eq.s32.totalorder %s22, 1
      %p229 = scmp.ne.s32.totalorder %s224, %s226
      %p230 = scmp.eq.s32.totalorder %s22, 0
      %p231 = por %p229, %p230
      %p232 = scmp.ne.s32.totalorder %s224, %s226
      %p233 = scmp.eq.s32.totalorder %s27, 1
      %p234 = por %p232, %p233
      %p235 = scmp.ne.s32.totalorder %s226, %s227
      %p236 = scmp.eq.s32.totalorder %s27, 0
      %p237 = por %p235, %p236
      %p238 = scmp.ne.s32.totalorder %s226, %s227
      %p239 = scmp.eq.s32.totalorder %s28, 1
      %p240 = por %p238, %p239
      %p242 = scmp.ne.s32.totalorder %s227, %s241
      %p243 = scmp.eq.s32.totalorder %s28, 0
      %p244 = por %p242, %p243
      %s245 = ssub.s32 %s22, %s29
      %p246 = scmp.eq.s32.totalorder %s245, 0
      %s248 = sadd.s32 %s247, 1
      %s249 = scalar_select %p246, %s247, %s248
      %p252 = pneg %p246
      %p253 = scmp.eq.s32.totalorder %s22, 1
      %p254 = por %p252, %p253
      %p255 = scmp.ne.s32.totalorder %s247, %s250
      %p256 = scmp.eq.s32.totalorder %s22, 0
      %p257 = por %p255, %p256
      %p258 = scmp.ne.s32.totalorder %s247, %s250
      %p259 = scmp.eq.s32.totalorder %s27, 1
      %p260 = por %p258, %p259
      %p261 = scmp.ne.s32.totalorder %s250, %s251
      %p262 = scmp.eq.s32.totalorder %s27, 0
      %p263 = por %p261, %p262
      %p264 = scmp.ne.s32.totalorder %s250, %s251
      %p265 = scmp.eq.s32.totalorder %s28, 1
      %p266 = por %p264, %p265
      %p268 = scmp.ne.s32.totalorder %s251, %s267
      %p269 = scmp.eq.s32.totalorder %s28, 0
      %p270 = por %p268, %p269
      %p271 = scmp.le.s32.totalorder 1, %s22
      %p272 = scmp.lt.s32.totalorder %s22, 3
      %p273 = pnand %p271, %p272
      %p274 = pneg %p273
      // Predicated region
      $region9: #{tpu_custom_call.1} parent=5 // pred_check
        _
      $region10: #{tpu_custom_call.1} parent=5 // pred_check_branch
        %276 = sbr.rel (%p273) target = $region12
      $region11: #{tpu_custom_call.1} parent=5 // pred_region
        %s277 = ssub.s32 %s22, 1
        // Predicated region
        $region13: #{tpu_custom_call.1} parent=11 // pred_check
          %p278 = pneg %p69
        $region14: #{tpu_custom_call.1} parent=11 // pred_check_branch
          %280 = sbr.rel (%p278) target = $region16
        $region15: #{tpu_custom_call.1} parent=11 // pred_region
          _
        $region16: #{tpu_custom_call.1} parent=11 // pred_fallthru
          _
        // Predicated region
        $region17: #{tpu_custom_call.1} parent=11 // pred_check
          %p281 = pneg %p90
        $region18: #{tpu_custom_call.1} parent=11 // pred_check_branch
          %283 = sbr.rel (%p281) target = $region20
        $region19: #{tpu_custom_call.1} parent=11 // pred_region
          _
        $region20: #{tpu_custom_call.1} parent=11 // pred_fallthru
          _
        // Predicated region
        $region21: #{tpu_custom_call.1} parent=11 // pred_check
          %p284 = pneg %p111
        $region22: #{tpu_custom_call.1} parent=11 // pred_check_branch
          %286 = sbr.rel (%p284) target = $region24
        $region23: #{tpu_custom_call.1} parent=11 // pred_region
          _
        $region24: #{tpu_custom_call.1} parent=11 // pred_fallthru
          _
        // Predicated region
        $region25: #{tpu_custom_call.1} parent=11 // pred_check
          %p287 = pneg %p132
        $region26: #{tpu_custom_call.1} parent=11 // pred_check_branch
          %289 = sbr.rel (%p287) target = $region28
        $region27: #{tpu_custom_call.1} parent=11 // pred_region
          _
        $region28: #{tpu_custom_call.1} parent=11 // pred_fallthru
          _
        // Predicated region
        $region29: #{tpu_custom_call.1} parent=11 // pred_check
          %p290 = pneg %p153
        $region30: #{tpu_custom_call.1} parent=11 // pred_check_branch
          %292 = sbr.rel (%p290) target = $region32
        $region31: #{tpu_custom_call.1} parent=11 // pred_region
          _
        $region32: #{tpu_custom_call.1} parent=11 // pred_fallthru
          _
        // Predicated region
        $region33: #{tpu_custom_call.1} parent=11 // pred_check
          %p293 = pneg %p174
        $region34: #{tpu_custom_call.1} parent=11 // pred_check_branch
          %295 = sbr.rel (%p293) target = $region36
        $region35: #{tpu_custom_call.1} parent=11 // pred_region
          _
        $region36: #{tpu_custom_call.1} parent=11 // pred_fallthru
          _
        // Predicated region
        $region37: #{tpu_custom_call.1} parent=11 // pred_check
          %p296 = pneg %p195
        $region38: #{tpu_custom_call.1} parent=11 // pred_check_branch
          %298 = sbr.rel (%p296) target = $region40
        $region39: #{tpu_custom_call.1} parent=11 // pred_region
          _
        $region40: #{tpu_custom_call.1} parent=11 // pred_fallthru
          _
        // Predicated region
        $region41: #{tpu_custom_call.1} parent=11 // pred_check
          %p299 = pneg %p216
        $region42: #{tpu_custom_call.1} parent=11 // pred_check_branch
          %301 = sbr.rel (%p299) target = $region44
        $region43: #{tpu_custom_call.1} parent=11 // pred_region
          _
        $region44: #{tpu_custom_call.1} parent=11 // pred_fallthru
          _
        // Predicated region
        $region45: #{tpu_custom_call.1} parent=11 // pred_check
          %p302 = pneg %p237
        $region46: #{tpu_custom_call.1} parent=11 // pred_check_branch
          %304 = sbr.rel (%p302) target = $region48
        $region47: #{tpu_custom_call.1} parent=11 // pred_region
          _
        $region48: #{tpu_custom_call.1} parent=11 // pred_fallthru
          _
      $region12: #{tpu_custom_call.1} parent=5 // pred_fallthru
        _
      %p305 = scmp.lt.s32.totalorder %s22, 2
      // Predicated region
      $region49: #{tpu_custom_call.1} parent=5 // pred_check
        %p306 = pneg %p305
      $region50: #{tpu_custom_call.1} parent=5 // pred_check_branch
        %308 = sbr.rel (%p306) target = $region52
      $region51: #{tpu_custom_call.1} parent=5 // pred_region
        // Predicated region
        $region53: #{tpu_custom_call.1} parent=51 // pred_check
          %p309 = pneg %p42
        $region54: #{tpu_custom_call.1} parent=51 // pred_check_branch
          %311 = sbr.rel (%p309) target = $region56
        $region55: #{tpu_custom_call.1} parent=51 // pred_region
          %s312 = sand.u32 %s32, 1
          %s313 = scalar_lea.sflag [#allocation7], %s312
          %s314 = sand.u32 %s32, 1
          %s315 = smul.addr %s314, 144
          %s316 = scalar_lea.vmem [#allocation6], %s315
          %s318 = ssub.s32 2304, 2304
          %319 = vsyncadd %s313, %s318
          %s320 = smul.addr %s22, 18
          %s321 = smul.addr %s320, 128
          %s322 = scalar_lea.hbm %s0, %s321
          %s323 = sshll.u32 %s316, 4
          %s324 = int_to_ptr.vmem [resolvable:$true] %s323
          %329 = dma.hbm_to_vmem [thread:$0]  %s322, 2304, %s324, %s313, 1152, 1152, 72
        $region56: #{tpu_custom_call.1} parent=51 // pred_fallthru
          _
      $region52: #{tpu_custom_call.1} parent=5 // pred_fallthru
        _
      %p330 = scmp.le.s32.totalorder 1, %s22
      %p331 = scmp.lt.s32.totalorder %s22, 3
      %p332 = pnand %p330, %p331
      %p333 = pneg %p332
      // Predicated region
      $region57: #{tpu_custom_call.1} parent=5 // pred_check
        _
      $region58: #{tpu_custom_call.1} parent=5 // pred_check_branch
        %335 = sbr.rel (%p332) target = $region60
      $region59: #{tpu_custom_call.1} parent=5 // pred_region
        %s336 = ssub.s32 %s22, 1
        %s337 = sand.u32 %s35, 1
        %s338 = scalar_lea.sflag [#allocation7], %s337
        %s339 = sand.u32 %s35, 1
        %s340 = smul.addr %s339, 144
        %s341 = scalar_lea.vmem [#allocation6], %s340
        // Predicated region
        $region61: #{tpu_custom_call.1} parent=59 // pred_check
          %p342 = pneg %p48
        $region62: #{tpu_custom_call.1} parent=59 // pred_check_branch
          %344 = sbr.rel (%p342) target = $region64
        $region63: #{tpu_custom_call.1} parent=59 // pred_region
          %345 = dma.done %s338, 2304
        $region64: #{tpu_custom_call.1} parent=59 // pred_fallthru
          _
        %s346 = sand.u32 %s35, 1
        %s347 = scalar_lea.sflag [#allocation7], %s346
        %s348 = sand.u32 %s35, 1
        %s349 = smul.addr %s348, 144
        %s350 = scalar_lea.vmem [#allocation6], %s349
        %p351 = pneg %p48
        %p352 = pneg %p45
        %p353 = pneg %p69
        %p354 = pneg %p66
        %p355 = pneg %p90
        %p356 = pneg %p87
        %p357 = pneg %p111
        %p358 = pneg %p108
        %p359 = pneg %p132
        %p360 = pneg %p129
        %p361 = pneg %p153
        %p362 = pneg %p150
        %p363 = pneg %p174
        %p364 = pneg %p171
        %p365 = pneg %p195
        %p366 = pneg %p192
        %p367 = pneg %p216
        %p368 = pneg %p213
        %p369 = pneg %p237
        %p370 = pneg %p234
        %p371 = pneg %p263
        %p372 = pneg %p260
        %s373 = sand.u32 %s250, 1
        %s374 = scalar_lea.sflag [#allocation8], %s373
        %s375 = sand.u32 %s250, 1
        %s376 = smul.addr %s375, 56
        %s377 = scalar_lea.vmem [#allocation9], %s376
        %v379 = vld [vmem:[%s341] sm:$0xff]
        %v380 = vld [vmem:[%s341 + $0x8] sm:$0xff]
        %v381 = vld [vmem:[%s341 + $0x10] sm:$0xff]
        %v382 = vld [vmem:[%s341 + $0x18] sm:$0xff]
        %v383 = vld [vmem:[%s341 + $0x20] sm:$0xff]
        %v384 = vld [vmem:[%s341 + $0x28] sm:$0xff]
        %v385 = vld [vmem:[%s341 + $0x30] sm:$0xff]
        %v386 = vld [vmem:[%s341 + $0x38] sm:$0xff]
        %v387 = vld [vmem:[%s341 + $0x40] sm:$0xff]
        %v388 = vld [vmem:[%s341 + $0x48] sm:$0xff]
        %v389 = vld [vmem:[%s341 + $0x50] sm:$0xff]
        %v390 = vld [vmem:[%s341 + $0x58] sm:$0xff]
        %v391 = vld [vmem:[%s341 + $0x60] sm:$0xff]
        %v392 = vld [vmem:[%s341 + $0x68] sm:$0xff]
        %v393 = vld [vmem:[%s341 + $0x70] sm:$0xff]
        %v394 = vld [vmem:[%s341 + $0x78] sm:$0xff]
        %v395 = vld [vmem:[%s341 + $0x80] sm:$0xff]
        %v396 = vld [vmem:[%s341 + $0x88] sm:$0xff]
        %v397 = vld [vmem:[%s1] sm:$0xff]
        %v398 = vld [vmem:[%s1 + $0x8] sm:$0x1]
        %v399 = vld [vmem:[%s1 + $0x1] sm:$0xff]
        %v400 = vadd.f32 %v379, %v380
        %v401 = vadd.f32 %v400, %v381
        %v402 = vadd.f32 %v401, %v382
        %v403 = vadd.f32 %v402, %v383
        %v404 = vadd.f32 %v403, %v384
        %v405 = vadd.f32 %v404, %v385
        %v406 = vadd.f32 %v405, %v386
        %v407 = vadd.f32 %v406, %v387
        %v408 = vadd.f32 %v407, %v388
        %v409 = vadd.f32 %v408, %v389
        %v410 = vadd.f32 %v409, %v390
        %v411 = vadd.f32 %v410, %v391
        %v412 = vadd.f32 %v411, %v392
        %v413 = vadd.f32 %v412, %v393
        %v414 = vadd.f32 %v413, %v394
        %v415 = vadd.f32 %v414, %v395
        %v416 = vadd.f32 %v415, %v396
        %417 = vadd.xlane.f32.xlu0 %v416
        %v418 = vpop.xlane.xlu0 %417
        %v419 = vrot.slane %v418, 4
        %v420 = vadd.f32 %v418, %v419
        %v421 = vrot.slane %v420, 2
        %v422 = vadd.f32 %v420, %v421
        %v423 = vrot.slane %v422, 1
        %v424 = vadd.f32 %v422, %v423
        %s425 = vtos %v424
        %v426 = vrcp.pop 2048.0
        %s427 = vtos %v426
        %s428 = smul.f32 %s425, %s427
        %v429 = vmul.f32 %v379, %v379
        %v430 = vmul.f32 %v380, %v380
        %v431 = vmul.f32 %v381, %v381
        %v432 = vmul.f32 %v382, %v382
        %v433 = vmul.f32 %v383, %v383
        %v434 = vmul.f32 %v384, %v384
        %v435 = vmul.f32 %v385, %v385
        %v436 = vmul.f32 %v386, %v386
        %v437 = vmul.f32 %v387, %v387
        %v438 = vmul.f32 %v388, %v388
        %v439 = vmul.f32 %v389, %v389
        %v440 = vmul.f32 %v390, %v390
        %v441 = vmul.f32 %v391, %v391
        %v442 = vmul.f32 %v392, %v392
        %v443 = vmul.f32 %v393, %v393
        %v444 = vmul.f32 %v394, %v394
        %v445 = vmul.f32 %v395, %v395
        %v446 = vmul.f32 %v396, %v396
        %v447 = vadd.f32 %v429, %v430
        %v448 = vadd.f32 %v447, %v431
        %v449 = vadd.f32 %v448, %v432
        %v450 = vadd.f32 %v449, %v433
        %v451 = vadd.f32 %v450, %v434
        %v452 = vadd.f32 %v451, %v435
        %v453 = vadd.f32 %v452, %v436
        %v454 = vadd.f32 %v453, %v437
        %v455 = vadd.f32 %v454, %v438
        %v456 = vadd.f32 %v455, %v439
        %v457 = vadd.f32 %v456, %v440
        %v458 = vadd.f32 %v457, %v441
        %v459 = vadd.f32 %v458, %v442
        %v460 = vadd.f32 %v459, %v443
        %v461 = vadd.f32 %v460, %v444
        %v462 = vadd.f32 %v461, %v445
        %v463 = vadd.f32 %v462, %v446
        %464 = vadd.xlane.f32.xlu0 %v463
        %v465 = vpop.xlane.xlu0 %464
        %v466 = vrot.slane %v465, 4
        %v467 = vadd.f32 %v465, %v466
        %v468 = vrot.slane %v467, 2
        %v469 = vadd.f32 %v467, %v468
        %v470 = vrot.slane %v469, 1
        %v471 = vadd.f32 %v469, %v470
        %s472 = vtos %v471
        %v473 = vrcp.pop 2048.0
        %s474 = vtos %v473
        %s475 = smul.f32 %s472, %s474
        %s476 = smul.f32 %s428, %s428
        %s477 = ssub.f32 %s475, %s476
        %s478 = smax.f32 %s477, 0.0
        %v479 = vstv %s428
        %v480 = vsub.f32 %v379, %v479
        %v481 = vsub.f32 %v380, %v479
        %v482 = vsub.f32 %v381, %v479
        %v483 = vsub.f32 %v382, %v479
        %v484 = vsub.f32 %v383, %v479
        %v485 = vsub.f32 %v384, %v479
        %v486 = vsub.f32 %v385, %v479
        %v487 = vsub.f32 %v386, %v479
        %v488 = vsub.f32 %v387, %v479
        %v489 = vsub.f32 %v388, %v479
        %v490 = vsub.f32 %v389, %v479
        %v491 = vsub.f32 %v390, %v479
        %v492 = vsub.f32 %v391, %v479
        %v493 = vsub.f32 %v392, %v479
        %v494 = vsub.f32 %v393, %v479
        %v495 = vsub.f32 %v394, %v479
        %v496 = vsub.f32 %v395, %v479
        %v497 = vsub.f32 %v396, %v479
        %s498 = sadd.f32 %s478, 1e-05
        %v499 = vstv %s498
        %v500 = vrsqrt.pop %v499
        %s501 = vtos %v500
        %v502 = vstv %s501
        %v503 = vmul.f32 %v480, %v502
        %v504 = vmul.f32 %v481, %v502
        %v505 = vmul.f32 %v482, %v502
        %v506 = vmul.f32 %v483, %v502
        %v507 = vmul.f32 %v484, %v502
        %v508 = vmul.f32 %v485, %v502
        %v509 = vmul.f32 %v486, %v502
        %v510 = vmul.f32 %v487, %v502
        %v511 = vmul.f32 %v488, %v502
        %v512 = vmul.f32 %v489, %v502
        %v513 = vmul.f32 %v490, %v502
        %v514 = vmul.f32 %v491, %v502
        %v515 = vmul.f32 %v492, %v502
        %v516 = vmul.f32 %v493, %v502
        %v517 = vmul.f32 %v494, %v502
        %v518 = vmul.f32 %v495, %v502
        %v519 = vmul.f32 %v496, %v502
        %v520 = vmul.f32 %v497, %v502
        %v521 = vld [vmem:[%s2] sm:$0xff]
        %v522 = vld [vmem:[%s2 + $0x8] sm:$0xff]
        %524 = vset.pattern.permute.xlu0 0
        %525 = vperm.xlu0 %524, %v521
        %v526 = vpop.permute.xlu0 %525
        %529 = vset.pattern.permute.xlu0 0
        %530 = vperm.xlu0 %529, %v522
        %v531 = vpop.permute.xlu0 %530
        %v533 = vmul.f32 %v503, %v526
        %v534 = vmul.f32 %v504, %v526
        %v535 = vmul.f32 %v505, %v526
        %v536 = vmul.f32 %v506, %v526
        %v537 = vmul.f32 %v507, %v526
        %v538 = vmul.f32 %v508, %v526
        %v539 = vmul.f32 %v509, %v526
        %v540 = vmul.f32 %v510, %v526
        %v541 = vmul.f32 %v511, %v526
        %v542 = vmul.f32 %v512, %v531
        %v543 = vmul.f32 %v513, %v531
        %v544 = vmul.f32 %v514, %v531
        %v545 = vmul.f32 %v515, %v531
        %v546 = vmul.f32 %v516, %v531
        %v547 = vmul.f32 %v517, %v531
        %v548 = vmul.f32 %v518, %v531
        %v549 = vmul.f32 %v519, %v531
        %v550 = vmul.f32 %v520, %v531
        %v551 = vld [vmem:[%s3] sm:$0xff]
        %v552 = vld [vmem:[%s3 + $0x8] sm:$0xff]
        %554 = vset.pattern.permute.xlu0 0
        %555 = vperm.xlu0 %554, %v551
        %v556 = vpop.permute.xlu0 %555
        %559 = vset.pattern.permute.xlu0 0
        %560 = vperm.xlu0 %559, %v552
        %v561 = vpop.permute.xlu0 %560
        %v563 = vadd.f32 %v533, %v556
        %v564 = vadd.f32 %v534, %v556
        %v565 = vadd.f32 %v535, %v556
        %v566 = vadd.f32 %v536, %v556
        %v567 = vadd.f32 %v537, %v556
        %v568 = vadd.f32 %v538, %v556
        %v569 = vadd.f32 %v539, %v556
        %v570 = vadd.f32 %v540, %v556
        %v571 = vadd.f32 %v541, %v556
        %v572 = vadd.f32 %v542, %v561
        %v573 = vadd.f32 %v543, %v561
        %v574 = vadd.f32 %v544, %v561
        %v575 = vadd.f32 %v545, %v561
        %v576 = vadd.f32 %v546, %v561
        %v577 = vadd.f32 %v547, %v561
        %v578 = vadd.f32 %v548, %v561
        %v579 = vadd.f32 %v549, %v561
        %v580 = vadd.f32 %v550, %v561
        %v581 = vmul.f32 %v563, 0.5
        %v582 = vmul.f32 %v564, 0.5
        %v583 = vmul.f32 %v565, 0.5
        %v584 = vmul.f32 %v566, 0.5
        %v585 = vmul.f32 %v567, 0.5
        %v586 = vmul.f32 %v568, 0.5
        %v587 = vmul.f32 %v569, 0.5
        %v588 = vmul.f32 %v570, 0.5
        %v589 = vmul.f32 %v571, 0.5
        %v590 = vmul.f32 %v572, 0.5
        %v591 = vmul.f32 %v573, 0.5
        %v592 = vmul.f32 %v574, 0.5
        %v593 = vmul.f32 %v575, 0.5
        %v594 = vmul.f32 %v576, 0.5
        %v595 = vmul.f32 %v577, 0.5
        %v596 = vmul.f32 %v578, 0.5
        %v597 = vmul.f32 %v579, 0.5
        %v598 = vmul.f32 %v580, 0.5
        %v599 = vmul.f32 %v563, 0.044715
        %v600 = vmul.f32 %v564, 0.044715
        %v601 = vmul.f32 %v565, 0.044715
        %v602 = vmul.f32 %v566, 0.044715
        %v603 = vmul.f32 %v567, 0.044715
        %v604 = vmul.f32 %v568, 0.044715
        %v605 = vmul.f32 %v569, 0.044715
        %v606 = vmul.f32 %v570, 0.044715
        %v607 = vmul.f32 %v571, 0.044715
        %v608 = vmul.f32 %v572, 0.044715
        %v609 = vmul.f32 %v573, 0.044715
        %v610 = vmul.f32 %v574, 0.044715
        %v611 = vmul.f32 %v575, 0.044715
        %v612 = vmul.f32 %v576, 0.044715
        %v613 = vmul.f32 %v577, 0.044715
        %v614 = vmul.f32 %v578, 0.044715
        %v615 = vmul.f32 %v579, 0.044715
        %v616 = vmul.f32 %v580, 0.044715
        %v617 = vmul.f32 %v599, %v563
        %v618 = vmul.f32 %v600, %v564
        %v619 = vmul.f32 %v601, %v565
        %v620 = vmul.f32 %v602, %v566
        %v621 = vmul.f32 %v603, %v567
        %v622 = vmul.f32 %v604, %v568
        %v623 = vmul.f32 %v605, %v569
        %v624 = vmul.f32 %v606, %v570
        %v625 = vmul.f32 %v607, %v571
        %v626 = vmul.f32 %v608, %v572
        %v627 = vmul.f32 %v609, %v573
        %v628 = vmul.f32 %v610, %v574
        %v629 = vmul.f32 %v611, %v575
        %v630 = vmul.f32 %v612, %v576
        %v631 = vmul.f32 %v613, %v577
        %v632 = vmul.f32 %v614, %v578
        %v633 = vmul.f32 %v615, %v579
        %v634 = vmul.f32 %v616, %v580
        %v635 = vmul.f32 %v617, %v563
        %v636 = vmul.f32 %v618, %v564
        %v637 = vmul.f32 %v619, %v565
        %v638 = vmul.f32 %v620, %v566
        %v639 = vmul.f32 %v621, %v567
        %v640 = vmul.f32 %v622, %v568
        %v641 = vmul.f32 %v623, %v569
        %v642 = vmul.f32 %v624, %v570
        %v643 = vmul.f32 %v625, %v571
        %v644 = vmul.f32 %v626, %v572
        %v645 = vmul.f32 %v627, %v573
        %v646 = vmul.f32 %v628, %v574
        %v647 = vmul.f32 %v629, %v575
        %v648 = vmul.f32 %v630, %v576
        %v649 = vmul.f32 %v631, %v577
        %v650 = vmul.f32 %v632, %v578
        %v651 = vmul.f32 %v633, %v579
        %v652 = vmul.f32 %v634, %v580
        %v653 = vadd.f32 %v563, %v635
        %v654 = vadd.f32 %v564, %v636
        %v655 = vadd.f32 %v565, %v637
        %v656 = vadd.f32 %v566, %v638
        %v657 = vadd.f32 %v567, %v639
        %v658 = vadd.f32 %v568, %v640
        %v659 = vadd.f32 %v569, %v641
        %v660 = vadd.f32 %v570, %v642
        %v661 = vadd.f32 %v571, %v643
        %v662 = vadd.f32 %v572, %v644
        %v663 = vadd.f32 %v573, %v645
        %v664 = vadd.f32 %v574, %v646
        %v665 = vadd.f32 %v575, %v647
        %v666 = vadd.f32 %v576, %v648
        %v667 = vadd.f32 %v577, %v649
        %v668 = vadd.f32 %v578, %v650
        %v669 = vadd.f32 %v579, %v651
        %v670 = vadd.f32 %v580, %v652
        %v671 = vmul.f32 %v653, 0.7978846
        %v672 = vmul.f32 %v654, 0.7978846
        %v673 = vmul.f32 %v655, 0.7978846
        %v674 = vmul.f32 %v656, 0.7978846
        %v675 = vmul.f32 %v657, 0.7978846
        %v676 = vmul.f32 %v658, 0.7978846
        %v677 = vmul.f32 %v659, 0.7978846
        %v678 = vmul.f32 %v660, 0.7978846
        %v679 = vmul.f32 %v661, 0.7978846
        %v680 = vmul.f32 %v662, 0.7978846
        %v681 = vmul.f32 %v663, 0.7978846
        %v682 = vmul.f32 %v664, 0.7978846
        %v683 = vmul.f32 %v665, 0.7978846
        %v684 = vmul.f32 %v666, 0.7978846
        %v685 = vmul.f32 %v667, 0.7978846
        %v686 = vmul.f32 %v668, 0.7978846
        %v687 = vmul.f32 %v669, 0.7978846
        %v688 = vmul.f32 %v670, 0.7978846
        %v689 = vtanh.pop %v671
        %v690 = vtanh.pop %v672
        %v691 = vtanh.pop %v673
        %v692 = vtanh.pop %v674
        %v693 = vtanh.pop %v675
        %v694 = vtanh.pop %v676
        %v695 = vtanh.pop %v677
        %v696 = vtanh.pop %v678
        %v697 = vtanh.pop %v679
        %v698 = vtanh.pop %v680
        %v699 = vtanh.pop %v681
        %v700 = vtanh.pop %v682
        %v701 = vtanh.pop %v683
        %v702 = vtanh.pop %v684
        %v703 = vtanh.pop %v685
        %v704 = vtanh.pop %v686
        %v705 = vtanh.pop %v687
        %v706 = vtanh.pop %v688
        %v707 = vadd.f32 %v689, 1.0
        %v708 = vadd.f32 %v690, 1.0
        %v709 = vadd.f32 %v691, 1.0
        %v710 = vadd.f32 %v692, 1.0
        %v711 = vadd.f32 %v693, 1.0
        %v712 = vadd.f32 %v694, 1.0
        %v713 = vadd.f32 %v695, 1.0
        %v714 = vadd.f32 %v696, 1.0
        %v715 = vadd.f32 %v697, 1.0
        %v716 = vadd.f32 %v698, 1.0
        %v717 = vadd.f32 %v699, 1.0
        %v718 = vadd.f32 %v700, 1.0
        %v719 = vadd.f32 %v701, 1.0
        %v720 = vadd.f32 %v702, 1.0
        %v721 = vadd.f32 %v703, 1.0
        %v722 = vadd.f32 %v704, 1.0
        %v723 = vadd.f32 %v705, 1.0
        %v724 = vadd.f32 %v706, 1.0
        %v725 = vmul.f32 %v581, %v707
        %v726 = vmul.f32 %v582, %v708
        %v727 = vmul.f32 %v583, %v709
        %v728 = vmul.f32 %v584, %v710
        %v729 = vmul.f32 %v585, %v711
        %v730 = vmul.f32 %v586, %v712
        %v731 = vmul.f32 %v587, %v713
        %v732 = vmul.f32 %v588, %v714
        %v733 = vmul.f32 %v589, %v715
        %v734 = vmul.f32 %v590, %v716
        %v735 = vmul.f32 %v591, %v717
        %v736 = vmul.f32 %v592, %v718
        %v737 = vmul.f32 %v593, %v719
        %v738 = vmul.f32 %v594, %v720
        %v739 = vmul.f32 %v595, %v721
        %v740 = vmul.f32 %v596, %v722
        %v741 = vmul.f32 %v597, %v723
        %v742 = vmul.f32 %v598, %v724
        %v745 = vlaneseq
        %v746 = vshrl.u32 %v745, 7
        %v747 = vsub.s32 0, %v746
        %v748 = vrot.slane %v397, %v747
        %v749 = vlaneseq
        %v750 = vshrl.u32 %v749, 7
        %v751 = vsub.s32 1, %v750
        %v752 = vrot.slane %v397, %v751
        %v753 = vlaneseq
        %v754 = vshrl.u32 %v753, 7
        %v755 = vsub.s32 2, %v754
        %v756 = vrot.slane %v397, %v755
        %v757 = vlaneseq
        %v758 = vshrl.u32 %v757, 7
        %v759 = vsub.s32 3, %v758
        %v760 = vrot.slane %v397, %v759
        %v761 = vlaneseq
        %v762 = vshrl.u32 %v761, 7
        %v763 = vsub.s32 4, %v762
        %v764 = vrot.slane %v397, %v763
        %v765 = vlaneseq
        %v766 = vshrl.u32 %v765, 7
        %v767 = vsub.s32 5, %v766
        %v768 = vrot.slane %v397, %v767
        %v769 = vlaneseq
        %v770 = vshrl.u32 %v769, 7
        %v771 = vsub.s32 6, %v770
        %v772 = vrot.slane %v397, %v771
        %v773 = vlaneseq
        %v774 = vshrl.u32 %v773, 7
        %v775 = vsub.s32 7, %v774
        %v776 = vrot.slane %v397, %v775
        %v777 = vlaneseq
        %v778 = vshrl.u32 %v777, 7
        %v779 = vsub.s32 0, %v778
        %v780 = vrot.slane %v398, %v779
        %v790 = vmul.f32 %v725, %v748
        %v791 = vmul.f32 %v726, %v752
        %v792 = vmul.f32 %v727, %v756
        %v793 = vmul.f32 %v728, %v760
        %v794 = vmul.f32 %v729, %v764
        %v795 = vmul.f32 %v730, %v768
        %v796 = vmul.f32 %v731, %v772
        %v797 = vmul.f32 %v732, %v776
        %v798 = vmul.f32 %v733, %v780
        %v799 = vmul.f32 %v734, %v748
        %v800 = vmul.f32 %v735, %v752
        %v801 = vmul.f32 %v736, %v756
        %v802 = vmul.f32 %v737, %v760
        %v803 = vmul.f32 %v738, %v764
        %v804 = vmul.f32 %v739, %v768
        %v805 = vmul.f32 %v740, %v772
        %v806 = vmul.f32 %v741, %v776
        %v807 = vmul.f32 %v742, %v780
        %808 = vst [vmem:[#allocation2] sm:$0xff] %v790
        %809 = vst [vmem:[#allocation2 + $0x8] sm:$0xff] %v791
        %810 = vst [vmem:[#allocation2 + $0x10] sm:$0xff] %v792
        %811 = vst [vmem:[#allocation2 + $0x18] sm:$0xff] %v793
        %812 = vst [vmem:[#allocation2 + $0x20] sm:$0xff] %v794
        %813 = vst [vmem:[#allocation2 + $0x28] sm:$0xff] %v795
        %814 = vst [vmem:[#allocation2 + $0x30] sm:$0xff] %v796
        %815 = vst [vmem:[#allocation2 + $0x38] sm:$0xff] %v797
        %816 = vst [vmem:[#allocation2 + $0x40] sm:$0xff] %v798
        %817 = vst [vmem:[#allocation2 + $0x48] sm:$0xff] %v799
        %818 = vst [vmem:[#allocation2 + $0x50] sm:$0xff] %v800
        %819 = vst [vmem:[#allocation2 + $0x58] sm:$0xff] %v801
        %820 = vst [vmem:[#allocation2 + $0x60] sm:$0xff] %v802
        %821 = vst [vmem:[#allocation2 + $0x68] sm:$0xff] %v803
        %822 = vst [vmem:[#allocation2 + $0x70] sm:$0xff] %v804
        %823 = vst [vmem:[#allocation2 + $0x78] sm:$0xff] %v805
        %824 = vst [vmem:[#allocation2 + $0x80] sm:$0xff] %v806
        %825 = vst [vmem:[#allocation2 + $0x88] sm:$0xff] %v807
        %v826 = vld [vmem:[#allocation2] sm:$0xff]
        %v827 = vld [vmem:[#allocation2 + $0x8] sm:$0xff]
        %v828 = vld [vmem:[#allocation2 + $0x10] sm:$0xff]
        %v829 = vld [vmem:[#allocation2 + $0x18] sm:$0xff]
        %v830 = vld [vmem:[#allocation2 + $0x20] sm:$0xff]
        %v831 = vld [vmem:[#allocation2 + $0x28] sm:$0xff]
        %v832 = vld [vmem:[#allocation2 + $0x30] sm:$0xff]
        %v833 = vld [vmem:[#allocation2 + $0x38] sm:$0xff]
        %v834 = vld [vmem:[#allocation2 + $0x48] sm:$0xff]
        %v835 = vld [vmem:[#allocation2 + $0x50] sm:$0xff]
        %v836 = vld [vmem:[#allocation2 + $0x58] sm:$0xff]
        %v837 = vld [vmem:[#allocation2 + $0x60] sm:$0xff]
        %v838 = vld [vmem:[#allocation2 + $0x68] sm:$0xff]
        %v839 = vld [vmem:[#allocation2 + $0x70] sm:$0xff]
        %v840 = vld [vmem:[#allocation2 + $0x78] sm:$0xff]
        %v841 = vld [vmem:[#allocation2 + $0x80] sm:$0xff]
        %858 = vrot.lane.b32.xlu0 %v826, 110
        %v859 = vpop.permute.xlu0 %858
        %860 = vrot.lane.b32.xlu0 %v827, 110
        %v861 = vpop.permute.xlu0 %860
        %862 = vrot.lane.b32.xlu0 %v828, 110
        %v863 = vpop.permute.xlu0 %862
        %864 = vrot.lane.b32.xlu0 %v829, 110
        %v865 = vpop.permute.xlu0 %864
        %866 = vrot.lane.b32.xlu0 %v830, 110
        %v867 = vpop.permute.xlu0 %866
        %868 = vrot.lane.b32.xlu0 %v831, 110
        %v869 = vpop.permute.xlu0 %868
        %870 = vrot.lane.b32.xlu0 %v832, 110
        %v871 = vpop.permute.xlu0 %870
        %872 = vrot.lane.b32.xlu0 %v833, 110
        %v873 = vpop.permute.xlu0 %872
        %874 = vrot.lane.b32.xlu0 %v834, 110
        %v875 = vpop.permute.xlu0 %874
        %876 = vrot.lane.b32.xlu0 %v835, 110
        %v877 = vpop.permute.xlu0 %876
        %878 = vrot.lane.b32.xlu0 %v836, 110
        %v879 = vpop.permute.xlu0 %878
        %880 = vrot.lane.b32.xlu0 %v837, 110
        %v881 = vpop.permute.xlu0 %880
        %882 = vrot.lane.b32.xlu0 %v838, 110
        %v883 = vpop.permute.xlu0 %882
        %884 = vrot.lane.b32.xlu0 %v839, 110
        %v885 = vpop.permute.xlu0 %884
        %886 = vrot.lane.b32.xlu0 %v840, 110
        %v887 = vpop.permute.xlu0 %886
        %888 = vrot.lane.b32.xlu0 %v841, 110
        %v889 = vpop.permute.xlu0 %888
        %vm890 = vcmask 900096
        %v891 = vsel %vm890, %v859, %v861
        %v892 = vsel %vm890, %v861, %v863
        %v893 = vsel %vm890, %v863, %v865
        %v894 = vsel %vm890, %v865, %v867
        %v895 = vsel %vm890, %v867, %v869
        %v896 = vsel %vm890, %v869, %v871
        %v897 = vsel %vm890, %v871, %v873
        %v898 = vsel %vm890, %v875, %v877
        %v899 = vsel %vm890, %v877, %v879
        %v900 = vsel %vm890, %v879, %v881
        %v901 = vsel %vm890, %v881, %v883
        %v902 = vsel %vm890, %v883, %v885
        %v903 = vsel %vm890, %v885, %v887
        %v904 = vsel %vm890, %v887, %v889
        %919 = vrot.lane.b32.xlu0 %v891, 1
        %v920 = vpop.permute.xlu0 %919
        %921 = vrot.lane.b32.xlu0 %v898, 1
        %v922 = vpop.permute.xlu0 %921
        %923 = vrot.lane.b32.xlu0 %v892, 1
        %v924 = vpop.permute.xlu0 %923
        %925 = vrot.lane.b32.xlu0 %v899, 1
        %v926 = vpop.permute.xlu0 %925
        %927 = vrot.lane.b32.xlu0 %v893, 1
        %v928 = vpop.permute.xlu0 %927
        %929 = vrot.lane.b32.xlu0 %v900, 1
        %v930 = vpop.permute.xlu0 %929
        %931 = vrot.lane.b32.xlu0 %v894, 1
        %v932 = vpop.permute.xlu0 %931
        %933 = vrot.lane.b32.xlu0 %v901, 1
        %v934 = vpop.permute.xlu0 %933
        %935 = vrot.lane.b32.xlu0 %v895, 1
        %v936 = vpop.permute.xlu0 %935
        %937 = vrot.lane.b32.xlu0 %v902, 1
        %v938 = vpop.permute.xlu0 %937
        %939 = vrot.lane.b32.xlu0 %v896, 1
        %v940 = vpop.permute.xlu0 %939
        %941 = vrot.lane.b32.xlu0 %v903, 1
        %v942 = vpop.permute.xlu0 %941
        %943 = vrot.lane.b32.xlu0 %v897, 1
        %v944 = vpop.permute.xlu0 %943
        %945 = vrot.lane.b32.xlu0 %v904, 1
        %v946 = vpop.permute.xlu0 %945
        %v947 = vlaneseq
        %v948 = vand.u32 %v947, 127
        %vm949 = vcmp.lt.s32.totalorder %v948, 1
        %v950 = vsel %vm949, %v940, %v944
        %v951 = vsel %vm949, %v942, %v946
        %v952 = vsel %vm949, %v936, %v940
        %v953 = vsel %vm949, %v938, %v942
        %v954 = vsel %vm949, %v932, %v936
        %v955 = vsel %vm949, %v934, %v938
        %v956 = vsel %vm949, %v928, %v932
        %v957 = vsel %vm949, %v930, %v934
        %v958 = vsel %vm949, %v924, %v928
        %v959 = vsel %vm949, %v926, %v930
        %v960 = vsel %vm949, %v920, %v924
        %v961 = vsel %vm949, %v922, %v926
        %v962 = vsel %vm949, %v944, %v920
        %v963 = vsel %vm949, %v946, %v922
        %v964 = vpack.c.bf16 %v963, %v962
        %v965 = vpack.c.bf16 %v961, %v960
        %v966 = vpack.c.bf16 %v959, %v958
        %v967 = vpack.c.bf16 %v957, %v956
        %v968 = vpack.c.bf16 %v955, %v954
        %v969 = vpack.c.bf16 %v953, %v952
        %v970 = vpack.c.bf16 %v951, %v950
        %v978 = vunpack.c.l.b16 %v964
        %v979 = vunpack.c.l.b16 %v965
        %v980 = vunpack.c.l.b16 %v966
        %v981 = vunpack.c.l.b16 %v967
        %v982 = vunpack.c.l.b16 %v968
        %v983 = vunpack.c.l.b16 %v969
        %v984 = vunpack.c.l.b16 %v970
        %v985 = vunpack.c.h.b16 %v964
        %v986 = vunpack.c.h.b16 %v965
        %v987 = vunpack.c.h.b16 %v966
        %v988 = vunpack.c.h.b16 %v967
        %v989 = vunpack.c.h.b16 %v968
        %v990 = vunpack.c.h.b16 %v969
        %v991 = vunpack.c.h.b16 %v970
        %v992 = vpack.c.b16 %v979, %v978
        %v993 = vpack.c.b16 %v981, %v980
        %v994 = vpack.c.b16 %v983, %v982
        %v995 = vpack.c.b16 %v984, %v984
        %v996 = vpack.c.b16 %v986, %v985
        %v997 = vpack.c.b16 %v988, %v987
        %v998 = vpack.c.b16 %v990, %v989
        %v999 = vpack.c.b16 %v991, %v991
        %1008 = vst [vmem:[#allocation4] sm:$0xff] %v992
        %1009 = vst [vmem:[#allocation4 + $0x8] sm:$0xff] %v993
        %1010 = vst [vmem:[#allocation4 + $0x10] sm:$0xff] %v994
        %1011 = vst [vmem:[#allocation4 + $0x18] sm:$0xf] %v995
        %1012 = vst [vmem:[#allocation4 + $0x1c] sm:$0xff] %v996
        %1013 = vst [vmem:[#allocation4 + $0x24] sm:$0xff] %v997
        %1014 = vst [vmem:[#allocation4 + $0x2c] sm:$0xff] %v998
        %1015 = vst [vmem:[#allocation4 + $0x34] sm:$0xf] %v999
        %v1016 = vpack.c.bf16 %v834, %v826
        %v1017 = vpack.c.bf16 %v835, %v827
        %v1018 = vpack.c.bf16 %v836, %v828
        %v1019 = vpack.c.bf16 %v837, %v829
        %v1020 = vpack.c.bf16 %v838, %v830
        %v1021 = vpack.c.bf16 %v839, %v831
        %v1022 = vpack.c.bf16 %v840, %v832
        %v1023 = vpack.c.bf16 %v841, %v833
        %v1032 = vunpack.c.l.b16 %v1016
        %v1033 = vunpack.c.l.b16 %v1017
        %v1034 = vunpack.c.l.b16 %v1018
        %v1035 = vunpack.c.l.b16 %v1019
        %v1036 = vunpack.c.l.b16 %v1020
        %v1037 = vunpack.c.l.b16 %v1021
        %v1038 = vunpack.c.l.b16 %v1022
        %v1039 = vunpack.c.l.b16 %v1023
        %v1040 = vunpack.c.h.b16 %v1016
        %v1041 = vunpack.c.h.b16 %v1017
        %v1042 = vunpack.c.h.b16 %v1018
        %v1043 = vunpack.c.h.b16 %v1019
        %v1044 = vunpack.c.h.b16 %v1020
        %v1045 = vunpack.c.h.b16 %v1021
        %v1046 = vunpack.c.h.b16 %v1022
        %v1047 = vunpack.c.h.b16 %v1023
        %v1048 = vpack.c.b16 %v1033, %v1032
        %v1049 = vpack.c.b16 %v1035, %v1034
        %v1050 = vpack.c.b16 %v1037, %v1036
        %v1051 = vpack.c.b16 %v1039, %v1038
        %v1052 = vpack.c.b16 %v1041, %v1040
        %v1053 = vpack.c.b16 %v1043, %v1042
        %v1054 = vpack.c.b16 %v1045, %v1044
        %v1055 = vpack.c.b16 %v1047, %v1046
        %1056 = vrot.lane.b32.xlu0 %v1048, 110
        %v1057 = vpop.permute.xlu0 %1056
        %1058 = vrot.lane.b32.xlu0 %v1049, 110
        %v1059 = vpop.permute.xlu0 %1058
        %1060 = vrot.lane.b32.xlu0 %v1050, 110
        %v1061 = vpop.permute.xlu0 %1060
        %1062 = vrot.lane.b32.xlu0 %v1051, 110
        %v1063 = vpop.permute.xlu0 %1062
        %1064 = vrot.lane.b32.xlu0 %v1052, 110
        %v1065 = vpop.permute.xlu0 %1064
        %1066 = vrot.lane.b32.xlu0 %v1053, 110
        %v1067 = vpop.permute.xlu0 %1066
        %1068 = vrot.lane.b32.xlu0 %v1054, 110
        %v1069 = vpop.permute.xlu0 %1068
        %1070 = vrot.lane.b32.xlu0 %v1055, 110
        %v1071 = vpop.permute.xlu0 %1070
        %v1072 = vrot.slane %v1057, 4
        %v1073 = vrot.slane %v1059, 4
        %v1074 = vrot.slane %v1061, 4
        %v1075 = vrot.slane %v1063, 4
        %v1076 = vrot.slane %v1065, 4
        %v1077 = vrot.slane %v1067, 4
        %v1078 = vrot.slane %v1069, 4
        %v1079 = vrot.slane %v1071, 4
        %vm1080 = vcmask 1043456
        %v1081 = vsel %vm1080, %v1072, %v1073
        %vm1082 = vcmask 900096
        %v1083 = vsel %vm1082, %v1057, %v1081
        %v1084 = vsel %vm1080, %v1073, %v1074
        %v1085 = vsel %vm1082, %v1059, %v1084
        %v1086 = vsel %vm1080, %v1074, %v1075
        %v1087 = vsel %vm1082, %v1061, %v1086
        %v1088 = vsel %vm1082, %v1063, %v1075
        %v1089 = vsel %vm1080, %v1076, %v1077
        %v1090 = vsel %vm1082, %v1065, %v1089
        %v1091 = vsel %vm1080, %v1077, %v1078
        %v1092 = vsel %vm1082, %v1067, %v1091
        %v1093 = vsel %vm1080, %v1078, %v1079
        %v1094 = vsel %vm1082, %v1069, %v1093
        %v1095 = vsel %vm1082, %v1071, %v1079
        %1104 = vst [vmem:[#allocation4 + $0x38] sm:$0xff] %v1083
        %1105 = vst [vmem:[#allocation4 + $0x40] sm:$0xff] %v1085
        %1106 = vst [vmem:[#allocation4 + $0x48] sm:$0xff] %v1087
        %1107 = vst [vmem:[#allocation4 + $0x50] sm:$0xf] %v1088
        %1108 = vst [vmem:[#allocation4 + $0x54] sm:$0xff] %v1090
        %1109 = vst [vmem:[#allocation4 + $0x5c] sm:$0xff] %v1092
        %1110 = vst [vmem:[#allocation4 + $0x64] sm:$0xff] %v1094
        %1111 = vst [vmem:[#allocation4 + $0x6c] sm:$0xf] %v1095
        %1112 = vrot.lane.b32.xlu0 %v891, 127
        %v1113 = vpop.permute.xlu0 %1112
        %1114 = vrot.lane.b32.xlu0 %v898, 127
        %v1115 = vpop.permute.xlu0 %1114
        %1116 = vrot.lane.b32.xlu0 %v892, 127
        %v1117 = vpop.permute.xlu0 %1116
        %1118 = vrot.lane.b32.xlu0 %v899, 127
        %v1119 = vpop.permute.xlu0 %1118
        %1120 = vrot.lane.b32.xlu0 %v893, 127
        %v1121 = vpop.permute.xlu0 %1120
        %1122 = vrot.lane.b32.xlu0 %v900, 127
        %v1123 = vpop.permute.xlu0 %1122
        %1124 = vrot.lane.b32.xlu0 %v894, 127
        %v1125 = vpop.permute.xlu0 %1124
        %1126 = vrot.lane.b32.xlu0 %v901, 127
        %v1127 = vpop.permute.xlu0 %1126
        %1128 = vrot.lane.b32.xlu0 %v895, 127
        %v1129 = vpop.permute.xlu0 %1128
        %1130 = vrot.lane.b32.xlu0 %v902, 127
        %v1131 = vpop.permute.xlu0 %1130
        %1132 = vrot.lane.b32.xlu0 %v896, 127
        %v1133 = vpop.permute.xlu0 %1132
        %1134 = vrot.lane.b32.xlu0 %v903, 127
        %v1135 = vpop.permute.xlu0 %1134
        %1136 = vrot.lane.b32.xlu0 %v897, 127
        %v1137 = vpop.permute.xlu0 %1136
        %1138 = vrot.lane.b32.xlu0 %v904, 127
        %v1139 = vpop.permute.xlu0 %1138
        %vm1140 = vcmp.lt.s32.totalorder %v948, 127
        %v1141 = vsel %vm1140, %v1133, %v1137
        %v1142 = vsel %vm1140, %v1135, %v1139
        %v1143 = vsel %vm1140, %v1129, %v1133
        %v1144 = vsel %vm1140, %v1131, %v1135
        %v1145 = vsel %vm1140, %v1125, %v1129
        %v1146 = vsel %vm1140, %v1127, %v1131
        %v1147 = vsel %vm1140, %v1121, %v1125
        %v1148 = vsel %vm1140, %v1123, %v1127
        %v1149 = vsel %vm1140, %v1117, %v1121
        %v1150 = vsel %vm1140, %v1119, %v1123
        %v1151 = vsel %vm1140, %v1113, %v1117
        %v1152 = vsel %vm1140, %v1115, %v1119
        %v1153 = vsel %vm1140, %v1137, %v1113
        %v1154 = vsel %vm1140, %v1139, %v1115
        %v1155 = vpack.c.bf16 %v1152, %v1151
        %v1156 = vpack.c.bf16 %v1150, %v1149
        %v1157 = vpack.c.bf16 %v1148, %v1147
        %v1158 = vpack.c.bf16 %v1146, %v1145
        %v1159 = vpack.c.bf16 %v1144, %v1143
        %v1160 = vpack.c.bf16 %v1142, %v1141
        %v1161 = vpack.c.bf16 %v1154, %v1153
        %v1169 = vunpack.c.l.b16 %v1155
        %v1170 = vunpack.c.l.b16 %v1156
        %v1171 = vunpack.c.l.b16 %v1157
        %v1172 = vunpack.c.l.b16 %v1158
        %v1173 = vunpack.c.l.b16 %v1159
        %v1174 = vunpack.c.l.b16 %v1160
        %v1175 = vunpack.c.l.b16 %v1161
        %v1176 = vunpack.c.h.b16 %v1155
        %v1177 = vunpack.c.h.b16 %v1156
        %v1178 = vunpack.c.h.b16 %v1157
        %v1179 = vunpack.c.h.b16 %v1158
        %v1180 = vunpack.c.h.b16 %v1159
        %v1181 = vunpack.c.h.b16 %v1160
        %v1182 = vunpack.c.h.b16 %v1161
        %v1183 = vpack.c.b16 %v1170, %v1169
        %v1184 = vpack.c.b16 %v1172, %v1171
        %v1185 = vpack.c.b16 %v1174, %v1173
        %v1186 = vpack.c.b16 %v1175, %v1175
        %v1187 = vpack.c.b16 %v1177, %v1176
        %v1188 = vpack.c.b16 %v1179, %v1178
        %v1189 = vpack.c.b16 %v1181, %v1180
        %v1190 = vpack.c.b16 %v1182, %v1182
        %1199 = vst [vmem:[#allocation4 + $0x70] sm:$0xff] %v1183
        %1200 = vst [vmem:[#allocation4 + $0x78] sm:$0xff] %v1184
        %1201 = vst [vmem:[#allocation4 + $0x80] sm:$0xff] %v1185
        %1202 = vst [vmem:[#allocation4 + $0x88] sm:$0xf] %v1186
        %1203 = vst [vmem:[#allocation4 + $0x8c] sm:$0xff] %v1187
        %1204 = vst [vmem:[#allocation4 + $0x94] sm:$0xff] %v1188
        %1205 = vst [vmem:[#allocation4 + $0x9c] sm:$0xff] %v1189
        %1206 = vst [vmem:[#allocation4 + $0xa4] sm:$0xf] %v1190
        %v1207 = vld [vmem:[#allocation2] sm:$0xff]
        %v1208 = vld [vmem:[#allocation2 + $0x8] sm:$0xff]
        %v1209 = vld [vmem:[#allocation2 + $0x10] sm:$0xff]
        %v1210 = vld [vmem:[#allocation2 + $0x18] sm:$0xff]
        %v1211 = vld [vmem:[#allocation2 + $0x20] sm:$0xff]
        %v1212 = vld [vmem:[#allocation2 + $0x28] sm:$0xff]
        %v1213 = vld [vmem:[#allocation2 + $0x30] sm:$0xff]
        %v1214 = vld [vmem:[#allocation2 + $0x38] sm:$0xff]
        %v1215 = vld [vmem:[#allocation2 + $0x48] sm:$0xff]
        %v1216 = vld [vmem:[#allocation2 + $0x50] sm:$0xff]
        %v1217 = vld [vmem:[#allocation2 + $0x58] sm:$0xff]
        %v1218 = vld [vmem:[#allocation2 + $0x60] sm:$0xff]
        %v1219 = vld [vmem:[#allocation2 + $0x68] sm:$0xff]
        %v1220 = vld [vmem:[#allocation2 + $0x70] sm:$0xff]
        %v1221 = vld [vmem:[#allocation2 + $0x78] sm:$0xff]
        %v1222 = vld [vmem:[#allocation2 + $0x80] sm:$0xff]
        %1239 = vrot.lane.b32.xlu0 %v1207, 100
        %v1240 = vpop.permute.xlu0 %1239
        %1241 = vrot.lane.b32.xlu0 %v1208, 100
        %v1242 = vpop.permute.xlu0 %1241
        %1243 = vrot.lane.b32.xlu0 %v1209, 100
        %v1244 = vpop.permute.xlu0 %1243
        %1245 = vrot.lane.b32.xlu0 %v1210, 100
        %v1246 = vpop.permute.xlu0 %1245
        %1247 = vrot.lane.b32.xlu0 %v1211, 100
        %v1248 = vpop.permute.xlu0 %1247
        %1249 = vrot.lane.b32.xlu0 %v1212, 100
        %v1250 = vpop.permute.xlu0 %1249
        %1251 = vrot.lane.b32.xlu0 %v1213, 100
        %v1252 = vpop.permute.xlu0 %1251
        %1253 = vrot.lane.b32.xlu0 %v1214, 100
        %v1254 = vpop.permute.xlu0 %1253
        %1255 = vrot.lane.b32.xlu0 %v1215, 100
        %v1256 = vpop.permute.xlu0 %1255
        %1257 = vrot.lane.b32.xlu0 %v1216, 100
        %v1258 = vpop.permute.xlu0 %1257
        %1259 = vrot.lane.b32.xlu0 %v1217, 100
        %v1260 = vpop.permute.xlu0 %1259
        %1261 = vrot.lane.b32.xlu0 %v1218, 100
        %v1262 = vpop.permute.xlu0 %1261
        %1263 = vrot.lane.b32.xlu0 %v1219, 100
        %v1264 = vpop.permute.xlu0 %1263
        %1265 = vrot.lane.b32.xlu0 %v1220, 100
        %v1266 = vpop.permute.xlu0 %1265
        %1267 = vrot.lane.b32.xlu0 %v1221, 100
        %v1268 = vpop.permute.xlu0 %1267
        %1269 = vrot.lane.b32.xlu0 %v1222, 100
        %v1270 = vpop.permute.xlu0 %1269
        %vm1271 = vcmask 818176
        %v1272 = vsel %vm1271, %v1240, %v1242
        %v1273 = vsel %vm1271, %v1242, %v1244
        %v1274 = vsel %vm1271, %v1244, %v1246
        %v1275 = vsel %vm1271, %v1246, %v1248
        %v1276 = vsel %vm1271, %v1248, %v1250
        %v1277 = vsel %vm1271, %v1250, %v1252
        %v1278 = vsel %vm1271, %v1252, %v1254
        %v1279 = vsel %vm1271, %v1256, %v1258
        %v1280 = vsel %vm1271, %v1258, %v1260
        %v1281 = vsel %vm1271, %v1260, %v1262
        %v1282 = vsel %vm1271, %v1262, %v1264
        %v1283 = vsel %vm1271, %v1264, %v1266
        %v1284 = vsel %vm1271, %v1266, %v1268
        %v1285 = vsel %vm1271, %v1268, %v1270
        %1300 = vrot.lane.b32.xlu0 %v1272, 1
        %v1301 = vpop.permute.xlu0 %1300
        %1302 = vrot.lane.b32.xlu0 %v1279, 1
        %v1303 = vpop.permute.xlu0 %1302
        %1304 = vrot.lane.b32.xlu0 %v1273, 1
        %v1305 = vpop.permute.xlu0 %1304
        %1306 = vrot.lane.b32.xlu0 %v1280, 1
        %v1307 = vpop.permute.xlu0 %1306
        %1308 = vrot.lane.b32.xlu0 %v1274, 1
        %v1309 = vpop.permute.xlu0 %1308
        %1310 = vrot.lane.b32.xlu0 %v1281, 1
        %v1311 = vpop.permute.xlu0 %1310
        %1312 = vrot.lane.b32.xlu0 %v1275, 1
        %v1313 = vpop.permute.xlu0 %1312
        %1314 = vrot.lane.b32.xlu0 %v1282, 1
        %v1315 = vpop.permute.xlu0 %1314
        %1316 = vrot.lane.b32.xlu0 %v1276, 1
        %v1317 = vpop.permute.xlu0 %1316
        %1318 = vrot.lane.b32.xlu0 %v1283, 1
        %v1319 = vpop.permute.xlu0 %1318
        %1320 = vrot.lane.b32.xlu0 %v1277, 1
        %v1321 = vpop.permute.xlu0 %1320
        %1322 = vrot.lane.b32.xlu0 %v1284, 1
        %v1323 = vpop.permute.xlu0 %1322
        %1324 = vrot.lane.b32.xlu0 %v1278, 1
        %v1325 = vpop.permute.xlu0 %1324
        %1326 = vrot.lane.b32.xlu0 %v1285, 1
        %v1327 = vpop.permute.xlu0 %1326
        %v1328 = vsel %vm949, %v1321, %v1325
        %v1329 = vsel %vm949, %v1323, %v1327
        %v1330 = vsel %vm949, %v1317, %v1321
        %v1331 = vsel %vm949, %v1319, %v1323
        %v1332 = vsel %vm949, %v1313, %v1317
        %v1333 = vsel %vm949, %v1315, %v1319
        %v1334 = vsel %vm949, %v1309, %v1313
        %v1335 = vsel %vm949, %v1311, %v1315
        %v1336 = vsel %vm949, %v1305, %v1309
        %v1337 = vsel %vm949, %v1307, %v1311
        %v1338 = vsel %vm949, %v1301, %v1305
        %v1339 = vsel %vm949, %v1303, %v1307
        %v1340 = vsel %vm949, %v1325, %v1301
        %v1341 = vsel %vm949, %v1327, %v1303
        %v1342 = vpack.c.bf16 %v1341, %v1340
        %v1343 = vpack.c.bf16 %v1339, %v1338
        %v1344 = vpack.c.bf16 %v1337, %v1336
        %v1345 = vpack.c.bf16 %v1335, %v1334
        %v1346 = vpack.c.bf16 %v1333, %v1332
        %v1347 = vpack.c.bf16 %v1331, %v1330
        %v1348 = vpack.c.bf16 %v1329, %v1328
        %v1356 = vunpack.c.l.b16 %v1342
        %v1357 = vunpack.c.l.b16 %v1343
        %v1358 = vunpack.c.l.b16 %v1344
        %v1359 = vunpack.c.l.b16 %v1345
        %v1360 = vunpack.c.l.b16 %v1346
        %v1361 = vunpack.c.l.b16 %v1347
        %v1362 = vunpack.c.l.b16 %v1348
        %v1363 = vunpack.c.h.b16 %v1342
        %v1364 = vunpack.c.h.b16 %v1343
        %v1365 = vunpack.c.h.b16 %v1344
        %v1366 = vunpack.c.h.b16 %v1345
        %v1367 = vunpack.c.h.b16 %v1346
        %v1368 = vunpack.c.h.b16 %v1347
        %v1369 = vunpack.c.h.b16 %v1348
        %v1370 = vpack.c.b16 %v1357, %v1356
        %v1371 = vpack.c.b16 %v1359, %v1358
        %v1372 = vpack.c.b16 %v1361, %v1360
        %v1373 = vpack.c.b16 %v1362, %v1362
        %v1374 = vpack.c.b16 %v1364, %v1363
        %v1375 = vpack.c.b16 %v1366, %v1365
        %v1376 = vpack.c.b16 %v1368, %v1367
        %v1377 = vpack.c.b16 %v1369, %v1369
        %1386 = vst [vmem:[#allocation4 + $0xa8] sm:$0xff] %v1370
        %1387 = vst [vmem:[#allocation4 + $0xb0] sm:$0xff] %v1371
        %1388 = vst [vmem:[#allocation4 + $0xb8] sm:$0xff] %v1372
        %1389 = vst [vmem:[#allocation4 + $0xc0] sm:$0xf] %v1373
        %1390 = vst [vmem:[#allocation4 + $0xc4] sm:$0xff] %v1374
        %1391 = vst [vmem:[#allocation4 + $0xcc] sm:$0xff] %v1375
        %1392 = vst [vmem:[#allocation4 + $0xd4] sm:$0xff] %v1376
        %1393 = vst [vmem:[#allocation4 + $0xdc] sm:$0xf] %v1377
        %v1394 = vpack.c.bf16 %v1215, %v1207
        %v1395 = vpack.c.bf16 %v1216, %v1208
        %v1396 = vpack.c.bf16 %v1217, %v1209
        %v1397 = vpack.c.bf16 %v1218, %v1210
        %v1398 = vpack.c.bf16 %v1219, %v1211
        %v1399 = vpack.c.bf16 %v1220, %v1212
        %v1400 = vpack.c.bf16 %v1221, %v1213
        %v1401 = vpack.c.bf16 %v1222, %v1214
        %v1410 = vunpack.c.l.b16 %v1394
        %v1411 = vunpack.c.l.b16 %v1395
        %v1412 = vunpack.c.l.b16 %v1396
        %v1413 = vunpack.c.l.b16 %v1397
        %v1414 = vunpack.c.l.b16 %v1398
        %v1415 = vunpack.c.l.b16 %v1399
        %v1416 = vunpack.c.l.b16 %v1400
        %v1417 = vunpack.c.l.b16 %v1401
        %v1418 = vunpack.c.h.b16 %v1394
        %v1419 = vunpack.c.h.b16 %v1395
        %v1420 = vunpack.c.h.b16 %v1396
        %v1421 = vunpack.c.h.b16 %v1397
        %v1422 = vunpack.c.h.b16 %v1398
        %v1423 = vunpack.c.h.b16 %v1399
        %v1424 = vunpack.c.h.b16 %v1400
        %v1425 = vunpack.c.h.b16 %v1401
        %v1426 = vpack.c.b16 %v1411, %v1410
        %v1427 = vpack.c.b16 %v1413, %v1412
        %v1428 = vpack.c.b16 %v1415, %v1414
        %v1429 = vpack.c.b16 %v1417, %v1416
        %v1430 = vpack.c.b16 %v1419, %v1418
        %v1431 = vpack.c.b16 %v1421, %v1420
        %v1432 = vpack.c.b16 %v1423, %v1422
        %v1433 = vpack.c.b16 %v1425, %v1424
        %1434 = vrot.lane.b32.xlu0 %v1426, 100
        %v1435 = vpop.permute.xlu0 %1434
        %1436 = vrot.lane.b32.xlu0 %v1427, 100
        %v1437 = vpop.permute.xlu0 %1436
        %1438 = vrot.lane.b32.xlu0 %v1428, 100
        %v1439 = vpop.permute.xlu0 %1438
        %1440 = vrot.lane.b32.xlu0 %v1429, 100
        %v1441 = vpop.permute.xlu0 %1440
        %1442 = vrot.lane.b32.xlu0 %v1430, 100
        %v1443 = vpop.permute.xlu0 %1442
        %1444 = vrot.lane.b32.xlu0 %v1431, 100
        %v1445 = vpop.permute.xlu0 %1444
        %1446 = vrot.lane.b32.xlu0 %v1432, 100
        %v1447 = vpop.permute.xlu0 %1446
        %1448 = vrot.lane.b32.xlu0 %v1433, 100
        %v1449 = vpop.permute.xlu0 %1448
        %v1450 = vrot.slane %v1435, 4
        %v1451 = vrot.slane %v1437, 4
        %v1452 = vrot.slane %v1439, 4
        %v1453 = vrot.slane %v1441, 4
        %v1454 = vrot.slane %v1443, 4
        %v1455 = vrot.slane %v1445, 4
        %v1456 = vrot.slane %v1447, 4
        %v1457 = vrot.slane %v1449, 4
        %v1458 = vsel %vm1080, %v1450, %v1451
        %vm1459 = vcmask 818176
        %v1460 = vsel %vm1459, %v1435, %v1458
        %v1461 = vsel %vm1080, %v1451, %v1452
        %v1462 = vsel %vm1459, %v1437, %v1461
        %v1463 = vsel %vm1080, %v1452, %v1453
        %v1464 = vsel %vm1459, %v1439, %v1463
        %v1465 = vsel %vm1459, %v1441, %v1453
        %v1466 = vsel %vm1080, %v1454, %v1455
        %v1467 = vsel %vm1459, %v1443, %v1466
        %v1468 = vsel %vm1080, %v1455, %v1456
        %v1469 = vsel %vm1459, %v1445, %v1468
        %v1470 = vsel %vm1080, %v1456, %v1457
        %v1471 = vsel %vm1459, %v1447, %v1470
        %v1472 = vsel %vm1459, %v1449, %v1457
        %1481 = vst [vmem:[#allocation4 + $0xe0] sm:$0xff] %v1460
        %1482 = vst [vmem:[#allocation4 + $0xe8] sm:$0xff] %v1462
        %1483 = vst [vmem:[#allocation4 + $0xf0] sm:$0xff] %v1464
        %1484 = vst [vmem:[#allocation4 + $0xf8] sm:$0xf] %v1465
        %1485 = vst [vmem:[#allocation4 + $0xfc] sm:$0xff] %v1467
        %1486 = vst [vmem:[#allocation4 + $0x104] sm:$0xff] %v1469
        %1487 = vst [vmem:[#allocation4 + $0x10c] sm:$0xff] %v1471
        %1488 = vst [vmem:[#allocation4 + $0x114] sm:$0xf] %v1472
        %1489 = vrot.lane.b32.xlu0 %v1272, 127
        %v1490 = vpop.permute.xlu0 %1489
        %1491 = vrot.lane.b32.xlu0 %v1279, 127
        %v1492 = vpop.permute.xlu0 %1491
        %1493 = vrot.lane.b32.xlu0 %v1273, 127
        %v1494 = vpop.permute.xlu0 %1493
        %1495 = vrot.lane.b32.xlu0 %v1280, 127
        %v1496 = vpop.permute.xlu0 %1495
        %1497 = vrot.lane.b32.xlu0 %v1274, 127
        %v1498 = vpop.permute.xlu0 %1497
        %1499 = vrot.lane.b32.xlu0 %v1281, 127
        %v1500 = vpop.permute.xlu0 %1499
        %1501 = vrot.lane.b32.xlu0 %v1275, 127
        %v1502 = vpop.permute.xlu0 %1501
        %1503 = vrot.lane.b32.xlu0 %v1282, 127
        %v1504 = vpop.permute.xlu0 %1503
        %1505 = vrot.lane.b32.xlu0 %v1276, 127
        %v1506 = vpop.permute.xlu0 %1505
        %1507 = vrot.lane.b32.xlu0 %v1283, 127
        %v1508 = vpop.permute.xlu0 %1507
        %1509 = vrot.lane.b32.xlu0 %v1277, 127
        %v1510 = vpop.permute.xlu0 %1509
        %1511 = vrot.lane.b32.xlu0 %v1284, 127
        %v1512 = vpop.permute.xlu0 %1511
        %1513 = vrot.lane.b32.xlu0 %v1278, 127
        %v1514 = vpop.permute.xlu0 %1513
        %1515 = vrot.lane.b32.xlu0 %v1285, 127
        %v1516 = vpop.permute.xlu0 %1515
        %v1517 = vsel %vm1140, %v1510, %v1514
        %v1518 = vsel %vm1140, %v1512, %v1516
        %v1519 = vsel %vm1140, %v1506, %v1510
        %v1520 = vsel %vm1140, %v1508, %v1512
        %v1521 = vsel %vm1140, %v1502, %v1506
        %v1522 = vsel %vm1140, %v1504, %v1508
        %v1523 = vsel %vm1140, %v1498, %v1502
        %v1524 = vsel %vm1140, %v1500, %v1504
        %v1525 = vsel %vm1140, %v1494, %v1498
        %v1526 = vsel %vm1140, %v1496, %v1500
        %v1527 = vsel %vm1140, %v1490, %v1494
        %v1528 = vsel %vm1140, %v1492, %v1496
        %v1529 = vsel %vm1140, %v1514, %v1490
        %v1530 = vsel %vm1140, %v1516, %v1492
        %v1531 = vpack.c.bf16 %v1528, %v1527
        %v1532 = vpack.c.bf16 %v1526, %v1525
        %v1533 = vpack.c.bf16 %v1524, %v1523
        %v1534 = vpack.c.bf16 %v1522, %v1521
        %v1535 = vpack.c.bf16 %v1520, %v1519
        %v1536 = vpack.c.bf16 %v1518, %v1517
        %v1537 = vpack.c.bf16 %v1530, %v1529
        %v1545 = vunpack.c.l.b16 %v1531
        %v1546 = vunpack.c.l.b16 %v1532
        %v1547 = vunpack.c.l.b16 %v1533
        %v1548 = vunpack.c.l.b16 %v1534
        %v1549 = vunpack.c.l.b16 %v1535
        %v1550 = vunpack.c.l.b16 %v1536
        %v1551 = vunpack.c.l.b16 %v1537
        %v1552 = vunpack.c.h.b16 %v1531
        %v1553 = vunpack.c.h.b16 %v1532
        %v1554 = vunpack.c.h.b16 %v1533
        %v1555 = vunpack.c.h.b16 %v1534
        %v1556 = vunpack.c.h.b16 %v1535
        %v1557 = vunpack.c.h.b16 %v1536
        %v1558 = vunpack.c.h.b16 %v1537
        %v1559 = vpack.c.b16 %v1546, %v1545
        %v1560 = vpack.c.b16 %v1548, %v1547
        %v1561 = vpack.c.b16 %v1550, %v1549
        %v1562 = vpack.c.b16 %v1551, %v1551
        %v1563 = vpack.c.b16 %v1553, %v1552
        %v1564 = vpack.c.b16 %v1555, %v1554
        %v1565 = vpack.c.b16 %v1557, %v1556
        %v1566 = vpack.c.b16 %v1558, %v1558
        %1575 = vst [vmem:[#allocation4 + $0x118] sm:$0xff] %v1559
        %1576 = vst [vmem:[#allocation4 + $0x120] sm:$0xff] %v1560
        %1577 = vst [vmem:[#allocation4 + $0x128] sm:$0xff] %v1561
        %1578 = vst [vmem:[#allocation4 + $0x130] sm:$0xf] %v1562
        %1579 = vst [vmem:[#allocation4 + $0x134] sm:$0xff] %v1563
        %1580 = vst [vmem:[#allocation4 + $0x13c] sm:$0xff] %v1564
        %1581 = vst [vmem:[#allocation4 + $0x144] sm:$0xff] %v1565
        %1582 = vst [vmem:[#allocation4 + $0x14c] sm:$0xf] %v1566
        %v1583 = vld [vmem:[#allocation2] sm:$0xff]
        %v1584 = vld [vmem:[#allocation2 + $0x8] sm:$0xff]
        %v1585 = vld [vmem:[#allocation2 + $0x10] sm:$0xff]
        %v1586 = vld [vmem:[#allocation2 + $0x18] sm:$0xff]
        %v1587 = vld [vmem:[#allocation2 + $0x20] sm:$0xff]
        %v1588 = vld [vmem:[#allocation2 + $0x28] sm:$0xff]
        %v1589 = vld [vmem:[#allocation2 + $0x30] sm:$0xff]
        %v1590 = vld [vmem:[#allocation2 + $0x38] sm:$0xff]
        %v1591 = vld [vmem:[#allocation2 + $0x48] sm:$0xff]
        %v1592 = vld [vmem:[#allocation2 + $0x50] sm:$0xff]
        %v1593 = vld [vmem:[#allocation2 + $0x58] sm:$0xff]
        %v1594 = vld [vmem:[#allocation2 + $0x60] sm:$0xff]
        %v1595 = vld [vmem:[#allocation2 + $0x68] sm:$0xff]
        %v1596 = vld [vmem:[#allocation2 + $0x70] sm:$0xff]
        %v1597 = vld [vmem:[#allocation2 + $0x78] sm:$0xff]
        %v1598 = vld [vmem:[#allocation2 + $0x80] sm:$0xff]
        %1615 = vrot.lane.b32.xlu0 %v1583, 90
        %v1616 = vpop.permute.xlu0 %1615
        %1617 = vrot.lane.b32.xlu0 %v1584, 90
        %v1618 = vpop.permute.xlu0 %1617
        %1619 = vrot.lane.b32.xlu0 %v1585, 90
        %v1620 = vpop.permute.xlu0 %1619
        %1621 = vrot.lane.b32.xlu0 %v1586, 90
        %v1622 = vpop.permute.xlu0 %1621
        %1623 = vrot.lane.b32.xlu0 %v1587, 90
        %v1624 = vpop.permute.xlu0 %1623
        %1625 = vrot.lane.b32.xlu0 %v1588, 90
        %v1626 = vpop.permute.xlu0 %1625
        %1627 = vrot.lane.b32.xlu0 %v1589, 90
        %v1628 = vpop.permute.xlu0 %1627
        %1629 = vrot.lane.b32.xlu0 %v1590, 90
        %v1630 = vpop.permute.xlu0 %1629
        %1631 = vrot.lane.b32.xlu0 %v1591, 90
        %v1632 = vpop.permute.xlu0 %1631
        %1633 = vrot.lane.b32.xlu0 %v1592, 90
        %v1634 = vpop.permute.xlu0 %1633
        %1635 = vrot.lane.b32.xlu0 %v1593, 90
        %v1636 = vpop.permute.xlu0 %1635
        %1637 = vrot.lane.b32.xlu0 %v1594, 90
        %v1638 = vpop.permute.xlu0 %1637
        %1639 = vrot.lane.b32.xlu0 %v1595, 90
        %v1640 = vpop.permute.xlu0 %1639
        %1641 = vrot.lane.b32.xlu0 %v1596, 90
        %v1642 = vpop.permute.xlu0 %1641
        %1643 = vrot.lane.b32.xlu0 %v1597, 90
        %v1644 = vpop.permute.xlu0 %1643
        %1645 = vrot.lane.b32.xlu0 %v1598, 90
        %v1646 = vpop.permute.xlu0 %1645
        %vm1647 = vcmask 736256
        %v1648 = vsel %vm1647, %v1616, %v1618
        %v1649 = vsel %vm1647, %v1618, %v1620
        %v1650 = vsel %vm1647, %v1620, %v1622
        %v1651 = vsel %vm1647, %v1622, %v1624
        %v1652 = vsel %vm1647, %v1624, %v1626
        %v1653 = vsel %vm1647, %v1626, %v1628
        %v1654 = vsel %vm1647, %v1628, %v1630
        %v1655 = vsel %vm1647, %v1632, %v1634
        %v1656 = vsel %vm1647, %v1634, %v1636
        %v1657 = vsel %vm1647, %v1636, %v1638
        %v1658 = vsel %vm1647, %v1638, %v1640
        %v1659 = vsel %vm1647, %v1640, %v1642
        %v1660 = vsel %vm1647, %v1642, %v1644
        %v1661 = vsel %vm1647, %v1644, %v1646
        %1676 = vrot.lane.b32.xlu0 %v1648, 1
        %v1677 = vpop.permute.xlu0 %1676
        %1678 = vrot.lane.b32.xlu0 %v1655, 1
        %v1679 = vpop.permute.xlu0 %1678
        %1680 = vrot.lane.b32.xlu0 %v1649, 1
        %v1681 = vpop.permute.xlu0 %1680
        %1682 = vrot.lane.b32.xlu0 %v1656, 1
        %v1683 = vpop.permute.xlu0 %1682
        %1684 = vrot.lane.b32.xlu0 %v1650, 1
        %v1685 = vpop.permute.xlu0 %1684
        %1686 = vrot.lane.b32.xlu0 %v1657, 1
        %v1687 = vpop.permute.xlu0 %1686
        %1688 = vrot.lane.b32.xlu0 %v1651, 1
        %v1689 = vpop.permute.xlu0 %1688
        %1690 = vrot.lane.b32.xlu0 %v1658, 1
        %v1691 = vpop.permute.xlu0 %1690
        %1692 = vrot.lane.b32.xlu0 %v1652, 1
        %v1693 = vpop.permute.xlu0 %1692
        %1694 = vrot.lane.b32.xlu0 %v1659, 1
        %v1695 = vpop.permute.xlu0 %1694
        %1696 = vrot.lane.b32.xlu0 %v1653, 1
        %v1697 = vpop.permute.xlu0 %1696
        %1698 = vrot.lane.b32.xlu0 %v1660, 1
        %v1699 = vpop.permute.xlu0 %1698
        %1700 = vrot.lane.b32.xlu0 %v1654, 1
        %v1701 = vpop.permute.xlu0 %1700
        %1702 = vrot.lane.b32.xlu0 %v1661, 1
        %v1703 = vpop.permute.xlu0 %1702
        %v1704 = vsel %vm949, %v1697, %v1701
        %v1705 = vsel %vm949, %v1699, %v1703
        %v1706 = vsel %vm949, %v1693, %v1697
        %v1707 = vsel %vm949, %v1695, %v1699
        %v1708 = vsel %vm949, %v1689, %v1693
        %v1709 = vsel %vm949, %v1691, %v1695
        %v1710 = vsel %vm949, %v1685, %v1689
        %v1711 = vsel %vm949, %v1687, %v1691
        %v1712 = vsel %vm949, %v1681, %v1685
        %v1713 = vsel %vm949, %v1683, %v1687
        %v1714 = vsel %vm949, %v1677, %v1681
        %v1715 = vsel %vm949, %v1679, %v1683
        %v1716 = vsel %vm949, %v1701, %v1677
        %v1717 = vsel %vm949, %v1703, %v1679
        %v1718 = vpack.c.bf16 %v1717, %v1716
        %v1719 = vpack.c.bf16 %v1715, %v1714
        %v1720 = vpack.c.bf16 %v1713, %v1712
        %v1721 = vpack.c.bf16 %v1711, %v1710
        %v1722 = vpack.c.bf16 %v1709, %v1708
        %v1723 = vpack.c.bf16 %v1707, %v1706
        %v1724 = vpack.c.bf16 %v1705, %v1704
        %v1732 = vunpack.c.l.b16 %v1718
        %v1733 = vunpack.c.l.b16 %v1719
        %v1734 = vunpack.c.l.b16 %v1720
        %v1735 = vunpack.c.l.b16 %v1721
        %v1736 = vunpack.c.l.b16 %v1722
        %v1737 = vunpack.c.l.b16 %v1723
        %v1738 = vunpack.c.l.b16 %v1724
        %v1739 = vunpack.c.h.b16 %v1718
        %v1740 = vunpack.c.h.b16 %v1719
        %v1741 = vunpack.c.h.b16 %v1720
        %v1742 = vunpack.c.h.b16 %v1721
        %v1743 = vunpack.c.h.b16 %v1722
        %v1744 = vunpack.c.h.b16 %v1723
        %v1745 = vunpack.c.h.b16 %v1724
        %v1746 = vpack.c.b16 %v1733, %v1732
        %v1747 = vpack.c.b16 %v1735, %v1734
        %v1748 = vpack.c.b16 %v1737, %v1736
        %v1749 = vpack.c.b16 %v1738, %v1738
        %v1750 = vpack.c.b16 %v1740, %v1739
        %v1751 = vpack.c.b16 %v1742, %v1741
        %v1752 = vpack.c.b16 %v1744, %v1743
        %v1753 = vpack.c.b16 %v1745, %v1745
        %1762 = vst [vmem:[#allocation4 + $0x150] sm:$0xff] %v1746
        %1763 = vst [vmem:[#allocation4 + $0x158] sm:$0xff] %v1747
        %1764 = vst [vmem:[#allocation4 + $0x160] sm:$0xff] %v1748
        %1765 = vst [vmem:[#allocation4 + $0x168] sm:$0xf] %v1749
        %1766 = vst [vmem:[#allocation4 + $0x16c] sm:$0xff] %v1750
        %1767 = vst [vmem:[#allocation4 + $0x174] sm:$0xff] %v1751
        %1768 = vst [vmem:[#allocation4 + $0x17c] sm:$0xff] %v1752
        %1769 = vst [vmem:[#allocation4 + $0x184] sm:$0xf] %v1753
        %v1770 = vpack.c.bf16 %v1591, %v1583
        %v1771 = vpack.c.bf16 %v1592, %v1584
        %v1772 = vpack.c.bf16 %v1593, %v1585
        %v1773 = vpack.c.bf16 %v1594, %v1586
        %v1774 = vpack.c.bf16 %v1595, %v1587
        %v1775 = vpack.c.bf16 %v1596, %v1588
        %v1776 = vpack.c.bf16 %v1597, %v1589
        %v1777 = vpack.c.bf16 %v1598, %v1590
        %v1786 = vunpack.c.l.b16 %v1770
        %v1787 = vunpack.c.l.b16 %v1771
        %v1788 = vunpack.c.l.b16 %v1772
        %v1789 = vunpack.c.l.b16 %v1773
        %v1790 = vunpack.c.l.b16 %v1774
        %v1791 = vunpack.c.l.b16 %v1775
        %v1792 = vunpack.c.l.b16 %v1776
        %v1793 = vunpack.c.l.b16 %v1777
        %v1794 = vunpack.c.h.b16 %v1770
        %v1795 = vunpack.c.h.b16 %v1771
        %v1796 = vunpack.c.h.b16 %v1772
        %v1797 = vunpack.c.h.b16 %v1773
        %v1798 = vunpack.c.h.b16 %v1774
        %v1799 = vunpack.c.h.b16 %v1775
        %v1800 = vunpack.c.h.b16 %v1776
        %v1801 = vunpack.c.h.b16 %v1777
        %v1802 = vpack.c.b16 %v1787, %v1786
        %v1803 = vpack.c.b16 %v1789, %v1788
        %v1804 = vpack.c.b16 %v1791, %v1790
        %v1805 = vpack.c.b16 %v1793, %v1792
        %v1806 = vpack.c.b16 %v1795, %v1794
        %v1807 = vpack.c.b16 %v1797, %v1796
        %v1808 = vpack.c.b16 %v1799, %v1798
        %v1809 = vpack.c.b16 %v1801, %v1800
        %1810 = vrot.lane.b32.xlu0 %v1802, 90
        %v1811 = vpop.permute.xlu0 %1810
        %1812 = vrot.lane.b32.xlu0 %v1803, 90
        %v1813 = vpop.permute.xlu0 %1812
        %1814 = vrot.lane.b32.xlu0 %v1804, 90
        %v1815 = vpop.permute.xlu0 %1814
        %1816 = vrot.lane.b32.xlu0 %v1805, 90
        %v1817 = vpop.permute.xlu0 %1816
        %1818 = vrot.lane.b32.xlu0 %v1806, 90
        %v1819 = vpop.permute.xlu0 %1818
        %1820 = vrot.lane.b32.xlu0 %v1807, 90
        %v1821 = vpop.permute.xlu0 %1820
        %1822 = vrot.lane.b32.xlu0 %v1808, 90
        %v1823 = vpop.permute.xlu0 %1822
        %1824 = vrot.lane.b32.xlu0 %v1809, 90
        %v1825 = vpop.permute.xlu0 %1824
        %v1826 = vrot.slane %v1811, 4
        %v1827 = vrot.slane %v1813, 4
        %v1828 = vrot.slane %v1815, 4
        %v1829 = vrot.slane %v1817, 4
        %v1830 = vrot.slane %v1819, 4
        %v1831 = vrot.slane %v1821, 4
        %v1832 = vrot.slane %v1823, 4
        %v1833 = vrot.slane %v1825, 4
        %v1834 = vsel %vm1080, %v1826, %v1827
        %vm1835 = vcmask 736256
        %v1836 = vsel %vm1835, %v1811, %v1834
        %v1837 = vsel %vm1080, %v1827, %v1828
        %v1838 = vsel %vm1835, %v1813, %v1837
        %v1839 = vsel %vm1080, %v1828, %v1829
        %v1840 = vsel %vm1835, %v1815, %v1839
        %v1841 = vsel %vm1835, %v1817, %v1829
        %v1842 = vsel %vm1080, %v1830, %v1831
        %v1843 = vsel %vm1835, %v1819, %v1842
        %v1844 = vsel %vm1080, %v1831, %v1832
        %v1845 = vsel %vm1835, %v1821, %v1844
        %v1846 = vsel %vm1080, %v1832, %v1833
        %v1847 = vsel %vm1835, %v1823, %v1846
        %v1848 = vsel %vm1835, %v1825, %v1833
        %1857 = vst [vmem:[#allocation4 + $0x188] sm:$0xff] %v1836
        %1858 = vst [vmem:[#allocation4 + $0x190] sm:$0xff] %v1838
        %1859 = vst [vmem:[#allocation4 + $0x198] sm:$0xff] %v1840
        %1860 = vst [vmem:[#allocation4 + $0x1a0] sm:$0xf] %v1841
        %1861 = vst [vmem:[#allocation4 + $0x1a4] sm:$0xff] %v1843
        %1862 = vst [vmem:[#allocation4 + $0x1ac] sm:$0xff] %v1845
        %1863 = vst [vmem:[#allocation4 + $0x1b4] sm:$0xff] %v1847
        %1864 = vst [vmem:[#allocation4 + $0x1bc] sm:$0xf] %v1848
        %1865 = vrot.lane.b32.xlu0 %v1648, 127
        %v1866 = vpop.permute.xlu0 %1865
        %1867 = vrot.lane.b32.xlu0 %v1655, 127
        %v1868 = vpop.permute.xlu0 %1867
        %1869 = vrot.lane.b32.xlu0 %v1649, 127
        %v1870 = vpop.permute.xlu0 %1869
        %1871 = vrot.lane.b32.xlu0 %v1656, 127
        %v1872 = vpop.permute.xlu0 %1871
        %1873 = vrot.lane.b32.xlu0 %v1650, 127
        %v1874 = vpop.permute.xlu0 %1873
        %1875 = vrot.lane.b32.xlu0 %v1657, 127
        %v1876 = vpop.permute.xlu0 %1875
        %1877 = vrot.lane.b32.xlu0 %v1651, 127
        %v1878 = vpop.permute.xlu0 %1877
        %1879 = vrot.lane.b32.xlu0 %v1658, 127
        %v1880 = vpop.permute.xlu0 %1879
        %1881 = vrot.lane.b32.xlu0 %v1652, 127
        %v1882 = vpop.permute.xlu0 %1881
        %1883 = vrot.lane.b32.xlu0 %v1659, 127
        %v1884 = vpop.permute.xlu0 %1883
        %1885 = vrot.lane.b32.xlu0 %v1653, 127
        %v1886 = vpop.permute.xlu0 %1885
        %1887 = vrot.lane.b32.xlu0 %v1660, 127
        %v1888 = vpop.permute.xlu0 %1887
        %1889 = vrot.lane.b32.xlu0 %v1654, 127
        %v1890 = vpop.permute.xlu0 %1889
        %1891 = vrot.lane.b32.xlu0 %v1661, 127
        %v1892 = vpop.permute.xlu0 %1891
        %v1893 = vsel %vm1140, %v1886, %v1890
        %v1894 = vsel %vm1140, %v1888, %v1892
        %v1895 = vsel %vm1140, %v1882, %v1886
        %v1896 = vsel %vm1140, %v1884, %v1888
        %v1897 = vsel %vm1140, %v1878, %v1882
        %v1898 = vsel %vm1140, %v1880, %v1884
        %v1899 = vsel %vm1140, %v1874, %v1878
        %v1900 = vsel %vm1140, %v1876, %v1880
        %v1901 = vsel %vm1140, %v1870, %v1874
        %v1902 = vsel %vm1140, %v1872, %v1876
        %v1903 = vsel %vm1140, %v1866, %v1870
        %v1904 = vsel %vm1140, %v1868, %v1872
        %v1905 = vsel %vm1140, %v1890, %v1866
        %v1906 = vsel %vm1140, %v1892, %v1868
        %v1907 = vpack.c.bf16 %v1904, %v1903
        %v1908 = vpack.c.bf16 %v1902, %v1901
        %v1909 = vpack.c.bf16 %v1900, %v1899
        %v1910 = vpack.c.bf16 %v1898, %v1897
        %v1911 = vpack.c.bf16 %v1896, %v1895
        %v1912 = vpack.c.bf16 %v1894, %v1893
        %v1913 = vpack.c.bf16 %v1906, %v1905
        %v1921 = vunpack.c.l.b16 %v1907
        %v1922 = vunpack.c.l.b16 %v1908
        %v1923 = vunpack.c.l.b16 %v1909
        %v1924 = vunpack.c.l.b16 %v1910
        %v1925 = vunpack.c.l.b16 %v1911
        %v1926 = vunpack.c.l.b16 %v1912
        %v1927 = vunpack.c.l.b16 %v1913
        %v1928 = vunpack.c.h.b16 %v1907
        %v1929 = vunpack.c.h.b16 %v1908
        %v1930 = vunpack.c.h.b16 %v1909
        %v1931 = vunpack.c.h.b16 %v1910
        %v1932 = vunpack.c.h.b16 %v1911
        %v1933 = vunpack.c.h.b16 %v1912
        %v1934 = vunpack.c.h.b16 %v1913
        %v1935 = vpack.c.b16 %v1922, %v1921
        %v1936 = vpack.c.b16 %v1924, %v1923
        %v1937 = vpack.c.b16 %v1926, %v1925
        %v1938 = vpack.c.b16 %v1927, %v1927
        %v1939 = vpack.c.b16 %v1929, %v1928
        %v1940 = vpack.c.b16 %v1931, %v1930
        %v1941 = vpack.c.b16 %v1933, %v1932
        %v1942 = vpack.c.b16 %v1934, %v1934
        %1951 = vst [vmem:[#allocation4 + $0x1c0] sm:$0xff] %v1935
        %1952 = vst [vmem:[#allocation4 + $0x1c8] sm:$0xff] %v1936
        %1953 = vst [vmem:[#allocation4 + $0x1d0] sm:$0xff] %v1937
        %1954 = vst [vmem:[#allocation4 + $0x1d8] sm:$0xf] %v1938
        %1955 = vst [vmem:[#allocation4 + $0x1dc] sm:$0xff] %v1939
        %1956 = vst [vmem:[#allocation4 + $0x1e4] sm:$0xff] %v1940
        %1957 = vst [vmem:[#allocation4 + $0x1ec] sm:$0xff] %v1941
        %1958 = vst [vmem:[#allocation4 + $0x1f4] sm:$0xf] %v1942
        %v1959 = vld [vmem:[#allocation2] sm:$0xff]
        %v1960 = vld [vmem:[#allocation2 + $0x8] sm:$0xff]
        %v1961 = vld [vmem:[#allocation2 + $0x10] sm:$0xff]
        %v1962 = vld [vmem:[#allocation2 + $0x18] sm:$0xff]
        %v1963 = vld [vmem:[#allocation2 + $0x20] sm:$0xff]
        %v1964 = vld [vmem:[#allocation2 + $0x28] sm:$0xff]
        %v1965 = vld [vmem:[#allocation2 + $0x30] sm:$0xff]
        %v1966 = vld [vmem:[#allocation2 + $0x38] sm:$0xff]
        %v1967 = vld [vmem:[#allocation2 + $0x48] sm:$0xff]
        %v1968 = vld [vmem:[#allocation2 + $0x50] sm:$0xff]
        %v1969 = vld [vmem:[#allocation2 + $0x58] sm:$0xff]
        %v1970 = vld [vmem:[#allocation2 + $0x60] sm:$0xff]
        %v1971 = vld [vmem:[#allocation2 + $0x68] sm:$0xff]
        %v1972 = vld [vmem:[#allocation2 + $0x70] sm:$0xff]
        %v1973 = vld [vmem:[#allocation2 + $0x78] sm:$0xff]
        %v1974 = vld [vmem:[#allocation2 + $0x80] sm:$0xff]
        %1991 = vrot.lane.b32.xlu0 %v1959, 10
        %v1992 = vpop.permute.xlu0 %1991
        %1993 = vrot.lane.b32.xlu0 %v1960, 10
        %v1994 = vpop.permute.xlu0 %1993
        %1995 = vrot.lane.b32.xlu0 %v1961, 10
        %v1996 = vpop.permute.xlu0 %1995
        %1997 = vrot.lane.b32.xlu0 %v1962, 10
        %v1998 = vpop.permute.xlu0 %1997
        %1999 = vrot.lane.b32.xlu0 %v1963, 10
        %v2000 = vpop.permute.xlu0 %1999
        %2001 = vrot.lane.b32.xlu0 %v1964, 10
        %v2002 = vpop.permute.xlu0 %2001
        %2003 = vrot.lane.b32.xlu0 %v1965, 10
        %v2004 = vpop.permute.xlu0 %2003
        %2005 = vrot.lane.b32.xlu0 %v1966, 10
        %v2006 = vpop.permute.xlu0 %2005
        %2007 = vrot.lane.b32.xlu0 %v1967, 10
        %v2008 = vpop.permute.xlu0 %2007
        %2009 = vrot.lane.b32.xlu0 %v1968, 10
        %v2010 = vpop.permute.xlu0 %2009
        %2011 = vrot.lane.b32.xlu0 %v1969, 10
        %v2012 = vpop.permute.xlu0 %2011
        %2013 = vrot.lane.b32.xlu0 %v1970, 10
        %v2014 = vpop.permute.xlu0 %2013
        %2015 = vrot.lane.b32.xlu0 %v1971, 10
        %v2016 = vpop.permute.xlu0 %2015
        %2017 = vrot.lane.b32.xlu0 %v1972, 10
        %v2018 = vpop.permute.xlu0 %2017
        %2019 = vrot.lane.b32.xlu0 %v1973, 10
        %v2020 = vpop.permute.xlu0 %2019
        %2021 = vrot.lane.b32.xlu0 %v1974, 10
        %v2022 = vpop.permute.xlu0 %2021
        %vm2023 = vcmask 80896
        %v2024 = vsel %vm2023, %v1992, %v1994
        %v2025 = vsel %vm2023, %v1994, %v1996
        %v2026 = vsel %vm2023, %v1996, %v1998
        %v2027 = vsel %vm2023, %v1998, %v2000
        %v2028 = vsel %vm2023, %v2000, %v2002
        %v2029 = vsel %vm2023, %v2002, %v2004
        %v2030 = vsel %vm2023, %v2004, %v2006
        %v2031 = vsel %vm2023, %v2008, %v2010
        %v2032 = vsel %vm2023, %v2010, %v2012
        %v2033 = vsel %vm2023, %v2012, %v2014
        %v2034 = vsel %vm2023, %v2014, %v2016
        %v2035 = vsel %vm2023, %v2016, %v2018
        %v2036 = vsel %vm2023, %v2018, %v2020
        %v2037 = vsel %vm2023, %v2020, %v2022
        %2052 = vrot.lane.b32.xlu0 %v2024, 1
        %v2053 = vpop.permute.xlu0 %2052
        %2054 = vrot.lane.b32.xlu0 %v2031, 1
        %v2055 = vpop.permute.xlu0 %2054
        %2056 = vrot.lane.b32.xlu0 %v2025, 1
        %v2057 = vpop.permute.xlu0 %2056
        %2058 = vrot.lane.b32.xlu0 %v2032, 1
        %v2059 = vpop.permute.xlu0 %2058
        %2060 = vrot.lane.b32.xlu0 %v2026, 1
        %v2061 = vpop.permute.xlu0 %2060
        %2062 = vrot.lane.b32.xlu0 %v2033, 1
        %v2063 = vpop.permute.xlu0 %2062
        %2064 = vrot.lane.b32.xlu0 %v2027, 1
        %v2065 = vpop.permute.xlu0 %2064
        %2066 = vrot.lane.b32.xlu0 %v2034, 1
        %v2067 = vpop.permute.xlu0 %2066
        %2068 = vrot.lane.b32.xlu0 %v2028, 1
        %v2069 = vpop.permute.xlu0 %2068
        %2070 = vrot.lane.b32.xlu0 %v2035, 1
        %v2071 = vpop.permute.xlu0 %2070
        %2072 = vrot.lane.b32.xlu0 %v2029, 1
        %v2073 = vpop.permute.xlu0 %2072
        %2074 = vrot.lane.b32.xlu0 %v2036, 1
        %v2075 = vpop.permute.xlu0 %2074
        %2076 = vrot.lane.b32.xlu0 %v2030, 1
        %v2077 = vpop.permute.xlu0 %2076
        %2078 = vrot.lane.b32.xlu0 %v2037, 1
        %v2079 = vpop.permute.xlu0 %2078
        %v2080 = vsel %vm949, %v2073, %v2077
        %v2081 = vsel %vm949, %v2075, %v2079
        %v2082 = vsel %vm949, %v2069, %v2073
        %v2083 = vsel %vm949, %v2071, %v2075
        %v2084 = vsel %vm949, %v2065, %v2069
        %v2085 = vsel %vm949, %v2067, %v2071
        %v2086 = vsel %vm949, %v2061, %v2065
        %v2087 = vsel %vm949, %v2063, %v2067
        %v2088 = vsel %vm949, %v2057, %v2061
        %v2089 = vsel %vm949, %v2059, %v2063
        %v2090 = vsel %vm949, %v2053, %v2057
        %v2091 = vsel %vm949, %v2055, %v2059
        %v2092 = vsel %vm949, %v2077, %v2053
        %v2093 = vsel %vm949, %v2079, %v2055
        %v2094 = vpack.c.bf16 %v2093, %v2092
        %v2095 = vpack.c.bf16 %v2091, %v2090
        %v2096 = vpack.c.bf16 %v2089, %v2088
        %v2097 = vpack.c.bf16 %v2087, %v2086
        %v2098 = vpack.c.bf16 %v2085, %v2084
        %v2099 = vpack.c.bf16 %v2083, %v2082
        %v2100 = vpack.c.bf16 %v2081, %v2080
        %v2108 = vunpack.c.l.b16 %v2094
        %v2109 = vunpack.c.l.b16 %v2095
        %v2110 = vunpack.c.l.b16 %v2096
        %v2111 = vunpack.c.l.b16 %v2097
        %v2112 = vunpack.c.l.b16 %v2098
        %v2113 = vunpack.c.l.b16 %v2099
        %v2114 = vunpack.c.l.b16 %v2100
        %v2115 = vunpack.c.h.b16 %v2094
        %v2116 = vunpack.c.h.b16 %v2095
        %v2117 = vunpack.c.h.b16 %v2096
        %v2118 = vunpack.c.h.b16 %v2097
        %v2119 = vunpack.c.h.b16 %v2098
        %v2120 = vunpack.c.h.b16 %v2099
        %v2121 = vunpack.c.h.b16 %v2100
        %v2122 = vpack.c.b16 %v2109, %v2108
        %v2123 = vpack.c.b16 %v2111, %v2110
        %v2124 = vpack.c.b16 %v2113, %v2112
        %v2125 = vpack.c.b16 %v2114, %v2114
        %v2126 = vpack.c.b16 %v2116, %v2115
        %v2127 = vpack.c.b16 %v2118, %v2117
        %v2128 = vpack.c.b16 %v2120, %v2119
        %v2129 = vpack.c.b16 %v2121, %v2121
        %2138 = vst [vmem:[#allocation4 + $0x1f8] sm:$0xff] %v2122
        %2139 = vst [vmem:[#allocation4 + $0x200] sm:$0xff] %v2123
        %2140 = vst [vmem:[#allocation4 + $0x208] sm:$0xff] %v2124
        %2141 = vst [vmem:[#allocation4 + $0x210] sm:$0xf] %v2125
        %2142 = vst [vmem:[#allocation4 + $0x214] sm:$0xff] %v2126
        %2143 = vst [vmem:[#allocation4 + $0x21c] sm:$0xff] %v2127
        %2144 = vst [vmem:[#allocation4 + $0x224] sm:$0xff] %v2128
        %2145 = vst [vmem:[#allocation4 + $0x22c] sm:$0xf] %v2129
        %v2146 = vpack.c.bf16 %v1967, %v1959
        %v2147 = vpack.c.bf16 %v1968, %v1960
        %v2148 = vpack.c.bf16 %v1969, %v1961
        %v2149 = vpack.c.bf16 %v1970, %v1962
        %v2150 = vpack.c.bf16 %v1971, %v1963
        %v2151 = vpack.c.bf16 %v1972, %v1964
        %v2152 = vpack.c.bf16 %v1973, %v1965
        %v2153 = vpack.c.bf16 %v1974, %v1966
        %v2162 = vunpack.c.l.b16 %v2146
        %v2163 = vunpack.c.l.b16 %v2147
        %v2164 = vunpack.c.l.b16 %v2148
        %v2165 = vunpack.c.l.b16 %v2149
        %v2166 = vunpack.c.l.b16 %v2150
        %v2167 = vunpack.c.l.b16 %v2151
        %v2168 = vunpack.c.l.b16 %v2152
        %v2169 = vunpack.c.l.b16 %v2153
        %v2170 = vunpack.c.h.b16 %v2146
        %v2171 = vunpack.c.h.b16 %v2147
        %v2172 = vunpack.c.h.b16 %v2148
        %v2173 = vunpack.c.h.b16 %v2149
        %v2174 = vunpack.c.h.b16 %v2150
        %v2175 = vunpack.c.h.b16 %v2151
        %v2176 = vunpack.c.h.b16 %v2152
        %v2177 = vunpack.c.h.b16 %v2153
        %v2178 = vpack.c.b16 %v2163, %v2162
        %v2179 = vpack.c.b16 %v2165, %v2164
        %v2180 = vpack.c.b16 %v2167, %v2166
        %v2181 = vpack.c.b16 %v2169, %v2168
        %v2182 = vpack.c.b16 %v2171, %v2170
        %v2183 = vpack.c.b16 %v2173, %v2172
        %v2184 = vpack.c.b16 %v2175, %v2174
        %v2185 = vpack.c.b16 %v2177, %v2176
        %2186 = vrot.lane.b32.xlu0 %v2178, 10
        %v2187 = vpop.permute.xlu0 %2186
        %2188 = vrot.lane.b32.xlu0 %v2179, 10
        %v2189 = vpop.permute.xlu0 %2188
        %2190 = vrot.lane.b32.xlu0 %v2180, 10
        %v2191 = vpop.permute.xlu0 %2190
        %2192 = vrot.lane.b32.xlu0 %v2181, 10
        %v2193 = vpop.permute.xlu0 %2192
        %2194 = vrot.lane.b32.xlu0 %v2182, 10
        %v2195 = vpop.permute.xlu0 %2194
        %2196 = vrot.lane.b32.xlu0 %v2183, 10
        %v2197 = vpop.permute.xlu0 %2196
        %2198 = vrot.lane.b32.xlu0 %v2184, 10
        %v2199 = vpop.permute.xlu0 %2198
        %2200 = vrot.lane.b32.xlu0 %v2185, 10
        %v2201 = vpop.permute.xlu0 %2200
        %v2202 = vrot.slane %v2187, 4
        %v2203 = vrot.slane %v2189, 4
        %v2204 = vrot.slane %v2191, 4
        %v2205 = vrot.slane %v2193, 4
        %v2206 = vrot.slane %v2195, 4
        %v2207 = vrot.slane %v2197, 4
        %v2208 = vrot.slane %v2199, 4
        %v2209 = vrot.slane %v2201, 4
        %v2210 = vsel %vm1080, %v2202, %v2203
        %vm2211 = vcmask 80896
        %v2212 = vsel %vm2211, %v2187, %v2210
        %v2213 = vsel %vm1080, %v2203, %v2204
        %v2214 = vsel %vm2211, %v2189, %v2213
        %v2215 = vsel %vm1080, %v2204, %v2205
        %v2216 = vsel %vm2211, %v2191, %v2215
        %v2217 = vsel %vm2211, %v2193, %v2205
        %v2218 = vsel %vm1080, %v2206, %v2207
        %v2219 = vsel %vm2211, %v2195, %v2218
        %v2220 = vsel %vm1080, %v2207, %v2208
        %v2221 = vsel %vm2211, %v2197, %v2220
        %v2222 = vsel %vm1080, %v2208, %v2209
        %v2223 = vsel %vm2211, %v2199, %v2222
        %v2224 = vsel %vm2211, %v2201, %v2209
        %2233 = vst [vmem:[#allocation4 + $0x230] sm:$0xff] %v2212
        %2234 = vst [vmem:[#allocation4 + $0x238] sm:$0xff] %v2214
        %2235 = vst [vmem:[#allocation4 + $0x240] sm:$0xff] %v2216
        %2236 = vst [vmem:[#allocation4 + $0x248] sm:$0xf] %v2217
        %2237 = vst [vmem:[#allocation4 + $0x24c] sm:$0xff] %v2219
        %2238 = vst [vmem:[#allocation4 + $0x254] sm:$0xff] %v2221
        %2239 = vst [vmem:[#allocation4 + $0x25c] sm:$0xff] %v2223
        %2240 = vst [vmem:[#allocation4 + $0x264] sm:$0xf] %v2224
        %2241 = vrot.lane.b32.xlu0 %v2024, 127
        %v2242 = vpop.permute.xlu0 %2241
        %2243 = vrot.lane.b32.xlu0 %v2031, 127
        %v2244 = vpop.permute.xlu0 %2243
        %2245 = vrot.lane.b32.xlu0 %v2025, 127
        %v2246 = vpop.permute.xlu0 %2245
        %2247 = vrot.lane.b32.xlu0 %v2032, 127
        %v2248 = vpop.permute.xlu0 %2247
        %2249 = vrot.lane.b32.xlu0 %v2026, 127
        %v2250 = vpop.permute.xlu0 %2249
        %2251 = vrot.lane.b32.xlu0 %v2033, 127
        %v2252 = vpop.permute.xlu0 %2251
        %2253 = vrot.lane.b32.xlu0 %v2027, 127
        %v2254 = vpop.permute.xlu0 %2253
        %2255 = vrot.lane.b32.xlu0 %v2034, 127
        %v2256 = vpop.permute.xlu0 %2255
        %2257 = vrot.lane.b32.xlu0 %v2028, 127
        %v2258 = vpop.permute.xlu0 %2257
        %2259 = vrot.lane.b32.xlu0 %v2035, 127
        %v2260 = vpop.permute.xlu0 %2259
        %2261 = vrot.lane.b32.xlu0 %v2029, 127
        %v2262 = vpop.permute.xlu0 %2261
        %2263 = vrot.lane.b32.xlu0 %v2036, 127
        %v2264 = vpop.permute.xlu0 %2263
        %2265 = vrot.lane.b32.xlu0 %v2030, 127
        %v2266 = vpop.permute.xlu0 %2265
        %2267 = vrot.lane.b32.xlu0 %v2037, 127
        %v2268 = vpop.permute.xlu0 %2267
        %v2269 = vsel %vm1140, %v2262, %v2266
        %v2270 = vsel %vm1140, %v2264, %v2268
        %v2271 = vsel %vm1140, %v2258, %v2262
        %v2272 = vsel %vm1140, %v2260, %v2264
        %v2273 = vsel %vm1140, %v2254, %v2258
        %v2274 = vsel %vm1140, %v2256, %v2260
        %v2275 = vsel %vm1140, %v2250, %v2254
        %v2276 = vsel %vm1140, %v2252, %v2256
        %v2277 = vsel %vm1140, %v2246, %v2250
        %v2278 = vsel %vm1140, %v2248, %v2252
        %v2279 = vsel %vm1140, %v2242, %v2246
        %v2280 = vsel %vm1140, %v2244, %v2248
        %v2281 = vsel %vm1140, %v2266, %v2242
        %v2282 = vsel %vm1140, %v2268, %v2244
        %v2283 = vpack.c.bf16 %v2280, %v2279
        %v2284 = vpack.c.bf16 %v2278, %v2277
        %v2285 = vpack.c.bf16 %v2276, %v2275
        %v2286 = vpack.c.bf16 %v2274, %v2273
        %v2287 = vpack.c.bf16 %v2272, %v2271
        %v2288 = vpack.c.bf16 %v2270, %v2269
        %v2289 = vpack.c.bf16 %v2282, %v2281
        %v2297 = vunpack.c.l.b16 %v2283
        %v2298 = vunpack.c.l.b16 %v2284
        %v2299 = vunpack.c.l.b16 %v2285
        %v2300 = vunpack.c.l.b16 %v2286
        %v2301 = vunpack.c.l.b16 %v2287
        %v2302 = vunpack.c.l.b16 %v2288
        %v2303 = vunpack.c.l.b16 %v2289
        %v2304 = vunpack.c.h.b16 %v2283
        %v2305 = vunpack.c.h.b16 %v2284
        %v2306 = vunpack.c.h.b16 %v2285
        %v2307 = vunpack.c.h.b16 %v2286
        %v2308 = vunpack.c.h.b16 %v2287
        %v2309 = vunpack.c.h.b16 %v2288
        %v2310 = vunpack.c.h.b16 %v2289
        %v2311 = vpack.c.b16 %v2298, %v2297
        %v2312 = vpack.c.b16 %v2300, %v2299
        %v2313 = vpack.c.b16 %v2302, %v2301
        %v2314 = vpack.c.b16 %v2303, %v2303
        %v2315 = vpack.c.b16 %v2305, %v2304
        %v2316 = vpack.c.b16 %v2307, %v2306
        %v2317 = vpack.c.b16 %v2309, %v2308
        %v2318 = vpack.c.b16 %v2310, %v2310
        %2327 = vst [vmem:[#allocation4 + $0x268] sm:$0xff] %v2311
        %2328 = vst [vmem:[#allocation4 + $0x270] sm:$0xff] %v2312
        %2329 = vst [vmem:[#allocation4 + $0x278] sm:$0xff] %v2313
        %2330 = vst [vmem:[#allocation4 + $0x280] sm:$0xf] %v2314
        %2331 = vst [vmem:[#allocation4 + $0x284] sm:$0xff] %v2315
        %2332 = vst [vmem:[#allocation4 + $0x28c] sm:$0xff] %v2316
        %2333 = vst [vmem:[#allocation4 + $0x294] sm:$0xff] %v2317
        %2334 = vst [vmem:[#allocation4 + $0x29c] sm:$0xf] %v2318
        %v2335 = vld [vmem:[#allocation2 + $0x8] sm:$0xff]
        %v2336 = vld [vmem:[#allocation2 + $0x10] sm:$0xff]
        %v2337 = vld [vmem:[#allocation2 + $0x18] sm:$0xff]
        %v2338 = vld [vmem:[#allocation2 + $0x20] sm:$0xff]
        %v2339 = vld [vmem:[#allocation2 + $0x28] sm:$0xff]
        %v2340 = vld [vmem:[#allocation2 + $0x30] sm:$0xff]
        %v2341 = vld [vmem:[#allocation2 + $0x38] sm:$0xff]
        %v2342 = vld [vmem:[#allocation2 + $0x50] sm:$0xff]
        %v2343 = vld [vmem:[#allocation2 + $0x58] sm:$0xff]
        %v2344 = vld [vmem:[#allocation2 + $0x60] sm:$0xff]
        %v2345 = vld [vmem:[#allocation2 + $0x68] sm:$0xff]
        %v2346 = vld [vmem:[#allocation2 + $0x70] sm:$0xff]
        %v2347 = vld [vmem:[#allocation2 + $0x78] sm:$0xff]
        %v2348 = vld [vmem:[#allocation2 + $0x80] sm:$0xff]
        %2349 = vrot.lane.b32.xlu0 %v2335, 1
        %v2350 = vpop.permute.xlu0 %2349
        %2351 = vrot.lane.b32.xlu0 %v2342, 1
        %v2352 = vpop.permute.xlu0 %2351
        %2353 = vrot.lane.b32.xlu0 %v2336, 1
        %v2354 = vpop.permute.xlu0 %2353
        %2355 = vrot.lane.b32.xlu0 %v2343, 1
        %v2356 = vpop.permute.xlu0 %2355
        %2357 = vrot.lane.b32.xlu0 %v2337, 1
        %v2358 = vpop.permute.xlu0 %2357
        %2359 = vrot.lane.b32.xlu0 %v2344, 1
        %v2360 = vpop.permute.xlu0 %2359
        %2361 = vrot.lane.b32.xlu0 %v2338, 1
        %v2362 = vpop.permute.xlu0 %2361
        %2363 = vrot.lane.b32.xlu0 %v2345, 1
        %v2364 = vpop.permute.xlu0 %2363
        %2365 = vrot.lane.b32.xlu0 %v2339, 1
        %v2366 = vpop.permute.xlu0 %2365
        %2367 = vrot.lane.b32.xlu0 %v2346, 1
        %v2368 = vpop.permute.xlu0 %2367
        %2369 = vrot.lane.b32.xlu0 %v2340, 1
        %v2370 = vpop.permute.xlu0 %2369
        %2371 = vrot.lane.b32.xlu0 %v2347, 1
        %v2372 = vpop.permute.xlu0 %2371
        %2373 = vrot.lane.b32.xlu0 %v2341, 1
        %v2374 = vpop.permute.xlu0 %2373
        %2375 = vrot.lane.b32.xlu0 %v2348, 1
        %v2376 = vpop.permute.xlu0 %2375
        %v2377 = vsel %vm949, %v2370, %v2374
        %v2378 = vsel %vm949, %v2372, %v2376
        %v2379 = vsel %vm949, %v2366, %v2370
        %v2380 = vsel %vm949, %v2368, %v2372
        %v2381 = vsel %vm949, %v2362, %v2366
        %v2382 = vsel %vm949, %v2364, %v2368
        %v2383 = vsel %vm949, %v2358, %v2362
        %v2384 = vsel %vm949, %v2360, %v2364
        %v2385 = vsel %vm949, %v2354, %v2358
        %v2386 = vsel %vm949, %v2356, %v2360
        %v2387 = vsel %vm949, %v2350, %v2354
        %v2388 = vsel %vm949, %v2352, %v2356
        %v2389 = vsel %vm949, %v2374, %v2350
        %v2390 = vsel %vm949, %v2376, %v2352
        %v2391 = vpack.c.bf16 %v2390, %v2389
        %v2392 = vpack.c.bf16 %v2388, %v2387
        %v2393 = vpack.c.bf16 %v2386, %v2385
        %v2394 = vpack.c.bf16 %v2384, %v2383
        %v2395 = vpack.c.bf16 %v2382, %v2381
        %v2396 = vpack.c.bf16 %v2380, %v2379
        %v2397 = vpack.c.bf16 %v2378, %v2377
        %v2405 = vunpack.c.l.b16 %v2391
        %v2406 = vunpack.c.l.b16 %v2392
        %v2407 = vunpack.c.l.b16 %v2393
        %v2408 = vunpack.c.l.b16 %v2394
        %v2409 = vunpack.c.l.b16 %v2395
        %v2410 = vunpack.c.l.b16 %v2396
        %v2411 = vunpack.c.l.b16 %v2397
        %v2412 = vunpack.c.h.b16 %v2391
        %v2413 = vunpack.c.h.b16 %v2392
        %v2414 = vunpack.c.h.b16 %v2393
        %v2415 = vunpack.c.h.b16 %v2394
        %v2416 = vunpack.c.h.b16 %v2395
        %v2417 = vunpack.c.h.b16 %v2396
        %v2418 = vunpack.c.h.b16 %v2397
        %v2419 = vpack.c.b16 %v2406, %v2405
        %v2420 = vpack.c.b16 %v2408, %v2407
        %v2421 = vpack.c.b16 %v2410, %v2409
        %v2422 = vpack.c.b16 %v2411, %v2411
        %v2423 = vpack.c.b16 %v2413, %v2412
        %v2424 = vpack.c.b16 %v2415, %v2414
        %v2425 = vpack.c.b16 %v2417, %v2416
        %v2426 = vpack.c.b16 %v2418, %v2418
        %2435 = vst [vmem:[#allocation4 + $0x2a0] sm:$0xff] %v2419
        %2436 = vst [vmem:[#allocation4 + $0x2a8] sm:$0xff] %v2420
        %2437 = vst [vmem:[#allocation4 + $0x2b0] sm:$0xff] %v2421
        %2438 = vst [vmem:[#allocation4 + $0x2b8] sm:$0xf] %v2422
        %2439 = vst [vmem:[#allocation4 + $0x2bc] sm:$0xff] %v2423
        %2440 = vst [vmem:[#allocation4 + $0x2c4] sm:$0xff] %v2424
        %2441 = vst [vmem:[#allocation4 + $0x2cc] sm:$0xff] %v2425
        %2442 = vst [vmem:[#allocation4 + $0x2d4] sm:$0xf] %v2426
        %v2443 = vpack.c.bf16 %v2342, %v2335
        %v2444 = vpack.c.bf16 %v2343, %v2336
        %v2445 = vpack.c.bf16 %v2344, %v2337
        %v2446 = vpack.c.bf16 %v2345, %v2338
        %v2447 = vpack.c.bf16 %v2346, %v2339
        %v2448 = vpack.c.bf16 %v2347, %v2340
        %v2449 = vpack.c.bf16 %v2348, %v2341
        %v2457 = vunpack.c.l.b16 %v2443
        %v2458 = vunpack.c.l.b16 %v2444
        %v2459 = vunpack.c.l.b16 %v2445
        %v2460 = vunpack.c.l.b16 %v2446
        %v2461 = vunpack.c.l.b16 %v2447
        %v2462 = vunpack.c.l.b16 %v2448
        %v2463 = vunpack.c.l.b16 %v2449
        %v2464 = vunpack.c.h.b16 %v2443
        %v2465 = vunpack.c.h.b16 %v2444
        %v2466 = vunpack.c.h.b16 %v2445
        %v2467 = vunpack.c.h.b16 %v2446
        %v2468 = vunpack.c.h.b16 %v2447
        %v2469 = vunpack.c.h.b16 %v2448
        %v2470 = vunpack.c.h.b16 %v2449
        %v2471 = vpack.c.b16 %v2458, %v2457
        %v2472 = vpack.c.b16 %v2460, %v2459
        %v2473 = vpack.c.b16 %v2462, %v2461
        %v2474 = vpack.c.b16 %v2463, %v2463
        %v2475 = vpack.c.b16 %v2465, %v2464
        %v2476 = vpack.c.b16 %v2467, %v2466
        %v2477 = vpack.c.b16 %v2469, %v2468
        %v2478 = vpack.c.b16 %v2470, %v2470
        %2487 = vst [vmem:[#allocation4 + $0x2d8] sm:$0xff] %v2471
        %2488 = vst [vmem:[#allocation4 + $0x2e0] sm:$0xff] %v2472
        %2489 = vst [vmem:[#allocation4 + $0x2e8] sm:$0xff] %v2473
        %2490 = vst [vmem:[#allocation4 + $0x2f0] sm:$0xf] %v2474
        %2491 = vst [vmem:[#allocation4 + $0x2f4] sm:$0xff] %v2475
        %2492 = vst [vmem:[#allocation4 + $0x2fc] sm:$0xff] %v2476
        %2493 = vst [vmem:[#allocation4 + $0x304] sm:$0xff] %v2477
        %2494 = vst [vmem:[#allocation4 + $0x30c] sm:$0xf] %v2478
        %2495 = vrot.lane.b32.xlu0 %v2335, 127
        %v2496 = vpop.permute.xlu0 %2495
        %2497 = vrot.lane.b32.xlu0 %v2342, 127
        %v2498 = vpop.permute.xlu0 %2497
        %2499 = vrot.lane.b32.xlu0 %v2336, 127
        %v2500 = vpop.permute.xlu0 %2499
        %2501 = vrot.lane.b32.xlu0 %v2343, 127
        %v2502 = vpop.permute.xlu0 %2501
        %2503 = vrot.lane.b32.xlu0 %v2337, 127
        %v2504 = vpop.permute.xlu0 %2503
        %2505 = vrot.lane.b32.xlu0 %v2344, 127
        %v2506 = vpop.permute.xlu0 %2505
        %2507 = vrot.lane.b32.xlu0 %v2338, 127
        %v2508 = vpop.permute.xlu0 %2507
        %2509 = vrot.lane.b32.xlu0 %v2345, 127
        %v2510 = vpop.permute.xlu0 %2509
        %2511 = vrot.lane.b32.xlu0 %v2339, 127
        %v2512 = vpop.permute.xlu0 %2511
        %2513 = vrot.lane.b32.xlu0 %v2346, 127
        %v2514 = vpop.permute.xlu0 %2513
        %2515 = vrot.lane.b32.xlu0 %v2340, 127
        %v2516 = vpop.permute.xlu0 %2515
        %2517 = vrot.lane.b32.xlu0 %v2347, 127
        %v2518 = vpop.permute.xlu0 %2517
        %2519 = vrot.lane.b32.xlu0 %v2341, 127
        %v2520 = vpop.permute.xlu0 %2519
        %2521 = vrot.lane.b32.xlu0 %v2348, 127
        %v2522 = vpop.permute.xlu0 %2521
        %v2523 = vsel %vm1140, %v2516, %v2520
        %v2524 = vsel %vm1140, %v2518, %v2522
        %v2525 = vsel %vm1140, %v2512, %v2516
        %v2526 = vsel %vm1140, %v2514, %v2518
        %v2527 = vsel %vm1140, %v2508, %v2512
        %v2528 = vsel %vm1140, %v2510, %v2514
        %v2529 = vsel %vm1140, %v2504, %v2508
        %v2530 = vsel %vm1140, %v2506, %v2510
        %v2531 = vsel %vm1140, %v2500, %v2504
        %v2532 = vsel %vm1140, %v2502, %v2506
        %v2533 = vsel %vm1140, %v2496, %v2500
        %v2534 = vsel %vm1140, %v2498, %v2502
        %v2535 = vsel %vm1140, %v2520, %v2496
        %v2536 = vsel %vm1140, %v2522, %v2498
        %v2537 = vpack.c.bf16 %v2534, %v2533
        %v2538 = vpack.c.bf16 %v2532, %v2531
        %v2539 = vpack.c.bf16 %v2530, %v2529
        %v2540 = vpack.c.bf16 %v2528, %v2527
        %v2541 = vpack.c.bf16 %v2526, %v2525
        %v2542 = vpack.c.bf16 %v2524, %v2523
        %v2543 = vpack.c.bf16 %v2536, %v2535
        %v2551 = vunpack.c.l.b16 %v2537
        %v2552 = vunpack.c.l.b16 %v2538
        %v2553 = vunpack.c.l.b16 %v2539
        %v2554 = vunpack.c.l.b16 %v2540
        %v2555 = vunpack.c.l.b16 %v2541
        %v2556 = vunpack.c.l.b16 %v2542
        %v2557 = vunpack.c.l.b16 %v2543
        %v2558 = vunpack.c.h.b16 %v2537
        %v2559 = vunpack.c.h.b16 %v2538
        %v2560 = vunpack.c.h.b16 %v2539
        %v2561 = vunpack.c.h.b16 %v2540
        %v2562 = vunpack.c.h.b16 %v2541
        %v2563 = vunpack.c.h.b16 %v2542
        %v2564 = vunpack.c.h.b16 %v2543
        %v2565 = vpack.c.b16 %v2552, %v2551
        %v2566 = vpack.c.b16 %v2554, %v2553
        %v2567 = vpack.c.b16 %v2556, %v2555
        %v2568 = vpack.c.b16 %v2557, %v2557
        %v2569 = vpack.c.b16 %v2559, %v2558
        %v2570 = vpack.c.b16 %v2561, %v2560
        %v2571 = vpack.c.b16 %v2563, %v2562
        %v2572 = vpack.c.b16 %v2564, %v2564
        %2581 = vst [vmem:[#allocation4 + $0x310] sm:$0xff] %v2565
        %2582 = vst [vmem:[#allocation4 + $0x318] sm:$0xff] %v2566
        %2583 = vst [vmem:[#allocation4 + $0x320] sm:$0xff] %v2567
        %2584 = vst [vmem:[#allocation4 + $0x328] sm:$0xf] %v2568
        %2585 = vst [vmem:[#allocation4 + $0x32c] sm:$0xff] %v2569
        %2586 = vst [vmem:[#allocation4 + $0x334] sm:$0xff] %v2570
        %2587 = vst [vmem:[#allocation4 + $0x33c] sm:$0xff] %v2571
        %2588 = vst [vmem:[#allocation4 + $0x344] sm:$0xf] %v2572
        %v2589 = vld [vmem:[#allocation2 + $0x8] sm:$0xff]
        %v2590 = vld [vmem:[#allocation2 + $0x10] sm:$0xff]
        %v2591 = vld [vmem:[#allocation2 + $0x18] sm:$0xff]
        %v2592 = vld [vmem:[#allocation2 + $0x20] sm:$0xff]
        %v2593 = vld [vmem:[#allocation2 + $0x28] sm:$0xff]
        %v2594 = vld [vmem:[#allocation2 + $0x30] sm:$0xff]
        %v2595 = vld [vmem:[#allocation2 + $0x38] sm:$0xff]
        %v2596 = vld [vmem:[#allocation2 + $0x40] sm:$0xff]
        %v2597 = vld [vmem:[#allocation2 + $0x50] sm:$0xff]
        %v2598 = vld [vmem:[#allocation2 + $0x58] sm:$0xff]
        %v2599 = vld [vmem:[#allocation2 + $0x60] sm:$0xff]
        %v2600 = vld [vmem:[#allocation2 + $0x68] sm:$0xff]
        %v2601 = vld [vmem:[#allocation2 + $0x70] sm:$0xff]
        %v2602 = vld [vmem:[#allocation2 + $0x78] sm:$0xff]
        %v2603 = vld [vmem:[#allocation2 + $0x80] sm:$0xff]
        %v2604 = vld [vmem:[#allocation2 + $0x88] sm:$0xff]
        %2621 = vrot.lane.b32.xlu0 %v2589, 118
        %v2622 = vpop.permute.xlu0 %2621
        %2623 = vrot.lane.b32.xlu0 %v2590, 118
        %v2624 = vpop.permute.xlu0 %2623
        %2625 = vrot.lane.b32.xlu0 %v2591, 118
        %v2626 = vpop.permute.xlu0 %2625
        %2627 = vrot.lane.b32.xlu0 %v2592, 118
        %v2628 = vpop.permute.xlu0 %2627
        %2629 = vrot.lane.b32.xlu0 %v2593, 118
        %v2630 = vpop.permute.xlu0 %2629
        %2631 = vrot.lane.b32.xlu0 %v2594, 118
        %v2632 = vpop.permute.xlu0 %2631
        %2633 = vrot.lane.b32.xlu0 %v2595, 118
        %v2634 = vpop.permute.xlu0 %2633
        %2635 = vrot.lane.b32.xlu0 %v2596, 118
        %v2636 = vpop.permute.xlu0 %2635
        %2637 = vrot.lane.b32.xlu0 %v2597, 118
        %v2638 = vpop.permute.xlu0 %2637
        %2639 = vrot.lane.b32.xlu0 %v2598, 118
        %v2640 = vpop.permute.xlu0 %2639
        %2641 = vrot.lane.b32.xlu0 %v2599, 118
        %v2642 = vpop.permute.xlu0 %2641
        %2643 = vrot.lane.b32.xlu0 %v2600, 118
        %v2644 = vpop.permute.xlu0 %2643
        %2645 = vrot.lane.b32.xlu0 %v2601, 118
        %v2646 = vpop.permute.xlu0 %2645
        %2647 = vrot.lane.b32.xlu0 %v2602, 118
        %v2648 = vpop.permute.xlu0 %2647
        %2649 = vrot.lane.b32.xlu0 %v2603, 118
        %v2650 = vpop.permute.xlu0 %2649
        %2651 = vrot.lane.b32.xlu0 %v2604, 118
        %v2652 = vpop.permute.xlu0 %2651
        %vm2653 = vcmask 965632
        %v2654 = vsel %vm2653, %v2622, %v2624
        %v2655 = vsel %vm2653, %v2624, %v2626
        %v2656 = vsel %vm2653, %v2626, %v2628
        %v2657 = vsel %vm2653, %v2628, %v2630
        %v2658 = vsel %vm2653, %v2630, %v2632
        %v2659 = vsel %vm2653, %v2632, %v2634
        %v2660 = vsel %vm2653, %v2634, %v2636
        %v2661 = vsel %vm2653, %v2638, %v2640
        %v2662 = vsel %vm2653, %v2640, %v2642
        %v2663 = vsel %vm2653, %v2642, %v2644
        %v2664 = vsel %vm2653, %v2644, %v2646
        %v2665 = vsel %vm2653, %v2646, %v2648
        %v2666 = vsel %vm2653, %v2648, %v2650
        %v2667 = vsel %vm2653, %v2650, %v2652
        %2682 = vrot.lane.b32.xlu0 %v2654, 1
        %v2683 = vpop.permute.xlu0 %2682
        %2684 = vrot.lane.b32.xlu0 %v2661, 1
        %v2685 = vpop.permute.xlu0 %2684
        %2686 = vrot.lane.b32.xlu0 %v2655, 1
        %v2687 = vpop.permute.xlu0 %2686
        %2688 = vrot.lane.b32.xlu0 %v2662, 1
        %v2689 = vpop.permute.xlu0 %2688
        %2690 = vrot.lane.b32.xlu0 %v2656, 1
        %v2691 = vpop.permute.xlu0 %2690
        %2692 = vrot.lane.b32.xlu0 %v2663, 1
        %v2693 = vpop.permute.xlu0 %2692
        %2694 = vrot.lane.b32.xlu0 %v2657, 1
        %v2695 = vpop.permute.xlu0 %2694
        %2696 = vrot.lane.b32.xlu0 %v2664, 1
        %v2697 = vpop.permute.xlu0 %2696
        %2698 = vrot.lane.b32.xlu0 %v2658, 1
        %v2699 = vpop.permute.xlu0 %2698
        %2700 = vrot.lane.b32.xlu0 %v2665, 1
        %v2701 = vpop.permute.xlu0 %2700
        %2702 = vrot.lane.b32.xlu0 %v2659, 1
        %v2703 = vpop.permute.xlu0 %2702
        %2704 = vrot.lane.b32.xlu0 %v2666, 1
        %v2705 = vpop.permute.xlu0 %2704
        %2706 = vrot.lane.b32.xlu0 %v2660, 1
        %v2707 = vpop.permute.xlu0 %2706
        %2708 = vrot.lane.b32.xlu0 %v2667, 1
        %v2709 = vpop.permute.xlu0 %2708
        %v2710 = vsel %vm949, %v2703, %v2707
        %v2711 = vsel %vm949, %v2705, %v2709
        %v2712 = vsel %vm949, %v2699, %v2703
        %v2713 = vsel %vm949, %v2701, %v2705
        %v2714 = vsel %vm949, %v2695, %v2699
        %v2715 = vsel %vm949, %v2697, %v2701
        %v2716 = vsel %vm949, %v2691, %v2695
        %v2717 = vsel %vm949, %v2693, %v2697
        %v2718 = vsel %vm949, %v2687, %v2691
        %v2719 = vsel %vm949, %v2689, %v2693
        %v2720 = vsel %vm949, %v2683, %v2687
        %v2721 = vsel %vm949, %v2685, %v2689
        %v2722 = vsel %vm949, %v2707, %v2683
        %v2723 = vsel %vm949, %v2709, %v2685
        %v2724 = vpack.c.bf16 %v2723, %v2722
        %v2725 = vpack.c.bf16 %v2721, %v2720
        %v2726 = vpack.c.bf16 %v2719, %v2718
        %v2727 = vpack.c.bf16 %v2717, %v2716
        %v2728 = vpack.c.bf16 %v2715, %v2714
        %v2729 = vpack.c.bf16 %v2713, %v2712
        %v2730 = vpack.c.bf16 %v2711, %v2710
        %v2738 = vunpack.c.l.b16 %v2724
        %v2739 = vunpack.c.l.b16 %v2725
        %v2740 = vunpack.c.l.b16 %v2726
        %v2741 = vunpack.c.l.b16 %v2727
        %v2742 = vunpack.c.l.b16 %v2728
        %v2743 = vunpack.c.l.b16 %v2729
        %v2744 = vunpack.c.l.b16 %v2730
        %v2745 = vunpack.c.h.b16 %v2724
        %v2746 = vunpack.c.h.b16 %v2725
        %v2747 = vunpack.c.h.b16 %v2726
        %v2748 = vunpack.c.h.b16 %v2727
        %v2749 = vunpack.c.h.b16 %v2728
        %v2750 = vunpack.c.h.b16 %v2729
        %v2751 = vunpack.c.h.b16 %v2730
        %v2752 = vpack.c.b16 %v2739, %v2738
        %v2753 = vpack.c.b16 %v2741, %v2740
        %v2754 = vpack.c.b16 %v2743, %v2742
        %v2755 = vpack.c.b16 %v2744, %v2744
        %v2756 = vpack.c.b16 %v2746, %v2745
        %v2757 = vpack.c.b16 %v2748, %v2747
        %v2758 = vpack.c.b16 %v2750, %v2749
        %v2759 = vpack.c.b16 %v2751, %v2751
        %2768 = vst [vmem:[#allocation4 + $0x348] sm:$0xff] %v2752
        %2769 = vst [vmem:[#allocation4 + $0x350] sm:$0xff] %v2753
        %2770 = vst [vmem:[#allocation4 + $0x358] sm:$0xff] %v2754
        %2771 = vst [vmem:[#allocation4 + $0x360] sm:$0xf] %v2755
        %2772 = vst [vmem:[#allocation4 + $0x364] sm:$0xff] %v2756
        %2773 = vst [vmem:[#allocation4 + $0x36c] sm:$0xff] %v2757
        %2774 = vst [vmem:[#allocation4 + $0x374] sm:$0xff] %v2758
        %2775 = vst [vmem:[#allocation4 + $0x37c] sm:$0xf] %v2759
        %v2776 = vpack.c.bf16 %v2597, %v2589
        %v2777 = vpack.c.bf16 %v2598, %v2590
        %v2778 = vpack.c.bf16 %v2599, %v2591
        %v2779 = vpack.c.bf16 %v2600, %v2592
        %v2780 = vpack.c.bf16 %v2601, %v2593
        %v2781 = vpack.c.bf16 %v2602, %v2594
        %v2782 = vpack.c.bf16 %v2603, %v2595
        %v2783 = vpack.c.bf16 %v2604, %v2596
        %v2792 = vunpack.c.l.b16 %v2776
        %v2793 = vunpack.c.l.b16 %v2777
        %v2794 = vunpack.c.l.b16 %v2778
        %v2795 = vunpack.c.l.b16 %v2779
        %v2796 = vunpack.c.l.b16 %v2780
        %v2797 = vunpack.c.l.b16 %v2781
        %v2798 = vunpack.c.l.b16 %v2782
        %v2799 = vunpack.c.l.b16 %v2783
        %v2800 = vunpack.c.h.b16 %v2776
        %v2801 = vunpack.c.h.b16 %v2777
        %v2802 = vunpack.c.h.b16 %v2778
        %v2803 = vunpack.c.h.b16 %v2779
        %v2804 = vunpack.c.h.b16 %v2780
        %v2805 = vunpack.c.h.b16 %v2781
        %v2806 = vunpack.c.h.b16 %v2782
        %v2807 = vunpack.c.h.b16 %v2783
        %v2808 = vpack.c.b16 %v2793, %v2792
        %v2809 = vpack.c.b16 %v2795, %v2794
        %v2810 = vpack.c.b16 %v2797, %v2796
        %v2811 = vpack.c.b16 %v2799, %v2798
        %v2812 = vpack.c.b16 %v2801, %v2800
        %v2813 = vpack.c.b16 %v2803, %v2802
        %v2814 = vpack.c.b16 %v2805, %v2804
        %v2815 = vpack.c.b16 %v2807, %v2806
        %2816 = vrot.lane.b32.xlu0 %v2808, 118
        %v2817 = vpop.permute.xlu0 %2816
        %2818 = vrot.lane.b32.xlu0 %v2809, 118
        %v2819 = vpop.permute.xlu0 %2818
        %2820 = vrot.lane.b32.xlu0 %v2810, 118
        %v2821 = vpop.permute.xlu0 %2820
        %2822 = vrot.lane.b32.xlu0 %v2811, 118
        %v2823 = vpop.permute.xlu0 %2822
        %2824 = vrot.lane.b32.xlu0 %v2812, 118
        %v2825 = vpop.permute.xlu0 %2824
        %2826 = vrot.lane.b32.xlu0 %v2813, 118
        %v2827 = vpop.permute.xlu0 %2826
        %2828 = vrot.lane.b32.xlu0 %v2814, 118
        %v2829 = vpop.permute.xlu0 %2828
        %2830 = vrot.lane.b32.xlu0 %v2815, 118
        %v2831 = vpop.permute.xlu0 %2830
        %v2832 = vrot.slane %v2817, 4
        %v2833 = vrot.slane %v2819, 4
        %v2834 = vrot.slane %v2821, 4
        %v2835 = vrot.slane %v2823, 4
        %v2836 = vrot.slane %v2825, 4
        %v2837 = vrot.slane %v2827, 4
        %v2838 = vrot.slane %v2829, 4
        %v2839 = vrot.slane %v2831, 4
        %v2840 = vsel %vm1080, %v2832, %v2833
        %vm2841 = vcmask 965632
        %v2842 = vsel %vm2841, %v2817, %v2840
        %v2843 = vsel %vm1080, %v2833, %v2834
        %v2844 = vsel %vm2841, %v2819, %v2843
        %v2845 = vsel %vm1080, %v2834, %v2835
        %v2846 = vsel %vm2841, %v2821, %v2845
        %v2847 = vsel %vm2841, %v2823, %v2835
        %v2848 = vsel %vm1080, %v2836, %v2837
        %v2849 = vsel %vm2841, %v2825, %v2848
        %v2850 = vsel %vm1080, %v2837, %v2838
        %v2851 = vsel %vm2841, %v2827, %v2850
        %v2852 = vsel %vm1080, %v2838, %v2839
        %v2853 = vsel %vm2841, %v2829, %v2852
        %v2854 = vsel %vm2841, %v2831, %v2839
        %2863 = vst [vmem:[#allocation4 + $0x380] sm:$0xff] %v2842
        %2864 = vst [vmem:[#allocation4 + $0x388] sm:$0xff] %v2844
        %2865 = vst [vmem:[#allocation4 + $0x390] sm:$0xff] %v2846
        %2866 = vst [vmem:[#allocation4 + $0x398] sm:$0xf] %v2847
        %2867 = vst [vmem:[#allocation4 + $0x39c] sm:$0xff] %v2849
        %2868 = vst [vmem:[#allocation4 + $0x3a4] sm:$0xff] %v2851
        %2869 = vst [vmem:[#allocation4 + $0x3ac] sm:$0xff] %v2853
        %2870 = vst [vmem:[#allocation4 + $0x3b4] sm:$0xf] %v2854
        %2871 = vrot.lane.b32.xlu0 %v2654, 127
        %v2872 = vpop.permute.xlu0 %2871
        %2873 = vrot.lane.b32.xlu0 %v2661, 127
        %v2874 = vpop.permute.xlu0 %2873
        %2875 = vrot.lane.b32.xlu0 %v2655, 127
        %v2876 = vpop.permute.xlu0 %2875
        %2877 = vrot.lane.b32.xlu0 %v2662, 127
        %v2878 = vpop.permute.xlu0 %2877
        %2879 = vrot.lane.b32.xlu0 %v2656, 127
        %v2880 = vpop.permute.xlu0 %2879
        %2881 = vrot.lane.b32.xlu0 %v2663, 127
        %v2882 = vpop.permute.xlu0 %2881
        %2883 = vrot.lane.b32.xlu0 %v2657, 127
        %v2884 = vpop.permute.xlu0 %2883
        %2885 = vrot.lane.b32.xlu0 %v2664, 127
        %v2886 = vpop.permute.xlu0 %2885
        %2887 = vrot.lane.b32.xlu0 %v2658, 127
        %v2888 = vpop.permute.xlu0 %2887
        %2889 = vrot.lane.b32.xlu0 %v2665, 127
        %v2890 = vpop.permute.xlu0 %2889
        %2891 = vrot.lane.b32.xlu0 %v2659, 127
        %v2892 = vpop.permute.xlu0 %2891
        %2893 = vrot.lane.b32.xlu0 %v2666, 127
        %v2894 = vpop.permute.xlu0 %2893
        %2895 = vrot.lane.b32.xlu0 %v2660, 127
        %v2896 = vpop.permute.xlu0 %2895
        %2897 = vrot.lane.b32.xlu0 %v2667, 127
        %v2898 = vpop.permute.xlu0 %2897
        %v2899 = vsel %vm1140, %v2892, %v2896
        %v2900 = vsel %vm1140, %v2894, %v2898
        %v2901 = vsel %vm1140, %v2888, %v2892
        %v2902 = vsel %vm1140, %v2890, %v2894
        %v2903 = vsel %vm1140, %v2884, %v2888
        %v2904 = vsel %vm1140, %v2886, %v2890
        %v2905 = vsel %vm1140, %v2880, %v2884
        %v2906 = vsel %vm1140, %v2882, %v2886
        %v2907 = vsel %vm1140, %v2876, %v2880
        %v2908 = vsel %vm1140, %v2878, %v2882
        %v2909 = vsel %vm1140, %v2872, %v2876
        %v2910 = vsel %vm1140, %v2874, %v2878
        %v2911 = vsel %vm1140, %v2896, %v2872
        %v2912 = vsel %vm1140, %v2898, %v2874
        %v2913 = vpack.c.bf16 %v2910, %v2909
        %v2914 = vpack.c.bf16 %v2908, %v2907
        %v2915 = vpack.c.bf16 %v2906, %v2905
        %v2916 = vpack.c.bf16 %v2904, %v2903
        %v2917 = vpack.c.bf16 %v2902, %v2901
        %v2918 = vpack.c.bf16 %v2900, %v2899
        %v2919 = vpack.c.bf16 %v2912, %v2911
        %v2927 = vunpack.c.l.b16 %v2913
        %v2928 = vunpack.c.l.b16 %v2914
        %v2929 = vunpack.c.l.b16 %v2915
        %v2930 = vunpack.c.l.b16 %v2916
        %v2931 = vunpack.c.l.b16 %v2917
        %v2932 = vunpack.c.l.b16 %v2918
        %v2933 = vunpack.c.l.b16 %v2919
        %v2934 = vunpack.c.h.b16 %v2913
        %v2935 = vunpack.c.h.b16 %v2914
        %v2936 = vunpack.c.h.b16 %v2915
        %v2937 = vunpack.c.h.b16 %v2916
        %v2938 = vunpack.c.h.b16 %v2917
        %v2939 = vunpack.c.h.b16 %v2918
        %v2940 = vunpack.c.h.b16 %v2919
        %v2941 = vpack.c.b16 %v2928, %v2927
        %v2942 = vpack.c.b16 %v2930, %v2929
        %v2943 = vpack.c.b16 %v2932, %v2931
        %v2944 = vpack.c.b16 %v2933, %v2933
        %v2945 = vpack.c.b16 %v2935, %v2934
        %v2946 = vpack.c.b16 %v2937, %v2936
        %v2947 = vpack.c.b16 %v2939, %v2938
        %v2948 = vpack.c.b16 %v2940, %v2940
        %2957 = vst [vmem:[#allocation4 + $0x3b8] sm:$0xff] %v2941
        %2958 = vst [vmem:[#allocation4 + $0x3c0] sm:$0xff] %v2942
        %2959 = vst [vmem:[#allocation4 + $0x3c8] sm:$0xff] %v2943
        %2960 = vst [vmem:[#allocation4 + $0x3d0] sm:$0xf] %v2944
        %2961 = vst [vmem:[#allocation4 + $0x3d4] sm:$0xff] %v2945
        %2962 = vst [vmem:[#allocation4 + $0x3dc] sm:$0xff] %v2946
        %2963 = vst [vmem:[#allocation4 + $0x3e4] sm:$0xff] %v2947
        %2964 = vst [vmem:[#allocation4 + $0x3ec] sm:$0xf] %v2948
        %v2965 = vld [vmem:[#allocation2 + $0x8] sm:$0xff]
        %v2966 = vld [vmem:[#allocation2 + $0x10] sm:$0xff]
        %v2967 = vld [vmem:[#allocation2 + $0x18] sm:$0xff]
        %v2968 = vld [vmem:[#allocation2 + $0x20] sm:$0xff]
        %v2969 = vld [vmem:[#allocation2 + $0x28] sm:$0xff]
        %v2970 = vld [vmem:[#allocation2 + $0x30] sm:$0xff]
        %v2971 = vld [vmem:[#allocation2 + $0x38] sm:$0xff]
        %v2972 = vld [vmem:[#allocation2 + $0x40] sm:$0xff]
        %v2973 = vld [vmem:[#allocation2 + $0x50] sm:$0xff]
        %v2974 = vld [vmem:[#allocation2 + $0x58] sm:$0xff]
        %v2975 = vld [vmem:[#allocation2 + $0x60] sm:$0xff]
        %v2976 = vld [vmem:[#allocation2 + $0x68] sm:$0xff]
        %v2977 = vld [vmem:[#allocation2 + $0x70] sm:$0xff]
        %v2978 = vld [vmem:[#allocation2 + $0x78] sm:$0xff]
        %v2979 = vld [vmem:[#allocation2 + $0x80] sm:$0xff]
        %v2980 = vld [vmem:[#allocation2 + $0x88] sm:$0xff]
        %2997 = vrot.lane.b32.xlu0 %v2965, 38
        %v2998 = vpop.permute.xlu0 %2997
        %2999 = vrot.lane.b32.xlu0 %v2966, 38
        %v3000 = vpop.permute.xlu0 %2999
        %3001 = vrot.lane.b32.xlu0 %v2967, 38
        %v3002 = vpop.permute.xlu0 %3001
        %3003 = vrot.lane.b32.xlu0 %v2968, 38
        %v3004 = vpop.permute.xlu0 %3003
        %3005 = vrot.lane.b32.xlu0 %v2969, 38
        %v3006 = vpop.permute.xlu0 %3005
        %3007 = vrot.lane.b32.xlu0 %v2970, 38
        %v3008 = vpop.permute.xlu0 %3007
        %3009 = vrot.lane.b32.xlu0 %v2971, 38
        %v3010 = vpop.permute.xlu0 %3009
        %3011 = vrot.lane.b32.xlu0 %v2972, 38
        %v3012 = vpop.permute.xlu0 %3011
        %3013 = vrot.lane.b32.xlu0 %v2973, 38
        %v3014 = vpop.permute.xlu0 %3013
        %3015 = vrot.lane.b32.xlu0 %v2974, 38
        %v3016 = vpop.permute.xlu0 %3015
        %3017 = vrot.lane.b32.xlu0 %v2975, 38
        %v3018 = vpop.permute.xlu0 %3017
        %3019 = vrot.lane.b32.xlu0 %v2976, 38
        %v3020 = vpop.permute.xlu0 %3019
        %3021 = vrot.lane.b32.xlu0 %v2977, 38
        %v3022 = vpop.permute.xlu0 %3021
        %3023 = vrot.lane.b32.xlu0 %v2978, 38
        %v3024 = vpop.permute.xlu0 %3023
        %3025 = vrot.lane.b32.xlu0 %v2979, 38
        %v3026 = vpop.permute.xlu0 %3025
        %3027 = vrot.lane.b32.xlu0 %v2980, 38
        %v3028 = vpop.permute.xlu0 %3027
        %vm3029 = vcmask 310272
        %v3030 = vsel %vm3029, %v2998, %v3000
        %v3031 = vsel %vm3029, %v3000, %v3002
        %v3032 = vsel %vm3029, %v3002, %v3004
        %v3033 = vsel %vm3029, %v3004, %v3006
        %v3034 = vsel %vm3029, %v3006, %v3008
        %v3035 = vsel %vm3029, %v3008, %v3010
        %v3036 = vsel %vm3029, %v3010, %v3012
        %v3037 = vsel %vm3029, %v3014, %v3016
        %v3038 = vsel %vm3029, %v3016, %v3018
        %v3039 = vsel %vm3029, %v3018, %v3020
        %v3040 = vsel %vm3029, %v3020, %v3022
        %v3041 = vsel %vm3029, %v3022, %v3024
        %v3042 = vsel %vm3029, %v3024, %v3026
        %v3043 = vsel %vm3029, %v3026, %v3028
        %3058 = vrot.lane.b32.xlu0 %v3030, 1
        %v3059 = vpop.permute.xlu0 %3058
        %3060 = vrot.lane.b32.xlu0 %v3037, 1
        %v3061 = vpop.permute.xlu0 %3060
        %3062 = vrot.lane.b32.xlu0 %v3031, 1
        %v3063 = vpop.permute.xlu0 %3062
        %3064 = vrot.lane.b32.xlu0 %v3038, 1
        %v3065 = vpop.permute.xlu0 %3064
        %3066 = vrot.lane.b32.xlu0 %v3032, 1
        %v3067 = vpop.permute.xlu0 %3066
        %3068 = vrot.lane.b32.xlu0 %v3039, 1
        %v3069 = vpop.permute.xlu0 %3068
        %3070 = vrot.lane.b32.xlu0 %v3033, 1
        %v3071 = vpop.permute.xlu0 %3070
        %3072 = vrot.lane.b32.xlu0 %v3040, 1
        %v3073 = vpop.permute.xlu0 %3072
        %3074 = vrot.lane.b32.xlu0 %v3034, 1
        %v3075 = vpop.permute.xlu0 %3074
        %3076 = vrot.lane.b32.xlu0 %v3041, 1
        %v3077 = vpop.permute.xlu0 %3076
        %3078 = vrot.lane.b32.xlu0 %v3035, 1
        %v3079 = vpop.permute.xlu0 %3078
        %3080 = vrot.lane.b32.xlu0 %v3042, 1
        %v3081 = vpop.permute.xlu0 %3080
        %3082 = vrot.lane.b32.xlu0 %v3036, 1
        %v3083 = vpop.permute.xlu0 %3082
        %3084 = vrot.lane.b32.xlu0 %v3043, 1
        %v3085 = vpop.permute.xlu0 %3084
        %v3086 = vsel %vm949, %v3079, %v3083
        %v3087 = vsel %vm949, %v3081, %v3085
        %v3088 = vsel %vm949, %v3075, %v3079
        %v3089 = vsel %vm949, %v3077, %v3081
        %v3090 = vsel %vm949, %v3071, %v3075
        %v3091 = vsel %vm949, %v3073, %v3077
        %v3092 = vsel %vm949, %v3067, %v3071
        %v3093 = vsel %vm949, %v3069, %v3073
        %v3094 = vsel %vm949, %v3063, %v3067
        %v3095 = vsel %vm949, %v3065, %v3069
        %v3096 = vsel %vm949, %v3059, %v3063
        %v3097 = vsel %vm949, %v3061, %v3065
        %v3098 = vsel %vm949, %v3083, %v3059
        %v3099 = vsel %vm949, %v3085, %v3061
        %v3100 = vpack.c.bf16 %v3099, %v3098
        %v3101 = vpack.c.bf16 %v3097, %v3096
        %v3102 = vpack.c.bf16 %v3095, %v3094
        %v3103 = vpack.c.bf16 %v3093, %v3092
        %v3104 = vpack.c.bf16 %v3091, %v3090
        %v3105 = vpack.c.bf16 %v3089, %v3088
        %v3106 = vpack.c.bf16 %v3087, %v3086
        %v3114 = vunpack.c.l.b16 %v3100
        %v3115 = vunpack.c.l.b16 %v3101
        %v3116 = vunpack.c.l.b16 %v3102
        %v3117 = vunpack.c.l.b16 %v3103
        %v3118 = vunpack.c.l.b16 %v3104
        %v3119 = vunpack.c.l.b16 %v3105
        %v3120 = vunpack.c.l.b16 %v3106
        %v3121 = vunpack.c.h.b16 %v3100
        %v3122 = vunpack.c.h.b16 %v3101
        %v3123 = vunpack.c.h.b16 %v3102
        %v3124 = vunpack.c.h.b16 %v3103
        %v3125 = vunpack.c.h.b16 %v3104
        %v3126 = vunpack.c.h.b16 %v3105
        %v3127 = vunpack.c.h.b16 %v3106
        %v3128 = vpack.c.b16 %v3115, %v3114
        %v3129 = vpack.c.b16 %v3117, %v3116
        %v3130 = vpack.c.b16 %v3119, %v3118
        %v3131 = vpack.c.b16 %v3120, %v3120
        %v3132 = vpack.c.b16 %v3122, %v3121
        %v3133 = vpack.c.b16 %v3124, %v3123
        %v3134 = vpack.c.b16 %v3126, %v3125
        %v3135 = vpack.c.b16 %v3127, %v3127
        %3144 = vst [vmem:[#allocation4 + $0x3f0] sm:$0xff] %v3128
        %3145 = vst [vmem:[#allocation4 + $0x3f8] sm:$0xff] %v3129
        %3146 = vst [vmem:[#allocation4 + $0x400] sm:$0xff] %v3130
        %3147 = vst [vmem:[#allocation4 + $0x408] sm:$0xf] %v3131
        %3148 = vst [vmem:[#allocation4 + $0x40c] sm:$0xff] %v3132
        %3149 = vst [vmem:[#allocation4 + $0x414] sm:$0xff] %v3133
        %3150 = vst [vmem:[#allocation4 + $0x41c] sm:$0xff] %v3134
        %3151 = vst [vmem:[#allocation4 + $0x424] sm:$0xf] %v3135
        %v3152 = vpack.c.bf16 %v2973, %v2965
        %v3153 = vpack.c.bf16 %v2974, %v2966
        %v3154 = vpack.c.bf16 %v2975, %v2967
        %v3155 = vpack.c.bf16 %v2976, %v2968
        %v3156 = vpack.c.bf16 %v2977, %v2969
        %v3157 = vpack.c.bf16 %v2978, %v2970
        %v3158 = vpack.c.bf16 %v2979, %v2971
        %v3159 = vpack.c.bf16 %v2980, %v2972
        %v3168 = vunpack.c.l.b16 %v3152
        %v3169 = vunpack.c.l.b16 %v3153
        %v3170 = vunpack.c.l.b16 %v3154
        %v3171 = vunpack.c.l.b16 %v3155
        %v3172 = vunpack.c.l.b16 %v3156
        %v3173 = vunpack.c.l.b16 %v3157
        %v3174 = vunpack.c.l.b16 %v3158
        %v3175 = vunpack.c.l.b16 %v3159
        %v3176 = vunpack.c.h.b16 %v3152
        %v3177 = vunpack.c.h.b16 %v3153
        %v3178 = vunpack.c.h.b16 %v3154
        %v3179 = vunpack.c.h.b16 %v3155
        %v3180 = vunpack.c.h.b16 %v3156
        %v3181 = vunpack.c.h.b16 %v3157
        %v3182 = vunpack.c.h.b16 %v3158
        %v3183 = vunpack.c.h.b16 %v3159
        %v3184 = vpack.c.b16 %v3169, %v3168
        %v3185 = vpack.c.b16 %v3171, %v3170
        %v3186 = vpack.c.b16 %v3173, %v3172
        %v3187 = vpack.c.b16 %v3175, %v3174
        %v3188 = vpack.c.b16 %v3177, %v3176
        %v3189 = vpack.c.b16 %v3179, %v3178
        %v3190 = vpack.c.b16 %v3181, %v3180
        %v3191 = vpack.c.b16 %v3183, %v3182
        %3192 = vrot.lane.b32.xlu0 %v3184, 38
        %v3193 = vpop.permute.xlu0 %3192
        %3194 = vrot.lane.b32.xlu0 %v3185, 38
        %v3195 = vpop.permute.xlu0 %3194
        %3196 = vrot.lane.b32.xlu0 %v3186, 38
        %v3197 = vpop.permute.xlu0 %3196
        %3198 = vrot.lane.b32.xlu0 %v3187, 38
        %v3199 = vpop.permute.xlu0 %3198
        %3200 = vrot.lane.b32.xlu0 %v3188, 38
        %v3201 = vpop.permute.xlu0 %3200
        %3202 = vrot.lane.b32.xlu0 %v3189, 38
        %v3203 = vpop.permute.xlu0 %3202
        %3204 = vrot.lane.b32.xlu0 %v3190, 38
        %v3205 = vpop.permute.xlu0 %3204
        %3206 = vrot.lane.b32.xlu0 %v3191, 38
        %v3207 = vpop.permute.xlu0 %3206
        %v3208 = vrot.slane %v3193, 4
        %v3209 = vrot.slane %v3195, 4
        %v3210 = vrot.slane %v3197, 4
        %v3211 = vrot.slane %v3199, 4
        %v3212 = vrot.slane %v3201, 4
        %v3213 = vrot.slane %v3203, 4
        %v3214 = vrot.slane %v3205, 4
        %v3215 = vrot.slane %v3207, 4
        %v3216 = vsel %vm1080, %v3208, %v3209
        %vm3217 = vcmask 310272
        %v3218 = vsel %vm3217, %v3193, %v3216
        %v3219 = vsel %vm1080, %v3209, %v3210
        %v3220 = vsel %vm3217, %v3195, %v3219
        %v3221 = vsel %vm1080, %v3210, %v3211
        %v3222 = vsel %vm3217, %v3197, %v3221
        %v3223 = vsel %vm3217, %v3199, %v3211
        %v3224 = vsel %vm1080, %v3212, %v3213
        %v3225 = vsel %vm3217, %v3201, %v3224
        %v3226 = vsel %vm1080, %v3213, %v3214
        %v3227 = vsel %vm3217, %v3203, %v3226
        %v3228 = vsel %vm1080, %v3214, %v3215
        %v3229 = vsel %vm3217, %v3205, %v3228
        %v3230 = vsel %vm3217, %v3207, %v3215
        %3239 = vst [vmem:[#allocation4 + $0x428] sm:$0xff] %v3218
        %3240 = vst [vmem:[#allocation4 + $0x430] sm:$0xff] %v3220
        %3241 = vst [vmem:[#allocation4 + $0x438] sm:$0xff] %v3222
        %3242 = vst [vmem:[#allocation4 + $0x440] sm:$0xf] %v3223
        %3243 = vst [vmem:[#allocation4 + $0x444] sm:$0xff] %v3225
        %3244 = vst [vmem:[#allocation4 + $0x44c] sm:$0xff] %v3227
        %3245 = vst [vmem:[#allocation4 + $0x454] sm:$0xff] %v3229
        %3246 = vst [vmem:[#allocation4 + $0x45c] sm:$0xf] %v3230
        %3247 = vrot.lane.b32.xlu0 %v3030, 127
        %v3248 = vpop.permute.xlu0 %3247
        %3249 = vrot.lane.b32.xlu0 %v3037, 127
        %v3250 = vpop.permute.xlu0 %3249
        %3251 = vrot.lane.b32.xlu0 %v3031, 127
        %v3252 = vpop.permute.xlu0 %3251
        %3253 = vrot.lane.b32.xlu0 %v3038, 127
        %v3254 = vpop.permute.xlu0 %3253
        %3255 = vrot.lane.b32.xlu0 %v3032, 127
        %v3256 = vpop.permute.xlu0 %3255
        %3257 = vrot.lane.b32.xlu0 %v3039, 127
        %v3258 = vpop.permute.xlu0 %3257
        %3259 = vrot.lane.b32.xlu0 %v3033, 127
        %v3260 = vpop.permute.xlu0 %3259
        %3261 = vrot.lane.b32.xlu0 %v3040, 127
        %v3262 = vpop.permute.xlu0 %3261
        %3263 = vrot.lane.b32.xlu0 %v3034, 127
        %v3264 = vpop.permute.xlu0 %3263
        %3265 = vrot.lane.b32.xlu0 %v3041, 127
        %v3266 = vpop.permute.xlu0 %3265
        %3267 = vrot.lane.b32.xlu0 %v3035, 127
        %v3268 = vpop.permute.xlu0 %3267
        %3269 = vrot.lane.b32.xlu0 %v3042, 127
        %v3270 = vpop.permute.xlu0 %3269
        %3271 = vrot.lane.b32.xlu0 %v3036, 127
        %v3272 = vpop.permute.xlu0 %3271
        %3273 = vrot.lane.b32.xlu0 %v3043, 127
        %v3274 = vpop.permute.xlu0 %3273
        %v3275 = vsel %vm1140, %v3268, %v3272
        %v3276 = vsel %vm1140, %v3270, %v3274
        %v3277 = vsel %vm1140, %v3264, %v3268
        %v3278 = vsel %vm1140, %v3266, %v3270
        %v3279 = vsel %vm1140, %v3260, %v3264
        %v3280 = vsel %vm1140, %v3262, %v3266
        %v3281 = vsel %vm1140, %v3256, %v3260
        %v3282 = vsel %vm1140, %v3258, %v3262
        %v3283 = vsel %vm1140, %v3252, %v3256
        %v3284 = vsel %vm1140, %v3254, %v3258
        %v3285 = vsel %vm1140, %v3248, %v3252
        %v3286 = vsel %vm1140, %v3250, %v3254
        %v3287 = vsel %vm1140, %v3272, %v3248
        %v3288 = vsel %vm1140, %v3274, %v3250
        %v3289 = vpack.c.bf16 %v3286, %v3285
        %v3290 = vpack.c.bf16 %v3284, %v3283
        %v3291 = vpack.c.bf16 %v3282, %v3281
        %v3292 = vpack.c.bf16 %v3280, %v3279
        %v3293 = vpack.c.bf16 %v3278, %v3277
        %v3294 = vpack.c.bf16 %v3276, %v3275
        %v3295 = vpack.c.bf16 %v3288, %v3287
        %v3303 = vunpack.c.l.b16 %v3289
        %v3304 = vunpack.c.l.b16 %v3290
        %v3305 = vunpack.c.l.b16 %v3291
        %v3306 = vunpack.c.l.b16 %v3292
        %v3307 = vunpack.c.l.b16 %v3293
        %v3308 = vunpack.c.l.b16 %v3294
        %v3309 = vunpack.c.l.b16 %v3295
        %v3310 = vunpack.c.h.b16 %v3289
        %v3311 = vunpack.c.h.b16 %v3290
        %v3312 = vunpack.c.h.b16 %v3291
        %v3313 = vunpack.c.h.b16 %v3292
        %v3314 = vunpack.c.h.b16 %v3293
        %v3315 = vunpack.c.h.b16 %v3294
        %v3316 = vunpack.c.h.b16 %v3295
        %v3317 = vpack.c.b16 %v3304, %v3303
        %v3318 = vpack.c.b16 %v3306, %v3305
        %v3319 = vpack.c.b16 %v3308, %v3307
        %v3320 = vpack.c.b16 %v3309, %v3309
        %v3321 = vpack.c.b16 %v3311, %v3310
        %v3322 = vpack.c.b16 %v3313, %v3312
        %v3323 = vpack.c.b16 %v3315, %v3314
        %v3324 = vpack.c.b16 %v3316, %v3316
        %3333 = vst [vmem:[#allocation4 + $0x460] sm:$0xff] %v3317
        %3334 = vst [vmem:[#allocation4 + $0x468] sm:$0xff] %v3318
        %3335 = vst [vmem:[#allocation4 + $0x470] sm:$0xff] %v3319
        %3336 = vst [vmem:[#allocation4 + $0x478] sm:$0xf] %v3320
        %3337 = vst [vmem:[#allocation4 + $0x47c] sm:$0xff] %v3321
        %3338 = vst [vmem:[#allocation4 + $0x484] sm:$0xff] %v3322
        %3339 = vst [vmem:[#allocation4 + $0x48c] sm:$0xff] %v3323
        %3340 = vst [vmem:[#allocation4 + $0x494] sm:$0xf] %v3324
        %v3341 = vld [vmem:[#allocation2 + $0x8] sm:$0xff]
        %v3342 = vld [vmem:[#allocation2 + $0x10] sm:$0xff]
        %v3343 = vld [vmem:[#allocation2 + $0x18] sm:$0xff]
        %v3344 = vld [vmem:[#allocation2 + $0x20] sm:$0xff]
        %v3345 = vld [vmem:[#allocation2 + $0x28] sm:$0xff]
        %v3346 = vld [vmem:[#allocation2 + $0x30] sm:$0xff]
        %v3347 = vld [vmem:[#allocation2 + $0x38] sm:$0xff]
        %v3348 = vld [vmem:[#allocation2 + $0x40] sm:$0xff]
        %v3349 = vld [vmem:[#allocation2 + $0x50] sm:$0xff]
        %v3350 = vld [vmem:[#allocation2 + $0x58] sm:$0xff]
        %v3351 = vld [vmem:[#allocation2 + $0x60] sm:$0xff]
        %v3352 = vld [vmem:[#allocation2 + $0x68] sm:$0xff]
        %v3353 = vld [vmem:[#allocation2 + $0x70] sm:$0xff]
        %v3354 = vld [vmem:[#allocation2 + $0x78] sm:$0xff]
        %v3355 = vld [vmem:[#allocation2 + $0x80] sm:$0xff]
        %v3356 = vld [vmem:[#allocation2 + $0x88] sm:$0xff]
        %3373 = vrot.lane.b32.xlu0 %v3341, 28
        %v3374 = vpop.permute.xlu0 %3373
        %3375 = vrot.lane.b32.xlu0 %v3342, 28
        %v3376 = vpop.permute.xlu0 %3375
        %3377 = vrot.lane.b32.xlu0 %v3343, 28
        %v3378 = vpop.permute.xlu0 %3377
        %3379 = vrot.lane.b32.xlu0 %v3344, 28
        %v3380 = vpop.permute.xlu0 %3379
        %3381 = vrot.lane.b32.xlu0 %v3345, 28
        %v3382 = vpop.permute.xlu0 %3381
        %3383 = vrot.lane.b32.xlu0 %v3346, 28
        %v3384 = vpop.permute.xlu0 %3383
        %3385 = vrot.lane.b32.xlu0 %v3347, 28
        %v3386 = vpop.permute.xlu0 %3385
        %3387 = vrot.lane.b32.xlu0 %v3348, 28
        %v3388 = vpop.permute.xlu0 %3387
        %3389 = vrot.lane.b32.xlu0 %v3349, 28
        %v3390 = vpop.permute.xlu0 %3389
        %3391 = vrot.lane.b32.xlu0 %v3350, 28
        %v3392 = vpop.permute.xlu0 %3391
        %3393 = vrot.lane.b32.xlu0 %v3351, 28
        %v3394 = vpop.permute.xlu0 %3393
        %3395 = vrot.lane.b32.xlu0 %v3352, 28
        %v3396 = vpop.permute.xlu0 %3395
        %3397 = vrot.lane.b32.xlu0 %v3353, 28
        %v3398 = vpop.permute.xlu0 %3397
        %3399 = vrot.lane.b32.xlu0 %v3354, 28
        %v3400 = vpop.permute.xlu0 %3399
        %3401 = vrot.lane.b32.xlu0 %v3355, 28
        %v3402 = vpop.permute.xlu0 %3401
        %3403 = vrot.lane.b32.xlu0 %v3356, 28
        %v3404 = vpop.permute.xlu0 %3403
        %vm3405 = vcmask 228352
        %v3406 = vsel %vm3405, %v3374, %v3376
        %v3407 = vsel %vm3405, %v3376, %v3378
        %v3408 = vsel %vm3405, %v3378, %v3380
        %v3409 = vsel %vm3405, %v3380, %v3382
        %v3410 = vsel %vm3405, %v3382, %v3384
        %v3411 = vsel %vm3405, %v3384, %v3386
        %v3412 = vsel %vm3405, %v3386, %v3388
        %v3413 = vsel %vm3405, %v3390, %v3392
        %v3414 = vsel %vm3405, %v3392, %v3394
        %v3415 = vsel %vm3405, %v3394, %v3396
        %v3416 = vsel %vm3405, %v3396, %v3398
        %v3417 = vsel %vm3405, %v3398, %v3400
        %v3418 = vsel %vm3405, %v3400, %v3402
        %v3419 = vsel %vm3405, %v3402, %v3404
        %3434 = vrot.lane.b32.xlu0 %v3406, 1
        %v3435 = vpop.permute.xlu0 %3434
        %3436 = vrot.lane.b32.xlu0 %v3413, 1
        %v3437 = vpop.permute.xlu0 %3436
        %3438 = vrot.lane.b32.xlu0 %v3407, 1
        %v3439 = vpop.permute.xlu0 %3438
        %3440 = vrot.lane.b32.xlu0 %v3414, 1
        %v3441 = vpop.permute.xlu0 %3440
        %3442 = vrot.lane.b32.xlu0 %v3408, 1
        %v3443 = vpop.permute.xlu0 %3442
        %3444 = vrot.lane.b32.xlu0 %v3415, 1
        %v3445 = vpop.permute.xlu0 %3444
        %3446 = vrot.lane.b32.xlu0 %v3409, 1
        %v3447 = vpop.permute.xlu0 %3446
        %3448 = vrot.lane.b32.xlu0 %v3416, 1
        %v3449 = vpop.permute.xlu0 %3448
        %3450 = vrot.lane.b32.xlu0 %v3410, 1
        %v3451 = vpop.permute.xlu0 %3450
        %3452 = vrot.lane.b32.xlu0 %v3417, 1
        %v3453 = vpop.permute.xlu0 %3452
        %3454 = vrot.lane.b32.xlu0 %v3411, 1
        %v3455 = vpop.permute.xlu0 %3454
        %3456 = vrot.lane.b32.xlu0 %v3418, 1
        %v3457 = vpop.permute.xlu0 %3456
        %3458 = vrot.lane.b32.xlu0 %v3412, 1
        %v3459 = vpop.permute.xlu0 %3458
        %3460 = vrot.lane.b32.xlu0 %v3419, 1
        %v3461 = vpop.permute.xlu0 %3460
        %v3462 = vsel %vm949, %v3455, %v3459
        %v3463 = vsel %vm949, %v3457, %v3461
        %v3464 = vsel %vm949, %v3451, %v3455
        %v3465 = vsel %vm949, %v3453, %v3457
        %v3466 = vsel %vm949, %v3447, %v3451
        %v3467 = vsel %vm949, %v3449, %v3453
        %v3468 = vsel %vm949, %v3443, %v3447
        %v3469 = vsel %vm949, %v3445, %v3449
        %v3470 = vsel %vm949, %v3439, %v3443
        %v3471 = vsel %vm949, %v3441, %v3445
        %v3472 = vsel %vm949, %v3435, %v3439
        %v3473 = vsel %vm949, %v3437, %v3441
        %v3474 = vsel %vm949, %v3459, %v3435
        %v3475 = vsel %vm949, %v3461, %v3437
        %v3476 = vpack.c.bf16 %v3475, %v3474
        %v3477 = vpack.c.bf16 %v3473, %v3472
        %v3478 = vpack.c.bf16 %v3471, %v3470
        %v3479 = vpack.c.bf16 %v3469, %v3468
        %v3480 = vpack.c.bf16 %v3467, %v3466
        %v3481 = vpack.c.bf16 %v3465, %v3464
        %v3482 = vpack.c.bf16 %v3463, %v3462
        %v3490 = vunpack.c.l.b16 %v3476
        %v3491 = vunpack.c.l.b16 %v3477
        %v3492 = vunpack.c.l.b16 %v3478
        %v3493 = vunpack.c.l.b16 %v3479
        %v3494 = vunpack.c.l.b16 %v3480
        %v3495 = vunpack.c.l.b16 %v3481
        %v3496 = vunpack.c.l.b16 %v3482
        %v3497 = vunpack.c.h.b16 %v3476
        %v3498 = vunpack.c.h.b16 %v3477
        %v3499 = vunpack.c.h.b16 %v3478
        %v3500 = vunpack.c.h.b16 %v3479
        %v3501 = vunpack.c.h.b16 %v3480
        %v3502 = vunpack.c.h.b16 %v3481
        %v3503 = vunpack.c.h.b16 %v3482
        %v3504 = vpack.c.b16 %v3491, %v3490
        %v3505 = vpack.c.b16 %v3493, %v3492
        %v3506 = vpack.c.b16 %v3495, %v3494
        %v3507 = vpack.c.b16 %v3496, %v3496
        %v3508 = vpack.c.b16 %v3498, %v3497
        %v3509 = vpack.c.b16 %v3500, %v3499
        %v3510 = vpack.c.b16 %v3502, %v3501
        %v3511 = vpack.c.b16 %v3503, %v3503
        %3520 = vst [vmem:[#allocation4 + $0x498] sm:$0xff] %v3504
        %3521 = vst [vmem:[#allocation4 + $0x4a0] sm:$0xff] %v3505
        %3522 = vst [vmem:[#allocation4 + $0x4a8] sm:$0xff] %v3506
        %3523 = vst [vmem:[#allocation4 + $0x4b0] sm:$0xf] %v3507
        %3524 = vst [vmem:[#allocation4 + $0x4b4] sm:$0xff] %v3508
        %3525 = vst [vmem:[#allocation4 + $0x4bc] sm:$0xff] %v3509
        %3526 = vst [vmem:[#allocation4 + $0x4c4] sm:$0xff] %v3510
        %3527 = vst [vmem:[#allocation4 + $0x4cc] sm:$0xf] %v3511
        %v3528 = vpack.c.bf16 %v3349, %v3341
        %v3529 = vpack.c.bf16 %v3350, %v3342
        %v3530 = vpack.c.bf16 %v3351, %v3343
        %v3531 = vpack.c.bf16 %v3352, %v3344
        %v3532 = vpack.c.bf16 %v3353, %v3345
        %v3533 = vpack.c.bf16 %v3354, %v3346
        %v3534 = vpack.c.bf16 %v3355, %v3347
        %v3535 = vpack.c.bf16 %v3356, %v3348
        %v3544 = vunpack.c.l.b16 %v3528
        %v3545 = vunpack.c.l.b16 %v3529
        %v3546 = vunpack.c.l.b16 %v3530
        %v3547 = vunpack.c.l.b16 %v3531
        %v3548 = vunpack.c.l.b16 %v3532
        %v3549 = vunpack.c.l.b16 %v3533
        %v3550 = vunpack.c.l.b16 %v3534
        %v3551 = vunpack.c.l.b16 %v3535
        %v3552 = vunpack.c.h.b16 %v3528
        %v3553 = vunpack.c.h.b16 %v3529
        %v3554 = vunpack.c.h.b16 %v3530
        %v3555 = vunpack.c.h.b16 %v3531
        %v3556 = vunpack.c.h.b16 %v3532
        %v3557 = vunpack.c.h.b16 %v3533
        %v3558 = vunpack.c.h.b16 %v3534
        %v3559 = vunpack.c.h.b16 %v3535
        %v3560 = vpack.c.b16 %v3545, %v3544
        %v3561 = vpack.c.b16 %v3547, %v3546
        %v3562 = vpack.c.b16 %v3549, %v3548
        %v3563 = vpack.c.b16 %v3551, %v3550
        %v3564 = vpack.c.b16 %v3553, %v3552
        %v3565 = vpack.c.b16 %v3555, %v3554
        %v3566 = vpack.c.b16 %v3557, %v3556
        %v3567 = vpack.c.b16 %v3559, %v3558
        %3568 = vrot.lane.b32.xlu0 %v3560, 28
        %v3569 = vpop.permute.xlu0 %3568
        %3570 = vrot.lane.b32.xlu0 %v3561, 28
        %v3571 = vpop.permute.xlu0 %3570
        %3572 = vrot.lane.b32.xlu0 %v3562, 28
        %v3573 = vpop.permute.xlu0 %3572
        %3574 = vrot.lane.b32.xlu0 %v3563, 28
        %v3575 = vpop.permute.xlu0 %3574
        %3576 = vrot.lane.b32.xlu0 %v3564, 28
        %v3577 = vpop.permute.xlu0 %3576
        %3578 = vrot.lane.b32.xlu0 %v3565, 28
        %v3579 = vpop.permute.xlu0 %3578
        %3580 = vrot.lane.b32.xlu0 %v3566, 28
        %v3581 = vpop.permute.xlu0 %3580
        %3582 = vrot.lane.b32.xlu0 %v3567, 28
        %v3583 = vpop.permute.xlu0 %3582
        %v3584 = vrot.slane %v3569, 4
        %v3585 = vrot.slane %v3571, 4
        %v3586 = vrot.slane %v3573, 4
        %v3587 = vrot.slane %v3575, 4
        %v3588 = vrot.slane %v3577, 4
        %v3589 = vrot.slane %v3579, 4
        %v3590 = vrot.slane %v3581, 4
        %v3591 = vrot.slane %v3583, 4
        %v3592 = vsel %vm1080, %v3584, %v3585
        %vm3593 = vcmask 228352
        %v3594 = vsel %vm3593, %v3569, %v3592
        %v3595 = vsel %vm1080, %v3585, %v3586
        %v3596 = vsel %vm3593, %v3571, %v3595
        %v3597 = vsel %vm1080, %v3586, %v3587
        %v3598 = vsel %vm3593, %v3573, %v3597
        %v3599 = vsel %vm3593, %v3575, %v3587
        %v3600 = vsel %vm1080, %v3588, %v3589
        %v3601 = vsel %vm3593, %v3577, %v3600
        %v3602 = vsel %vm1080, %v3589, %v3590
        %v3603 = vsel %vm3593, %v3579, %v3602
        %v3604 = vsel %vm1080, %v3590, %v3591
        %v3605 = vsel %vm3593, %v3581, %v3604
        %v3606 = vsel %vm3593, %v3583, %v3591
        %3615 = vst [vmem:[#allocation4 + $0x4d0] sm:$0xff] %v3594
        %3616 = vst [vmem:[#allocation4 + $0x4d8] sm:$0xff] %v3596
        %3617 = vst [vmem:[#allocation4 + $0x4e0] sm:$0xff] %v3598
        %3618 = vst [vmem:[#allocation4 + $0x4e8] sm:$0xf] %v3599
        %3619 = vst [vmem:[#allocation4 + $0x4ec] sm:$0xff] %v3601
        %3620 = vst [vmem:[#allocation4 + $0x4f4] sm:$0xff] %v3603
        %3621 = vst [vmem:[#allocation4 + $0x4fc] sm:$0xff] %v3605
        %3622 = vst [vmem:[#allocation4 + $0x504] sm:$0xf] %v3606
        %3623 = vrot.lane.b32.xlu0 %v3406, 127
        %v3624 = vpop.permute.xlu0 %3623
        %3625 = vrot.lane.b32.xlu0 %v3413, 127
        %v3626 = vpop.permute.xlu0 %3625
        %3627 = vrot.lane.b32.xlu0 %v3407, 127
        %v3628 = vpop.permute.xlu0 %3627
        %3629 = vrot.lane.b32.xlu0 %v3414, 127
        %v3630 = vpop.permute.xlu0 %3629
        %3631 = vrot.lane.b32.xlu0 %v3408, 127
        %v3632 = vpop.permute.xlu0 %3631
        %3633 = vrot.lane.b32.xlu0 %v3415, 127
        %v3634 = vpop.permute.xlu0 %3633
        %3635 = vrot.lane.b32.xlu0 %v3409, 127
        %v3636 = vpop.permute.xlu0 %3635
        %3637 = vrot.lane.b32.xlu0 %v3416, 127
        %v3638 = vpop.permute.xlu0 %3637
        %3639 = vrot.lane.b32.xlu0 %v3410, 127
        %v3640 = vpop.permute.xlu0 %3639
        %3641 = vrot.lane.b32.xlu0 %v3417, 127
        %v3642 = vpop.permute.xlu0 %3641
        %3643 = vrot.lane.b32.xlu0 %v3411, 127
        %v3644 = vpop.permute.xlu0 %3643
        %3645 = vrot.lane.b32.xlu0 %v3418, 127
        %v3646 = vpop.permute.xlu0 %3645
        %3647 = vrot.lane.b32.xlu0 %v3412, 127
        %v3648 = vpop.permute.xlu0 %3647
        %3649 = vrot.lane.b32.xlu0 %v3419, 127
        %v3650 = vpop.permute.xlu0 %3649
        %v3651 = vsel %vm1140, %v3644, %v3648
        %v3652 = vsel %vm1140, %v3646, %v3650
        %v3653 = vsel %vm1140, %v3640, %v3644
        %v3654 = vsel %vm1140, %v3642, %v3646
        %v3655 = vsel %vm1140, %v3636, %v3640
        %v3656 = vsel %vm1140, %v3638, %v3642
        %v3657 = vsel %vm1140, %v3632, %v3636
        %v3658 = vsel %vm1140, %v3634, %v3638
        %v3659 = vsel %vm1140, %v3628, %v3632
        %v3660 = vsel %vm1140, %v3630, %v3634
        %v3661 = vsel %vm1140, %v3624, %v3628
        %v3662 = vsel %vm1140, %v3626, %v3630
        %v3663 = vsel %vm1140, %v3648, %v3624
        %v3664 = vsel %vm1140, %v3650, %v3626
        %v3665 = vpack.c.bf16 %v3662, %v3661
        %v3666 = vpack.c.bf16 %v3660, %v3659
        %v3667 = vpack.c.bf16 %v3658, %v3657
        %v3668 = vpack.c.bf16 %v3656, %v3655
        %v3669 = vpack.c.bf16 %v3654, %v3653
        %v3670 = vpack.c.bf16 %v3652, %v3651
        %v3671 = vpack.c.bf16 %v3664, %v3663
        %v3679 = vunpack.c.l.b16 %v3665
        %v3680 = vunpack.c.l.b16 %v3666
        %v3681 = vunpack.c.l.b16 %v3667
        %v3682 = vunpack.c.l.b16 %v3668
        %v3683 = vunpack.c.l.b16 %v3669
        %v3684 = vunpack.c.l.b16 %v3670
        %v3685 = vunpack.c.l.b16 %v3671
        %v3686 = vunpack.c.h.b16 %v3665
        %v3687 = vunpack.c.h.b16 %v3666
        %v3688 = vunpack.c.h.b16 %v3667
        %v3689 = vunpack.c.h.b16 %v3668
        %v3690 = vunpack.c.h.b16 %v3669
        %v3691 = vunpack.c.h.b16 %v3670
        %v3692 = vunpack.c.h.b16 %v3671
        %v3693 = vpack.c.b16 %v3680, %v3679
        %v3694 = vpack.c.b16 %v3682, %v3681
        %v3695 = vpack.c.b16 %v3684, %v3683
        %v3696 = vpack.c.b16 %v3685, %v3685
        %v3697 = vpack.c.b16 %v3687, %v3686
        %v3698 = vpack.c.b16 %v3689, %v3688
        %v3699 = vpack.c.b16 %v3691, %v3690
        %v3700 = vpack.c.b16 %v3692, %v3692
        %3709 = vst [vmem:[#allocation4 + $0x508] sm:$0xff] %v3693
        %3710 = vst [vmem:[#allocation4 + $0x510] sm:$0xff] %v3694
        %3711 = vst [vmem:[#allocation4 + $0x518] sm:$0xff] %v3695
        %3712 = vst [vmem:[#allocation4 + $0x520] sm:$0xf] %v3696
        %3713 = vst [vmem:[#allocation4 + $0x524] sm:$0xff] %v3697
        %3714 = vst [vmem:[#allocation4 + $0x52c] sm:$0xff] %v3698
        %3715 = vst [vmem:[#allocation4 + $0x534] sm:$0xff] %v3699
        %3716 = vst [vmem:[#allocation4 + $0x53c] sm:$0xf] %v3700
        %v3717 = vld [vmem:[#allocation2 + $0x8] sm:$0xff]
        %v3718 = vld [vmem:[#allocation2 + $0x10] sm:$0xff]
        %v3719 = vld [vmem:[#allocation2 + $0x18] sm:$0xff]
        %v3720 = vld [vmem:[#allocation2 + $0x20] sm:$0xff]
        %v3721 = vld [vmem:[#allocation2 + $0x28] sm:$0xff]
        %v3722 = vld [vmem:[#allocation2 + $0x30] sm:$0xff]
        %v3723 = vld [vmem:[#allocation2 + $0x38] sm:$0xff]
        %v3724 = vld [vmem:[#allocation2 + $0x40] sm:$0xff]
        %v3725 = vld [vmem:[#allocation2 + $0x50] sm:$0xff]
        %v3726 = vld [vmem:[#allocation2 + $0x58] sm:$0xff]
        %v3727 = vld [vmem:[#allocation2 + $0x60] sm:$0xff]
        %v3728 = vld [vmem:[#allocation2 + $0x68] sm:$0xff]
        %v3729 = vld [vmem:[#allocation2 + $0x70] sm:$0xff]
        %v3730 = vld [vmem:[#allocation2 + $0x78] sm:$0xff]
        %v3731 = vld [vmem:[#allocation2 + $0x80] sm:$0xff]
        %v3732 = vld [vmem:[#allocation2 + $0x88] sm:$0xff]
        %3749 = vrot.lane.b32.xlu0 %v3717, 18
        %v3750 = vpop.permute.xlu0 %3749
        %3751 = vrot.lane.b32.xlu0 %v3718, 18
        %v3752 = vpop.permute.xlu0 %3751
        %3753 = vrot.lane.b32.xlu0 %v3719, 18
        %v3754 = vpop.permute.xlu0 %3753
        %3755 = vrot.lane.b32.xlu0 %v3720, 18
        %v3756 = vpop.permute.xlu0 %3755
        %3757 = vrot.lane.b32.xlu0 %v3721, 18
        %v3758 = vpop.permute.xlu0 %3757
        %3759 = vrot.lane.b32.xlu0 %v3722, 18
        %v3760 = vpop.permute.xlu0 %3759
        %3761 = vrot.lane.b32.xlu0 %v3723, 18
        %v3762 = vpop.permute.xlu0 %3761
        %3763 = vrot.lane.b32.xlu0 %v3724, 18
        %v3764 = vpop.permute.xlu0 %3763
        %3765 = vrot.lane.b32.xlu0 %v3725, 18
        %v3766 = vpop.permute.xlu0 %3765
        %3767 = vrot.lane.b32.xlu0 %v3726, 18
        %v3768 = vpop.permute.xlu0 %3767
        %3769 = vrot.lane.b32.xlu0 %v3727, 18
        %v3770 = vpop.permute.xlu0 %3769
        %3771 = vrot.lane.b32.xlu0 %v3728, 18
        %v3772 = vpop.permute.xlu0 %3771
        %3773 = vrot.lane.b32.xlu0 %v3729, 18
        %v3774 = vpop.permute.xlu0 %3773
        %3775 = vrot.lane.b32.xlu0 %v3730, 18
        %v3776 = vpop.permute.xlu0 %3775
        %3777 = vrot.lane.b32.xlu0 %v3731, 18
        %v3778 = vpop.permute.xlu0 %3777
        %3779 = vrot.lane.b32.xlu0 %v3732, 18
        %v3780 = vpop.permute.xlu0 %3779
        %vm3781 = vcmask 146432
        %v3782 = vsel %vm3781, %v3750, %v3752
        %v3783 = vsel %vm3781, %v3752, %v3754
        %v3784 = vsel %vm3781, %v3754, %v3756
        %v3785 = vsel %vm3781, %v3756, %v3758
        %v3786 = vsel %vm3781, %v3758, %v3760
        %v3787 = vsel %vm3781, %v3760, %v3762
        %v3788 = vsel %vm3781, %v3762, %v3764
        %v3789 = vsel %vm3781, %v3766, %v3768
        %v3790 = vsel %vm3781, %v3768, %v3770
        %v3791 = vsel %vm3781, %v3770, %v3772
        %v3792 = vsel %vm3781, %v3772, %v3774
        %v3793 = vsel %vm3781, %v3774, %v3776
        %v3794 = vsel %vm3781, %v3776, %v3778
        %v3795 = vsel %vm3781, %v3778, %v3780
        %3810 = vrot.lane.b32.xlu0 %v3782, 1
        %v3811 = vpop.permute.xlu0 %3810
        %3812 = vrot.lane.b32.xlu0 %v3789, 1
        %v3813 = vpop.permute.xlu0 %3812
        %3814 = vrot.lane.b32.xlu0 %v3783, 1
        %v3815 = vpop.permute.xlu0 %3814
        %3816 = vrot.lane.b32.xlu0 %v3790, 1
        %v3817 = vpop.permute.xlu0 %3816
        %3818 = vrot.lane.b32.xlu0 %v3784, 1
        %v3819 = vpop.permute.xlu0 %3818
        %3820 = vrot.lane.b32.xlu0 %v3791, 1
        %v3821 = vpop.permute.xlu0 %3820
        %3822 = vrot.lane.b32.xlu0 %v3785, 1
        %v3823 = vpop.permute.xlu0 %3822
        %3824 = vrot.lane.b32.xlu0 %v3792, 1
        %v3825 = vpop.permute.xlu0 %3824
        %3826 = vrot.lane.b32.xlu0 %v3786, 1
        %v3827 = vpop.permute.xlu0 %3826
        %3828 = vrot.lane.b32.xlu0 %v3793, 1
        %v3829 = vpop.permute.xlu0 %3828
        %3830 = vrot.lane.b32.xlu0 %v3787, 1
        %v3831 = vpop.permute.xlu0 %3830
        %3832 = vrot.lane.b32.xlu0 %v3794, 1
        %v3833 = vpop.permute.xlu0 %3832
        %3834 = vrot.lane.b32.xlu0 %v3788, 1
        %v3835 = vpop.permute.xlu0 %3834
        %3836 = vrot.lane.b32.xlu0 %v3795, 1
        %v3837 = vpop.permute.xlu0 %3836
        %v3838 = vsel %vm949, %v3831, %v3835
        %v3839 = vsel %vm949, %v3833, %v3837
        %v3840 = vsel %vm949, %v3827, %v3831
        %v3841 = vsel %vm949, %v3829, %v3833
        %v3842 = vsel %vm949, %v3823, %v3827
        %v3843 = vsel %vm949, %v3825, %v3829
        %v3844 = vsel %vm949, %v3819, %v3823
        %v3845 = vsel %vm949, %v3821, %v3825
        %v3846 = vsel %vm949, %v3815, %v3819
        %v3847 = vsel %vm949, %v3817, %v3821
        %v3848 = vsel %vm949, %v3811, %v3815
        %v3849 = vsel %vm949, %v3813, %v3817
        %v3850 = vsel %vm949, %v3835, %v3811
        %v3851 = vsel %vm949, %v3837, %v3813
        %v3852 = vpack.c.bf16 %v3851, %v3850
        %v3853 = vpack.c.bf16 %v3849, %v3848
        %v3854 = vpack.c.bf16 %v3847, %v3846
        %v3855 = vpack.c.bf16 %v3845, %v3844
        %v3856 = vpack.c.bf16 %v3843, %v3842
        %v3857 = vpack.c.bf16 %v3841, %v3840
        %v3858 = vpack.c.bf16 %v3839, %v3838
        %v3866 = vunpack.c.l.b16 %v3852
        %v3867 = vunpack.c.l.b16 %v3853
        %v3868 = vunpack.c.l.b16 %v3854
        %v3869 = vunpack.c.l.b16 %v3855
        %v3870 = vunpack.c.l.b16 %v3856
        %v3871 = vunpack.c.l.b16 %v3857
        %v3872 = vunpack.c.l.b16 %v3858
        %v3873 = vunpack.c.h.b16 %v3852
        %v3874 = vunpack.c.h.b16 %v3853
        %v3875 = vunpack.c.h.b16 %v3854
        %v3876 = vunpack.c.h.b16 %v3855
        %v3877 = vunpack.c.h.b16 %v3856
        %v3878 = vunpack.c.h.b16 %v3857
        %v3879 = vunpack.c.h.b16 %v3858
        %v3880 = vpack.c.b16 %v3867, %v3866
        %v3881 = vpack.c.b16 %v3869, %v3868
        %v3882 = vpack.c.b16 %v3871, %v3870
        %v3883 = vpack.c.b16 %v3872, %v3872
        %v3884 = vpack.c.b16 %v3874, %v3873
        %v3885 = vpack.c.b16 %v3876, %v3875
        %v3886 = vpack.c.b16 %v3878, %v3877
        %v3887 = vpack.c.b16 %v3879, %v3879
        %3896 = vst [vmem:[#allocation4 + $0x540] sm:$0xff] %v3880
        %3897 = vst [vmem:[#allocation4 + $0x548] sm:$0xff] %v3881
        %3898 = vst [vmem:[#allocation4 + $0x550] sm:$0xff] %v3882
        %3899 = vst [vmem:[#allocation4 + $0x558] sm:$0xf] %v3883
        %3900 = vst [vmem:[#allocation4 + $0x55c] sm:$0xff] %v3884
        %3901 = vst [vmem:[#allocation4 + $0x564] sm:$0xff] %v3885
        %3902 = vst [vmem:[#allocation4 + $0x56c] sm:$0xff] %v3886
        %3903 = vst [vmem:[#allocation4 + $0x574] sm:$0xf] %v3887
        %v3904 = vpack.c.bf16 %v3725, %v3717
        %v3905 = vpack.c.bf16 %v3726, %v3718
        %v3906 = vpack.c.bf16 %v3727, %v3719
        %v3907 = vpack.c.bf16 %v3728, %v3720
        %v3908 = vpack.c.bf16 %v3729, %v3721
        %v3909 = vpack.c.bf16 %v3730, %v3722
        %v3910 = vpack.c.bf16 %v3731, %v3723
        %v3911 = vpack.c.bf16 %v3732, %v3724
        %v3920 = vunpack.c.l.b16 %v3904
        %v3921 = vunpack.c.l.b16 %v3905
        %v3922 = vunpack.c.l.b16 %v3906
        %v3923 = vunpack.c.l.b16 %v3907
        %v3924 = vunpack.c.l.b16 %v3908
        %v3925 = vunpack.c.l.b16 %v3909
        %v3926 = vunpack.c.l.b16 %v3910
        %v3927 = vunpack.c.l.b16 %v3911
        %v3928 = vunpack.c.h.b16 %v3904
        %v3929 = vunpack.c.h.b16 %v3905
        %v3930 = vunpack.c.h.b16 %v3906
        %v3931 = vunpack.c.h.b16 %v3907
        %v3932 = vunpack.c.h.b16 %v3908
        %v3933 = vunpack.c.h.b16 %v3909
        %v3934 = vunpack.c.h.b16 %v3910
        %v3935 = vunpack.c.h.b16 %v3911
        %v3936 = vpack.c.b16 %v3921, %v3920
        %v3937 = vpack.c.b16 %v3923, %v3922
        %v3938 = vpack.c.b16 %v3925, %v3924
        %v3939 = vpack.c.b16 %v3927, %v3926
        %v3940 = vpack.c.b16 %v3929, %v3928
        %v3941 = vpack.c.b16 %v3931, %v3930
        %v3942 = vpack.c.b16 %v3933, %v3932
        %v3943 = vpack.c.b16 %v3935, %v3934
        %3944 = vrot.lane.b32.xlu0 %v3936, 18
        %v3945 = vpop.permute.xlu0 %3944
        %3946 = vrot.lane.b32.xlu0 %v3937, 18
        %v3947 = vpop.permute.xlu0 %3946
        %3948 = vrot.lane.b32.xlu0 %v3938, 18
        %v3949 = vpop.permute.xlu0 %3948
        %3950 = vrot.lane.b32.xlu0 %v3939, 18
        %v3951 = vpop.permute.xlu0 %3950
        %3952 = vrot.lane.b32.xlu0 %v3940, 18
        %v3953 = vpop.permute.xlu0 %3952
        %3954 = vrot.lane.b32.xlu0 %v3941, 18
        %v3955 = vpop.permute.xlu0 %3954
        %3956 = vrot.lane.b32.xlu0 %v3942, 18
        %v3957 = vpop.permute.xlu0 %3956
        %3958 = vrot.lane.b32.xlu0 %v3943, 18
        %v3959 = vpop.permute.xlu0 %3958
        %v3960 = vrot.slane %v3945, 4
        %v3961 = vrot.slane %v3947, 4
        %v3962 = vrot.slane %v3949, 4
        %v3963 = vrot.slane %v3951, 4
        %v3964 = vrot.slane %v3953, 4
        %v3965 = vrot.slane %v3955, 4
        %v3966 = vrot.slane %v3957, 4
        %v3967 = vrot.slane %v3959, 4
        %v3968 = vsel %vm1080, %v3960, %v3961
        %vm3969 = vcmask 146432
        %v3970 = vsel %vm3969, %v3945, %v3968
        %v3971 = vsel %vm1080, %v3961, %v3962
        %v3972 = vsel %vm3969, %v3947, %v3971
        %v3973 = vsel %vm1080, %v3962, %v3963
        %v3974 = vsel %vm3969, %v3949, %v3973
        %v3975 = vsel %vm3969, %v3951, %v3963
        %v3976 = vsel %vm1080, %v3964, %v3965
        %v3977 = vsel %vm3969, %v3953, %v3976
        %v3978 = vsel %vm1080, %v3965, %v3966
        %v3979 = vsel %vm3969, %v3955, %v3978
        %v3980 = vsel %vm1080, %v3966, %v3967
        %v3981 = vsel %vm3969, %v3957, %v3980
        %v3982 = vsel %vm3969, %v3959, %v3967
        %3991 = vst [vmem:[#allocation4 + $0x578] sm:$0xff] %v3970
        %3992 = vst [vmem:[#allocation4 + $0x580] sm:$0xff] %v3972
        %3993 = vst [vmem:[#allocation4 + $0x588] sm:$0xff] %v3974
        %3994 = vst [vmem:[#allocation4 + $0x590] sm:$0xf] %v3975
        %3995 = vst [vmem:[#allocation4 + $0x594] sm:$0xff] %v3977
        %3996 = vst [vmem:[#allocation4 + $0x59c] sm:$0xff] %v3979
        %3997 = vst [vmem:[#allocation4 + $0x5a4] sm:$0xff] %v3981
        %3998 = vst [vmem:[#allocation4 + $0x5ac] sm:$0xf] %v3982
        %3999 = vrot.lane.b32.xlu0 %v3782, 127
        %v4000 = vpop.permute.xlu0 %3999
        %4001 = vrot.lane.b32.xlu0 %v3789, 127
        %v4002 = vpop.permute.xlu0 %4001
        %4003 = vrot.lane.b32.xlu0 %v3783, 127
        %v4004 = vpop.permute.xlu0 %4003
        %4005 = vrot.lane.b32.xlu0 %v3790, 127
        %v4006 = vpop.permute.xlu0 %4005
        %4007 = vrot.lane.b32.xlu0 %v3784, 127
        %v4008 = vpop.permute.xlu0 %4007
        %4009 = vrot.lane.b32.xlu0 %v3791, 127
        %v4010 = vpop.permute.xlu0 %4009
        %4011 = vrot.lane.b32.xlu0 %v3785, 127
        %v4012 = vpop.permute.xlu0 %4011
        %4013 = vrot.lane.b32.xlu0 %v3792, 127
        %v4014 = vpop.permute.xlu0 %4013
        %4015 = vrot.lane.b32.xlu0 %v3786, 127
        %v4016 = vpop.permute.xlu0 %4015
        %4017 = vrot.lane.b32.xlu0 %v3793, 127
        %v4018 = vpop.permute.xlu0 %4017
        %4019 = vrot.lane.b32.xlu0 %v3787, 127
        %v4020 = vpop.permute.xlu0 %4019
        %4021 = vrot.lane.b32.xlu0 %v3794, 127
        %v4022 = vpop.permute.xlu0 %4021
        %4023 = vrot.lane.b32.xlu0 %v3788, 127
        %v4024 = vpop.permute.xlu0 %4023
        %4025 = vrot.lane.b32.xlu0 %v3795, 127
        %v4026 = vpop.permute.xlu0 %4025
        %v4027 = vsel %vm1140, %v4020, %v4024
        %v4028 = vsel %vm1140, %v4022, %v4026
        %v4029 = vsel %vm1140, %v4016, %v4020
        %v4030 = vsel %vm1140, %v4018, %v4022
        %v4031 = vsel %vm1140, %v4012, %v4016
        %v4032 = vsel %vm1140, %v4014, %v4018
        %v4033 = vsel %vm1140, %v4008, %v4012
        %v4034 = vsel %vm1140, %v4010, %v4014
        %v4035 = vsel %vm1140, %v4004, %v4008
        %v4036 = vsel %vm1140, %v4006, %v4010
        %v4037 = vsel %vm1140, %v4000, %v4004
        %v4038 = vsel %vm1140, %v4002, %v4006
        %v4039 = vsel %vm1140, %v4024, %v4000
        %v4040 = vsel %vm1140, %v4026, %v4002
        %v4041 = vpack.c.bf16 %v4038, %v4037
        %v4042 = vpack.c.bf16 %v4036, %v4035
        %v4043 = vpack.c.bf16 %v4034, %v4033
        %v4044 = vpack.c.bf16 %v4032, %v4031
        %v4045 = vpack.c.bf16 %v4030, %v4029
        %v4046 = vpack.c.bf16 %v4028, %v4027
        %v4047 = vpack.c.bf16 %v4040, %v4039
        %v4055 = vunpack.c.l.b16 %v4041
        %v4056 = vunpack.c.l.b16 %v4042
        %v4057 = vunpack.c.l.b16 %v4043
        %v4058 = vunpack.c.l.b16 %v4044
        %v4059 = vunpack.c.l.b16 %v4045
        %v4060 = vunpack.c.l.b16 %v4046
        %v4061 = vunpack.c.l.b16 %v4047
        %v4062 = vunpack.c.h.b16 %v4041
        %v4063 = vunpack.c.h.b16 %v4042
        %v4064 = vunpack.c.h.b16 %v4043
        %v4065 = vunpack.c.h.b16 %v4044
        %v4066 = vunpack.c.h.b16 %v4045
        %v4067 = vunpack.c.h.b16 %v4046
        %v4068 = vunpack.c.h.b16 %v4047
        %v4069 = vpack.c.b16 %v4056, %v4055
        %v4070 = vpack.c.b16 %v4058, %v4057
        %v4071 = vpack.c.b16 %v4060, %v4059
        %v4072 = vpack.c.b16 %v4061, %v4061
        %v4073 = vpack.c.b16 %v4063, %v4062
        %v4074 = vpack.c.b16 %v4065, %v4064
        %v4075 = vpack.c.b16 %v4067, %v4066
        %v4076 = vpack.c.b16 %v4068, %v4068
        %4085 = vst [vmem:[#allocation4 + $0x5b0] sm:$0xff] %v4069
        %4086 = vst [vmem:[#allocation4 + $0x5b8] sm:$0xff] %v4070
        %4087 = vst [vmem:[#allocation4 + $0x5c0] sm:$0xff] %v4071
        %4088 = vst [vmem:[#allocation4 + $0x5c8] sm:$0xf] %v4072
        %4089 = vst [vmem:[#allocation4 + $0x5cc] sm:$0xff] %v4073
        %4090 = vst [vmem:[#allocation4 + $0x5d4] sm:$0xff] %v4074
        %4091 = vst [vmem:[#allocation4 + $0x5dc] sm:$0xff] %v4075
        %4092 = vst [vmem:[#allocation4 + $0x5e4] sm:$0xf] %v4076
        %v4093 = vld [vmem:[%s4] sm:$0xff]
        %v4094 = vld [vmem:[%s4 + $0x8] sm:$0xff]
        %v4095 = vld [vmem:[%s4 + $0x10] sm:$0xff]
        %v4096 = vld [vmem:[%s4 + $0x18] sm:$0xff]
        %v4097 = vld [vmem:[#allocation4] sm:$0xff]
        %v4098 = vld [vmem:[#allocation4 + $0x8] sm:$0xff]
        %v4099 = vld [vmem:[#allocation4 + $0x10] sm:$0xff]
        %v4100 = vld [vmem:[#allocation4 + $0x18] sm:$0xf]
        %v4101 = vld [vmem:[#allocation4 + $0x1c] sm:$0xff]
        %v4102 = vld [vmem:[#allocation4 + $0x24] sm:$0xff]
        %v4103 = vld [vmem:[#allocation4 + $0x2c] sm:$0xff]
        %v4104 = vld [vmem:[#allocation4 + $0x34] sm:$0xf]
        %v4105 = vld [vmem:[#allocation4 + $0x38] sm:$0xff]
        %v4106 = vld [vmem:[#allocation4 + $0x40] sm:$0xff]
        %v4107 = vld [vmem:[#allocation4 + $0x48] sm:$0xff]
        %v4108 = vld [vmem:[#allocation4 + $0x50] sm:$0xf]
        %v4109 = vld [vmem:[#allocation4 + $0x54] sm:$0xff]
        %v4110 = vld [vmem:[#allocation4 + $0x5c] sm:$0xff]
        %v4111 = vld [vmem:[#allocation4 + $0x64] sm:$0xff]
        %v4112 = vld [vmem:[#allocation4 + $0x6c] sm:$0xf]
        %v4113 = vld [vmem:[#allocation4 + $0x70] sm:$0xff]
        %v4114 = vld [vmem:[#allocation4 + $0x78] sm:$0xff]
        %v4115 = vld [vmem:[#allocation4 + $0x80] sm:$0xff]
        %v4116 = vld [vmem:[#allocation4 + $0x88] sm:$0xf]
        %v4117 = vld [vmem:[#allocation4 + $0x8c] sm:$0xff]
        %v4118 = vld [vmem:[#allocation4 + $0x94] sm:$0xff]
        %v4119 = vld [vmem:[#allocation4 + $0x9c] sm:$0xff]
        %v4120 = vld [vmem:[#allocation4 + $0xa4] sm:$0xf]
        %v4121 = vld [vmem:[#allocation4 + $0xa8] sm:$0xff]
        %v4122 = vld [vmem:[#allocation4 + $0xb0] sm:$0xff]
        %v4123 = vld [vmem:[#allocation4 + $0xb8] sm:$0xff]
        %v4124 = vld [vmem:[#allocation4 + $0xc0] sm:$0xf]
        %v4125 = vld [vmem:[#allocation4 + $0xc4] sm:$0xff]
        %v4126 = vld [vmem:[#allocation4 + $0xcc] sm:$0xff]
        %v4127 = vld [vmem:[#allocation4 + $0xd4] sm:$0xff]
        %v4128 = vld [vmem:[#allocation4 + $0xdc] sm:$0xf]
        %v4129 = vld [vmem:[#allocation4 + $0xe0] sm:$0xff]
        %v4130 = vld [vmem:[#allocation4 + $0xe8] sm:$0xff]
        %v4131 = vld [vmem:[#allocation4 + $0xf0] sm:$0xff]
        %v4132 = vld [vmem:[#allocation4 + $0xf8] sm:$0xf]
        %v4133 = vld [vmem:[#allocation4 + $0xfc] sm:$0xff]
        %v4134 = vld [vmem:[#allocation4 + $0x104] sm:$0xff]
        %v4135 = vld [vmem:[#allocation4 + $0x10c] sm:$0xff]
        %v4136 = vld [vmem:[#allocation4 + $0x114] sm:$0xf]
        %v4137 = vld [vmem:[#allocation4 + $0x118] sm:$0xff]
        %v4138 = vld [vmem:[#allocation4 + $0x120] sm:$0xff]
        %v4139 = vld [vmem:[#allocation4 + $0x128] sm:$0xff]
        %v4140 = vld [vmem:[#allocation4 + $0x130] sm:$0xf]
        %v4141 = vld [vmem:[#allocation4 + $0x134] sm:$0xff]
        %v4142 = vld [vmem:[#allocation4 + $0x13c] sm:$0xff]
        %v4143 = vld [vmem:[#allocation4 + $0x144] sm:$0xff]
        %v4144 = vld [vmem:[#allocation4 + $0x14c] sm:$0xf]
        %v4145 = vld [vmem:[#allocation4 + $0x150] sm:$0xff]
        %v4146 = vld [vmem:[#allocation4 + $0x158] sm:$0xff]
        %v4147 = vld [vmem:[#allocation4 + $0x160] sm:$0xff]
        %v4148 = vld [vmem:[#allocation4 + $0x168] sm:$0xf]
        %v4149 = vld [vmem:[#allocation4 + $0x16c] sm:$0xff]
        %v4150 = vld [vmem:[#allocation4 + $0x174] sm:$0xff]
        %v4151 = vld [vmem:[#allocation4 + $0x17c] sm:$0xff]
        %v4152 = vld [vmem:[#allocation4 + $0x184] sm:$0xf]
        %v4153 = vld [vmem:[#allocation4 + $0x188] sm:$0xff]
        %v4154 = vld [vmem:[#allocation4 + $0x190] sm:$0xff]
        %v4155 = vld [vmem:[#allocation4 + $0x198] sm:$0xff]
        %v4156 = vld [vmem:[#allocation4 + $0x1a0] sm:$0xf]
        %v4157 = vld [vmem:[#allocation4 + $0x1a4] sm:$0xff]
        %v4158 = vld [vmem:[#allocation4 + $0x1ac] sm:$0xff]
        %v4159 = vld [vmem:[#allocation4 + $0x1b4] sm:$0xff]
        %v4160 = vld [vmem:[#allocation4 + $0x1bc] sm:$0xf]
        %v4161 = vld [vmem:[#allocation4 + $0x1c0] sm:$0xff]
        %v4162 = vld [vmem:[#allocation4 + $0x1c8] sm:$0xff]
        %v4163 = vld [vmem:[#allocation4 + $0x1d0] sm:$0xff]
        %v4164 = vld [vmem:[#allocation4 + $0x1d8] sm:$0xf]
        %v4165 = vld [vmem:[#allocation4 + $0x1dc] sm:$0xff]
        %v4166 = vld [vmem:[#allocation4 + $0x1e4] sm:$0xff]
        %v4167 = vld [vmem:[#allocation4 + $0x1ec] sm:$0xff]
        %v4168 = vld [vmem:[#allocation4 + $0x1f4] sm:$0xf]
        %v4169 = vld [vmem:[#allocation4 + $0x1f8] sm:$0xff]
        %v4170 = vld [vmem:[#allocation4 + $0x200] sm:$0xff]
        %v4171 = vld [vmem:[#allocation4 + $0x208] sm:$0xff]
        %v4172 = vld [vmem:[#allocation4 + $0x210] sm:$0xf]
        %v4173 = vld [vmem:[#allocation4 + $0x214] sm:$0xff]
        %v4174 = vld [vmem:[#allocation4 + $0x21c] sm:$0xff]
        %v4175 = vld [vmem:[#allocation4 + $0x224] sm:$0xff]
        %v4176 = vld [vmem:[#allocation4 + $0x22c] sm:$0xf]
        %v4177 = vld [vmem:[#allocation4 + $0x230] sm:$0xff]
        %v4178 = vld [vmem:[#allocation4 + $0x238] sm:$0xff]
        %v4179 = vld [vmem:[#allocation4 + $0x240] sm:$0xff]
        %v4180 = vld [vmem:[#allocation4 + $0x248] sm:$0xf]
        %v4181 = vld [vmem:[#allocation4 + $0x24c] sm:$0xff]
        %v4182 = vld [vmem:[#allocation4 + $0x254] sm:$0xff]
        %v4183 = vld [vmem:[#allocation4 + $0x25c] sm:$0xff]
        %v4184 = vld [vmem:[#allocation4 + $0x264] sm:$0xf]
        %v4185 = vld [vmem:[#allocation4 + $0x268] sm:$0xff]
        %v4186 = vld [vmem:[#allocation4 + $0x270] sm:$0xff]
        %v4187 = vld [vmem:[#allocation4 + $0x278] sm:$0xff]
        %v4188 = vld [vmem:[#allocation4 + $0x280] sm:$0xf]
        %v4189 = vld [vmem:[#allocation4 + $0x284] sm:$0xff]
        %v4190 = vld [vmem:[#allocation4 + $0x28c] sm:$0xff]
        %v4191 = vld [vmem:[#allocation4 + $0x294] sm:$0xff]
        %v4192 = vld [vmem:[#allocation4 + $0x29c] sm:$0xf]
        %v4193 = vld [vmem:[#allocation4 + $0x2a0] sm:$0xff]
        %v4194 = vld [vmem:[#allocation4 + $0x2a8] sm:$0xff]
        %v4195 = vld [vmem:[#allocation4 + $0x2b0] sm:$0xff]
        %v4196 = vld [vmem:[#allocation4 + $0x2b8] sm:$0xf]
        %v4197 = vld [vmem:[#allocation4 + $0x2bc] sm:$0xff]
        %v4198 = vld [vmem:[#allocation4 + $0x2c4] sm:$0xff]
        %v4199 = vld [vmem:[#allocation4 + $0x2cc] sm:$0xff]
        %v4200 = vld [vmem:[#allocation4 + $0x2d4] sm:$0xf]
        %v4201 = vld [vmem:[#allocation4 + $0x2d8] sm:$0xff]
        %v4202 = vld [vmem:[#allocation4 + $0x2e0] sm:$0xff]
        %v4203 = vld [vmem:[#allocation4 + $0x2e8] sm:$0xff]
        %v4204 = vld [vmem:[#allocation4 + $0x2f0] sm:$0xf]
        %v4205 = vld [vmem:[#allocation4 + $0x2f4] sm:$0xff]
        %v4206 = vld [vmem:[#allocation4 + $0x2fc] sm:$0xff]
        %v4207 = vld [vmem:[#allocation4 + $0x304] sm:$0xff]
        %v4208 = vld [vmem:[#allocation4 + $0x30c] sm:$0xf]
        %v4209 = vld [vmem:[#allocation4 + $0x310] sm:$0xff]
        %v4210 = vld [vmem:[#allocation4 + $0x318] sm:$0xff]
        %v4211 = vld [vmem:[#allocation4 + $0x320] sm:$0xff]
        %v4212 = vld [vmem:[#allocation4 + $0x328] sm:$0xf]
        %v4213 = vld [vmem:[#allocation4 + $0x32c] sm:$0xff]
        %v4214 = vld [vmem:[#allocation4 + $0x334] sm:$0xff]
        %v4215 = vld [vmem:[#allocation4 + $0x33c] sm:$0xff]
        %v4216 = vld [vmem:[#allocation4 + $0x344] sm:$0xf]
        %v4217 = vld [vmem:[#allocation4 + $0x348] sm:$0xff]
        %v4218 = vld [vmem:[#allocation4 + $0x350] sm:$0xff]
        %v4219 = vld [vmem:[#allocation4 + $0x358] sm:$0xff]
        %v4220 = vld [vmem:[#allocation4 + $0x360] sm:$0xf]
        %v4221 = vld [vmem:[#allocation4 + $0x364] sm:$0xff]
        %v4222 = vld [vmem:[#allocation4 + $0x36c] sm:$0xff]
        %v4223 = vld [vmem:[#allocation4 + $0x374] sm:$0xff]
        %v4224 = vld [vmem:[#allocation4 + $0x37c] sm:$0xf]
        %v4225 = vld [vmem:[#allocation4 + $0x380] sm:$0xff]
        %v4226 = vld [vmem:[#allocation4 + $0x388] sm:$0xff]
        %v4227 = vld [vmem:[#allocation4 + $0x390] sm:$0xff]
        %v4228 = vld [vmem:[#allocation4 + $0x398] sm:$0xf]
        %v4229 = vld [vmem:[#allocation4 + $0x39c] sm:$0xff]
        %v4230 = vld [vmem:[#allocation4 + $0x3a4] sm:$0xff]
        %v4231 = vld [vmem:[#allocation4 + $0x3ac] sm:$0xff]
        %v4232 = vld [vmem:[#allocation4 + $0x3b4] sm:$0xf]
        %v4233 = vld [vmem:[#allocation4 + $0x3b8] sm:$0xff]
        %v4234 = vld [vmem:[#allocation4 + $0x3c0] sm:$0xff]
        %v4235 = vld [vmem:[#allocation4 + $0x3c8] sm:$0xff]
        %v4236 = vld [vmem:[#allocation4 + $0x3d0] sm:$0xf]
        %v4237 = vld [vmem:[#allocation4 + $0x3d4] sm:$0xff]
        %v4238 = vld [vmem:[#allocation4 + $0x3dc] sm:$0xff]
        %v4239 = vld [vmem:[#allocation4 + $0x3e4] sm:$0xff]
        %v4240 = vld [vmem:[#allocation4 + $0x3ec] sm:$0xf]
        %v4241 = vld [vmem:[#allocation4 + $0x3f0] sm:$0xff]
        %v4242 = vld [vmem:[#allocation4 + $0x3f8] sm:$0xff]
        %v4243 = vld [vmem:[#allocation4 + $0x400] sm:$0xff]
        %v4244 = vld [vmem:[#allocation4 + $0x408] sm:$0xf]
        %v4245 = vld [vmem:[#allocation4 + $0x40c] sm:$0xff]
        %v4246 = vld [vmem:[#allocation4 + $0x414] sm:$0xff]
        %v4247 = vld [vmem:[#allocation4 + $0x41c] sm:$0xff]
        %v4248 = vld [vmem:[#allocation4 + $0x424] sm:$0xf]
        %v4249 = vld [vmem:[#allocation4 + $0x428] sm:$0xff]
        %v4250 = vld [vmem:[#allocation4 + $0x430] sm:$0xff]
        %v4251 = vld [vmem:[#allocation4 + $0x438] sm:$0xff]
        %v4252 = vld [vmem:[#allocation4 + $0x440] sm:$0xf]
        %v4253 = vld [vmem:[#allocation4 + $0x444] sm:$0xff]
        %v4254 = vld [vmem:[#allocation4 + $0x44c] sm:$0xff]
        %v4255 = vld [vmem:[#allocation4 + $0x454] sm:$0xff]
        %v4256 = vld [vmem:[#allocation4 + $0x45c] sm:$0xf]
        %v4257 = vld [vmem:[#allocation4 + $0x460] sm:$0xff]
        %v4258 = vld [vmem:[#allocation4 + $0x468] sm:$0xff]
        %v4259 = vld [vmem:[#allocation4 + $0x470] sm:$0xff]
        %v4260 = vld [vmem:[#allocation4 + $0x478] sm:$0xf]
        %v4261 = vld [vmem:[#allocation4 + $0x47c] sm:$0xff]
        %v4262 = vld [vmem:[#allocation4 + $0x484] sm:$0xff]
        %v4263 = vld [vmem:[#allocation4 + $0x48c] sm:$0xff]
        %v4264 = vld [vmem:[#allocation4 + $0x494] sm:$0xf]
        %v4265 = vld [vmem:[#allocation4 + $0x498] sm:$0xff]
        %v4266 = vld [vmem:[#allocation4 + $0x4a0] sm:$0xff]
        %v4267 = vld [vmem:[#allocation4 + $0x4a8] sm:$0xff]
        %v4268 = vld [vmem:[#allocation4 + $0x4b0] sm:$0xf]
        %v4269 = vld [vmem:[#allocation4 + $0x4b4] sm:$0xff]
        %v4270 = vld [vmem:[#allocation4 + $0x4bc] sm:$0xff]
        %v4271 = vld [vmem:[#allocation4 + $0x4c4] sm:$0xff]
        %v4272 = vld [vmem:[#allocation4 + $0x4cc] sm:$0xf]
        %v4273 = vld [vmem:[#allocation4 + $0x4d0] sm:$0xff]
        %v4274 = vld [vmem:[#allocation4 + $0x4d8] sm:$0xff]
        %v4275 = vld [vmem:[#allocation4 + $0x4e0] sm:$0xff]
        %v4276 = vld [vmem:[#allocation4 + $0x4e8] sm:$0xf]
        %v4277 = vld [vmem:[#allocation4 + $0x4ec] sm:$0xff]
        %v4278 = vld [vmem:[#allocation4 + $0x4f4] sm:$0xff]
        %v4279 = vld [vmem:[#allocation4 + $0x4fc] sm:$0xff]
        %v4280 = vld [vmem:[#allocation4 + $0x504] sm:$0xf]
        %v4281 = vld [vmem:[#allocation4 + $0x508] sm:$0xff]
        %v4282 = vld [vmem:[#allocation4 + $0x510] sm:$0xff]
        %v4283 = vld [vmem:[#allocation4 + $0x518] sm:$0xff]
        %v4284 = vld [vmem:[#allocation4 + $0x520] sm:$0xf]
        %v4285 = vld [vmem:[#allocation4 + $0x524] sm:$0xff]
        %v4286 = vld [vmem:[#allocation4 + $0x52c] sm:$0xff]
        %v4287 = vld [vmem:[#allocation4 + $0x534] sm:$0xff]
        %v4288 = vld [vmem:[#allocation4 + $0x53c] sm:$0xf]
        %v4289 = vld [vmem:[#allocation4 + $0x540] sm:$0xff]
        %v4290 = vld [vmem:[#allocation4 + $0x548] sm:$0xff]
        %v4291 = vld [vmem:[#allocation4 + $0x550] sm:$0xff]
        %v4292 = vld [vmem:[#allocation4 + $0x558] sm:$0xf]
        %v4293 = vld [vmem:[#allocation4 + $0x55c] sm:$0xff]
        %v4294 = vld [vmem:[#allocation4 + $0x564] sm:$0xff]
        %v4295 = vld [vmem:[#allocation4 + $0x56c] sm:$0xff]
        %v4296 = vld [vmem:[#allocation4 + $0x574] sm:$0xf]
        %v4297 = vld [vmem:[#allocation4 + $0x578] sm:$0xff]
        %v4298 = vld [vmem:[#allocation4 + $0x580] sm:$0xff]
        %v4299 = vld [vmem:[#allocation4 + $0x588] sm:$0xff]
        %v4300 = vld [vmem:[#allocation4 + $0x590] sm:$0xf]
        %v4301 = vld [vmem:[#allocation4 + $0x594] sm:$0xff]
        %v4302 = vld [vmem:[#allocation4 + $0x59c] sm:$0xff]
        %v4303 = vld [vmem:[#allocation4 + $0x5a4] sm:$0xff]
        %v4304 = vld [vmem:[#allocation4 + $0x5ac] sm:$0xf]
        %v4305 = vld [vmem:[#allocation4 + $0x5b0] sm:$0xff]
        %v4306 = vld [vmem:[#allocation4 + $0x5b8] sm:$0xff]
        %v4307 = vld [vmem:[#allocation4 + $0x5c0] sm:$0xff]
        %v4308 = vld [vmem:[#allocation4 + $0x5c8] sm:$0xf]
        %v4309 = vld [vmem:[#allocation4 + $0x5cc] sm:$0xff]
        %v4310 = vld [vmem:[#allocation4 + $0x5d4] sm:$0xff]
        %v4311 = vld [vmem:[#allocation4 + $0x5dc] sm:$0xff]
        %v4312 = vld [vmem:[#allocation4 + $0x5e4] sm:$0xf]
        %v4313 = vld [vmem:[%s5] sm:$0xff]
        %v4314 = vld [vmem:[%s5 + $0x8] sm:$0xff]
        %4316 = vset.pattern.permute.xlu0 0
        %4317 = vperm.xlu0 %4316, %v4313
        %v4318 = vpop.permute.xlu0 %4317
        %4321 = vset.pattern.permute.xlu0 0
        %4322 = vperm.xlu0 %4321, %v4314
        %v4323 = vpop.permute.xlu0 %4322
        %v4329 = vunpack.c.l.b16 %v4093
        %v4330 = vunpack.c.h.b16 %v4093
        %v4331 = vunpack.c.l.b16 %v4094
        %v4332 = vunpack.c.h.b16 %v4094
        %v4333 = vunpack.c.l.b16 %v4095
        %v4334 = vunpack.c.h.b16 %v4095
        %v4335 = vunpack.c.l.b16 %v4096
        %v4336 = vunpack.c.h.b16 %v4096
        %v4337 = vpack.c.b16 %v4333, %v4329
        %v4338 = vpack.c.b16 %v4334, %v4330
        %v4339 = vpack.c.b16 %v4335, %v4331
        %v4340 = vpack.c.b16 %v4336, %v4332
        %v4560 = vunpack.c.l.b16 %v4097
        %v4561 = vunpack.c.h.b16 %v4097
        %v4562 = vunpack.c.l.b16 %v4098
        %v4563 = vunpack.c.h.b16 %v4098
        %v4564 = vunpack.c.l.b16 %v4099
        %v4565 = vunpack.c.h.b16 %v4099
        %v4566 = vunpack.c.l.b16 %v4100
        %v4567 = vunpack.c.l.b16 %v4101
        %v4568 = vunpack.c.h.b16 %v4101
        %v4569 = vunpack.c.l.b16 %v4102
        %v4570 = vunpack.c.h.b16 %v4102
        %v4571 = vunpack.c.l.b16 %v4103
        %v4572 = vunpack.c.h.b16 %v4103
        %v4573 = vunpack.c.l.b16 %v4104
        %v4574 = vunpack.c.l.b16 %v4105
        %v4575 = vunpack.c.h.b16 %v4105
        %v4576 = vunpack.c.l.b16 %v4106
        %v4577 = vunpack.c.h.b16 %v4106
        %v4578 = vunpack.c.l.b16 %v4107
        %v4579 = vunpack.c.h.b16 %v4107
        %v4580 = vunpack.c.l.b16 %v4108
        %v4581 = vunpack.c.l.b16 %v4109
        %v4582 = vunpack.c.h.b16 %v4109
        %v4583 = vunpack.c.l.b16 %v4110
        %v4584 = vunpack.c.h.b16 %v4110
        %v4585 = vunpack.c.l.b16 %v4111
        %v4586 = vunpack.c.h.b16 %v4111
        %v4587 = vunpack.c.l.b16 %v4112
        %v4588 = vunpack.c.l.b16 %v4113
        %v4589 = vunpack.c.h.b16 %v4113
        %v4590 = vunpack.c.l.b16 %v4114
        %v4591 = vunpack.c.h.b16 %v4114
        %v4592 = vunpack.c.l.b16 %v4115
        %v4593 = vunpack.c.h.b16 %v4115
        %v4594 = vunpack.c.l.b16 %v4116
        %v4595 = vunpack.c.l.b16 %v4117
        %v4596 = vunpack.c.h.b16 %v4117
        %v4597 = vunpack.c.l.b16 %v4118
        %v4598 = vunpack.c.h.b16 %v4118
        %v4599 = vunpack.c.l.b16 %v4119
        %v4600 = vunpack.c.h.b16 %v4119
        %v4601 = vunpack.c.l.b16 %v4120
        %v4602 = vunpack.c.l.b16 %v4121
        %v4603 = vunpack.c.h.b16 %v4121
        %v4604 = vunpack.c.l.b16 %v4122
        %v4605 = vunpack.c.h.b16 %v4122
        %v4606 = vunpack.c.l.b16 %v4123
        %v4607 = vunpack.c.h.b16 %v4123
        %v4608 = vunpack.c.l.b16 %v4124
        %v4609 = vunpack.c.l.b16 %v4125
        %v4610 = vunpack.c.h.b16 %v4125
        %v4611 = vunpack.c.l.b16 %v4126
        %v4612 = vunpack.c.h.b16 %v4126
        %v4613 = vunpack.c.l.b16 %v4127
        %v4614 = vunpack.c.h.b16 %v4127
        %v4615 = vunpack.c.l.b16 %v4128
        %v4616 = vunpack.c.l.b16 %v4129
        %v4617 = vunpack.c.h.b16 %v4129
        %v4618 = vunpack.c.l.b16 %v4130
        %v4619 = vunpack.c.h.b16 %v4130
        %v4620 = vunpack.c.l.b16 %v4131
        %v4621 = vunpack.c.h.b16 %v4131
        %v4622 = vunpack.c.l.b16 %v4132
        %v4623 = vunpack.c.l.b16 %v4133
        %v4624 = vunpack.c.h.b16 %v4133
        %v4625 = vunpack.c.l.b16 %v4134
        %v4626 = vunpack.c.h.b16 %v4134
        %v4627 = vunpack.c.l.b16 %v4135
        %v4628 = vunpack.c.h.b16 %v4135
        %v4629 = vunpack.c.l.b16 %v4136
        %v4630 = vunpack.c.l.b16 %v4137
        %v4631 = vunpack.c.h.b16 %v4137
        %v4632 = vunpack.c.l.b16 %v4138
        %v4633 = vunpack.c.h.b16 %v4138
        %v4634 = vunpack.c.l.b16 %v4139
        %v4635 = vunpack.c.h.b16 %v4139
        %v4636 = vunpack.c.l.b16 %v4140
        %v4637 = vunpack.c.l.b16 %v4141
        %v4638 = vunpack.c.h.b16 %v4141
        %v4639 = vunpack.c.l.b16 %v4142
        %v4640 = vunpack.c.h.b16 %v4142
        %v4641 = vunpack.c.l.b16 %v4143
        %v4642 = vunpack.c.h.b16 %v4143
        %v4643 = vunpack.c.l.b16 %v4144
        %v4644 = vunpack.c.l.b16 %v4145
        %v4645 = vunpack.c.h.b16 %v4145
        %v4646 = vunpack.c.l.b16 %v4146
        %v4647 = vunpack.c.h.b16 %v4146
        %v4648 = vunpack.c.l.b16 %v4147
        %v4649 = vunpack.c.h.b16 %v4147
        %v4650 = vunpack.c.l.b16 %v4148
        %v4651 = vunpack.c.l.b16 %v4149
        %v4652 = vunpack.c.h.b16 %v4149
        %v4653 = vunpack.c.l.b16 %v4150
        %v4654 = vunpack.c.h.b16 %v4150
        %v4655 = vunpack.c.l.b16 %v4151
        %v4656 = vunpack.c.h.b16 %v4151
        %v4657 = vunpack.c.l.b16 %v4152
        %v4658 = vunpack.c.l.b16 %v4153
        %v4659 = vunpack.c.h.b16 %v4153
        %v4660 = vunpack.c.l.b16 %v4154
        %v4661 = vunpack.c.h.b16 %v4154
        %v4662 = vunpack.c.l.b16 %v4155
        %v4663 = vunpack.c.h.b16 %v4155
        %v4664 = vunpack.c.l.b16 %v4156
        %v4665 = vunpack.c.l.b16 %v4157
        %v4666 = vunpack.c.h.b16 %v4157
        %v4667 = vunpack.c.l.b16 %v4158
        %v4668 = vunpack.c.h.b16 %v4158
        %v4669 = vunpack.c.l.b16 %v4159
        %v4670 = vunpack.c.h.b16 %v4159
        %v4671 = vunpack.c.l.b16 %v4160
        %v4672 = vunpack.c.l.b16 %v4161
        %v4673 = vunpack.c.h.b16 %v4161
        %v4674 = vunpack.c.l.b16 %v4162
        %v4675 = vunpack.c.h.b16 %v4162
        %v4676 = vunpack.c.l.b16 %v4163
        %v4677 = vunpack.c.h.b16 %v4163
        %v4678 = vunpack.c.l.b16 %v4164
        %v4679 = vunpack.c.l.b16 %v4165
        %v4680 = vunpack.c.h.b16 %v4165
        %v4681 = vunpack.c.l.b16 %v4166
        %v4682 = vunpack.c.h.b16 %v4166
        %v4683 = vunpack.c.l.b16 %v4167
        %v4684 = vunpack.c.h.b16 %v4167
        %v4685 = vunpack.c.l.b16 %v4168
        %v4686 = vunpack.c.l.b16 %v4169
        %v4687 = vunpack.c.h.b16 %v4169
        %v4688 = vunpack.c.l.b16 %v4170
        %v4689 = vunpack.c.h.b16 %v4170
        %v4690 = vunpack.c.l.b16 %v4171
        %v4691 = vunpack.c.h.b16 %v4171
        %v4692 = vunpack.c.l.b16 %v4172
        %v4693 = vunpack.c.l.b16 %v4173
        %v4694 = vunpack.c.h.b16 %v4173
        %v4695 = vunpack.c.l.b16 %v4174
        %v4696 = vunpack.c.h.b16 %v4174
        %v4697 = vunpack.c.l.b16 %v4175
        %v4698 = vunpack.c.h.b16 %v4175
        %v4699 = vunpack.c.l.b16 %v4176
        %v4700 = vunpack.c.l.b16 %v4177
        %v4701 = vunpack.c.h.b16 %v4177
        %v4702 = vunpack.c.l.b16 %v4178
        %v4703 = vunpack.c.h.b16 %v4178
        %v4704 = vunpack.c.l.b16 %v4179
        %v4705 = vunpack.c.h.b16 %v4179
        %v4706 = vunpack.c.l.b16 %v4180
        %v4707 = vunpack.c.l.b16 %v4181
        %v4708 = vunpack.c.h.b16 %v4181
        %v4709 = vunpack.c.l.b16 %v4182
        %v4710 = vunpack.c.h.b16 %v4182
        %v4711 = vunpack.c.l.b16 %v4183
        %v4712 = vunpack.c.h.b16 %v4183
        %v4713 = vunpack.c.l.b16 %v4184
        %v4714 = vunpack.c.l.b16 %v4185
        %v4715 = vunpack.c.h.b16 %v4185
        %v4716 = vunpack.c.l.b16 %v4186
        %v4717 = vunpack.c.h.b16 %v4186
        %v4718 = vunpack.c.l.b16 %v4187
        %v4719 = vunpack.c.h.b16 %v4187
        %v4720 = vunpack.c.l.b16 %v4188
        %v4721 = vunpack.c.l.b16 %v4189
        %v4722 = vunpack.c.h.b16 %v4189
        %v4723 = vunpack.c.l.b16 %v4190
        %v4724 = vunpack.c.h.b16 %v4190
        %v4725 = vunpack.c.l.b16 %v4191
        %v4726 = vunpack.c.h.b16 %v4191
        %v4727 = vunpack.c.l.b16 %v4192
        %v4728 = vunpack.c.l.b16 %v4193
        %v4729 = vunpack.c.h.b16 %v4193
        %v4730 = vunpack.c.l.b16 %v4194
        %v4731 = vunpack.c.h.b16 %v4194
        %v4732 = vunpack.c.l.b16 %v4195
        %v4733 = vunpack.c.h.b16 %v4195
        %v4734 = vunpack.c.l.b16 %v4196
        %v4735 = vunpack.c.l.b16 %v4197
        %v4736 = vunpack.c.h.b16 %v4197
        %v4737 = vunpack.c.l.b16 %v4198
        %v4738 = vunpack.c.h.b16 %v4198
        %v4739 = vunpack.c.l.b16 %v4199
        %v4740 = vunpack.c.h.b16 %v4199
        %v4741 = vunpack.c.l.b16 %v4200
        %v4742 = vunpack.c.l.b16 %v4201
        %v4743 = vunpack.c.h.b16 %v4201
        %v4744 = vunpack.c.l.b16 %v4202
        %v4745 = vunpack.c.h.b16 %v4202
        %v4746 = vunpack.c.l.b16 %v4203
        %v4747 = vunpack.c.h.b16 %v4203
        %v4748 = vunpack.c.l.b16 %v4204
        %v4749 = vunpack.c.l.b16 %v4205
        %v4750 = vunpack.c.h.b16 %v4205
        %v4751 = vunpack.c.l.b16 %v4206
        %v4752 = vunpack.c.h.b16 %v4206
        %v4753 = vunpack.c.l.b16 %v4207
        %v4754 = vunpack.c.h.b16 %v4207
        %v4755 = vunpack.c.l.b16 %v4208
        %v4756 = vunpack.c.l.b16 %v4209
        %v4757 = vunpack.c.h.b16 %v4209
        %v4758 = vunpack.c.l.b16 %v4210
        %v4759 = vunpack.c.h.b16 %v4210
        %v4760 = vunpack.c.l.b16 %v4211
        %v4761 = vunpack.c.h.b16 %v4211
        %v4762 = vunpack.c.l.b16 %v4212
        %v4763 = vunpack.c.l.b16 %v4213
        %v4764 = vunpack.c.h.b16 %v4213
        %v4765 = vunpack.c.l.b16 %v4214
        %v4766 = vunpack.c.h.b16 %v4214
        %v4767 = vunpack.c.l.b16 %v4215
        %v4768 = vunpack.c.h.b16 %v4215
        %v4769 = vunpack.c.l.b16 %v4216
        %v4770 = vunpack.c.l.b16 %v4217
        %v4771 = vunpack.c.h.b16 %v4217
        %v4772 = vunpack.c.l.b16 %v4218
        %v4773 = vunpack.c.h.b16 %v4218
        %v4774 = vunpack.c.l.b16 %v4219
        %v4775 = vunpack.c.h.b16 %v4219
        %v4776 = vunpack.c.l.b16 %v4220
        %v4777 = vunpack.c.l.b16 %v4221
        %v4778 = vunpack.c.h.b16 %v4221
        %v4779 = vunpack.c.l.b16 %v4222
        %v4780 = vunpack.c.h.b16 %v4222
        %v4781 = vunpack.c.l.b16 %v4223
        %v4782 = vunpack.c.h.b16 %v4223
        %v4783 = vunpack.c.l.b16 %v4224
        %v4784 = vunpack.c.l.b16 %v4225
        %v4785 = vunpack.c.h.b16 %v4225
        %v4786 = vunpack.c.l.b16 %v4226
        %v4787 = vunpack.c.h.b16 %v4226
        %v4788 = vunpack.c.l.b16 %v4227
        %v4789 = vunpack.c.h.b16 %v4227
        %v4790 = vunpack.c.l.b16 %v4228
        %v4791 = vunpack.c.l.b16 %v4229
        %v4792 = vunpack.c.h.b16 %v4229
        %v4793 = vunpack.c.l.b16 %v4230
        %v4794 = vunpack.c.h.b16 %v4230
        %v4795 = vunpack.c.l.b16 %v4231
        %v4796 = vunpack.c.h.b16 %v4231
        %v4797 = vunpack.c.l.b16 %v4232
        %v4798 = vunpack.c.l.b16 %v4233
        %v4799 = vunpack.c.h.b16 %v4233
        %v4800 = vunpack.c.l.b16 %v4234
        %v4801 = vunpack.c.h.b16 %v4234
        %v4802 = vunpack.c.l.b16 %v4235
        %v4803 = vunpack.c.h.b16 %v4235
        %v4804 = vunpack.c.l.b16 %v4236
        %v4805 = vunpack.c.l.b16 %v4237
        %v4806 = vunpack.c.h.b16 %v4237
        %v4807 = vunpack.c.l.b16 %v4238
        %v4808 = vunpack.c.h.b16 %v4238
        %v4809 = vunpack.c.l.b16 %v4239
        %v4810 = vunpack.c.h.b16 %v4239
        %v4811 = vunpack.c.l.b16 %v4240
        %v4812 = vunpack.c.l.b16 %v4241
        %v4813 = vunpack.c.h.b16 %v4241
        %v4814 = vunpack.c.l.b16 %v4242
        %v4815 = vunpack.c.h.b16 %v4242
        %v4816 = vunpack.c.l.b16 %v4243
        %v4817 = vunpack.c.h.b16 %v4243
        %v4818 = vunpack.c.l.b16 %v4244
        %v4819 = vunpack.c.l.b16 %v4245
        %v4820 = vunpack.c.h.b16 %v4245
        %v4821 = vunpack.c.l.b16 %v4246
        %v4822 = vunpack.c.h.b16 %v4246
        %v4823 = vunpack.c.l.b16 %v4247
        %v4824 = vunpack.c.h.b16 %v4247
        %v4825 = vunpack.c.l.b16 %v4248
        %v4826 = vunpack.c.l.b16 %v4249
        %v4827 = vunpack.c.h.b16 %v4249
        %v4828 = vunpack.c.l.b16 %v4250
        %v4829 = vunpack.c.h.b16 %v4250
        %v4830 = vunpack.c.l.b16 %v4251
        %v4831 = vunpack.c.h.b16 %v4251
        %v4832 = vunpack.c.l.b16 %v4252
        %v4833 = vunpack.c.l.b16 %v4253
        %v4834 = vunpack.c.h.b16 %v4253
        %v4835 = vunpack.c.l.b16 %v4254
        %v4836 = vunpack.c.h.b16 %v4254
        %v4837 = vunpack.c.l.b16 %v4255
        %v4838 = vunpack.c.h.b16 %v4255
        %v4839 = vunpack.c.l.b16 %v4256
        %v4840 = vunpack.c.l.b16 %v4257
        %v4841 = vunpack.c.h.b16 %v4257
        %v4842 = vunpack.c.l.b16 %v4258
        %v4843 = vunpack.c.h.b16 %v4258
        %v4844 = vunpack.c.l.b16 %v4259
        %v4845 = vunpack.c.h.b16 %v4259
        %v4846 = vunpack.c.l.b16 %v4260
        %v4847 = vunpack.c.l.b16 %v4261
        %v4848 = vunpack.c.h.b16 %v4261
        %v4849 = vunpack.c.l.b16 %v4262
        %v4850 = vunpack.c.h.b16 %v4262
        %v4851 = vunpack.c.l.b16 %v4263
        %v4852 = vunpack.c.h.b16 %v4263
        %v4853 = vunpack.c.l.b16 %v4264
        %v4854 = vunpack.c.l.b16 %v4265
        %v4855 = vunpack.c.h.b16 %v4265
        %v4856 = vunpack.c.l.b16 %v4266
        %v4857 = vunpack.c.h.b16 %v4266
        %v4858 = vunpack.c.l.b16 %v4267
        %v4859 = vunpack.c.h.b16 %v4267
        %v4860 = vunpack.c.l.b16 %v4268
        %v4861 = vunpack.c.l.b16 %v4269
        %v4862 = vunpack.c.h.b16 %v4269
        %v4863 = vunpack.c.l.b16 %v4270
        %v4864 = vunpack.c.h.b16 %v4270
        %v4865 = vunpack.c.l.b16 %v4271
        %v4866 = vunpack.c.h.b16 %v4271
        %v4867 = vunpack.c.l.b16 %v4272
        %v4868 = vunpack.c.l.b16 %v4273
        %v4869 = vunpack.c.h.b16 %v4273
        %v4870 = vunpack.c.l.b16 %v4274
        %v4871 = vunpack.c.h.b16 %v4274
        %v4872 = vunpack.c.l.b16 %v4275
        %v4873 = vunpack.c.h.b16 %v4275
        %v4874 = vunpack.c.l.b16 %v4276
        %v4875 = vunpack.c.l.b16 %v4277
        %v4876 = vunpack.c.h.b16 %v4277
        %v4877 = vunpack.c.l.b16 %v4278
        %v4878 = vunpack.c.h.b16 %v4278
        %v4879 = vunpack.c.l.b16 %v4279
        %v4880 = vunpack.c.h.b16 %v4279
        %v4881 = vunpack.c.l.b16 %v4280
        %v4882 = vunpack.c.l.b16 %v4281
        %v4883 = vunpack.c.h.b16 %v4281
        %v4884 = vunpack.c.l.b16 %v4282
        %v4885 = vunpack.c.h.b16 %v4282
        %v4886 = vunpack.c.l.b16 %v4283
        %v4887 = vunpack.c.h.b16 %v4283
        %v4888 = vunpack.c.l.b16 %v4284
        %v4889 = vunpack.c.l.b16 %v4285
        %v4890 = vunpack.c.h.b16 %v4285
        %v4891 = vunpack.c.l.b16 %v4286
        %v4892 = vunpack.c.h.b16 %v4286
        %v4893 = vunpack.c.l.b16 %v4287
        %v4894 = vunpack.c.h.b16 %v4287
        %v4895 = vunpack.c.l.b16 %v4288
        %v4896 = vunpack.c.l.b16 %v4289
        %v4897 = vunpack.c.h.b16 %v4289
        %v4898 = vunpack.c.l.b16 %v4290
        %v4899 = vunpack.c.h.b16 %v4290
        %v4900 = vunpack.c.l.b16 %v4291
        %v4901 = vunpack.c.h.b16 %v4291
        %v4902 = vunpack.c.l.b16 %v4292
        %v4903 = vunpack.c.l.b16 %v4293
        %v4904 = vunpack.c.h.b16 %v4293
        %v4905 = vunpack.c.l.b16 %v4294
        %v4906 = vunpack.c.h.b16 %v4294
        %v4907 = vunpack.c.l.b16 %v4295
        %v4908 = vunpack.c.h.b16 %v4295
        %v4909 = vunpack.c.l.b16 %v4296
        %v4910 = vunpack.c.l.b16 %v4297
        %v4911 = vunpack.c.h.b16 %v4297
        %v4912 = vunpack.c.l.b16 %v4298
        %v4913 = vunpack.c.h.b16 %v4298
        %v4914 = vunpack.c.l.b16 %v4299
        %v4915 = vunpack.c.h.b16 %v4299
        %v4916 = vunpack.c.l.b16 %v4300
        %v4917 = vunpack.c.l.b16 %v4301
        %v4918 = vunpack.c.h.b16 %v4301
        %v4919 = vunpack.c.l.b16 %v4302
        %v4920 = vunpack.c.h.b16 %v4302
        %v4921 = vunpack.c.l.b16 %v4303
        %v4922 = vunpack.c.h.b16 %v4303
        %v4923 = vunpack.c.l.b16 %v4304
        %v4924 = vunpack.c.l.b16 %v4305
        %v4925 = vunpack.c.h.b16 %v4305
        %v4926 = vunpack.c.l.b16 %v4306
        %v4927 = vunpack.c.h.b16 %v4306
        %v4928 = vunpack.c.l.b16 %v4307
        %v4929 = vunpack.c.h.b16 %v4307
        %v4930 = vunpack.c.l.b16 %v4308
        %v4931 = vunpack.c.l.b16 %v4309
        %v4932 = vunpack.c.h.b16 %v4309
        %v4933 = vunpack.c.l.b16 %v4310
        %v4934 = vunpack.c.h.b16 %v4310
        %v4935 = vunpack.c.l.b16 %v4311
        %v4936 = vunpack.c.h.b16 %v4311
        %v4937 = vunpack.c.l.b16 %v4312
        %v4938 = vpack.c.b16 %v4567, %v4560
        %v4939 = vpack.c.b16 %v4568, %v4561
        %v4940 = vpack.c.b16 %v4569, %v4562
        %v4941 = vpack.c.b16 %v4570, %v4563
        %v4942 = vpack.c.b16 %v4571, %v4564
        %v4943 = vpack.c.b16 %v4572, %v4565
        %v4944 = vpack.c.b16 %v4573, %v4566
        %v4945 = vpack.c.b16 %v4581, %v4574
        %v4946 = vpack.c.b16 %v4582, %v4575
        %v4947 = vpack.c.b16 %v4583, %v4576
        %v4948 = vpack.c.b16 %v4584, %v4577
        %v4949 = vpack.c.b16 %v4585, %v4578
        %v4950 = vpack.c.b16 %v4586, %v4579
        %v4951 = vpack.c.b16 %v4587, %v4580
        %v4952 = vpack.c.b16 %v4595, %v4588
        %v4953 = vpack.c.b16 %v4596, %v4589
        %v4954 = vpack.c.b16 %v4597, %v4590
        %v4955 = vpack.c.b16 %v4598, %v4591
        %v4956 = vpack.c.b16 %v4599, %v4592
        %v4957 = vpack.c.b16 %v4600, %v4593
        %v4958 = vpack.c.b16 %v4601, %v4594
        %v4959 = vpack.c.b16 %v4609, %v4602
        %v4960 = vpack.c.b16 %v4610, %v4603
        %v4961 = vpack.c.b16 %v4611, %v4604
        %v4962 = vpack.c.b16 %v4612, %v4605
        %v4963 = vpack.c.b16 %v4613, %v4606
        %v4964 = vpack.c.b16 %v4614, %v4607
        %v4965 = vpack.c.b16 %v4615, %v4608
        %v4966 = vpack.c.b16 %v4623, %v4616
        %v4967 = vpack.c.b16 %v4624, %v4617
        %v4968 = vpack.c.b16 %v4625, %v4618
        %v4969 = vpack.c.b16 %v4626, %v4619
        %v4970 = vpack.c.b16 %v4627, %v4620
        %v4971 = vpack.c.b16 %v4628, %v4621
        %v4972 = vpack.c.b16 %v4629, %v4622
        %v4973 = vpack.c.b16 %v4637, %v4630
        %v4974 = vpack.c.b16 %v4638, %v4631
        %v4975 = vpack.c.b16 %v4639, %v4632
        %v4976 = vpack.c.b16 %v4640, %v4633
        %v4977 = vpack.c.b16 %v4641, %v4634
        %v4978 = vpack.c.b16 %v4642, %v4635
        %v4979 = vpack.c.b16 %v4643, %v4636
        %v4980 = vpack.c.b16 %v4651, %v4644
        %v4981 = vpack.c.b16 %v4652, %v4645
        %v4982 = vpack.c.b16 %v4653, %v4646
        %v4983 = vpack.c.b16 %v4654, %v4647
        %v4984 = vpack.c.b16 %v4655, %v4648
        %v4985 = vpack.c.b16 %v4656, %v4649
        %v4986 = vpack.c.b16 %v4657, %v4650
        %v4987 = vpack.c.b16 %v4665, %v4658
        %v4988 = vpack.c.b16 %v4666, %v4659
        %v4989 = vpack.c.b16 %v4667, %v4660
        %v4990 = vpack.c.b16 %v4668, %v4661
        %v4991 = vpack.c.b16 %v4669, %v4662
        %v4992 = vpack.c.b16 %v4670, %v4663
        %v4993 = vpack.c.b16 %v4671, %v4664
        %v4994 = vpack.c.b16 %v4679, %v4672
        %v4995 = vpack.c.b16 %v4680, %v4673
        %v4996 = vpack.c.b16 %v4681, %v4674
        %v4997 = vpack.c.b16 %v4682, %v4675
        %v4998 = vpack.c.b16 %v4683, %v4676
        %v4999 = vpack.c.b16 %v4684, %v4677
        %v5000 = vpack.c.b16 %v4685, %v4678
        %v5001 = vpack.c.b16 %v4693, %v4686
        %v5002 = vpack.c.b16 %v4694, %v4687
        %v5003 = vpack.c.b16 %v4695, %v4688
        %v5004 = vpack.c.b16 %v4696, %v4689
        %v5005 = vpack.c.b16 %v4697, %v4690
        %v5006 = vpack.c.b16 %v4698, %v4691
        %v5007 = vpack.c.b16 %v4699, %v4692
        %v5008 = vpack.c.b16 %v4707, %v4700
        %v5009 = vpack.c.b16 %v4708, %v4701
        %v5010 = vpack.c.b16 %v4709, %v4702
        %v5011 = vpack.c.b16 %v4710, %v4703
        %v5012 = vpack.c.b16 %v4711, %v4704
        %v5013 = vpack.c.b16 %v4712, %v4705
        %v5014 = vpack.c.b16 %v4713, %v4706
        %v5015 = vpack.c.b16 %v4721, %v4714
        %v5016 = vpack.c.b16 %v4722, %v4715
        %v5017 = vpack.c.b16 %v4723, %v4716
        %v5018 = vpack.c.b16 %v4724, %v4717
        %v5019 = vpack.c.b16 %v4725, %v4718
        %v5020 = vpack.c.b16 %v4726, %v4719
        %v5021 = vpack.c.b16 %v4727, %v4720
        %v5022 = vpack.c.b16 %v4735, %v4728
        %v5023 = vpack.c.b16 %v4736, %v4729
        %v5024 = vpack.c.b16 %v4737, %v4730
        %v5025 = vpack.c.b16 %v4738, %v4731
        %v5026 = vpack.c.b16 %v4739, %v4732
        %v5027 = vpack.c.b16 %v4740, %v4733
        %v5028 = vpack.c.b16 %v4741, %v4734
        %v5029 = vpack.c.b16 %v4749, %v4742
        %v5030 = vpack.c.b16 %v4750, %v4743
        %v5031 = vpack.c.b16 %v4751, %v4744
        %v5032 = vpack.c.b16 %v4752, %v4745
        %v5033 = vpack.c.b16 %v4753, %v4746
        %v5034 = vpack.c.b16 %v4754, %v4747
        %v5035 = vpack.c.b16 %v4755, %v4748
        %v5036 = vpack.c.b16 %v4763, %v4756
        %v5037 = vpack.c.b16 %v4764, %v4757
        %v5038 = vpack.c.b16 %v4765, %v4758
        %v5039 = vpack.c.b16 %v4766, %v4759
        %v5040 = vpack.c.b16 %v4767, %v4760
        %v5041 = vpack.c.b16 %v4768, %v4761
        %v5042 = vpack.c.b16 %v4769, %v4762
        %v5043 = vpack.c.b16 %v4777, %v4770
        %v5044 = vpack.c.b16 %v4778, %v4771
        %v5045 = vpack.c.b16 %v4779, %v4772
        %v5046 = vpack.c.b16 %v4780, %v4773
        %v5047 = vpack.c.b16 %v4781, %v4774
        %v5048 = vpack.c.b16 %v4782, %v4775
        %v5049 = vpack.c.b16 %v4783, %v4776
        %v5050 = vpack.c.b16 %v4791, %v4784
        %v5051 = vpack.c.b16 %v4792, %v4785
        %v5052 = vpack.c.b16 %v4793, %v4786
        %v5053 = vpack.c.b16 %v4794, %v4787
        %v5054 = vpack.c.b16 %v4795, %v4788
        %v5055 = vpack.c.b16 %v4796, %v4789
        %v5056 = vpack.c.b16 %v4797, %v4790
        %v5057 = vpack.c.b16 %v4805, %v4798
        %v5058 = vpack.c.b16 %v4806, %v4799
        %v5059 = vpack.c.b16 %v4807, %v4800
        %v5060 = vpack.c.b16 %v4808, %v4801
        %v5061 = vpack.c.b16 %v4809, %v4802
        %v5062 = vpack.c.b16 %v4810, %v4803
        %v5063 = vpack.c.b16 %v4811, %v4804
        %v5064 = vpack.c.b16 %v4819, %v4812
        %v5065 = vpack.c.b16 %v4820, %v4813
        %v5066 = vpack.c.b16 %v4821, %v4814
        %v5067 = vpack.c.b16 %v4822, %v4815
        %v5068 = vpack.c.b16 %v4823, %v4816
        %v5069 = vpack.c.b16 %v4824, %v4817
        %v5070 = vpack.c.b16 %v4825, %v4818
        %v5071 = vpack.c.b16 %v4833, %v4826
        %v5072 = vpack.c.b16 %v4834, %v4827
        %v5073 = vpack.c.b16 %v4835, %v4828
        %v5074 = vpack.c.b16 %v4836, %v4829
        %v5075 = vpack.c.b16 %v4837, %v4830
        %v5076 = vpack.c.b16 %v4838, %v4831
        %v5077 = vpack.c.b16 %v4839, %v4832
        %v5078 = vpack.c.b16 %v4847, %v4840
        %v5079 = vpack.c.b16 %v4848, %v4841
        %v5080 = vpack.c.b16 %v4849, %v4842
        %v5081 = vpack.c.b16 %v4850, %v4843
        %v5082 = vpack.c.b16 %v4851, %v4844
        %v5083 = vpack.c.b16 %v4852, %v4845
        %v5084 = vpack.c.b16 %v4853, %v4846
        %v5085 = vpack.c.b16 %v4861, %v4854
        %v5086 = vpack.c.b16 %v4862, %v4855
        %v5087 = vpack.c.b16 %v4863, %v4856
        %v5088 = vpack.c.b16 %v4864, %v4857
        %v5089 = vpack.c.b16 %v4865, %v4858
        %v5090 = vpack.c.b16 %v4866, %v4859
        %v5091 = vpack.c.b16 %v4867, %v4860
        %v5092 = vpack.c.b16 %v4875, %v4868
        %v5093 = vpack.c.b16 %v4876, %v4869
        %v5094 = vpack.c.b16 %v4877, %v4870
        %v5095 = vpack.c.b16 %v4878, %v4871
        %v5096 = vpack.c.b16 %v4879, %v4872
        %v5097 = vpack.c.b16 %v4880, %v4873
        %v5098 = vpack.c.b16 %v4881, %v4874
        %v5099 = vpack.c.b16 %v4889, %v4882
        %v5100 = vpack.c.b16 %v4890, %v4883
        %v5101 = vpack.c.b16 %v4891, %v4884
        %v5102 = vpack.c.b16 %v4892, %v4885
        %v5103 = vpack.c.b16 %v4893, %v4886
        %v5104 = vpack.c.b16 %v4894, %v4887
        %v5105 = vpack.c.b16 %v4895, %v4888
        %v5106 = vpack.c.b16 %v4903, %v4896
        %v5107 = vpack.c.b16 %v4904, %v4897
        %v5108 = vpack.c.b16 %v4905, %v4898
        %v5109 = vpack.c.b16 %v4906, %v4899
        %v5110 = vpack.c.b16 %v4907, %v4900
        %v5111 = vpack.c.b16 %v4908, %v4901
        %v5112 = vpack.c.b16 %v4909, %v4902
        %v5113 = vpack.c.b16 %v4917, %v4910
        %v5114 = vpack.c.b16 %v4918, %v4911
        %v5115 = vpack.c.b16 %v4919, %v4912
        %v5116 = vpack.c.b16 %v4920, %v4913
        %v5117 = vpack.c.b16 %v4921, %v4914
        %v5118 = vpack.c.b16 %v4922, %v4915
        %v5119 = vpack.c.b16 %v4923, %v4916
        %v5120 = vpack.c.b16 %v4931, %v4924
        %v5121 = vpack.c.b16 %v4932, %v4925
        %v5122 = vpack.c.b16 %v4933, %v4926
        %v5123 = vpack.c.b16 %v4934, %v4927
        %v5124 = vpack.c.b16 %v4935, %v4928
        %v5125 = vpack.c.b16 %v4936, %v4929
        %v5126 = vpack.c.b16 %v4937, %v4930
        %vm5316 = vcmask 392192
        %v5318 = vsel %vm5316, %v4340, 0
        %5320 = vmatprep.subr.bf16.mxu0 %v4988
        %5321 = vmatpush1.bf16.msra.mxu0 %v4987
        %5322 = vmatprep.subr.bf16.mxu0 %v4981
        %5323 = vmatpush1.bf16.msra.mxu0 %v4980
        %5324 = vmatprep.subr.bf16.mxu0 %v4974
        %5325 = vmatpush1.bf16.msra.mxu0 %v4973
        %5326 = vmatprep.subr.bf16.mxu0 %v4967
        %5327 = vmatpush1.bf16.msra.mxu0 %v4966
        %5328 = vmatprep.subr.bf16.mxu0 %v4960
        %5329 = vmatpush1.bf16.msra.mxu0 %v4959
        %5330 = vmatprep.subr.bf16.mxu0 %v4953
        %5331 = vmatpush1.bf16.msra.mxu0 %v4952
        %5332 = vmatprep.subr.bf16.mxu0 %v4946
        %5333 = vmatpush1.bf16.msra.mxu0 %v4945
        %5334 = vmatprep.subr.bf16.mxu0 %v4939
        %5335 = vmatpush1.bf16.msra.mxu0 %v4938
        %5336 = vmatprep.subr.bf16.mxu0 %v5044
        %5337 = vmatpush2.bf16.msra.mxu0 %v5043
        %5338 = vmatprep.subr.bf16.mxu0 %v5037
        %5339 = vmatpush2.bf16.msra.mxu0 %v5036
        %5340 = vmatprep.subr.bf16.mxu0 %v5030
        %5341 = vmatpush2.bf16.msra.mxu0 %v5029
        %5342 = vmatprep.subr.bf16.mxu0 %v5023
        %5343 = vmatpush2.bf16.msra.mxu0 %v5022
        %5344 = vmatprep.subr.bf16.mxu0 %v5016
        %5345 = vmatpush2.bf16.msra.mxu0 %v5015
        %5346 = vmatprep.subr.bf16.mxu0 %v5009
        %5347 = vmatpush2.bf16.msra.mxu0 %v5008
        %5348 = vmatprep.subr.bf16.mxu0 %v5002
        %5349 = vmatpush2.bf16.msra.mxu0 %v5001
        %5350 = vmatprep.subr.bf16.mxu0 %v4995
        %5351 = vmatpush2.bf16.msra.mxu0 %v4994
        %5352 = vmatprep.mubr.bf16.mxu0 %v4338
        %5353 = vmatmul.mubr.bf16.gmra.mxu0 %v4337
        %v5354 = vpop.f32.mrf.mxu0
        %v5355 = vadd.f32 %v4318, %v5354
        %v5356 = vpop.f32.mrf.mxu0
        %v5357 = vadd.f32 %v4318, %v5356
        %v5358 = vpop.f32.mrf.mxu0
        %v5359 = vadd.f32 %v4323, %v5358
        %v5360 = vpop.f32.mrf.mxu0
        %v5361 = vadd.f32 %v4323, %v5360
        %5362 = vdwg.mxu0
        %5363 = vmatprep.subr.bf16.mxu0 %v5100
        %5364 = vmatpush1.bf16.msra.mxu0 %v5099
        %5365 = vmatprep.subr.bf16.mxu0 %v5093
        %5366 = vmatpush1.bf16.msra.mxu0 %v5092
        %5367 = vmatprep.subr.bf16.mxu0 %v5086
        %5368 = vmatpush1.bf16.msra.mxu0 %v5085
        %5369 = vmatprep.subr.bf16.mxu0 %v5079
        %5370 = vmatpush1.bf16.msra.mxu0 %v5078
        %5371 = vmatprep.subr.bf16.mxu0 %v5072
        %5372 = vmatpush1.bf16.msra.mxu0 %v5071
        %5373 = vmatprep.subr.bf16.mxu0 %v5065
        %5374 = vmatpush1.bf16.msra.mxu0 %v5064
        %5375 = vmatprep.subr.bf16.mxu0 %v5058
        %5376 = vmatpush1.bf16.msra.mxu0 %v5057
        %5377 = vmatprep.subr.bf16.mxu0 %v5051
        %5378 = vmatpush1.bf16.msra.mxu0 %v5050
        %5379 = vmatprep.subr.bf16.mxu0 0
        %5380 = vmatpush2.bf16.msra.mxu0 0
        %5381 = vmatprep.subr.bf16.mxu0 0
        %5382 = vmatpush2.bf16.msra.mxu0 0
        %5383 = vmatprep.subr.bf16.mxu0 0
        %5384 = vmatpush2.bf16.msra.mxu0 0
        %5385 = vmatprep.subr.bf16.mxu0 0
        %5386 = vmatpush2.bf16.msra.mxu0 0
        %5387 = vmatprep.subr.bf16.mxu0 0
        %5388 = vmatpush2.bf16.msra.mxu0 0
        %5389 = vmatprep.subr.bf16.mxu0 %v5121
        %5390 = vmatpush2.bf16.msra.mxu0 %v5120
        %5391 = vmatprep.subr.bf16.mxu0 %v5114
        %5392 = vmatpush2.bf16.msra.mxu0 %v5113
        %5393 = vmatprep.subr.bf16.mxu0 %v5107
        %5394 = vmatpush2.bf16.msra.mxu0 %v5106
        %5395 = vmatprep.mubr.bf16.mxu0 %v5318
        %5396 = vmatmul.mubr.bf16.gmra.mxu0 %v4339
        %v5397 = vpop.f32.mrf.mxu0
        %v5398 = vadd.f32 %v5355, %v5397
        %v5399 = vpop.f32.mrf.mxu0
        %v5400 = vadd.f32 %v5357, %v5399
        %v5401 = vpop.f32.mrf.mxu0
        %v5402 = vadd.f32 %v5359, %v5401
        %v5403 = vpop.f32.mrf.mxu0
        %v5404 = vadd.f32 %v5361, %v5403
        %5405 = vdwg.mxu0
        %5406 = vmatprep.subr.bf16.mxu0 %v4990
        %5407 = vmatpush1.bf16.msra.mxu0 %v4989
        %5408 = vmatprep.subr.bf16.mxu0 %v4983
        %5409 = vmatpush1.bf16.msra.mxu0 %v4982
        %5410 = vmatprep.subr.bf16.mxu0 %v4976
        %5411 = vmatpush1.bf16.msra.mxu0 %v4975
        %5412 = vmatprep.subr.bf16.mxu0 %v4969
        %5413 = vmatpush1.bf16.msra.mxu0 %v4968
        %5414 = vmatprep.subr.bf16.mxu0 %v4962
        %5415 = vmatpush1.bf16.msra.mxu0 %v4961
        %5416 = vmatprep.subr.bf16.mxu0 %v4955
        %5417 = vmatpush1.bf16.msra.mxu0 %v4954
        %5418 = vmatprep.subr.bf16.mxu0 %v4948
        %5419 = vmatpush1.bf16.msra.mxu0 %v4947
        %5420 = vmatprep.subr.bf16.mxu0 %v4941
        %5421 = vmatpush1.bf16.msra.mxu0 %v4940
        %5422 = vmatprep.subr.bf16.mxu0 %v5046
        %5423 = vmatpush2.bf16.msra.mxu0 %v5045
        %5424 = vmatprep.subr.bf16.mxu0 %v5039
        %5425 = vmatpush2.bf16.msra.mxu0 %v5038
        %5426 = vmatprep.subr.bf16.mxu0 %v5032
        %5427 = vmatpush2.bf16.msra.mxu0 %v5031
        %5428 = vmatprep.subr.bf16.mxu0 %v5025
        %5429 = vmatpush2.bf16.msra.mxu0 %v5024
        %5430 = vmatprep.subr.bf16.mxu0 %v5018
        %5431 = vmatpush2.bf16.msra.mxu0 %v5017
        %5432 = vmatprep.subr.bf16.mxu0 %v5011
        %5433 = vmatpush2.bf16.msra.mxu0 %v5010
        %5434 = vmatprep.subr.bf16.mxu0 %v5004
        %5435 = vmatpush2.bf16.msra.mxu0 %v5003
        %5436 = vmatprep.subr.bf16.mxu0 %v4997
        %5437 = vmatpush2.bf16.msra.mxu0 %v4996
        %5438 = vmatprep.mubr.bf16.mxu0 %v4338
        %5439 = vmatmul.mubr.bf16.gmra.mxu0 %v4337
        %v5440 = vpop.f32.mrf.mxu0
        %v5441 = vadd.f32 %v4318, %v5440
        %v5442 = vpop.f32.mrf.mxu0
        %v5443 = vadd.f32 %v4318, %v5442
        %v5444 = vpop.f32.mrf.mxu0
        %v5445 = vadd.f32 %v4323, %v5444
        %v5446 = vpop.f32.mrf.mxu0
        %v5447 = vadd.f32 %v4323, %v5446
        %5448 = vdwg.mxu0
        %5449 = vmatprep.subr.bf16.mxu0 %v5102
        %5450 = vmatpush1.bf16.msra.mxu0 %v5101
        %5451 = vmatprep.subr.bf16.mxu0 %v5095
        %5452 = vmatpush1.bf16.msra.mxu0 %v5094
        %5453 = vmatprep.subr.bf16.mxu0 %v5088
        %5454 = vmatpush1.bf16.msra.mxu0 %v5087
        %5455 = vmatprep.subr.bf16.mxu0 %v5081
        %5456 = vmatpush1.bf16.msra.mxu0 %v5080
        %5457 = vmatprep.subr.bf16.mxu0 %v5074
        %5458 = vmatpush1.bf16.msra.mxu0 %v5073
        %5459 = vmatprep.subr.bf16.mxu0 %v5067
        %5460 = vmatpush1.bf16.msra.mxu0 %v5066
        %5461 = vmatprep.subr.bf16.mxu0 %v5060
        %5462 = vmatpush1.bf16.msra.mxu0 %v5059
        %5463 = vmatprep.subr.bf16.mxu0 %v5053
        %5464 = vmatpush1.bf16.msra.mxu0 %v5052
        %5465 = vmatprep.subr.bf16.mxu0 0
        %5466 = vmatpush2.bf16.msra.mxu0 0
        %5467 = vmatprep.subr.bf16.mxu0 0
        %5468 = vmatpush2.bf16.msra.mxu0 0
        %5469 = vmatprep.subr.bf16.mxu0 0
        %5470 = vmatpush2.bf16.msra.mxu0 0
        %5471 = vmatprep.subr.bf16.mxu0 0
        %5472 = vmatpush2.bf16.msra.mxu0 0
        %5473 = vmatprep.subr.bf16.mxu0 0
        %5474 = vmatpush2.bf16.msra.mxu0 0
        %5475 = vmatprep.subr.bf16.mxu0 %v5123
        %5476 = vmatpush2.bf16.msra.mxu0 %v5122
        %5477 = vmatprep.subr.bf16.mxu0 %v5116
        %5478 = vmatpush2.bf16.msra.mxu0 %v5115
        %5479 = vmatprep.subr.bf16.mxu0 %v5109
        %5480 = vmatpush2.bf16.msra.mxu0 %v5108
        %5481 = vmatprep.mubr.bf16.mxu0 %v5318
        %5482 = vmatmul.mubr.bf16.gmra.mxu0 %v4339
        %v5483 = vpop.f32.mrf.mxu0
        %v5484 = vadd.f32 %v5441, %v5483
        %v5485 = vpop.f32.mrf.mxu0
        %v5486 = vadd.f32 %v5443, %v5485
        %v5487 = vpop.f32.mrf.mxu0
        %v5488 = vadd.f32 %v5445, %v5487
        %v5489 = vpop.f32.mrf.mxu0
        %v5490 = vadd.f32 %v5447, %v5489
        %5491 = vdwg.mxu0
        %5492 = vmatprep.subr.bf16.mxu0 %v4992
        %5493 = vmatpush1.bf16.msra.mxu0 %v4991
        %5494 = vmatprep.subr.bf16.mxu0 %v4985
        %5495 = vmatpush1.bf16.msra.mxu0 %v4984
        %5496 = vmatprep.subr.bf16.mxu0 %v4978
        %5497 = vmatpush1.bf16.msra.mxu0 %v4977
        %5498 = vmatprep.subr.bf16.mxu0 %v4971
        %5499 = vmatpush1.bf16.msra.mxu0 %v4970
        %5500 = vmatprep.subr.bf16.mxu0 %v4964
        %5501 = vmatpush1.bf16.msra.mxu0 %v4963
        %5502 = vmatprep.subr.bf16.mxu0 %v4957
        %5503 = vmatpush1.bf16.msra.mxu0 %v4956
        %5504 = vmatprep.subr.bf16.mxu0 %v4950
        %5505 = vmatpush1.bf16.msra.mxu0 %v4949
        %5506 = vmatprep.subr.bf16.mxu0 %v4943
        %5507 = vmatpush1.bf16.msra.mxu0 %v4942
        %5508 = vmatprep.subr.bf16.mxu0 %v5048
        %5509 = vmatpush2.bf16.msra.mxu0 %v5047
        %5510 = vmatprep.subr.bf16.mxu0 %v5041
        %5511 = vmatpush2.bf16.msra.mxu0 %v5040
        %5512 = vmatprep.subr.bf16.mxu0 %v5034
        %5513 = vmatpush2.bf16.msra.mxu0 %v5033
        %5514 = vmatprep.subr.bf16.mxu0 %v5027
        %5515 = vmatpush2.bf16.msra.mxu0 %v5026
        %5516 = vmatprep.subr.bf16.mxu0 %v5020
        %5517 = vmatpush2.bf16.msra.mxu0 %v5019
        %5518 = vmatprep.subr.bf16.mxu0 %v5013
        %5519 = vmatpush2.bf16.msra.mxu0 %v5012
        %5520 = vmatprep.subr.bf16.mxu0 %v5006
        %5521 = vmatpush2.bf16.msra.mxu0 %v5005
        %5522 = vmatprep.subr.bf16.mxu0 %v4999
        %5523 = vmatpush2.bf16.msra.mxu0 %v4998
        %5524 = vmatprep.mubr.bf16.mxu0 %v4338
        %5525 = vmatmul.mubr.bf16.gmra.mxu0 %v4337
        %v5526 = vpop.f32.mrf.mxu0
        %v5527 = vadd.f32 %v4318, %v5526
        %v5528 = vpop.f32.mrf.mxu0
        %v5529 = vadd.f32 %v4318, %v5528
        %v5530 = vpop.f32.mrf.mxu0
        %v5531 = vadd.f32 %v4323, %v5530
        %v5532 = vpop.f32.mrf.mxu0
        %v5533 = vadd.f32 %v4323, %v5532
        %5534 = vdwg.mxu0
        %5535 = vmatprep.subr.bf16.mxu0 %v5104
        %5536 = vmatpush1.bf16.msra.mxu0 %v5103
        %5537 = vmatprep.subr.bf16.mxu0 %v5097
        %5538 = vmatpush1.bf16.msra.mxu0 %v5096
        %5539 = vmatprep.subr.bf16.mxu0 %v5090
        %5540 = vmatpush1.bf16.msra.mxu0 %v5089
        %5541 = vmatprep.subr.bf16.mxu0 %v5083
        %5542 = vmatpush1.bf16.msra.mxu0 %v5082
        %5543 = vmatprep.subr.bf16.mxu0 %v5076
        %5544 = vmatpush1.bf16.msra.mxu0 %v5075
        %5545 = vmatprep.subr.bf16.mxu0 %v5069
        %5546 = vmatpush1.bf16.msra.mxu0 %v5068
        %5547 = vmatprep.subr.bf16.mxu0 %v5062
        %5548 = vmatpush1.bf16.msra.mxu0 %v5061
        %5549 = vmatprep.subr.bf16.mxu0 %v5055
        %5550 = vmatpush1.bf16.msra.mxu0 %v5054
        %5551 = vmatprep.subr.bf16.mxu0 0
        %5552 = vmatpush2.bf16.msra.mxu0 0
        %5553 = vmatprep.subr.bf16.mxu0 0
        %5554 = vmatpush2.bf16.msra.mxu0 0
        %5555 = vmatprep.subr.bf16.mxu0 0
        %5556 = vmatpush2.bf16.msra.mxu0 0
        %5557 = vmatprep.subr.bf16.mxu0 0
        %5558 = vmatpush2.bf16.msra.mxu0 0
        %5559 = vmatprep.subr.bf16.mxu0 0
        %5560 = vmatpush2.bf16.msra.mxu0 0
        %5561 = vmatprep.subr.bf16.mxu0 %v5125
        %5562 = vmatpush2.bf16.msra.mxu0 %v5124
        %5563 = vmatprep.subr.bf16.mxu0 %v5118
        %5564 = vmatpush2.bf16.msra.mxu0 %v5117
        %5565 = vmatprep.subr.bf16.mxu0 %v5111
        %5566 = vmatpush2.bf16.msra.mxu0 %v5110
        %5567 = vmatprep.mubr.bf16.mxu0 %v5318
        %5568 = vmatmul.mubr.bf16.gmra.mxu0 %v4339
        %v5569 = vpop.f32.mrf.mxu0
        %v5570 = vadd.f32 %v5527, %v5569
        %v5571 = vpop.f32.mrf.mxu0
        %v5572 = vadd.f32 %v5529, %v5571
        %v5573 = vpop.f32.mrf.mxu0
        %v5574 = vadd.f32 %v5531, %v5573
        %v5575 = vpop.f32.mrf.mxu0
        %v5576 = vadd.f32 %v5533, %v5575
        %5577 = vdwg.mxu0
        %5578 = vmatprep.subr.bf16.mxu0 0
        %5579 = vmatpush1.bf16.msra.mxu0 %v4993
        %5580 = vmatprep.subr.bf16.mxu0 0
        %5581 = vmatpush1.bf16.msra.mxu0 %v4986
        %5582 = vmatprep.subr.bf16.mxu0 0
        %5583 = vmatpush1.bf16.msra.mxu0 %v4979
        %5584 = vmatprep.subr.bf16.mxu0 0
        %5585 = vmatpush1.bf16.msra.mxu0 %v4972
        %5586 = vmatprep.subr.bf16.mxu0 0
        %5587 = vmatpush1.bf16.msra.mxu0 %v4965
        %5588 = vmatprep.subr.bf16.mxu0 0
        %5589 = vmatpush1.bf16.msra.mxu0 %v4958
        %5590 = vmatprep.subr.bf16.mxu0 0
        %5591 = vmatpush1.bf16.msra.mxu0 %v4951
        %5592 = vmatprep.subr.bf16.mxu0 0
        %5593 = vmatpush1.bf16.msra.mxu0 %v4944
        %5594 = vmatprep.subr.bf16.mxu0 0
        %5595 = vmatpush2.bf16.msra.mxu0 %v5049
        %5596 = vmatprep.subr.bf16.mxu0 0
        %5597 = vmatpush2.bf16.msra.mxu0 %v5042
        %5598 = vmatprep.subr.bf16.mxu0 0
        %5599 = vmatpush2.bf16.msra.mxu0 %v5035
        %5600 = vmatprep.subr.bf16.mxu0 0
        %5601 = vmatpush2.bf16.msra.mxu0 %v5028
        %5602 = vmatprep.subr.bf16.mxu0 0
        %5603 = vmatpush2.bf16.msra.mxu0 %v5021
        %5604 = vmatprep.subr.bf16.mxu0 0
        %5605 = vmatpush2.bf16.msra.mxu0 %v5014
        %5606 = vmatprep.subr.bf16.mxu0 0
        %5607 = vmatpush2.bf16.msra.mxu0 %v5007
        %5608 = vmatprep.subr.bf16.mxu0 0
        %5609 = vmatpush2.bf16.msra.mxu0 %v5000
        %5610 = vmatprep.mubr.bf16.mxu0 %v4338
        %5611 = vmatmul.mubr.bf16.gmra.mxu0 %v4337
        %v5612 = vpop.f32.mrf.mxu0
        %v5613 = vadd.f32 %v4318, %v5612
        %v5614 = vpop.f32.mrf.mxu0
        %v5615 = vpop.f32.mrf.mxu0
        %v5616 = vadd.f32 %v4323, %v5615
        %v5617 = vpop.f32.mrf.mxu0
        %5618 = vdwg.mxu0
        %5619 = vmatprep.subr.bf16.mxu0 0
        %5620 = vmatpush1.bf16.msra.mxu0 %v5105
        %5621 = vmatprep.subr.bf16.mxu0 0
        %5622 = vmatpush1.bf16.msra.mxu0 %v5098
        %5623 = vmatprep.subr.bf16.mxu0 0
        %5624 = vmatpush1.bf16.msra.mxu0 %v5091
        %5625 = vmatprep.subr.bf16.mxu0 0
        %5626 = vmatpush1.bf16.msra.mxu0 %v5084
        %5627 = vmatprep.subr.bf16.mxu0 0
        %5628 = vmatpush1.bf16.msra.mxu0 %v5077
        %5629 = vmatprep.subr.bf16.mxu0 0
        %5630 = vmatpush1.bf16.msra.mxu0 %v5070
        %5631 = vmatprep.subr.bf16.mxu0 0
        %5632 = vmatpush1.bf16.msra.mxu0 %v5063
        %5633 = vmatprep.subr.bf16.mxu0 0
        %5634 = vmatpush1.bf16.msra.mxu0 %v5056
        %5635 = vmatprep.subr.bf16.mxu0 0
        %5636 = vmatpush2.bf16.msra.mxu0 0
        %5637 = vmatprep.subr.bf16.mxu0 0
        %5638 = vmatpush2.bf16.msra.mxu0 0
        %5639 = vmatprep.subr.bf16.mxu0 0
        %5640 = vmatpush2.bf16.msra.mxu0 0
        %5641 = vmatprep.subr.bf16.mxu0 0
        %5642 = vmatpush2.bf16.msra.mxu0 0
        %5643 = vmatprep.subr.bf16.mxu0 0
        %5644 = vmatpush2.bf16.msra.mxu0 0
        %5645 = vmatprep.subr.bf16.mxu0 0
        %5646 = vmatpush2.bf16.msra.mxu0 %v5126
        %5647 = vmatprep.subr.bf16.mxu0 0
        %5648 = vmatpush2.bf16.msra.mxu0 %v5119
        %5649 = vmatprep.subr.bf16.mxu0 0
        %5650 = vmatpush2.bf16.msra.mxu0 %v5112
        %5651 = vmatprep.mubr.bf16.mxu0 %v5318
        %5652 = vmatmul.mubr.bf16.gmra.mxu0 %v4339
        %v5653 = vpop.f32.mrf.mxu0
        %v5654 = vadd.f32 %v5613, %v5653
        %v5655 = vpop.f32.mrf.mxu0
        %v5656 = vpop.f32.mrf.mxu0
        %v5657 = vadd.f32 %v5616, %v5656
        %v5658 = vpop.f32.mrf.mxu0
        %5659 = vdwg.mxu0
        %v5661 = vlaneseq
        %v5662 = vshrl.u32 %v5661, 7
        %v5663 = vsub.s32 0, %v5662
        %v5664 = vrot.slane %v399, %v5663
        %v5665 = vlaneseq
        %v5666 = vshrl.u32 %v5665, 7
        %v5667 = vsub.s32 1, %v5666
        %v5668 = vrot.slane %v399, %v5667
        %v5669 = vlaneseq
        %v5670 = vshrl.u32 %v5669, 7
        %v5671 = vsub.s32 2, %v5670
        %v5672 = vrot.slane %v399, %v5671
        %v5673 = vlaneseq
        %v5674 = vshrl.u32 %v5673, 7
        %v5675 = vsub.s32 3, %v5674
        %v5676 = vrot.slane %v399, %v5675
        %v5677 = vlaneseq
        %v5678 = vshrl.u32 %v5677, 7
        %v5679 = vsub.s32 4, %v5678
        %v5680 = vrot.slane %v399, %v5679
        %v5681 = vlaneseq
        %v5682 = vshrl.u32 %v5681, 7
        %v5683 = vsub.s32 5, %v5682
        %v5684 = vrot.slane %v399, %v5683
        %v5685 = vlaneseq
        %v5686 = vshrl.u32 %v5685, 7
        %v5687 = vsub.s32 6, %v5686
        %v5688 = vrot.slane %v399, %v5687
        %v5696 = vmul.f32 %v5398, %v5664
        %v5697 = vmul.f32 %v5400, %v5668
        %v5698 = vmul.f32 %v5484, %v5672
        %v5699 = vmul.f32 %v5486, %v5676
        %v5700 = vmul.f32 %v5570, %v5680
        %v5701 = vmul.f32 %v5572, %v5684
        %v5702 = vmul.f32 %v5654, %v5688
        %v5703 = vmul.f32 %v5402, %v5664
        %v5704 = vmul.f32 %v5404, %v5668
        %v5705 = vmul.f32 %v5488, %v5672
        %v5706 = vmul.f32 %v5490, %v5676
        %v5707 = vmul.f32 %v5574, %v5680
        %v5708 = vmul.f32 %v5576, %v5684
        %v5709 = vmul.f32 %v5657, %v5688
        %v5710 = vadd.f32 %v5696, %v5697
        %v5711 = vadd.f32 %v5710, %v5698
        %v5712 = vadd.f32 %v5711, %v5699
        %v5713 = vadd.f32 %v5712, %v5700
        %v5714 = vadd.f32 %v5713, %v5701
        %v5715 = vadd.f32 %v5714, %v5702
        %v5716 = vadd.f32 %v5715, %v5703
        %v5717 = vadd.f32 %v5716, %v5704
        %v5718 = vadd.f32 %v5717, %v5705
        %v5719 = vadd.f32 %v5718, %v5706
        %v5720 = vadd.f32 %v5719, %v5707
        %v5721 = vadd.f32 %v5720, %v5708
        %v5722 = vadd.f32 %v5721, %v5709
        %5723 = vadd.xlane.f32.xlu0 %v5722
        %v5724 = vpop.xlane.xlu0 %5723
        %v5725 = vrot.slane %v5724, 4
        %v5726 = vadd.f32 %v5724, %v5725
        %v5727 = vrot.slane %v5726, 2
        %v5728 = vadd.f32 %v5726, %v5727
        %v5729 = vrot.slane %v5728, 1
        %v5730 = vadd.f32 %v5728, %v5729
        %s5731 = vtos %v5730
        %v5732 = vrcp.pop 4096.0
        %s5733 = vtos %v5732
        %s5734 = smul.f32 %s5731, %s5733
        %v5735 = vmul.f32 %v5398, %v5696
        %v5736 = vmul.f32 %v5400, %v5697
        %v5737 = vmul.f32 %v5484, %v5698
        %v5738 = vmul.f32 %v5486, %v5699
        %v5739 = vmul.f32 %v5570, %v5700
        %v5740 = vmul.f32 %v5572, %v5701
        %v5741 = vmul.f32 %v5654, %v5702
        %v5742 = vmul.f32 %v5402, %v5703
        %v5743 = vmul.f32 %v5404, %v5704
        %v5744 = vmul.f32 %v5488, %v5705
        %v5745 = vmul.f32 %v5490, %v5706
        %v5746 = vmul.f32 %v5574, %v5707
        %v5747 = vmul.f32 %v5576, %v5708
        %v5748 = vmul.f32 %v5657, %v5709
        %v5749 = vadd.f32 %v5735, %v5736
        %v5750 = vadd.f32 %v5749, %v5737
        %v5751 = vadd.f32 %v5750, %v5738
        %v5752 = vadd.f32 %v5751, %v5739
        %v5753 = vadd.f32 %v5752, %v5740
        %v5754 = vadd.f32 %v5753, %v5741
        %v5755 = vadd.f32 %v5754, %v5742
        %v5756 = vadd.f32 %v5755, %v5743
        %v5757 = vadd.f32 %v5756, %v5744
        %v5758 = vadd.f32 %v5757, %v5745
        %v5759 = vadd.f32 %v5758, %v5746
        %v5760 = vadd.f32 %v5759, %v5747
        %v5761 = vadd.f32 %v5760, %v5748
        %5762 = vadd.xlane.f32.xlu0 %v5761
        %v5763 = vpop.xlane.xlu0 %5762
        %v5764 = vrot.slane %v5763, 4
        %v5765 = vadd.f32 %v5763, %v5764
        %v5766 = vrot.slane %v5765, 2
        %v5767 = vadd.f32 %v5765, %v5766
        %v5768 = vrot.slane %v5767, 1
        %v5769 = vadd.f32 %v5767, %v5768
        %s5770 = vtos %v5769
        %v5771 = vrcp.pop 4096.0
        %s5772 = vtos %v5771
        %s5773 = smul.f32 %s5770, %s5772
        %s5774 = smul.f32 %s5734, %s5734
        %s5775 = ssub.f32 %s5773, %s5774
        %s5776 = smax.f32 %s5775, 0.0
        %v5777 = vstv %s5734
        %v5778 = vsub.f32 %v5398, %v5777
        %v5779 = vsub.f32 %v5400, %v5777
        %v5780 = vsub.f32 %v5484, %v5777
        %v5781 = vsub.f32 %v5486, %v5777
        %v5782 = vsub.f32 %v5570, %v5777
        %v5783 = vsub.f32 %v5572, %v5777
        %v5784 = vsub.f32 %v5654, %v5777
        %v5785 = vsub.f32 %v5402, %v5777
        %v5786 = vsub.f32 %v5404, %v5777
        %v5787 = vsub.f32 %v5488, %v5777
        %v5788 = vsub.f32 %v5490, %v5777
        %v5789 = vsub.f32 %v5574, %v5777
        %v5790 = vsub.f32 %v5576, %v5777
        %v5791 = vsub.f32 %v5657, %v5777
        %s5792 = sadd.f32 %s5776, 1e-05
        %v5793 = vstv %s5792
        %v5794 = vrsqrt.pop %v5793
        %s5795 = vtos %v5794
        %v5796 = vstv %s5795
        %v5797 = vmul.f32 %v5778, %v5796
        %v5798 = vmul.f32 %v5779, %v5796
        %v5799 = vmul.f32 %v5780, %v5796
        %v5800 = vmul.f32 %v5781, %v5796
        %v5801 = vmul.f32 %v5782, %v5796
        %v5802 = vmul.f32 %v5783, %v5796
        %v5803 = vmul.f32 %v5784, %v5796
        %v5804 = vmul.f32 %v5785, %v5796
        %v5805 = vmul.f32 %v5786, %v5796
        %v5806 = vmul.f32 %v5787, %v5796
        %v5807 = vmul.f32 %v5788, %v5796
        %v5808 = vmul.f32 %v5789, %v5796
        %v5809 = vmul.f32 %v5790, %v5796
        %v5810 = vmul.f32 %v5791, %v5796
        %v5811 = vld [vmem:[%s6] sm:$0xff]
        %v5812 = vld [vmem:[%s6 + $0x8] sm:$0xff]
        %5814 = vset.pattern.permute.xlu0 0
        %5815 = vperm.xlu0 %5814, %v5811
        %v5816 = vpop.permute.xlu0 %5815
        %5819 = vset.pattern.permute.xlu0 0
        %5820 = vperm.xlu0 %5819, %v5812
        %v5821 = vpop.permute.xlu0 %5820
        %v5823 = vmul.f32 %v5797, %v5816
        %v5824 = vmul.f32 %v5798, %v5816
        %v5825 = vmul.f32 %v5799, %v5816
        %v5826 = vmul.f32 %v5800, %v5816
        %v5827 = vmul.f32 %v5801, %v5816
        %v5828 = vmul.f32 %v5802, %v5816
        %v5829 = vmul.f32 %v5803, %v5816
        %v5830 = vmul.f32 %v5804, %v5821
        %v5831 = vmul.f32 %v5805, %v5821
        %v5832 = vmul.f32 %v5806, %v5821
        %v5833 = vmul.f32 %v5807, %v5821
        %v5834 = vmul.f32 %v5808, %v5821
        %v5835 = vmul.f32 %v5809, %v5821
        %v5836 = vmul.f32 %v5810, %v5821
        %v5837 = vld [vmem:[%s7] sm:$0xff]
        %v5838 = vld [vmem:[%s7 + $0x8] sm:$0xff]
        %5840 = vset.pattern.permute.xlu0 0
        %5841 = vperm.xlu0 %5840, %v5837
        %v5842 = vpop.permute.xlu0 %5841
        %5845 = vset.pattern.permute.xlu0 0
        %5846 = vperm.xlu0 %5845, %v5838
        %v5847 = vpop.permute.xlu0 %5846
        %v5849 = vadd.f32 %v5823, %v5842
        %v5850 = vadd.f32 %v5824, %v5842
        %v5851 = vadd.f32 %v5825, %v5842
        %v5852 = vadd.f32 %v5826, %v5842
        %v5853 = vadd.f32 %v5827, %v5842
        %v5854 = vadd.f32 %v5828, %v5842
        %v5855 = vadd.f32 %v5829, %v5842
        %v5856 = vadd.f32 %v5830, %v5847
        %v5857 = vadd.f32 %v5831, %v5847
        %v5858 = vadd.f32 %v5832, %v5847
        %v5859 = vadd.f32 %v5833, %v5847
        %v5860 = vadd.f32 %v5834, %v5847
        %v5861 = vadd.f32 %v5835, %v5847
        %v5862 = vadd.f32 %v5836, %v5847
        %v5863 = vmul.f32 %v5849, 0.5
        %v5864 = vmul.f32 %v5850, 0.5
        %v5865 = vmul.f32 %v5851, 0.5
        %v5866 = vmul.f32 %v5852, 0.5
        %v5867 = vmul.f32 %v5853, 0.5
        %v5868 = vmul.f32 %v5854, 0.5
        %v5869 = vmul.f32 %v5855, 0.5
        %v5870 = vmul.f32 %v5856, 0.5
        %v5871 = vmul.f32 %v5857, 0.5
        %v5872 = vmul.f32 %v5858, 0.5
        %v5873 = vmul.f32 %v5859, 0.5
        %v5874 = vmul.f32 %v5860, 0.5
        %v5875 = vmul.f32 %v5861, 0.5
        %v5876 = vmul.f32 %v5862, 0.5
        %v5877 = vmul.f32 %v5849, 0.044715
        %v5878 = vmul.f32 %v5850, 0.044715
        %v5879 = vmul.f32 %v5851, 0.044715
        %v5880 = vmul.f32 %v5852, 0.044715
        %v5881 = vmul.f32 %v5853, 0.044715
        %v5882 = vmul.f32 %v5854, 0.044715
        %v5883 = vmul.f32 %v5855, 0.044715
        %v5884 = vmul.f32 %v5856, 0.044715
        %v5885 = vmul.f32 %v5857, 0.044715
        %v5886 = vmul.f32 %v5858, 0.044715
        %v5887 = vmul.f32 %v5859, 0.044715
        %v5888 = vmul.f32 %v5860, 0.044715
        %v5889 = vmul.f32 %v5861, 0.044715
        %v5890 = vmul.f32 %v5862, 0.044715
        %v5891 = vmul.f32 %v5877, %v5849
        %v5892 = vmul.f32 %v5878, %v5850
        %v5893 = vmul.f32 %v5879, %v5851
        %v5894 = vmul.f32 %v5880, %v5852
        %v5895 = vmul.f32 %v5881, %v5853
        %v5896 = vmul.f32 %v5882, %v5854
        %v5897 = vmul.f32 %v5883, %v5855
        %v5898 = vmul.f32 %v5884, %v5856
        %v5899 = vmul.f32 %v5885, %v5857
        %v5900 = vmul.f32 %v5886, %v5858
        %v5901 = vmul.f32 %v5887, %v5859
        %v5902 = vmul.f32 %v5888, %v5860
        %v5903 = vmul.f32 %v5889, %v5861
        %v5904 = vmul.f32 %v5890, %v5862
        %v5905 = vmul.f32 %v5891, %v5849
        %v5906 = vmul.f32 %v5892, %v5850
        %v5907 = vmul.f32 %v5893, %v5851
        %v5908 = vmul.f32 %v5894, %v5852
        %v5909 = vmul.f32 %v5895, %v5853
        %v5910 = vmul.f32 %v5896, %v5854
        %v5911 = vmul.f32 %v5897, %v5855
        %v5912 = vmul.f32 %v5898, %v5856
        %v5913 = vmul.f32 %v5899, %v5857
        %v5914 = vmul.f32 %v5900, %v5858
        %v5915 = vmul.f32 %v5901, %v5859
        %v5916 = vmul.f32 %v5902, %v5860
        %v5917 = vmul.f32 %v5903, %v5861
        %v5918 = vmul.f32 %v5904, %v5862
        %v5919 = vadd.f32 %v5849, %v5905
        %v5920 = vadd.f32 %v5850, %v5906
        %v5921 = vadd.f32 %v5851, %v5907
        %v5922 = vadd.f32 %v5852, %v5908
        %v5923 = vadd.f32 %v5853, %v5909
        %v5924 = vadd.f32 %v5854, %v5910
        %v5925 = vadd.f32 %v5855, %v5911
        %v5926 = vadd.f32 %v5856, %v5912
        %v5927 = vadd.f32 %v5857, %v5913
        %v5928 = vadd.f32 %v5858, %v5914
        %v5929 = vadd.f32 %v5859, %v5915
        %v5930 = vadd.f32 %v5860, %v5916
        %v5931 = vadd.f32 %v5861, %v5917
        %v5932 = vadd.f32 %v5862, %v5918
        %v5933 = vmul.f32 %v5919, 0.7978846
        %v5934 = vmul.f32 %v5920, 0.7978846
        %v5935 = vmul.f32 %v5921, 0.7978846
        %v5936 = vmul.f32 %v5922, 0.7978846
        %v5937 = vmul.f32 %v5923, 0.7978846
        %v5938 = vmul.f32 %v5924, 0.7978846
        %v5939 = vmul.f32 %v5925, 0.7978846
        %v5940 = vmul.f32 %v5926, 0.7978846
        %v5941 = vmul.f32 %v5927, 0.7978846
        %v5942 = vmul.f32 %v5928, 0.7978846
        %v5943 = vmul.f32 %v5929, 0.7978846
        %v5944 = vmul.f32 %v5930, 0.7978846
        %v5945 = vmul.f32 %v5931, 0.7978846
        %v5946 = vmul.f32 %v5932, 0.7978846
        %v5947 = vtanh.pop %v5933
        %v5948 = vtanh.pop %v5934
        %v5949 = vtanh.pop %v5935
        %v5950 = vtanh.pop %v5936
        %v5951 = vtanh.pop %v5937
        %v5952 = vtanh.pop %v5938
        %v5953 = vtanh.pop %v5939
        %v5954 = vtanh.pop %v5940
        %v5955 = vtanh.pop %v5941
        %v5956 = vtanh.pop %v5942
        %v5957 = vtanh.pop %v5943
        %v5958 = vtanh.pop %v5944
        %v5959 = vtanh.pop %v5945
        %v5960 = vtanh.pop %v5946
        %v5961 = vadd.f32 %v5947, 1.0
        %v5962 = vadd.f32 %v5948, 1.0
        %v5963 = vadd.f32 %v5949, 1.0
        %v5964 = vadd.f32 %v5950, 1.0
        %v5965 = vadd.f32 %v5951, 1.0
        %v5966 = vadd.f32 %v5952, 1.0
        %v5967 = vadd.f32 %v5953, 1.0
        %v5968 = vadd.f32 %v5954, 1.0
        %v5969 = vadd.f32 %v5955, 1.0
        %v5970 = vadd.f32 %v5956, 1.0
        %v5971 = vadd.f32 %v5957, 1.0
        %v5972 = vadd.f32 %v5958, 1.0
        %v5973 = vadd.f32 %v5959, 1.0
        %v5974 = vadd.f32 %v5960, 1.0
        %v5975 = vmul.f32 %v5863, %v5961
        %v5976 = vmul.f32 %v5864, %v5962
        %v5977 = vmul.f32 %v5865, %v5963
        %v5978 = vmul.f32 %v5866, %v5964
        %v5979 = vmul.f32 %v5867, %v5965
        %v5980 = vmul.f32 %v5868, %v5966
        %v5981 = vmul.f32 %v5869, %v5967
        %v5982 = vmul.f32 %v5870, %v5968
        %v5983 = vmul.f32 %v5871, %v5969
        %v5984 = vmul.f32 %v5872, %v5970
        %v5985 = vmul.f32 %v5873, %v5971
        %v5986 = vmul.f32 %v5874, %v5972
        %v5987 = vmul.f32 %v5875, %v5973
        %v5988 = vmul.f32 %v5876, %v5974
        %5989 = vst [vmem:[#allocation3] sm:$0xff] 0.0
        %5990 = vst [vmem:[#allocation3 + $0x48] sm:$0xff] 0.0
        %v5991 = vmul.f32 %v5975, %v5664
        %v5992 = vmul.f32 %v5976, %v5668
        %v5993 = vmul.f32 %v5977, %v5672
        %v5994 = vmul.f32 %v5978, %v5676
        %v5995 = vmul.f32 %v5979, %v5680
        %v5996 = vmul.f32 %v5980, %v5684
        %v5997 = vmul.f32 %v5981, %v5688
        %v5998 = vmul.f32 %v5982, %v5664
        %v5999 = vmul.f32 %v5983, %v5668
        %v6000 = vmul.f32 %v5984, %v5672
        %v6001 = vmul.f32 %v5985, %v5676
        %v6002 = vmul.f32 %v5986, %v5680
        %v6003 = vmul.f32 %v5987, %v5684
        %v6004 = vmul.f32 %v5988, %v5688
        %6005 = vst [vmem:[#allocation3 + $0x8] sm:$0xff] %v5991
        %6006 = vst [vmem:[#allocation3 + $0x10] sm:$0xff] %v5992
        %6007 = vst [vmem:[#allocation3 + $0x18] sm:$0xff] %v5993
        %6008 = vst [vmem:[#allocation3 + $0x20] sm:$0xff] %v5994
        %6009 = vst [vmem:[#allocation3 + $0x28] sm:$0xff] %v5995
        %6010 = vst [vmem:[#allocation3 + $0x30] sm:$0xff] %v5996
        %6011 = vst [vmem:[#allocation3 + $0x38] sm:$0xff] %v5997
        %6012 = vst [vmem:[#allocation3 + $0x50] sm:$0xff] %v5998
        %6013 = vst [vmem:[#allocation3 + $0x58] sm:$0xff] %v5999
        %6014 = vst [vmem:[#allocation3 + $0x60] sm:$0xff] %v6000
        %6015 = vst [vmem:[#allocation3 + $0x68] sm:$0xff] %v6001
        %6016 = vst [vmem:[#allocation3 + $0x70] sm:$0xff] %v6002
        %6017 = vst [vmem:[#allocation3 + $0x78] sm:$0xff] %v6003
        %6018 = vst [vmem:[#allocation3 + $0x80] sm:$0xff] %v6004
        %6019 = vst [vmem:[#allocation3 + $0x40] sm:$0xff] 0.0
        %6020 = vst [vmem:[#allocation3 + $0x88] sm:$0xff] 0.0
        %v6021 = vld [vmem:[#allocation3] sm:$0xff]
        %v6022 = vld [vmem:[#allocation3 + $0x8] sm:$0xff]
        %v6023 = vld [vmem:[#allocation3 + $0x10] sm:$0xff]
        %v6024 = vld [vmem:[#allocation3 + $0x18] sm:$0xff]
        %v6025 = vld [vmem:[#allocation3 + $0x20] sm:$0xff]
        %v6026 = vld [vmem:[#allocation3 + $0x28] sm:$0xff]
        %v6027 = vld [vmem:[#allocation3 + $0x30] sm:$0xff]
        %v6028 = vld [vmem:[#allocation3 + $0x38] sm:$0xff]
        %v6029 = vld [vmem:[#allocation3 + $0x48] sm:$0xff]
        %v6030 = vld [vmem:[#allocation3 + $0x50] sm:$0xff]
        %v6031 = vld [vmem:[#allocation3 + $0x58] sm:$0xff]
        %v6032 = vld [vmem:[#allocation3 + $0x60] sm:$0xff]
        %v6033 = vld [vmem:[#allocation3 + $0x68] sm:$0xff]
        %v6034 = vld [vmem:[#allocation3 + $0x70] sm:$0xff]
        %v6035 = vld [vmem:[#allocation3 + $0x78] sm:$0xff]
        %v6036 = vld [vmem:[#allocation3 + $0x80] sm:$0xff]
        %6053 = vrot.lane.b32.xlu0 %v6021, 110
        %v6054 = vpop.permute.xlu0 %6053
        %6055 = vrot.lane.b32.xlu0 %v6022, 110
        %v6056 = vpop.permute.xlu0 %6055
        %6057 = vrot.lane.b32.xlu0 %v6023, 110
        %v6058 = vpop.permute.xlu0 %6057
        %6059 = vrot.lane.b32.xlu0 %v6024, 110
        %v6060 = vpop.permute.xlu0 %6059
        %6061 = vrot.lane.b32.xlu0 %v6025, 110
        %v6062 = vpop.permute.xlu0 %6061
        %6063 = vrot.lane.b32.xlu0 %v6026, 110
        %v6064 = vpop.permute.xlu0 %6063
        %6065 = vrot.lane.b32.xlu0 %v6027, 110
        %v6066 = vpop.permute.xlu0 %6065
        %6067 = vrot.lane.b32.xlu0 %v6028, 110
        %v6068 = vpop.permute.xlu0 %6067
        %6069 = vrot.lane.b32.xlu0 %v6029, 110
        %v6070 = vpop.permute.xlu0 %6069
        %6071 = vrot.lane.b32.xlu0 %v6030, 110
        %v6072 = vpop.permute.xlu0 %6071
        %6073 = vrot.lane.b32.xlu0 %v6031, 110
        %v6074 = vpop.permute.xlu0 %6073
        %6075 = vrot.lane.b32.xlu0 %v6032, 110
        %v6076 = vpop.permute.xlu0 %6075
        %6077 = vrot.lane.b32.xlu0 %v6033, 110
        %v6078 = vpop.permute.xlu0 %6077
        %6079 = vrot.lane.b32.xlu0 %v6034, 110
        %v6080 = vpop.permute.xlu0 %6079
        %6081 = vrot.lane.b32.xlu0 %v6035, 110
        %v6082 = vpop.permute.xlu0 %6081
        %6083 = vrot.lane.b32.xlu0 %v6036, 110
        %v6084 = vpop.permute.xlu0 %6083
        %v6085 = vsel %vm890, %v6054, %v6056
        %v6086 = vsel %vm890, %v6056, %v6058
        %v6087 = vsel %vm890, %v6058, %v6060
        %v6088 = vsel %vm890, %v6060, %v6062
        %v6089 = vsel %vm890, %v6062, %v6064
        %v6090 = vsel %vm890, %v6064, %v6066
        %v6091 = vsel %vm890, %v6066, %v6068
        %v6092 = vsel %vm890, %v6070, %v6072
        %v6093 = vsel %vm890, %v6072, %v6074
        %v6094 = vsel %vm890, %v6074, %v6076
        %v6095 = vsel %vm890, %v6076, %v6078
        %v6096 = vsel %vm890, %v6078, %v6080
        %v6097 = vsel %vm890, %v6080, %v6082
        %v6098 = vsel %vm890, %v6082, %v6084
        %6113 = vrot.lane.b32.xlu0 %v6085, 1
        %v6114 = vpop.permute.xlu0 %6113
        %6115 = vrot.lane.b32.xlu0 %v6092, 1
        %v6116 = vpop.permute.xlu0 %6115
        %6117 = vrot.lane.b32.xlu0 %v6086, 1
        %v6118 = vpop.permute.xlu0 %6117
        %6119 = vrot.lane.b32.xlu0 %v6093, 1
        %v6120 = vpop.permute.xlu0 %6119
        %6121 = vrot.lane.b32.xlu0 %v6087, 1
        %v6122 = vpop.permute.xlu0 %6121
        %6123 = vrot.lane.b32.xlu0 %v6094, 1
        %v6124 = vpop.permute.xlu0 %6123
        %6125 = vrot.lane.b32.xlu0 %v6088, 1
        %v6126 = vpop.permute.xlu0 %6125
        %6127 = vrot.lane.b32.xlu0 %v6095, 1
        %v6128 = vpop.permute.xlu0 %6127
        %6129 = vrot.lane.b32.xlu0 %v6089, 1
        %v6130 = vpop.permute.xlu0 %6129
        %6131 = vrot.lane.b32.xlu0 %v6096, 1
        %v6132 = vpop.permute.xlu0 %6131
        %6133 = vrot.lane.b32.xlu0 %v6090, 1
        %v6134 = vpop.permute.xlu0 %6133
        %6135 = vrot.lane.b32.xlu0 %v6097, 1
        %v6136 = vpop.permute.xlu0 %6135
        %6137 = vrot.lane.b32.xlu0 %v6091, 1
        %v6138 = vpop.permute.xlu0 %6137
        %6139 = vrot.lane.b32.xlu0 %v6098, 1
        %v6140 = vpop.permute.xlu0 %6139
        %v6141 = vsel %vm949, %v6134, %v6138
        %v6142 = vsel %vm949, %v6136, %v6140
        %v6143 = vsel %vm949, %v6130, %v6134
        %v6144 = vsel %vm949, %v6132, %v6136
        %v6145 = vsel %vm949, %v6126, %v6130
        %v6146 = vsel %vm949, %v6128, %v6132
        %v6147 = vsel %vm949, %v6122, %v6126
        %v6148 = vsel %vm949, %v6124, %v6128
        %v6149 = vsel %vm949, %v6118, %v6122
        %v6150 = vsel %vm949, %v6120, %v6124
        %v6151 = vsel %vm949, %v6114, %v6118
        %v6152 = vsel %vm949, %v6116, %v6120
        %v6153 = vsel %vm949, %v6138, %v6114
        %v6154 = vsel %vm949, %v6140, %v6116
        %v6155 = vpack.c.bf16 %v6154, %v6153
        %v6156 = vpack.c.bf16 %v6152, %v6151
        %v6157 = vpack.c.bf16 %v6150, %v6149
        %v6158 = vpack.c.bf16 %v6148, %v6147
        %v6159 = vpack.c.bf16 %v6146, %v6145
        %v6160 = vpack.c.bf16 %v6144, %v6143
        %v6161 = vpack.c.bf16 %v6142, %v6141
        %v6169 = vunpack.c.l.b16 %v6155
        %v6170 = vunpack.c.l.b16 %v6156
        %v6171 = vunpack.c.l.b16 %v6157
        %v6172 = vunpack.c.l.b16 %v6158
        %v6173 = vunpack.c.l.b16 %v6159
        %v6174 = vunpack.c.l.b16 %v6160
        %v6175 = vunpack.c.l.b16 %v6161
        %v6176 = vunpack.c.h.b16 %v6155
        %v6177 = vunpack.c.h.b16 %v6156
        %v6178 = vunpack.c.h.b16 %v6157
        %v6179 = vunpack.c.h.b16 %v6158
        %v6180 = vunpack.c.h.b16 %v6159
        %v6181 = vunpack.c.h.b16 %v6160
        %v6182 = vunpack.c.h.b16 %v6161
        %v6183 = vpack.c.b16 %v6170, %v6169
        %v6184 = vpack.c.b16 %v6172, %v6171
        %v6185 = vpack.c.b16 %v6174, %v6173
        %v6186 = vpack.c.b16 %v6175, %v6175
        %v6187 = vpack.c.b16 %v6177, %v6176
        %v6188 = vpack.c.b16 %v6179, %v6178
        %v6189 = vpack.c.b16 %v6181, %v6180
        %v6190 = vpack.c.b16 %v6182, %v6182
        %6199 = vst [vmem:[#allocation5] sm:$0xff] %v6183
        %6200 = vst [vmem:[#allocation5 + $0x8] sm:$0xff] %v6184
        %6201 = vst [vmem:[#allocation5 + $0x10] sm:$0xff] %v6185
        %6202 = vst [vmem:[#allocation5 + $0x18] sm:$0xf] %v6186
        %6203 = vst [vmem:[#allocation5 + $0x1c] sm:$0xff] %v6187
        %6204 = vst [vmem:[#allocation5 + $0x24] sm:$0xff] %v6188
        %6205 = vst [vmem:[#allocation5 + $0x2c] sm:$0xff] %v6189
        %6206 = vst [vmem:[#allocation5 + $0x34] sm:$0xf] %v6190
        %v6207 = vpack.c.bf16 %v6029, %v6021
        %v6208 = vpack.c.bf16 %v6030, %v6022
        %v6209 = vpack.c.bf16 %v6031, %v6023
        %v6210 = vpack.c.bf16 %v6032, %v6024
        %v6211 = vpack.c.bf16 %v6033, %v6025
        %v6212 = vpack.c.bf16 %v6034, %v6026
        %v6213 = vpack.c.bf16 %v6035, %v6027
        %v6214 = vpack.c.bf16 %v6036, %v6028
        %v6223 = vunpack.c.l.b16 %v6207
        %v6224 = vunpack.c.l.b16 %v6208
        %v6225 = vunpack.c.l.b16 %v6209
        %v6226 = vunpack.c.l.b16 %v6210
        %v6227 = vunpack.c.l.b16 %v6211
        %v6228 = vunpack.c.l.b16 %v6212
        %v6229 = vunpack.c.l.b16 %v6213
        %v6230 = vunpack.c.l.b16 %v6214
        %v6231 = vunpack.c.h.b16 %v6207
        %v6232 = vunpack.c.h.b16 %v6208
        %v6233 = vunpack.c.h.b16 %v6209
        %v6234 = vunpack.c.h.b16 %v6210
        %v6235 = vunpack.c.h.b16 %v6211
        %v6236 = vunpack.c.h.b16 %v6212
        %v6237 = vunpack.c.h.b16 %v6213
        %v6238 = vunpack.c.h.b16 %v6214
        %v6239 = vpack.c.b16 %v6224, %v6223
        %v6240 = vpack.c.b16 %v6226, %v6225
        %v6241 = vpack.c.b16 %v6228, %v6227
        %v6242 = vpack.c.b16 %v6230, %v6229
        %v6243 = vpack.c.b16 %v6232, %v6231
        %v6244 = vpack.c.b16 %v6234, %v6233
        %v6245 = vpack.c.b16 %v6236, %v6235
        %v6246 = vpack.c.b16 %v6238, %v6237
        %6247 = vrot.lane.b32.xlu0 %v6239, 110
        %v6248 = vpop.permute.xlu0 %6247
        %6249 = vrot.lane.b32.xlu0 %v6240, 110
        %v6250 = vpop.permute.xlu0 %6249
        %6251 = vrot.lane.b32.xlu0 %v6241, 110
        %v6252 = vpop.permute.xlu0 %6251
        %6253 = vrot.lane.b32.xlu0 %v6242, 110
        %v6254 = vpop.permute.xlu0 %6253
        %6255 = vrot.lane.b32.xlu0 %v6243, 110
        %v6256 = vpop.permute.xlu0 %6255
        %6257 = vrot.lane.b32.xlu0 %v6244, 110
        %v6258 = vpop.permute.xlu0 %6257
        %6259 = vrot.lane.b32.xlu0 %v6245, 110
        %v6260 = vpop.permute.xlu0 %6259
        %6261 = vrot.lane.b32.xlu0 %v6246, 110
        %v6262 = vpop.permute.xlu0 %6261
        %v6263 = vrot.slane %v6248, 4
        %v6264 = vrot.slane %v6250, 4
        %v6265 = vrot.slane %v6252, 4
        %v6266 = vrot.slane %v6254, 4
        %v6267 = vrot.slane %v6256, 4
        %v6268 = vrot.slane %v6258, 4
        %v6269 = vrot.slane %v6260, 4
        %v6270 = vrot.slane %v6262, 4
        %v6271 = vsel %vm1080, %v6263, %v6264
        %v6272 = vsel %vm1082, %v6248, %v6271
        %v6273 = vsel %vm1080, %v6264, %v6265
        %v6274 = vsel %vm1082, %v6250, %v6273
        %v6275 = vsel %vm1080, %v6265, %v6266
        %v6276 = vsel %vm1082, %v6252, %v6275
        %v6277 = vsel %vm1082, %v6254, %v6266
        %v6278 = vsel %vm1080, %v6267, %v6268
        %v6279 = vsel %vm1082, %v6256, %v6278
        %v6280 = vsel %vm1080, %v6268, %v6269
        %v6281 = vsel %vm1082, %v6258, %v6280
        %v6282 = vsel %vm1080, %v6269, %v6270
        %v6283 = vsel %vm1082, %v6260, %v6282
        %v6284 = vsel %vm1082, %v6262, %v6270
        %6293 = vst [vmem:[#allocation5 + $0x38] sm:$0xff] %v6272
        %6294 = vst [vmem:[#allocation5 + $0x40] sm:$0xff] %v6274
        %6295 = vst [vmem:[#allocation5 + $0x48] sm:$0xff] %v6276
        %6296 = vst [vmem:[#allocation5 + $0x50] sm:$0xf] %v6277
        %6297 = vst [vmem:[#allocation5 + $0x54] sm:$0xff] %v6279
        %6298 = vst [vmem:[#allocation5 + $0x5c] sm:$0xff] %v6281
        %6299 = vst [vmem:[#allocation5 + $0x64] sm:$0xff] %v6283
        %6300 = vst [vmem:[#allocation5 + $0x6c] sm:$0xf] %v6284
        %6301 = vrot.lane.b32.xlu0 %v6085, 127
        %v6302 = vpop.permute.xlu0 %6301
        %6303 = vrot.lane.b32.xlu0 %v6092, 127
        %v6304 = vpop.permute.xlu0 %6303
        %6305 = vrot.lane.b32.xlu0 %v6086, 127
        %v6306 = vpop.permute.xlu0 %6305
        %6307 = vrot.lane.b32.xlu0 %v6093, 127
        %v6308 = vpop.permute.xlu0 %6307
        %6309 = vrot.lane.b32.xlu0 %v6087, 127
        %v6310 = vpop.permute.xlu0 %6309
        %6311 = vrot.lane.b32.xlu0 %v6094, 127
        %v6312 = vpop.permute.xlu0 %6311
        %6313 = vrot.lane.b32.xlu0 %v6088, 127
        %v6314 = vpop.permute.xlu0 %6313
        %6315 = vrot.lane.b32.xlu0 %v6095, 127
        %v6316 = vpop.permute.xlu0 %6315
        %6317 = vrot.lane.b32.xlu0 %v6089, 127
        %v6318 = vpop.permute.xlu0 %6317
        %6319 = vrot.lane.b32.xlu0 %v6096, 127
        %v6320 = vpop.permute.xlu0 %6319
        %6321 = vrot.lane.b32.xlu0 %v6090, 127
        %v6322 = vpop.permute.xlu0 %6321
        %6323 = vrot.lane.b32.xlu0 %v6097, 127
        %v6324 = vpop.permute.xlu0 %6323
        %6325 = vrot.lane.b32.xlu0 %v6091, 127
        %v6326 = vpop.permute.xlu0 %6325
        %6327 = vrot.lane.b32.xlu0 %v6098, 127
        %v6328 = vpop.permute.xlu0 %6327
        %v6329 = vsel %vm1140, %v6322, %v6326
        %v6330 = vsel %vm1140, %v6324, %v6328
        %v6331 = vsel %vm1140, %v6318, %v6322
        %v6332 = vsel %vm1140, %v6320, %v6324
        %v6333 = vsel %vm1140, %v6314, %v6318
        %v6334 = vsel %vm1140, %v6316, %v6320
        %v6335 = vsel %vm1140, %v6310, %v6314
        %v6336 = vsel %vm1140, %v6312, %v6316
        %v6337 = vsel %vm1140, %v6306, %v6310
        %v6338 = vsel %vm1140, %v6308, %v6312
        %v6339 = vsel %vm1140, %v6302, %v6306
        %v6340 = vsel %vm1140, %v6304, %v6308
        %v6341 = vsel %vm1140, %v6326, %v6302
        %v6342 = vsel %vm1140, %v6328, %v6304
        %v6343 = vpack.c.bf16 %v6340, %v6339
        %v6344 = vpack.c.bf16 %v6338, %v6337
        %v6345 = vpack.c.bf16 %v6336, %v6335
        %v6346 = vpack.c.bf16 %v6334, %v6333
        %v6347 = vpack.c.bf16 %v6332, %v6331
        %v6348 = vpack.c.bf16 %v6330, %v6329
        %v6349 = vpack.c.bf16 %v6342, %v6341
        %v6357 = vunpack.c.l.b16 %v6343
        %v6358 = vunpack.c.l.b16 %v6344
        %v6359 = vunpack.c.l.b16 %v6345
        %v6360 = vunpack.c.l.b16 %v6346
        %v6361 = vunpack.c.l.b16 %v6347
        %v6362 = vunpack.c.l.b16 %v6348
        %v6363 = vunpack.c.l.b16 %v6349
        %v6364 = vunpack.c.h.b16 %v6343
        %v6365 = vunpack.c.h.b16 %v6344
        %v6366 = vunpack.c.h.b16 %v6345
        %v6367 = vunpack.c.h.b16 %v6346
        %v6368 = vunpack.c.h.b16 %v6347
        %v6369 = vunpack.c.h.b16 %v6348
        %v6370 = vunpack.c.h.b16 %v6349
        %v6371 = vpack.c.b16 %v6358, %v6357
        %v6372 = vpack.c.b16 %v6360, %v6359
        %v6373 = vpack.c.b16 %v6362, %v6361
        %v6374 = vpack.c.b16 %v6363, %v6363
        %v6375 = vpack.c.b16 %v6365, %v6364
        %v6376 = vpack.c.b16 %v6367, %v6366
        %v6377 = vpack.c.b16 %v6369, %v6368
        %v6378 = vpack.c.b16 %v6370, %v6370
        %6387 = vst [vmem:[#allocation5 + $0x70] sm:$0xff] %v6371
        %6388 = vst [vmem:[#allocation5 + $0x78] sm:$0xff] %v6372
        %6389 = vst [vmem:[#allocation5 + $0x80] sm:$0xff] %v6373
        %6390 = vst [vmem:[#allocation5 + $0x88] sm:$0xf] %v6374
        %6391 = vst [vmem:[#allocation5 + $0x8c] sm:$0xff] %v6375
        %6392 = vst [vmem:[#allocation5 + $0x94] sm:$0xff] %v6376
        %6393 = vst [vmem:[#allocation5 + $0x9c] sm:$0xff] %v6377
        %6394 = vst [vmem:[#allocation5 + $0xa4] sm:$0xf] %v6378
        %v6395 = vld [vmem:[#allocation3] sm:$0xff]
        %v6396 = vld [vmem:[#allocation3 + $0x8] sm:$0xff]
        %v6397 = vld [vmem:[#allocation3 + $0x10] sm:$0xff]
        %v6398 = vld [vmem:[#allocation3 + $0x18] sm:$0xff]
        %v6399 = vld [vmem:[#allocation3 + $0x20] sm:$0xff]
        %v6400 = vld [vmem:[#allocation3 + $0x28] sm:$0xff]
        %v6401 = vld [vmem:[#allocation3 + $0x30] sm:$0xff]
        %v6402 = vld [vmem:[#allocation3 + $0x38] sm:$0xff]
        %v6403 = vld [vmem:[#allocation3 + $0x48] sm:$0xff]
        %v6404 = vld [vmem:[#allocation3 + $0x50] sm:$0xff]
        %v6405 = vld [vmem:[#allocation3 + $0x58] sm:$0xff]
        %v6406 = vld [vmem:[#allocation3 + $0x60] sm:$0xff]
        %v6407 = vld [vmem:[#allocation3 + $0x68] sm:$0xff]
        %v6408 = vld [vmem:[#allocation3 + $0x70] sm:$0xff]
        %v6409 = vld [vmem:[#allocation3 + $0x78] sm:$0xff]
        %v6410 = vld [vmem:[#allocation3 + $0x80] sm:$0xff]
        %6427 = vrot.lane.b32.xlu0 %v6395, 100
        %v6428 = vpop.permute.xlu0 %6427
        %6429 = vrot.lane.b32.xlu0 %v6396, 100
        %v6430 = vpop.permute.xlu0 %6429
        %6431 = vrot.lane.b32.xlu0 %v6397, 100
        %v6432 = vpop.permute.xlu0 %6431
        %6433 = vrot.lane.b32.xlu0 %v6398, 100
        %v6434 = vpop.permute.xlu0 %6433
        %6435 = vrot.lane.b32.xlu0 %v6399, 100
        %v6436 = vpop.permute.xlu0 %6435
        %6437 = vrot.lane.b32.xlu0 %v6400, 100
        %v6438 = vpop.permute.xlu0 %6437
        %6439 = vrot.lane.b32.xlu0 %v6401, 100
        %v6440 = vpop.permute.xlu0 %6439
        %6441 = vrot.lane.b32.xlu0 %v6402, 100
        %v6442 = vpop.permute.xlu0 %6441
        %6443 = vrot.lane.b32.xlu0 %v6403, 100
        %v6444 = vpop.permute.xlu0 %6443
        %6445 = vrot.lane.b32.xlu0 %v6404, 100
        %v6446 = vpop.permute.xlu0 %6445
        %6447 = vrot.lane.b32.xlu0 %v6405, 100
        %v6448 = vpop.permute.xlu0 %6447
        %6449 = vrot.lane.b32.xlu0 %v6406, 100
        %v6450 = vpop.permute.xlu0 %6449
        %6451 = vrot.lane.b32.xlu0 %v6407, 100
        %v6452 = vpop.permute.xlu0 %6451
        %6453 = vrot.lane.b32.xlu0 %v6408, 100
        %v6454 = vpop.permute.xlu0 %6453
        %6455 = vrot.lane.b32.xlu0 %v6409, 100
        %v6456 = vpop.permute.xlu0 %6455
        %6457 = vrot.lane.b32.xlu0 %v6410, 100
        %v6458 = vpop.permute.xlu0 %6457
        %v6459 = vsel %vm1271, %v6428, %v6430
        %v6460 = vsel %vm1271, %v6430, %v6432
        %v6461 = vsel %vm1271, %v6432, %v6434
        %v6462 = vsel %vm1271, %v6434, %v6436
        %v6463 = vsel %vm1271, %v6436, %v6438
        %v6464 = vsel %vm1271, %v6438, %v6440
        %v6465 = vsel %vm1271, %v6440, %v6442
        %v6466 = vsel %vm1271, %v6444, %v6446
        %v6467 = vsel %vm1271, %v6446, %v6448
        %v6468 = vsel %vm1271, %v6448, %v6450
        %v6469 = vsel %vm1271, %v6450, %v6452
        %v6470 = vsel %vm1271, %v6452, %v6454
        %v6471 = vsel %vm1271, %v6454, %v6456
        %v6472 = vsel %vm1271, %v6456, %v6458
        %6487 = vrot.lane.b32.xlu0 %v6459, 1
        %v6488 = vpop.permute.xlu0 %6487
        %6489 = vrot.lane.b32.xlu0 %v6466, 1
        %v6490 = vpop.permute.xlu0 %6489
        %6491 = vrot.lane.b32.xlu0 %v6460, 1
        %v6492 = vpop.permute.xlu0 %6491
        %6493 = vrot.lane.b32.xlu0 %v6467, 1
        %v6494 = vpop.permute.xlu0 %6493
        %6495 = vrot.lane.b32.xlu0 %v6461, 1
        %v6496 = vpop.permute.xlu0 %6495
        %6497 = vrot.lane.b32.xlu0 %v6468, 1
        %v6498 = vpop.permute.xlu0 %6497
        %6499 = vrot.lane.b32.xlu0 %v6462, 1
        %v6500 = vpop.permute.xlu0 %6499
        %6501 = vrot.lane.b32.xlu0 %v6469, 1
        %v6502 = vpop.permute.xlu0 %6501
        %6503 = vrot.lane.b32.xlu0 %v6463, 1
        %v6504 = vpop.permute.xlu0 %6503
        %6505 = vrot.lane.b32.xlu0 %v6470, 1
        %v6506 = vpop.permute.xlu0 %6505
        %6507 = vrot.lane.b32.xlu0 %v6464, 1
        %v6508 = vpop.permute.xlu0 %6507
        %6509 = vrot.lane.b32.xlu0 %v6471, 1
        %v6510 = vpop.permute.xlu0 %6509
        %6511 = vrot.lane.b32.xlu0 %v6465, 1
        %v6512 = vpop.permute.xlu0 %6511
        %6513 = vrot.lane.b32.xlu0 %v6472, 1
        %v6514 = vpop.permute.xlu0 %6513
        %v6515 = vsel %vm949, %v6508, %v6512
        %v6516 = vsel %vm949, %v6510, %v6514
        %v6517 = vsel %vm949, %v6504, %v6508
        %v6518 = vsel %vm949, %v6506, %v6510
        %v6519 = vsel %vm949, %v6500, %v6504
        %v6520 = vsel %vm949, %v6502, %v6506
        %v6521 = vsel %vm949, %v6496, %v6500
        %v6522 = vsel %vm949, %v6498, %v6502
        %v6523 = vsel %vm949, %v6492, %v6496
        %v6524 = vsel %vm949, %v6494, %v6498
        %v6525 = vsel %vm949, %v6488, %v6492
        %v6526 = vsel %vm949, %v6490, %v6494
        %v6527 = vsel %vm949, %v6512, %v6488
        %v6528 = vsel %vm949, %v6514, %v6490
        %v6529 = vpack.c.bf16 %v6528, %v6527
        %v6530 = vpack.c.bf16 %v6526, %v6525
        %v6531 = vpack.c.bf16 %v6524, %v6523
        %v6532 = vpack.c.bf16 %v6522, %v6521
        %v6533 = vpack.c.bf16 %v6520, %v6519
        %v6534 = vpack.c.bf16 %v6518, %v6517
        %v6535 = vpack.c.bf16 %v6516, %v6515
        %v6543 = vunpack.c.l.b16 %v6529
        %v6544 = vunpack.c.l.b16 %v6530
        %v6545 = vunpack.c.l.b16 %v6531
        %v6546 = vunpack.c.l.b16 %v6532
        %v6547 = vunpack.c.l.b16 %v6533
        %v6548 = vunpack.c.l.b16 %v6534
        %v6549 = vunpack.c.l.b16 %v6535
        %v6550 = vunpack.c.h.b16 %v6529
        %v6551 = vunpack.c.h.b16 %v6530
        %v6552 = vunpack.c.h.b16 %v6531
        %v6553 = vunpack.c.h.b16 %v6532
        %v6554 = vunpack.c.h.b16 %v6533
        %v6555 = vunpack.c.h.b16 %v6534
        %v6556 = vunpack.c.h.b16 %v6535
        %v6557 = vpack.c.b16 %v6544, %v6543
        %v6558 = vpack.c.b16 %v6546, %v6545
        %v6559 = vpack.c.b16 %v6548, %v6547
        %v6560 = vpack.c.b16 %v6549, %v6549
        %v6561 = vpack.c.b16 %v6551, %v6550
        %v6562 = vpack.c.b16 %v6553, %v6552
        %v6563 = vpack.c.b16 %v6555, %v6554
        %v6564 = vpack.c.b16 %v6556, %v6556
        %6573 = vst [vmem:[#allocation5 + $0xa8] sm:$0xff] %v6557
        %6574 = vst [vmem:[#allocation5 + $0xb0] sm:$0xff] %v6558
        %6575 = vst [vmem:[#allocation5 + $0xb8] sm:$0xff] %v6559
        %6576 = vst [vmem:[#allocation5 + $0xc0] sm:$0xf] %v6560
        %6577 = vst [vmem:[#allocation5 + $0xc4] sm:$0xff] %v6561
        %6578 = vst [vmem:[#allocation5 + $0xcc] sm:$0xff] %v6562
        %6579 = vst [vmem:[#allocation5 + $0xd4] sm:$0xff] %v6563
        %6580 = vst [vmem:[#allocation5 + $0xdc] sm:$0xf] %v6564
        %v6581 = vpack.c.bf16 %v6403, %v6395
        %v6582 = vpack.c.bf16 %v6404, %v6396
        %v6583 = vpack.c.bf16 %v6405, %v6397
        %v6584 = vpack.c.bf16 %v6406, %v6398
        %v6585 = vpack.c.bf16 %v6407, %v6399
        %v6586 = vpack.c.bf16 %v6408, %v6400
        %v6587 = vpack.c.bf16 %v6409, %v6401
        %v6588 = vpack.c.bf16 %v6410, %v6402
        %v6597 = vunpack.c.l.b16 %v6581
        %v6598 = vunpack.c.l.b16 %v6582
        %v6599 = vunpack.c.l.b16 %v6583
        %v6600 = vunpack.c.l.b16 %v6584
        %v6601 = vunpack.c.l.b16 %v6585
        %v6602 = vunpack.c.l.b16 %v6586
        %v6603 = vunpack.c.l.b16 %v6587
        %v6604 = vunpack.c.l.b16 %v6588
        %v6605 = vunpack.c.h.b16 %v6581
        %v6606 = vunpack.c.h.b16 %v6582
        %v6607 = vunpack.c.h.b16 %v6583
        %v6608 = vunpack.c.h.b16 %v6584
        %v6609 = vunpack.c.h.b16 %v6585
        %v6610 = vunpack.c.h.b16 %v6586
        %v6611 = vunpack.c.h.b16 %v6587
        %v6612 = vunpack.c.h.b16 %v6588
        %v6613 = vpack.c.b16 %v6598, %v6597
        %v6614 = vpack.c.b16 %v6600, %v6599
        %v6615 = vpack.c.b16 %v6602, %v6601
        %v6616 = vpack.c.b16 %v6604, %v6603
        %v6617 = vpack.c.b16 %v6606, %v6605
        %v6618 = vpack.c.b16 %v6608, %v6607
        %v6619 = vpack.c.b16 %v6610, %v6609
        %v6620 = vpack.c.b16 %v6612, %v6611
        %6621 = vrot.lane.b32.xlu0 %v6613, 100
        %v6622 = vpop.permute.xlu0 %6621
        %6623 = vrot.lane.b32.xlu0 %v6614, 100
        %v6624 = vpop.permute.xlu0 %6623
        %6625 = vrot.lane.b32.xlu0 %v6615, 100
        %v6626 = vpop.permute.xlu0 %6625
        %6627 = vrot.lane.b32.xlu0 %v6616, 100
        %v6628 = vpop.permute.xlu0 %6627
        %6629 = vrot.lane.b32.xlu0 %v6617, 100
        %v6630 = vpop.permute.xlu0 %6629
        %6631 = vrot.lane.b32.xlu0 %v6618, 100
        %v6632 = vpop.permute.xlu0 %6631
        %6633 = vrot.lane.b32.xlu0 %v6619, 100
        %v6634 = vpop.permute.xlu0 %6633
        %6635 = vrot.lane.b32.xlu0 %v6620, 100
        %v6636 = vpop.permute.xlu0 %6635
        %v6637 = vrot.slane %v6622, 4
        %v6638 = vrot.slane %v6624, 4
        %v6639 = vrot.slane %v6626, 4
        %v6640 = vrot.slane %v6628, 4
        %v6641 = vrot.slane %v6630, 4
        %v6642 = vrot.slane %v6632, 4
        %v6643 = vrot.slane %v6634, 4
        %v6644 = vrot.slane %v6636, 4
        %v6645 = vsel %vm1080, %v6637, %v6638
        %v6646 = vsel %vm1459, %v6622, %v6645
        %v6647 = vsel %vm1080, %v6638, %v6639
        %v6648 = vsel %vm1459, %v6624, %v6647
        %v6649 = vsel %vm1080, %v6639, %v6640
        %v6650 = vsel %vm1459, %v6626, %v6649
        %v6651 = vsel %vm1459, %v6628, %v6640
        %v6652 = vsel %vm1080, %v6641, %v6642
        %v6653 = vsel %vm1459, %v6630, %v6652
        %v6654 = vsel %vm1080, %v6642, %v6643
        %v6655 = vsel %vm1459, %v6632, %v6654
        %v6656 = vsel %vm1080, %v6643, %v6644
        %v6657 = vsel %vm1459, %v6634, %v6656
        %v6658 = vsel %vm1459, %v6636, %v6644
        %6667 = vst [vmem:[#allocation5 + $0xe0] sm:$0xff] %v6646
        %6668 = vst [vmem:[#allocation5 + $0xe8] sm:$0xff] %v6648
        %6669 = vst [vmem:[#allocation5 + $0xf0] sm:$0xff] %v6650
        %6670 = vst [vmem:[#allocation5 + $0xf8] sm:$0xf] %v6651
        %6671 = vst [vmem:[#allocation5 + $0xfc] sm:$0xff] %v6653
        %6672 = vst [vmem:[#allocation5 + $0x104] sm:$0xff] %v6655
        %6673 = vst [vmem:[#allocation5 + $0x10c] sm:$0xff] %v6657
        %6674 = vst [vmem:[#allocation5 + $0x114] sm:$0xf] %v6658
        %6675 = vrot.lane.b32.xlu0 %v6459, 127
        %v6676 = vpop.permute.xlu0 %6675
        %6677 = vrot.lane.b32.xlu0 %v6466, 127
        %v6678 = vpop.permute.xlu0 %6677
        %6679 = vrot.lane.b32.xlu0 %v6460, 127
        %v6680 = vpop.permute.xlu0 %6679
        %6681 = vrot.lane.b32.xlu0 %v6467, 127
        %v6682 = vpop.permute.xlu0 %6681
        %6683 = vrot.lane.b32.xlu0 %v6461, 127
        %v6684 = vpop.permute.xlu0 %6683
        %6685 = vrot.lane.b32.xlu0 %v6468, 127
        %v6686 = vpop.permute.xlu0 %6685
        %6687 = vrot.lane.b32.xlu0 %v6462, 127
        %v6688 = vpop.permute.xlu0 %6687
        %6689 = vrot.lane.b32.xlu0 %v6469, 127
        %v6690 = vpop.permute.xlu0 %6689
        %6691 = vrot.lane.b32.xlu0 %v6463, 127
        %v6692 = vpop.permute.xlu0 %6691
        %6693 = vrot.lane.b32.xlu0 %v6470, 127
        %v6694 = vpop.permute.xlu0 %6693
        %6695 = vrot.lane.b32.xlu0 %v6464, 127
        %v6696 = vpop.permute.xlu0 %6695
        %6697 = vrot.lane.b32.xlu0 %v6471, 127
        %v6698 = vpop.permute.xlu0 %6697
        %6699 = vrot.lane.b32.xlu0 %v6465, 127
        %v6700 = vpop.permute.xlu0 %6699
        %6701 = vrot.lane.b32.xlu0 %v6472, 127
        %v6702 = vpop.permute.xlu0 %6701
        %v6703 = vsel %vm1140, %v6696, %v6700
        %v6704 = vsel %vm1140, %v6698, %v6702
        %v6705 = vsel %vm1140, %v6692, %v6696
        %v6706 = vsel %vm1140, %v6694, %v6698
        %v6707 = vsel %vm1140, %v6688, %v6692
        %v6708 = vsel %vm1140, %v6690, %v6694
        %v6709 = vsel %vm1140, %v6684, %v6688
        %v6710 = vsel %vm1140, %v6686, %v6690
        %v6711 = vsel %vm1140, %v6680, %v6684
        %v6712 = vsel %vm1140, %v6682, %v6686
        %v6713 = vsel %vm1140, %v6676, %v6680
        %v6714 = vsel %vm1140, %v6678, %v6682
        %v6715 = vsel %vm1140, %v6700, %v6676
        %v6716 = vsel %vm1140, %v6702, %v6678
        %v6717 = vpack.c.bf16 %v6714, %v6713
        %v6718 = vpack.c.bf16 %v6712, %v6711
        %v6719 = vpack.c.bf16 %v6710, %v6709
        %v6720 = vpack.c.bf16 %v6708, %v6707
        %v6721 = vpack.c.bf16 %v6706, %v6705
        %v6722 = vpack.c.bf16 %v6704, %v6703
        %v6723 = vpack.c.bf16 %v6716, %v6715
        %v6731 = vunpack.c.l.b16 %v6717
        %v6732 = vunpack.c.l.b16 %v6718
        %v6733 = vunpack.c.l.b16 %v6719
        %v6734 = vunpack.c.l.b16 %v6720
        %v6735 = vunpack.c.l.b16 %v6721
        %v6736 = vunpack.c.l.b16 %v6722
        %v6737 = vunpack.c.l.b16 %v6723
        %v6738 = vunpack.c.h.b16 %v6717
        %v6739 = vunpack.c.h.b16 %v6718
        %v6740 = vunpack.c.h.b16 %v6719
        %v6741 = vunpack.c.h.b16 %v6720
        %v6742 = vunpack.c.h.b16 %v6721
        %v6743 = vunpack.c.h.b16 %v6722
        %v6744 = vunpack.c.h.b16 %v6723
        %v6745 = vpack.c.b16 %v6732, %v6731
        %v6746 = vpack.c.b16 %v6734, %v6733
        %v6747 = vpack.c.b16 %v6736, %v6735
        %v6748 = vpack.c.b16 %v6737, %v6737
        %v6749 = vpack.c.b16 %v6739, %v6738
        %v6750 = vpack.c.b16 %v6741, %v6740
        %v6751 = vpack.c.b16 %v6743, %v6742
        %v6752 = vpack.c.b16 %v6744, %v6744
        %6761 = vst [vmem:[#allocation5 + $0x118] sm:$0xff] %v6745
        %6762 = vst [vmem:[#allocation5 + $0x120] sm:$0xff] %v6746
        %6763 = vst [vmem:[#allocation5 + $0x128] sm:$0xff] %v6747
        %6764 = vst [vmem:[#allocation5 + $0x130] sm:$0xf] %v6748
        %6765 = vst [vmem:[#allocation5 + $0x134] sm:$0xff] %v6749
        %6766 = vst [vmem:[#allocation5 + $0x13c] sm:$0xff] %v6750
        %6767 = vst [vmem:[#allocation5 + $0x144] sm:$0xff] %v6751
        %6768 = vst [vmem:[#allocation5 + $0x14c] sm:$0xf] %v6752
        %v6769 = vld [vmem:[#allocation3] sm:$0xff]
        %v6770 = vld [vmem:[#allocation3 + $0x8] sm:$0xff]
        %v6771 = vld [vmem:[#allocation3 + $0x10] sm:$0xff]
        %v6772 = vld [vmem:[#allocation3 + $0x18] sm:$0xff]
        %v6773 = vld [vmem:[#allocation3 + $0x20] sm:$0xff]
        %v6774 = vld [vmem:[#allocation3 + $0x28] sm:$0xff]
        %v6775 = vld [vmem:[#allocation3 + $0x30] sm:$0xff]
        %v6776 = vld [vmem:[#allocation3 + $0x38] sm:$0xff]
        %v6777 = vld [vmem:[#allocation3 + $0x48] sm:$0xff]
        %v6778 = vld [vmem:[#allocation3 + $0x50] sm:$0xff]
        %v6779 = vld [vmem:[#allocation3 + $0x58] sm:$0xff]
        %v6780 = vld [vmem:[#allocation3 + $0x60] sm:$0xff]
        %v6781 = vld [vmem:[#allocation3 + $0x68] sm:$0xff]
        %v6782 = vld [vmem:[#allocation3 + $0x70] sm:$0xff]
        %v6783 = vld [vmem:[#allocation3 + $0x78] sm:$0xff]
        %v6784 = vld [vmem:[#allocation3 + $0x80] sm:$0xff]
        %6801 = vrot.lane.b32.xlu0 %v6769, 90
        %v6802 = vpop.permute.xlu0 %6801
        %6803 = vrot.lane.b32.xlu0 %v6770, 90
        %v6804 = vpop.permute.xlu0 %6803
        %6805 = vrot.lane.b32.xlu0 %v6771, 90
        %v6806 = vpop.permute.xlu0 %6805
        %6807 = vrot.lane.b32.xlu0 %v6772, 90
        %v6808 = vpop.permute.xlu0 %6807
        %6809 = vrot.lane.b32.xlu0 %v6773, 90
        %v6810 = vpop.permute.xlu0 %6809
        %6811 = vrot.lane.b32.xlu0 %v6774, 90
        %v6812 = vpop.permute.xlu0 %6811
        %6813 = vrot.lane.b32.xlu0 %v6775, 90
        %v6814 = vpop.permute.xlu0 %6813
        %6815 = vrot.lane.b32.xlu0 %v6776, 90
        %v6816 = vpop.permute.xlu0 %6815
        %6817 = vrot.lane.b32.xlu0 %v6777, 90
        %v6818 = vpop.permute.xlu0 %6817
        %6819 = vrot.lane.b32.xlu0 %v6778, 90
        %v6820 = vpop.permute.xlu0 %6819
        %6821 = vrot.lane.b32.xlu0 %v6779, 90
        %v6822 = vpop.permute.xlu0 %6821
        %6823 = vrot.lane.b32.xlu0 %v6780, 90
        %v6824 = vpop.permute.xlu0 %6823
        %6825 = vrot.lane.b32.xlu0 %v6781, 90
        %v6826 = vpop.permute.xlu0 %6825
        %6827 = vrot.lane.b32.xlu0 %v6782, 90
        %v6828 = vpop.permute.xlu0 %6827
        %6829 = vrot.lane.b32.xlu0 %v6783, 90
        %v6830 = vpop.permute.xlu0 %6829
        %6831 = vrot.lane.b32.xlu0 %v6784, 90
        %v6832 = vpop.permute.xlu0 %6831
        %v6833 = vsel %vm1647, %v6802, %v6804
        %v6834 = vsel %vm1647, %v6804, %v6806
        %v6835 = vsel %vm1647, %v6806, %v6808
        %v6836 = vsel %vm1647, %v6808, %v6810
        %v6837 = vsel %vm1647, %v6810, %v6812
        %v6838 = vsel %vm1647, %v6812, %v6814
        %v6839 = vsel %vm1647, %v6814, %v6816
        %v6840 = vsel %vm1647, %v6818, %v6820
        %v6841 = vsel %vm1647, %v6820, %v6822
        %v6842 = vsel %vm1647, %v6822, %v6824
        %v6843 = vsel %vm1647, %v6824, %v6826
        %v6844 = vsel %vm1647, %v6826, %v6828
        %v6845 = vsel %vm1647, %v6828, %v6830
        %v6846 = vsel %vm1647, %v6830, %v6832
        %6861 = vrot.lane.b32.xlu0 %v6833, 1
        %v6862 = vpop.permute.xlu0 %6861
        %6863 = vrot.lane.b32.xlu0 %v6840, 1
        %v6864 = vpop.permute.xlu0 %6863
        %6865 = vrot.lane.b32.xlu0 %v6834, 1
        %v6866 = vpop.permute.xlu0 %6865
        %6867 = vrot.lane.b32.xlu0 %v6841, 1
        %v6868 = vpop.permute.xlu0 %6867
        %6869 = vrot.lane.b32.xlu0 %v6835, 1
        %v6870 = vpop.permute.xlu0 %6869
        %6871 = vrot.lane.b32.xlu0 %v6842, 1
        %v6872 = vpop.permute.xlu0 %6871
        %6873 = vrot.lane.b32.xlu0 %v6836, 1
        %v6874 = vpop.permute.xlu0 %6873
        %6875 = vrot.lane.b32.xlu0 %v6843, 1
        %v6876 = vpop.permute.xlu0 %6875
        %6877 = vrot.lane.b32.xlu0 %v6837, 1
        %v6878 = vpop.permute.xlu0 %6877
        %6879 = vrot.lane.b32.xlu0 %v6844, 1
        %v6880 = vpop.permute.xlu0 %6879
        %6881 = vrot.lane.b32.xlu0 %v6838, 1
        %v6882 = vpop.permute.xlu0 %6881
        %6883 = vrot.lane.b32.xlu0 %v6845, 1
        %v6884 = vpop.permute.xlu0 %6883
        %6885 = vrot.lane.b32.xlu0 %v6839, 1
        %v6886 = vpop.permute.xlu0 %6885
        %6887 = vrot.lane.b32.xlu0 %v6846, 1
        %v6888 = vpop.permute.xlu0 %6887
        %v6889 = vsel %vm949, %v6882, %v6886
        %v6890 = vsel %vm949, %v6884, %v6888
        %v6891 = vsel %vm949, %v6878, %v6882
        %v6892 = vsel %vm949, %v6880, %v6884
        %v6893 = vsel %vm949, %v6874, %v6878
        %v6894 = vsel %vm949, %v6876, %v6880
        %v6895 = vsel %vm949, %v6870, %v6874
        %v6896 = vsel %vm949, %v6872, %v6876
        %v6897 = vsel %vm949, %v6866, %v6870
        %v6898 = vsel %vm949, %v6868, %v6872
        %v6899 = vsel %vm949, %v6862, %v6866
        %v6900 = vsel %vm949, %v6864, %v6868
        %v6901 = vsel %vm949, %v6886, %v6862
        %v6902 = vsel %vm949, %v6888, %v6864
        %v6903 = vpack.c.bf16 %v6902, %v6901
        %v6904 = vpack.c.bf16 %v6900, %v6899
        %v6905 = vpack.c.bf16 %v6898, %v6897
        %v6906 = vpack.c.bf16 %v6896, %v6895
        %v6907 = vpack.c.bf16 %v6894, %v6893
        %v6908 = vpack.c.bf16 %v6892, %v6891
        %v6909 = vpack.c.bf16 %v6890, %v6889
        %v6917 = vunpack.c.l.b16 %v6903
        %v6918 = vunpack.c.l.b16 %v6904
        %v6919 = vunpack.c.l.b16 %v6905
        %v6920 = vunpack.c.l.b16 %v6906
        %v6921 = vunpack.c.l.b16 %v6907
        %v6922 = vunpack.c.l.b16 %v6908
        %v6923 = vunpack.c.l.b16 %v6909
        %v6924 = vunpack.c.h.b16 %v6903
        %v6925 = vunpack.c.h.b16 %v6904
        %v6926 = vunpack.c.h.b16 %v6905
        %v6927 = vunpack.c.h.b16 %v6906
        %v6928 = vunpack.c.h.b16 %v6907
        %v6929 = vunpack.c.h.b16 %v6908
        %v6930 = vunpack.c.h.b16 %v6909
        %v6931 = vpack.c.b16 %v6918, %v6917
        %v6932 = vpack.c.b16 %v6920, %v6919
        %v6933 = vpack.c.b16 %v6922, %v6921
        %v6934 = vpack.c.b16 %v6923, %v6923
        %v6935 = vpack.c.b16 %v6925, %v6924
        %v6936 = vpack.c.b16 %v6927, %v6926
        %v6937 = vpack.c.b16 %v6929, %v6928
        %v6938 = vpack.c.b16 %v6930, %v6930
        %6947 = vst [vmem:[#allocation5 + $0x150] sm:$0xff] %v6931
        %6948 = vst [vmem:[#allocation5 + $0x158] sm:$0xff] %v6932
        %6949 = vst [vmem:[#allocation5 + $0x160] sm:$0xff] %v6933
        %6950 = vst [vmem:[#allocation5 + $0x168] sm:$0xf] %v6934
        %6951 = vst [vmem:[#allocation5 + $0x16c] sm:$0xff] %v6935
        %6952 = vst [vmem:[#allocation5 + $0x174] sm:$0xff] %v6936
        %6953 = vst [vmem:[#allocation5 + $0x17c] sm:$0xff] %v6937
        %6954 = vst [vmem:[#allocation5 + $0x184] sm:$0xf] %v6938
        %v6955 = vpack.c.bf16 %v6777, %v6769
        %v6956 = vpack.c.bf16 %v6778, %v6770
        %v6957 = vpack.c.bf16 %v6779, %v6771
        %v6958 = vpack.c.bf16 %v6780, %v6772
        %v6959 = vpack.c.bf16 %v6781, %v6773
        %v6960 = vpack.c.bf16 %v6782, %v6774
        %v6961 = vpack.c.bf16 %v6783, %v6775
        %v6962 = vpack.c.bf16 %v6784, %v6776
        %v6971 = vunpack.c.l.b16 %v6955
        %v6972 = vunpack.c.l.b16 %v6956
        %v6973 = vunpack.c.l.b16 %v6957
        %v6974 = vunpack.c.l.b16 %v6958
        %v6975 = vunpack.c.l.b16 %v6959
        %v6976 = vunpack.c.l.b16 %v6960
        %v6977 = vunpack.c.l.b16 %v6961
        %v6978 = vunpack.c.l.b16 %v6962
        %v6979 = vunpack.c.h.b16 %v6955
        %v6980 = vunpack.c.h.b16 %v6956
        %v6981 = vunpack.c.h.b16 %v6957
        %v6982 = vunpack.c.h.b16 %v6958
        %v6983 = vunpack.c.h.b16 %v6959
        %v6984 = vunpack.c.h.b16 %v6960
        %v6985 = vunpack.c.h.b16 %v6961
        %v6986 = vunpack.c.h.b16 %v6962
        %v6987 = vpack.c.b16 %v6972, %v6971
        %v6988 = vpack.c.b16 %v6974, %v6973
        %v6989 = vpack.c.b16 %v6976, %v6975
        %v6990 = vpack.c.b16 %v6978, %v6977
        %v6991 = vpack.c.b16 %v6980, %v6979
        %v6992 = vpack.c.b16 %v6982, %v6981
        %v6993 = vpack.c.b16 %v6984, %v6983
        %v6994 = vpack.c.b16 %v6986, %v6985
        %6995 = vrot.lane.b32.xlu0 %v6987, 90
        %v6996 = vpop.permute.xlu0 %6995
        %6997 = vrot.lane.b32.xlu0 %v6988, 90
        %v6998 = vpop.permute.xlu0 %6997
        %6999 = vrot.lane.b32.xlu0 %v6989, 90
        %v7000 = vpop.permute.xlu0 %6999
        %7001 = vrot.lane.b32.xlu0 %v6990, 90
        %v7002 = vpop.permute.xlu0 %7001
        %7003 = vrot.lane.b32.xlu0 %v6991, 90
        %v7004 = vpop.permute.xlu0 %7003
        %7005 = vrot.lane.b32.xlu0 %v6992, 90
        %v7006 = vpop.permute.xlu0 %7005
        %7007 = vrot.lane.b32.xlu0 %v6993, 90
        %v7008 = vpop.permute.xlu0 %7007
        %7009 = vrot.lane.b32.xlu0 %v6994, 90
        %v7010 = vpop.permute.xlu0 %7009
        %v7011 = vrot.slane %v6996, 4
        %v7012 = vrot.slane %v6998, 4
        %v7013 = vrot.slane %v7000, 4
        %v7014 = vrot.slane %v7002, 4
        %v7015 = vrot.slane %v7004, 4
        %v7016 = vrot.slane %v7006, 4
        %v7017 = vrot.slane %v7008, 4
        %v7018 = vrot.slane %v7010, 4
        %v7019 = vsel %vm1080, %v7011, %v7012
        %v7020 = vsel %vm1835, %v6996, %v7019
        %v7021 = vsel %vm1080, %v7012, %v7013
        %v7022 = vsel %vm1835, %v6998, %v7021
        %v7023 = vsel %vm1080, %v7013, %v7014
        %v7024 = vsel %vm1835, %v7000, %v7023
        %v7025 = vsel %vm1835, %v7002, %v7014
        %v7026 = vsel %vm1080, %v7015, %v7016
        %v7027 = vsel %vm1835, %v7004, %v7026
        %v7028 = vsel %vm1080, %v7016, %v7017
        %v7029 = vsel %vm1835, %v7006, %v7028
        %v7030 = vsel %vm1080, %v7017, %v7018
        %v7031 = vsel %vm1835, %v7008, %v7030
        %v7032 = vsel %vm1835, %v7010, %v7018
        %7041 = vst [vmem:[#allocation5 + $0x188] sm:$0xff] %v7020
        %7042 = vst [vmem:[#allocation5 + $0x190] sm:$0xff] %v7022
        %7043 = vst [vmem:[#allocation5 + $0x198] sm:$0xff] %v7024
        %7044 = vst [vmem:[#allocation5 + $0x1a0] sm:$0xf] %v7025
        %7045 = vst [vmem:[#allocation5 + $0x1a4] sm:$0xff] %v7027
        %7046 = vst [vmem:[#allocation5 + $0x1ac] sm:$0xff] %v7029
        %7047 = vst [vmem:[#allocation5 + $0x1b4] sm:$0xff] %v7031
        %7048 = vst [vmem:[#allocation5 + $0x1bc] sm:$0xf] %v7032
        %7049 = vrot.lane.b32.xlu0 %v6833, 127
        %v7050 = vpop.permute.xlu0 %7049
        %7051 = vrot.lane.b32.xlu0 %v6840, 127
        %v7052 = vpop.permute.xlu0 %7051
        %7053 = vrot.lane.b32.xlu0 %v6834, 127
        %v7054 = vpop.permute.xlu0 %7053
        %7055 = vrot.lane.b32.xlu0 %v6841, 127
        %v7056 = vpop.permute.xlu0 %7055
        %7057 = vrot.lane.b32.xlu0 %v6835, 127
        %v7058 = vpop.permute.xlu0 %7057
        %7059 = vrot.lane.b32.xlu0 %v6842, 127
        %v7060 = vpop.permute.xlu0 %7059
        %7061 = vrot.lane.b32.xlu0 %v6836, 127
        %v7062 = vpop.permute.xlu0 %7061
        %7063 = vrot.lane.b32.xlu0 %v6843, 127
        %v7064 = vpop.permute.xlu0 %7063
        %7065 = vrot.lane.b32.xlu0 %v6837, 127
        %v7066 = vpop.permute.xlu0 %7065
        %7067 = vrot.lane.b32.xlu0 %v6844, 127
        %v7068 = vpop.permute.xlu0 %7067
        %7069 = vrot.lane.b32.xlu0 %v6838, 127
        %v7070 = vpop.permute.xlu0 %7069
        %7071 = vrot.lane.b32.xlu0 %v6845, 127
        %v7072 = vpop.permute.xlu0 %7071
        %7073 = vrot.lane.b32.xlu0 %v6839, 127
        %v7074 = vpop.permute.xlu0 %7073
        %7075 = vrot.lane.b32.xlu0 %v6846, 127
        %v7076 = vpop.permute.xlu0 %7075
        %v7077 = vsel %vm1140, %v7070, %v7074
        %v7078 = vsel %vm1140, %v7072, %v7076
        %v7079 = vsel %vm1140, %v7066, %v7070
        %v7080 = vsel %vm1140, %v7068, %v7072
        %v7081 = vsel %vm1140, %v7062, %v7066
        %v7082 = vsel %vm1140, %v7064, %v7068
        %v7083 = vsel %vm1140, %v7058, %v7062
        %v7084 = vsel %vm1140, %v7060, %v7064
        %v7085 = vsel %vm1140, %v7054, %v7058
        %v7086 = vsel %vm1140, %v7056, %v7060
        %v7087 = vsel %vm1140, %v7050, %v7054
        %v7088 = vsel %vm1140, %v7052, %v7056
        %v7089 = vsel %vm1140, %v7074, %v7050
        %v7090 = vsel %vm1140, %v7076, %v7052
        %v7091 = vpack.c.bf16 %v7088, %v7087
        %v7092 = vpack.c.bf16 %v7086, %v7085
        %v7093 = vpack.c.bf16 %v7084, %v7083
        %v7094 = vpack.c.bf16 %v7082, %v7081
        %v7095 = vpack.c.bf16 %v7080, %v7079
        %v7096 = vpack.c.bf16 %v7078, %v7077
        %v7097 = vpack.c.bf16 %v7090, %v7089
        %v7105 = vunpack.c.l.b16 %v7091
        %v7106 = vunpack.c.l.b16 %v7092
        %v7107 = vunpack.c.l.b16 %v7093
        %v7108 = vunpack.c.l.b16 %v7094
        %v7109 = vunpack.c.l.b16 %v7095
        %v7110 = vunpack.c.l.b16 %v7096
        %v7111 = vunpack.c.l.b16 %v7097
        %v7112 = vunpack.c.h.b16 %v7091
        %v7113 = vunpack.c.h.b16 %v7092
        %v7114 = vunpack.c.h.b16 %v7093
        %v7115 = vunpack.c.h.b16 %v7094
        %v7116 = vunpack.c.h.b16 %v7095
        %v7117 = vunpack.c.h.b16 %v7096
        %v7118 = vunpack.c.h.b16 %v7097
        %v7119 = vpack.c.b16 %v7106, %v7105
        %v7120 = vpack.c.b16 %v7108, %v7107
        %v7121 = vpack.c.b16 %v7110, %v7109
        %v7122 = vpack.c.b16 %v7111, %v7111
        %v7123 = vpack.c.b16 %v7113, %v7112
        %v7124 = vpack.c.b16 %v7115, %v7114
        %v7125 = vpack.c.b16 %v7117, %v7116
        %v7126 = vpack.c.b16 %v7118, %v7118
        %7135 = vst [vmem:[#allocation5 + $0x1c0] sm:$0xff] %v7119
        %7136 = vst [vmem:[#allocation5 + $0x1c8] sm:$0xff] %v7120
        %7137 = vst [vmem:[#allocation5 + $0x1d0] sm:$0xff] %v7121
        %7138 = vst [vmem:[#allocation5 + $0x1d8] sm:$0xf] %v7122
        %7139 = vst [vmem:[#allocation5 + $0x1dc] sm:$0xff] %v7123
        %7140 = vst [vmem:[#allocation5 + $0x1e4] sm:$0xff] %v7124
        %7141 = vst [vmem:[#allocation5 + $0x1ec] sm:$0xff] %v7125
        %7142 = vst [vmem:[#allocation5 + $0x1f4] sm:$0xf] %v7126
        %v7143 = vld [vmem:[#allocation3] sm:$0xff]
        %v7144 = vld [vmem:[#allocation3 + $0x8] sm:$0xff]
        %v7145 = vld [vmem:[#allocation3 + $0x10] sm:$0xff]
        %v7146 = vld [vmem:[#allocation3 + $0x18] sm:$0xff]
        %v7147 = vld [vmem:[#allocation3 + $0x20] sm:$0xff]
        %v7148 = vld [vmem:[#allocation3 + $0x28] sm:$0xff]
        %v7149 = vld [vmem:[#allocation3 + $0x30] sm:$0xff]
        %v7150 = vld [vmem:[#allocation3 + $0x38] sm:$0xff]
        %v7151 = vld [vmem:[#allocation3 + $0x48] sm:$0xff]
        %v7152 = vld [vmem:[#allocation3 + $0x50] sm:$0xff]
        %v7153 = vld [vmem:[#allocation3 + $0x58] sm:$0xff]
        %v7154 = vld [vmem:[#allocation3 + $0x60] sm:$0xff]
        %v7155 = vld [vmem:[#allocation3 + $0x68] sm:$0xff]
        %v7156 = vld [vmem:[#allocation3 + $0x70] sm:$0xff]
        %v7157 = vld [vmem:[#allocation3 + $0x78] sm:$0xff]
        %v7158 = vld [vmem:[#allocation3 + $0x80] sm:$0xff]
        %7175 = vrot.lane.b32.xlu0 %v7143, 10
        %v7176 = vpop.permute.xlu0 %7175
        %7177 = vrot.lane.b32.xlu0 %v7144, 10
        %v7178 = vpop.permute.xlu0 %7177
        %7179 = vrot.lane.b32.xlu0 %v7145, 10
        %v7180 = vpop.permute.xlu0 %7179
        %7181 = vrot.lane.b32.xlu0 %v7146, 10
        %v7182 = vpop.permute.xlu0 %7181
        %7183 = vrot.lane.b32.xlu0 %v7147, 10
        %v7184 = vpop.permute.xlu0 %7183
        %7185 = vrot.lane.b32.xlu0 %v7148, 10
        %v7186 = vpop.permute.xlu0 %7185
        %7187 = vrot.lane.b32.xlu0 %v7149, 10
        %v7188 = vpop.permute.xlu0 %7187
        %7189 = vrot.lane.b32.xlu0 %v7150, 10
        %v7190 = vpop.permute.xlu0 %7189
        %7191 = vrot.lane.b32.xlu0 %v7151, 10
        %v7192 = vpop.permute.xlu0 %7191
        %7193 = vrot.lane.b32.xlu0 %v7152, 10
        %v7194 = vpop.permute.xlu0 %7193
        %7195 = vrot.lane.b32.xlu0 %v7153, 10
        %v7196 = vpop.permute.xlu0 %7195
        %7197 = vrot.lane.b32.xlu0 %v7154, 10
        %v7198 = vpop.permute.xlu0 %7197
        %7199 = vrot.lane.b32.xlu0 %v7155, 10
        %v7200 = vpop.permute.xlu0 %7199
        %7201 = vrot.lane.b32.xlu0 %v7156, 10
        %v7202 = vpop.permute.xlu0 %7201
        %7203 = vrot.lane.b32.xlu0 %v7157, 10
        %v7204 = vpop.permute.xlu0 %7203
        %7205 = vrot.lane.b32.xlu0 %v7158, 10
        %v7206 = vpop.permute.xlu0 %7205
        %v7207 = vsel %vm2023, %v7176, %v7178
        %v7208 = vsel %vm2023, %v7178, %v7180
        %v7209 = vsel %vm2023, %v7180, %v7182
        %v7210 = vsel %vm2023, %v7182, %v7184
        %v7211 = vsel %vm2023, %v7184, %v7186
        %v7212 = vsel %vm2023, %v7186, %v7188
        %v7213 = vsel %vm2023, %v7188, %v7190
        %v7214 = vsel %vm2023, %v7192, %v7194
        %v7215 = vsel %vm2023, %v7194, %v7196
        %v7216 = vsel %vm2023, %v7196, %v7198
        %v7217 = vsel %vm2023, %v7198, %v7200
        %v7218 = vsel %vm2023, %v7200, %v7202
        %v7219 = vsel %vm2023, %v7202, %v7204
        %v7220 = vsel %vm2023, %v7204, %v7206
        %7235 = vrot.lane.b32.xlu0 %v7207, 1
        %v7236 = vpop.permute.xlu0 %7235
        %7237 = vrot.lane.b32.xlu0 %v7214, 1
        %v7238 = vpop.permute.xlu0 %7237
        %7239 = vrot.lane.b32.xlu0 %v7208, 1
        %v7240 = vpop.permute.xlu0 %7239
        %7241 = vrot.lane.b32.xlu0 %v7215, 1
        %v7242 = vpop.permute.xlu0 %7241
        %7243 = vrot.lane.b32.xlu0 %v7209, 1
        %v7244 = vpop.permute.xlu0 %7243
        %7245 = vrot.lane.b32.xlu0 %v7216, 1
        %v7246 = vpop.permute.xlu0 %7245
        %7247 = vrot.lane.b32.xlu0 %v7210, 1
        %v7248 = vpop.permute.xlu0 %7247
        %7249 = vrot.lane.b32.xlu0 %v7217, 1
        %v7250 = vpop.permute.xlu0 %7249
        %7251 = vrot.lane.b32.xlu0 %v7211, 1
        %v7252 = vpop.permute.xlu0 %7251
        %7253 = vrot.lane.b32.xlu0 %v7218, 1
        %v7254 = vpop.permute.xlu0 %7253
        %7255 = vrot.lane.b32.xlu0 %v7212, 1
        %v7256 = vpop.permute.xlu0 %7255
        %7257 = vrot.lane.b32.xlu0 %v7219, 1
        %v7258 = vpop.permute.xlu0 %7257
        %7259 = vrot.lane.b32.xlu0 %v7213, 1
        %v7260 = vpop.permute.xlu0 %7259
        %7261 = vrot.lane.b32.xlu0 %v7220, 1
        %v7262 = vpop.permute.xlu0 %7261
        %v7263 = vsel %vm949, %v7256, %v7260
        %v7264 = vsel %vm949, %v7258, %v7262
        %v7265 = vsel %vm949, %v7252, %v7256
        %v7266 = vsel %vm949, %v7254, %v7258
        %v7267 = vsel %vm949, %v7248, %v7252
        %v7268 = vsel %vm949, %v7250, %v7254
        %v7269 = vsel %vm949, %v7244, %v7248
        %v7270 = vsel %vm949, %v7246, %v7250
        %v7271 = vsel %vm949, %v7240, %v7244
        %v7272 = vsel %vm949, %v7242, %v7246
        %v7273 = vsel %vm949, %v7236, %v7240
        %v7274 = vsel %vm949, %v7238, %v7242
        %v7275 = vsel %vm949, %v7260, %v7236
        %v7276 = vsel %vm949, %v7262, %v7238
        %v7277 = vpack.c.bf16 %v7276, %v7275
        %v7278 = vpack.c.bf16 %v7274, %v7273
        %v7279 = vpack.c.bf16 %v7272, %v7271
        %v7280 = vpack.c.bf16 %v7270, %v7269
        %v7281 = vpack.c.bf16 %v7268, %v7267
        %v7282 = vpack.c.bf16 %v7266, %v7265
        %v7283 = vpack.c.bf16 %v7264, %v7263
        %v7291 = vunpack.c.l.b16 %v7277
        %v7292 = vunpack.c.l.b16 %v7278
        %v7293 = vunpack.c.l.b16 %v7279
        %v7294 = vunpack.c.l.b16 %v7280
        %v7295 = vunpack.c.l.b16 %v7281
        %v7296 = vunpack.c.l.b16 %v7282
        %v7297 = vunpack.c.l.b16 %v7283
        %v7298 = vunpack.c.h.b16 %v7277
        %v7299 = vunpack.c.h.b16 %v7278
        %v7300 = vunpack.c.h.b16 %v7279
        %v7301 = vunpack.c.h.b16 %v7280
        %v7302 = vunpack.c.h.b16 %v7281
        %v7303 = vunpack.c.h.b16 %v7282
        %v7304 = vunpack.c.h.b16 %v7283
        %v7305 = vpack.c.b16 %v7292, %v7291
        %v7306 = vpack.c.b16 %v7294, %v7293
        %v7307 = vpack.c.b16 %v7296, %v7295
        %v7308 = vpack.c.b16 %v7297, %v7297
        %v7309 = vpack.c.b16 %v7299, %v7298
        %v7310 = vpack.c.b16 %v7301, %v7300
        %v7311 = vpack.c.b16 %v7303, %v7302
        %v7312 = vpack.c.b16 %v7304, %v7304
        %7321 = vst [vmem:[#allocation5 + $0x1f8] sm:$0xff] %v7305
        %7322 = vst [vmem:[#allocation5 + $0x200] sm:$0xff] %v7306
        %7323 = vst [vmem:[#allocation5 + $0x208] sm:$0xff] %v7307
        %7324 = vst [vmem:[#allocation5 + $0x210] sm:$0xf] %v7308
        %7325 = vst [vmem:[#allocation5 + $0x214] sm:$0xff] %v7309
        %7326 = vst [vmem:[#allocation5 + $0x21c] sm:$0xff] %v7310
        %7327 = vst [vmem:[#allocation5 + $0x224] sm:$0xff] %v7311
        %7328 = vst [vmem:[#allocation5 + $0x22c] sm:$0xf] %v7312
        %v7329 = vpack.c.bf16 %v7151, %v7143
        %v7330 = vpack.c.bf16 %v7152, %v7144
        %v7331 = vpack.c.bf16 %v7153, %v7145
        %v7332 = vpack.c.bf16 %v7154, %v7146
        %v7333 = vpack.c.bf16 %v7155, %v7147
        %v7334 = vpack.c.bf16 %v7156, %v7148
        %v7335 = vpack.c.bf16 %v7157, %v7149
        %v7336 = vpack.c.bf16 %v7158, %v7150
        %v7345 = vunpack.c.l.b16 %v7329
        %v7346 = vunpack.c.l.b16 %v7330
        %v7347 = vunpack.c.l.b16 %v7331
        %v7348 = vunpack.c.l.b16 %v7332
        %v7349 = vunpack.c.l.b16 %v7333
        %v7350 = vunpack.c.l.b16 %v7334
        %v7351 = vunpack.c.l.b16 %v7335
        %v7352 = vunpack.c.l.b16 %v7336
        %v7353 = vunpack.c.h.b16 %v7329
        %v7354 = vunpack.c.h.b16 %v7330
        %v7355 = vunpack.c.h.b16 %v7331
        %v7356 = vunpack.c.h.b16 %v7332
        %v7357 = vunpack.c.h.b16 %v7333
        %v7358 = vunpack.c.h.b16 %v7334
        %v7359 = vunpack.c.h.b16 %v7335
        %v7360 = vunpack.c.h.b16 %v7336
        %v7361 = vpack.c.b16 %v7346, %v7345
        %v7362 = vpack.c.b16 %v7348, %v7347
        %v7363 = vpack.c.b16 %v7350, %v7349
        %v7364 = vpack.c.b16 %v7352, %v7351
        %v7365 = vpack.c.b16 %v7354, %v7353
        %v7366 = vpack.c.b16 %v7356, %v7355
        %v7367 = vpack.c.b16 %v7358, %v7357
        %v7368 = vpack.c.b16 %v7360, %v7359
        %7369 = vrot.lane.b32.xlu0 %v7361, 10
        %v7370 = vpop.permute.xlu0 %7369
        %7371 = vrot.lane.b32.xlu0 %v7362, 10
        %v7372 = vpop.permute.xlu0 %7371
        %7373 = vrot.lane.b32.xlu0 %v7363, 10
        %v7374 = vpop.permute.xlu0 %7373
        %7375 = vrot.lane.b32.xlu0 %v7364, 10
        %v7376 = vpop.permute.xlu0 %7375
        %7377 = vrot.lane.b32.xlu0 %v7365, 10
        %v7378 = vpop.permute.xlu0 %7377
        %7379 = vrot.lane.b32.xlu0 %v7366, 10
        %v7380 = vpop.permute.xlu0 %7379
        %7381 = vrot.lane.b32.xlu0 %v7367, 10
        %v7382 = vpop.permute.xlu0 %7381
        %7383 = vrot.lane.b32.xlu0 %v7368, 10
        %v7384 = vpop.permute.xlu0 %7383
        %v7385 = vrot.slane %v7370, 4
        %v7386 = vrot.slane %v7372, 4
        %v7387 = vrot.slane %v7374, 4
        %v7388 = vrot.slane %v7376, 4
        %v7389 = vrot.slane %v7378, 4
        %v7390 = vrot.slane %v7380, 4
        %v7391 = vrot.slane %v7382, 4
        %v7392 = vrot.slane %v7384, 4
        %v7393 = vsel %vm1080, %v7385, %v7386
        %v7394 = vsel %vm2211, %v7370, %v7393
        %v7395 = vsel %vm1080, %v7386, %v7387
        %v7396 = vsel %vm2211, %v7372, %v7395
        %v7397 = vsel %vm1080, %v7387, %v7388
        %v7398 = vsel %vm2211, %v7374, %v7397
        %v7399 = vsel %vm2211, %v7376, %v7388
        %v7400 = vsel %vm1080, %v7389, %v7390
        %v7401 = vsel %vm2211, %v7378, %v7400
        %v7402 = vsel %vm1080, %v7390, %v7391
        %v7403 = vsel %vm2211, %v7380, %v7402
        %v7404 = vsel %vm1080, %v7391, %v7392
        %v7405 = vsel %vm2211, %v7382, %v7404
        %v7406 = vsel %vm2211, %v7384, %v7392
        %7415 = vst [vmem:[#allocation5 + $0x230] sm:$0xff] %v7394
        %7416 = vst [vmem:[#allocation5 + $0x238] sm:$0xff] %v7396
        %7417 = vst [vmem:[#allocation5 + $0x240] sm:$0xff] %v7398
        %7418 = vst [vmem:[#allocation5 + $0x248] sm:$0xf] %v7399
        %7419 = vst [vmem:[#allocation5 + $0x24c] sm:$0xff] %v7401
        %7420 = vst [vmem:[#allocation5 + $0x254] sm:$0xff] %v7403
        %7421 = vst [vmem:[#allocation5 + $0x25c] sm:$0xff] %v7405
        %7422 = vst [vmem:[#allocation5 + $0x264] sm:$0xf] %v7406
        %7423 = vrot.lane.b32.xlu0 %v7207, 127
        %v7424 = vpop.permute.xlu0 %7423
        %7425 = vrot.lane.b32.xlu0 %v7214, 127
        %v7426 = vpop.permute.xlu0 %7425
        %7427 = vrot.lane.b32.xlu0 %v7208, 127
        %v7428 = vpop.permute.xlu0 %7427
        %7429 = vrot.lane.b32.xlu0 %v7215, 127
        %v7430 = vpop.permute.xlu0 %7429
        %7431 = vrot.lane.b32.xlu0 %v7209, 127
        %v7432 = vpop.permute.xlu0 %7431
        %7433 = vrot.lane.b32.xlu0 %v7216, 127
        %v7434 = vpop.permute.xlu0 %7433
        %7435 = vrot.lane.b32.xlu0 %v7210, 127
        %v7436 = vpop.permute.xlu0 %7435
        %7437 = vrot.lane.b32.xlu0 %v7217, 127
        %v7438 = vpop.permute.xlu0 %7437
        %7439 = vrot.lane.b32.xlu0 %v7211, 127
        %v7440 = vpop.permute.xlu0 %7439
        %7441 = vrot.lane.b32.xlu0 %v7218, 127
        %v7442 = vpop.permute.xlu0 %7441
        %7443 = vrot.lane.b32.xlu0 %v7212, 127
        %v7444 = vpop.permute.xlu0 %7443
        %7445 = vrot.lane.b32.xlu0 %v7219, 127
        %v7446 = vpop.permute.xlu0 %7445
        %7447 = vrot.lane.b32.xlu0 %v7213, 127
        %v7448 = vpop.permute.xlu0 %7447
        %7449 = vrot.lane.b32.xlu0 %v7220, 127
        %v7450 = vpop.permute.xlu0 %7449
        %v7451 = vsel %vm1140, %v7444, %v7448
        %v7452 = vsel %vm1140, %v7446, %v7450
        %v7453 = vsel %vm1140, %v7440, %v7444
        %v7454 = vsel %vm1140, %v7442, %v7446
        %v7455 = vsel %vm1140, %v7436, %v7440
        %v7456 = vsel %vm1140, %v7438, %v7442
        %v7457 = vsel %vm1140, %v7432, %v7436
        %v7458 = vsel %vm1140, %v7434, %v7438
        %v7459 = vsel %vm1140, %v7428, %v7432
        %v7460 = vsel %vm1140, %v7430, %v7434
        %v7461 = vsel %vm1140, %v7424, %v7428
        %v7462 = vsel %vm1140, %v7426, %v7430
        %v7463 = vsel %vm1140, %v7448, %v7424
        %v7464 = vsel %vm1140, %v7450, %v7426
        %v7465 = vpack.c.bf16 %v7462, %v7461
        %v7466 = vpack.c.bf16 %v7460, %v7459
        %v7467 = vpack.c.bf16 %v7458, %v7457
        %v7468 = vpack.c.bf16 %v7456, %v7455
        %v7469 = vpack.c.bf16 %v7454, %v7453
        %v7470 = vpack.c.bf16 %v7452, %v7451
        %v7471 = vpack.c.bf16 %v7464, %v7463
        %v7479 = vunpack.c.l.b16 %v7465
        %v7480 = vunpack.c.l.b16 %v7466
        %v7481 = vunpack.c.l.b16 %v7467
        %v7482 = vunpack.c.l.b16 %v7468
        %v7483 = vunpack.c.l.b16 %v7469
        %v7484 = vunpack.c.l.b16 %v7470
        %v7485 = vunpack.c.l.b16 %v7471
        %v7486 = vunpack.c.h.b16 %v7465
        %v7487 = vunpack.c.h.b16 %v7466
        %v7488 = vunpack.c.h.b16 %v7467
        %v7489 = vunpack.c.h.b16 %v7468
        %v7490 = vunpack.c.h.b16 %v7469
        %v7491 = vunpack.c.h.b16 %v7470
        %v7492 = vunpack.c.h.b16 %v7471
        %v7493 = vpack.c.b16 %v7480, %v7479
        %v7494 = vpack.c.b16 %v7482, %v7481
        %v7495 = vpack.c.b16 %v7484, %v7483
        %v7496 = vpack.c.b16 %v7485, %v7485
        %v7497 = vpack.c.b16 %v7487, %v7486
        %v7498 = vpack.c.b16 %v7489, %v7488
        %v7499 = vpack.c.b16 %v7491, %v7490
        %v7500 = vpack.c.b16 %v7492, %v7492
        %7509 = vst [vmem:[#allocation5 + $0x268] sm:$0xff] %v7493
        %7510 = vst [vmem:[#allocation5 + $0x270] sm:$0xff] %v7494
        %7511 = vst [vmem:[#allocation5 + $0x278] sm:$0xff] %v7495
        %7512 = vst [vmem:[#allocation5 + $0x280] sm:$0xf] %v7496
        %7513 = vst [vmem:[#allocation5 + $0x284] sm:$0xff] %v7497
        %7514 = vst [vmem:[#allocation5 + $0x28c] sm:$0xff] %v7498
        %7515 = vst [vmem:[#allocation5 + $0x294] sm:$0xff] %v7499
        %7516 = vst [vmem:[#allocation5 + $0x29c] sm:$0xf] %v7500
        %v7517 = vld [vmem:[#allocation3 + $0x8] sm:$0xff]
        %v7518 = vld [vmem:[#allocation3 + $0x10] sm:$0xff]
        %v7519 = vld [vmem:[#allocation3 + $0x18] sm:$0xff]
        %v7520 = vld [vmem:[#allocation3 + $0x20] sm:$0xff]
        %v7521 = vld [vmem:[#allocation3 + $0x28] sm:$0xff]
        %v7522 = vld [vmem:[#allocation3 + $0x30] sm:$0xff]
        %v7523 = vld [vmem:[#allocation3 + $0x38] sm:$0xff]
        %v7524 = vld [vmem:[#allocation3 + $0x50] sm:$0xff]
        %v7525 = vld [vmem:[#allocation3 + $0x58] sm:$0xff]
        %v7526 = vld [vmem:[#allocation3 + $0x60] sm:$0xff]
        %v7527 = vld [vmem:[#allocation3 + $0x68] sm:$0xff]
        %v7528 = vld [vmem:[#allocation3 + $0x70] sm:$0xff]
        %v7529 = vld [vmem:[#allocation3 + $0x78] sm:$0xff]
        %v7530 = vld [vmem:[#allocation3 + $0x80] sm:$0xff]
        %7531 = vrot.lane.b32.xlu0 %v7517, 1
        %v7532 = vpop.permute.xlu0 %7531
        %7533 = vrot.lane.b32.xlu0 %v7524, 1
        %v7534 = vpop.permute.xlu0 %7533
        %7535 = vrot.lane.b32.xlu0 %v7518, 1
        %v7536 = vpop.permute.xlu0 %7535
        %7537 = vrot.lane.b32.xlu0 %v7525, 1
        %v7538 = vpop.permute.xlu0 %7537
        %7539 = vrot.lane.b32.xlu0 %v7519, 1
        %v7540 = vpop.permute.xlu0 %7539
        %7541 = vrot.lane.b32.xlu0 %v7526, 1
        %v7542 = vpop.permute.xlu0 %7541
        %7543 = vrot.lane.b32.xlu0 %v7520, 1
        %v7544 = vpop.permute.xlu0 %7543
        %7545 = vrot.lane.b32.xlu0 %v7527, 1
        %v7546 = vpop.permute.xlu0 %7545
        %7547 = vrot.lane.b32.xlu0 %v7521, 1
        %v7548 = vpop.permute.xlu0 %7547
        %7549 = vrot.lane.b32.xlu0 %v7528, 1
        %v7550 = vpop.permute.xlu0 %7549
        %7551 = vrot.lane.b32.xlu0 %v7522, 1
        %v7552 = vpop.permute.xlu0 %7551
        %7553 = vrot.lane.b32.xlu0 %v7529, 1
        %v7554 = vpop.permute.xlu0 %7553
        %7555 = vrot.lane.b32.xlu0 %v7523, 1
        %v7556 = vpop.permute.xlu0 %7555
        %7557 = vrot.lane.b32.xlu0 %v7530, 1
        %v7558 = vpop.permute.xlu0 %7557
        %v7559 = vsel %vm949, %v7552, %v7556
        %v7560 = vsel %vm949, %v7554, %v7558
        %v7561 = vsel %vm949, %v7548, %v7552
        %v7562 = vsel %vm949, %v7550, %v7554
        %v7563 = vsel %vm949, %v7544, %v7548
        %v7564 = vsel %vm949, %v7546, %v7550
        %v7565 = vsel %vm949, %v7540, %v7544
        %v7566 = vsel %vm949, %v7542, %v7546
        %v7567 = vsel %vm949, %v7536, %v7540
        %v7568 = vsel %vm949, %v7538, %v7542
        %v7569 = vsel %vm949, %v7532, %v7536
        %v7570 = vsel %vm949, %v7534, %v7538
        %v7571 = vsel %vm949, %v7556, %v7532
        %v7572 = vsel %vm949, %v7558, %v7534
        %v7573 = vpack.c.bf16 %v7572, %v7571
        %v7574 = vpack.c.bf16 %v7570, %v7569
        %v7575 = vpack.c.bf16 %v7568, %v7567
        %v7576 = vpack.c.bf16 %v7566, %v7565
        %v7577 = vpack.c.bf16 %v7564, %v7563
        %v7578 = vpack.c.bf16 %v7562, %v7561
        %v7579 = vpack.c.bf16 %v7560, %v7559
        %v7587 = vunpack.c.l.b16 %v7573
        %v7588 = vunpack.c.l.b16 %v7574
        %v7589 = vunpack.c.l.b16 %v7575
        %v7590 = vunpack.c.l.b16 %v7576
        %v7591 = vunpack.c.l.b16 %v7577
        %v7592 = vunpack.c.l.b16 %v7578
        %v7593 = vunpack.c.l.b16 %v7579
        %v7594 = vunpack.c.h.b16 %v7573
        %v7595 = vunpack.c.h.b16 %v7574
        %v7596 = vunpack.c.h.b16 %v7575
        %v7597 = vunpack.c.h.b16 %v7576
        %v7598 = vunpack.c.h.b16 %v7577
        %v7599 = vunpack.c.h.b16 %v7578
        %v7600 = vunpack.c.h.b16 %v7579
        %v7601 = vpack.c.b16 %v7588, %v7587
        %v7602 = vpack.c.b16 %v7590, %v7589
        %v7603 = vpack.c.b16 %v7592, %v7591
        %v7604 = vpack.c.b16 %v7593, %v7593
        %v7605 = vpack.c.b16 %v7595, %v7594
        %v7606 = vpack.c.b16 %v7597, %v7596
        %v7607 = vpack.c.b16 %v7599, %v7598
        %v7608 = vpack.c.b16 %v7600, %v7600
        %7617 = vst [vmem:[#allocation5 + $0x2a0] sm:$0xff] %v7601
        %7618 = vst [vmem:[#allocation5 + $0x2a8] sm:$0xff] %v7602
        %7619 = vst [vmem:[#allocation5 + $0x2b0] sm:$0xff] %v7603
        %7620 = vst [vmem:[#allocation5 + $0x2b8] sm:$0xf] %v7604
        %7621 = vst [vmem:[#allocation5 + $0x2bc] sm:$0xff] %v7605
        %7622 = vst [vmem:[#allocation5 + $0x2c4] sm:$0xff] %v7606
        %7623 = vst [vmem:[#allocation5 + $0x2cc] sm:$0xff] %v7607
        %7624 = vst [vmem:[#allocation5 + $0x2d4] sm:$0xf] %v7608
        %v7625 = vpack.c.bf16 %v7524, %v7517
        %v7626 = vpack.c.bf16 %v7525, %v7518
        %v7627 = vpack.c.bf16 %v7526, %v7519
        %v7628 = vpack.c.bf16 %v7527, %v7520
        %v7629 = vpack.c.bf16 %v7528, %v7521
        %v7630 = vpack.c.bf16 %v7529, %v7522
        %v7631 = vpack.c.bf16 %v7530, %v7523
        %v7639 = vunpack.c.l.b16 %v7625
        %v7640 = vunpack.c.l.b16 %v7626
        %v7641 = vunpack.c.l.b16 %v7627
        %v7642 = vunpack.c.l.b16 %v7628
        %v7643 = vunpack.c.l.b16 %v7629
        %v7644 = vunpack.c.l.b16 %v7630
        %v7645 = vunpack.c.l.b16 %v7631
        %v7646 = vunpack.c.h.b16 %v7625
        %v7647 = vunpack.c.h.b16 %v7626
        %v7648 = vunpack.c.h.b16 %v7627
        %v7649 = vunpack.c.h.b16 %v7628
        %v7650 = vunpack.c.h.b16 %v7629
        %v7651 = vunpack.c.h.b16 %v7630
        %v7652 = vunpack.c.h.b16 %v7631
        %v7653 = vpack.c.b16 %v7640, %v7639
        %v7654 = vpack.c.b16 %v7642, %v7641
        %v7655 = vpack.c.b16 %v7644, %v7643
        %v7656 = vpack.c.b16 %v7645, %v7645
        %v7657 = vpack.c.b16 %v7647, %v7646
        %v7658 = vpack.c.b16 %v7649, %v7648
        %v7659 = vpack.c.b16 %v7651, %v7650
        %v7660 = vpack.c.b16 %v7652, %v7652
        %7669 = vst [vmem:[#allocation5 + $0x2d8] sm:$0xff] %v7653
        %7670 = vst [vmem:[#allocation5 + $0x2e0] sm:$0xff] %v7654
        %7671 = vst [vmem:[#allocation5 + $0x2e8] sm:$0xff] %v7655
        %7672 = vst [vmem:[#allocation5 + $0x2f0] sm:$0xf] %v7656
        %7673 = vst [vmem:[#allocation5 + $0x2f4] sm:$0xff] %v7657
        %7674 = vst [vmem:[#allocation5 + $0x2fc] sm:$0xff] %v7658
        %7675 = vst [vmem:[#allocation5 + $0x304] sm:$0xff] %v7659
        %7676 = vst [vmem:[#allocation5 + $0x30c] sm:$0xf] %v7660
        %7677 = vrot.lane.b32.xlu0 %v7517, 127
        %v7678 = vpop.permute.xlu0 %7677
        %7679 = vrot.lane.b32.xlu0 %v7524, 127
        %v7680 = vpop.permute.xlu0 %7679
        %7681 = vrot.lane.b32.xlu0 %v7518, 127
        %v7682 = vpop.permute.xlu0 %7681
        %7683 = vrot.lane.b32.xlu0 %v7525, 127
        %v7684 = vpop.permute.xlu0 %7683
        %7685 = vrot.lane.b32.xlu0 %v7519, 127
        %v7686 = vpop.permute.xlu0 %7685
        %7687 = vrot.lane.b32.xlu0 %v7526, 127
        %v7688 = vpop.permute.xlu0 %7687
        %7689 = vrot.lane.b32.xlu0 %v7520, 127
        %v7690 = vpop.permute.xlu0 %7689
        %7691 = vrot.lane.b32.xlu0 %v7527, 127
        %v7692 = vpop.permute.xlu0 %7691
        %7693 = vrot.lane.b32.xlu0 %v7521, 127
        %v7694 = vpop.permute.xlu0 %7693
        %7695 = vrot.lane.b32.xlu0 %v7528, 127
        %v7696 = vpop.permute.xlu0 %7695
        %7697 = vrot.lane.b32.xlu0 %v7522, 127
        %v7698 = vpop.permute.xlu0 %7697
        %7699 = vrot.lane.b32.xlu0 %v7529, 127
        %v7700 = vpop.permute.xlu0 %7699
        %7701 = vrot.lane.b32.xlu0 %v7523, 127
        %v7702 = vpop.permute.xlu0 %7701
        %7703 = vrot.lane.b32.xlu0 %v7530, 127
        %v7704 = vpop.permute.xlu0 %7703
        %v7705 = vsel %vm1140, %v7698, %v7702
        %v7706 = vsel %vm1140, %v7700, %v7704
        %v7707 = vsel %vm1140, %v7694, %v7698
        %v7708 = vsel %vm1140, %v7696, %v7700
        %v7709 = vsel %vm1140, %v7690, %v7694
        %v7710 = vsel %vm1140, %v7692, %v7696
        %v7711 = vsel %vm1140, %v7686, %v7690
        %v7712 = vsel %vm1140, %v7688, %v7692
        %v7713 = vsel %vm1140, %v7682, %v7686
        %v7714 = vsel %vm1140, %v7684, %v7688
        %v7715 = vsel %vm1140, %v7678, %v7682
        %v7716 = vsel %vm1140, %v7680, %v7684
        %v7717 = vsel %vm1140, %v7702, %v7678
        %v7718 = vsel %vm1140, %v7704, %v7680
        %v7719 = vpack.c.bf16 %v7716, %v7715
        %v7720 = vpack.c.bf16 %v7714, %v7713
        %v7721 = vpack.c.bf16 %v7712, %v7711
        %v7722 = vpack.c.bf16 %v7710, %v7709
        %v7723 = vpack.c.bf16 %v7708, %v7707
        %v7724 = vpack.c.bf16 %v7706, %v7705
        %v7725 = vpack.c.bf16 %v7718, %v7717
        %v7733 = vunpack.c.l.b16 %v7719
        %v7734 = vunpack.c.l.b16 %v7720
        %v7735 = vunpack.c.l.b16 %v7721
        %v7736 = vunpack.c.l.b16 %v7722
        %v7737 = vunpack.c.l.b16 %v7723
        %v7738 = vunpack.c.l.b16 %v7724
        %v7739 = vunpack.c.l.b16 %v7725
        %v7740 = vunpack.c.h.b16 %v7719
        %v7741 = vunpack.c.h.b16 %v7720
        %v7742 = vunpack.c.h.b16 %v7721
        %v7743 = vunpack.c.h.b16 %v7722
        %v7744 = vunpack.c.h.b16 %v7723
        %v7745 = vunpack.c.h.b16 %v7724
        %v7746 = vunpack.c.h.b16 %v7725
        %v7747 = vpack.c.b16 %v7734, %v7733
        %v7748 = vpack.c.b16 %v7736, %v7735
        %v7749 = vpack.c.b16 %v7738, %v7737
        %v7750 = vpack.c.b16 %v7739, %v7739
        %v7751 = vpack.c.b16 %v7741, %v7740
        %v7752 = vpack.c.b16 %v7743, %v7742
        %v7753 = vpack.c.b16 %v7745, %v7744
        %v7754 = vpack.c.b16 %v7746, %v7746
        %7763 = vst [vmem:[#allocation5 + $0x310] sm:$0xff] %v7747
        %7764 = vst [vmem:[#allocation5 + $0x318] sm:$0xff] %v7748
        %7765 = vst [vmem:[#allocation5 + $0x320] sm:$0xff] %v7749
        %7766 = vst [vmem:[#allocation5 + $0x328] sm:$0xf] %v7750
        %7767 = vst [vmem:[#allocation5 + $0x32c] sm:$0xff] %v7751
        %7768 = vst [vmem:[#allocation5 + $0x334] sm:$0xff] %v7752
        %7769 = vst [vmem:[#allocation5 + $0x33c] sm:$0xff] %v7753
        %7770 = vst [vmem:[#allocation5 + $0x344] sm:$0xf] %v7754
        %v7771 = vld [vmem:[#allocation3 + $0x8] sm:$0xff]
        %v7772 = vld [vmem:[#allocation3 + $0x10] sm:$0xff]
        %v7773 = vld [vmem:[#allocation3 + $0x18] sm:$0xff]
        %v7774 = vld [vmem:[#allocation3 + $0x20] sm:$0xff]
        %v7775 = vld [vmem:[#allocation3 + $0x28] sm:$0xff]
        %v7776 = vld [vmem:[#allocation3 + $0x30] sm:$0xff]
        %v7777 = vld [vmem:[#allocation3 + $0x38] sm:$0xff]
        %v7778 = vld [vmem:[#allocation3 + $0x40] sm:$0xff]
        %v7779 = vld [vmem:[#allocation3 + $0x50] sm:$0xff]
        %v7780 = vld [vmem:[#allocation3 + $0x58] sm:$0xff]
        %v7781 = vld [vmem:[#allocation3 + $0x60] sm:$0xff]
        %v7782 = vld [vmem:[#allocation3 + $0x68] sm:$0xff]
        %v7783 = vld [vmem:[#allocation3 + $0x70] sm:$0xff]
        %v7784 = vld [vmem:[#allocation3 + $0x78] sm:$0xff]
        %v7785 = vld [vmem:[#allocation3 + $0x80] sm:$0xff]
        %v7786 = vld [vmem:[#allocation3 + $0x88] sm:$0xff]
        %7803 = vrot.lane.b32.xlu0 %v7771, 118
        %v7804 = vpop.permute.xlu0 %7803
        %7805 = vrot.lane.b32.xlu0 %v7772, 118
        %v7806 = vpop.permute.xlu0 %7805
        %7807 = vrot.lane.b32.xlu0 %v7773, 118
        %v7808 = vpop.permute.xlu0 %7807
        %7809 = vrot.lane.b32.xlu0 %v7774, 118
        %v7810 = vpop.permute.xlu0 %7809
        %7811 = vrot.lane.b32.xlu0 %v7775, 118
        %v7812 = vpop.permute.xlu0 %7811
        %7813 = vrot.lane.b32.xlu0 %v7776, 118
        %v7814 = vpop.permute.xlu0 %7813
        %7815 = vrot.lane.b32.xlu0 %v7777, 118
        %v7816 = vpop.permute.xlu0 %7815
        %7817 = vrot.lane.b32.xlu0 %v7778, 118
        %v7818 = vpop.permute.xlu0 %7817
        %7819 = vrot.lane.b32.xlu0 %v7779, 118
        %v7820 = vpop.permute.xlu0 %7819
        %7821 = vrot.lane.b32.xlu0 %v7780, 118
        %v7822 = vpop.permute.xlu0 %7821
        %7823 = vrot.lane.b32.xlu0 %v7781, 118
        %v7824 = vpop.permute.xlu0 %7823
        %7825 = vrot.lane.b32.xlu0 %v7782, 118
        %v7826 = vpop.permute.xlu0 %7825
        %7827 = vrot.lane.b32.xlu0 %v7783, 118
        %v7828 = vpop.permute.xlu0 %7827
        %7829 = vrot.lane.b32.xlu0 %v7784, 118
        %v7830 = vpop.permute.xlu0 %7829
        %7831 = vrot.lane.b32.xlu0 %v7785, 118
        %v7832 = vpop.permute.xlu0 %7831
        %7833 = vrot.lane.b32.xlu0 %v7786, 118
        %v7834 = vpop.permute.xlu0 %7833
        %v7835 = vsel %vm2653, %v7804, %v7806
        %v7836 = vsel %vm2653, %v7806, %v7808
        %v7837 = vsel %vm2653, %v7808, %v7810
        %v7838 = vsel %vm2653, %v7810, %v7812
        %v7839 = vsel %vm2653, %v7812, %v7814
        %v7840 = vsel %vm2653, %v7814, %v7816
        %v7841 = vsel %vm2653, %v7816, %v7818
        %v7842 = vsel %vm2653, %v7820, %v7822
        %v7843 = vsel %vm2653, %v7822, %v7824
        %v7844 = vsel %vm2653, %v7824, %v7826
        %v7845 = vsel %vm2653, %v7826, %v7828
        %v7846 = vsel %vm2653, %v7828, %v7830
        %v7847 = vsel %vm2653, %v7830, %v7832
        %v7848 = vsel %vm2653, %v7832, %v7834
        %7863 = vrot.lane.b32.xlu0 %v7835, 1
        %v7864 = vpop.permute.xlu0 %7863
        %7865 = vrot.lane.b32.xlu0 %v7842, 1
        %v7866 = vpop.permute.xlu0 %7865
        %7867 = vrot.lane.b32.xlu0 %v7836, 1
        %v7868 = vpop.permute.xlu0 %7867
        %7869 = vrot.lane.b32.xlu0 %v7843, 1
        %v7870 = vpop.permute.xlu0 %7869
        %7871 = vrot.lane.b32.xlu0 %v7837, 1
        %v7872 = vpop.permute.xlu0 %7871
        %7873 = vrot.lane.b32.xlu0 %v7844, 1
        %v7874 = vpop.permute.xlu0 %7873
        %7875 = vrot.lane.b32.xlu0 %v7838, 1
        %v7876 = vpop.permute.xlu0 %7875
        %7877 = vrot.lane.b32.xlu0 %v7845, 1
        %v7878 = vpop.permute.xlu0 %7877
        %7879 = vrot.lane.b32.xlu0 %v7839, 1
        %v7880 = vpop.permute.xlu0 %7879
        %7881 = vrot.lane.b32.xlu0 %v7846, 1
        %v7882 = vpop.permute.xlu0 %7881
        %7883 = vrot.lane.b32.xlu0 %v7840, 1
        %v7884 = vpop.permute.xlu0 %7883
        %7885 = vrot.lane.b32.xlu0 %v7847, 1
        %v7886 = vpop.permute.xlu0 %7885
        %7887 = vrot.lane.b32.xlu0 %v7841, 1
        %v7888 = vpop.permute.xlu0 %7887
        %7889 = vrot.lane.b32.xlu0 %v7848, 1
        %v7890 = vpop.permute.xlu0 %7889
        %v7891 = vsel %vm949, %v7884, %v7888
        %v7892 = vsel %vm949, %v7886, %v7890
        %v7893 = vsel %vm949, %v7880, %v7884
        %v7894 = vsel %vm949, %v7882, %v7886
        %v7895 = vsel %vm949, %v7876, %v7880
        %v7896 = vsel %vm949, %v7878, %v7882
        %v7897 = vsel %vm949, %v7872, %v7876
        %v7898 = vsel %vm949, %v7874, %v7878
        %v7899 = vsel %vm949, %v7868, %v7872
        %v7900 = vsel %vm949, %v7870, %v7874
        %v7901 = vsel %vm949, %v7864, %v7868
        %v7902 = vsel %vm949, %v7866, %v7870
        %v7903 = vsel %vm949, %v7888, %v7864
        %v7904 = vsel %vm949, %v7890, %v7866
        %v7905 = vpack.c.bf16 %v7904, %v7903
        %v7906 = vpack.c.bf16 %v7902, %v7901
        %v7907 = vpack.c.bf16 %v7900, %v7899
        %v7908 = vpack.c.bf16 %v7898, %v7897
        %v7909 = vpack.c.bf16 %v7896, %v7895
        %v7910 = vpack.c.bf16 %v7894, %v7893
        %v7911 = vpack.c.bf16 %v7892, %v7891
        %v7919 = vunpack.c.l.b16 %v7905
        %v7920 = vunpack.c.l.b16 %v7906
        %v7921 = vunpack.c.l.b16 %v7907
        %v7922 = vunpack.c.l.b16 %v7908
        %v7923 = vunpack.c.l.b16 %v7909
        %v7924 = vunpack.c.l.b16 %v7910
        %v7925 = vunpack.c.l.b16 %v7911
        %v7926 = vunpack.c.h.b16 %v7905
        %v7927 = vunpack.c.h.b16 %v7906
        %v7928 = vunpack.c.h.b16 %v7907
        %v7929 = vunpack.c.h.b16 %v7908
        %v7930 = vunpack.c.h.b16 %v7909
        %v7931 = vunpack.c.h.b16 %v7910
        %v7932 = vunpack.c.h.b16 %v7911
        %v7933 = vpack.c.b16 %v7920, %v7919
        %v7934 = vpack.c.b16 %v7922, %v7921
        %v7935 = vpack.c.b16 %v7924, %v7923
        %v7936 = vpack.c.b16 %v7925, %v7925
        %v7937 = vpack.c.b16 %v7927, %v7926
        %v7938 = vpack.c.b16 %v7929, %v7928
        %v7939 = vpack.c.b16 %v7931, %v7930
        %v7940 = vpack.c.b16 %v7932, %v7932
        %7949 = vst [vmem:[#allocation5 + $0x348] sm:$0xff] %v7933
        %7950 = vst [vmem:[#allocation5 + $0x350] sm:$0xff] %v7934
        %7951 = vst [vmem:[#allocation5 + $0x358] sm:$0xff] %v7935
        %7952 = vst [vmem:[#allocation5 + $0x360] sm:$0xf] %v7936
        %7953 = vst [vmem:[#allocation5 + $0x364] sm:$0xff] %v7937
        %7954 = vst [vmem:[#allocation5 + $0x36c] sm:$0xff] %v7938
        %7955 = vst [vmem:[#allocation5 + $0x374] sm:$0xff] %v7939
        %7956 = vst [vmem:[#allocation5 + $0x37c] sm:$0xf] %v7940
        %v7957 = vpack.c.bf16 %v7779, %v7771
        %v7958 = vpack.c.bf16 %v7780, %v7772
        %v7959 = vpack.c.bf16 %v7781, %v7773
        %v7960 = vpack.c.bf16 %v7782, %v7774
        %v7961 = vpack.c.bf16 %v7783, %v7775
        %v7962 = vpack.c.bf16 %v7784, %v7776
        %v7963 = vpack.c.bf16 %v7785, %v7777
        %v7964 = vpack.c.bf16 %v7786, %v7778
        %v7973 = vunpack.c.l.b16 %v7957
        %v7974 = vunpack.c.l.b16 %v7958
        %v7975 = vunpack.c.l.b16 %v7959
        %v7976 = vunpack.c.l.b16 %v7960
        %v7977 = vunpack.c.l.b16 %v7961
        %v7978 = vunpack.c.l.b16 %v7962
        %v7979 = vunpack.c.l.b16 %v7963
        %v7980 = vunpack.c.l.b16 %v7964
        %v7981 = vunpack.c.h.b16 %v7957
        %v7982 = vunpack.c.h.b16 %v7958
        %v7983 = vunpack.c.h.b16 %v7959
        %v7984 = vunpack.c.h.b16 %v7960
        %v7985 = vunpack.c.h.b16 %v7961
        %v7986 = vunpack.c.h.b16 %v7962
        %v7987 = vunpack.c.h.b16 %v7963
        %v7988 = vunpack.c.h.b16 %v7964
        %v7989 = vpack.c.b16 %v7974, %v7973
        %v7990 = vpack.c.b16 %v7976, %v7975
        %v7991 = vpack.c.b16 %v7978, %v7977
        %v7992 = vpack.c.b16 %v7980, %v7979
        %v7993 = vpack.c.b16 %v7982, %v7981
        %v7994 = vpack.c.b16 %v7984, %v7983
        %v7995 = vpack.c.b16 %v7986, %v7985
        %v7996 = vpack.c.b16 %v7988, %v7987
        %7997 = vrot.lane.b32.xlu0 %v7989, 118
        %v7998 = vpop.permute.xlu0 %7997
        %7999 = vrot.lane.b32.xlu0 %v7990, 118
        %v8000 = vpop.permute.xlu0 %7999
        %8001 = vrot.lane.b32.xlu0 %v7991, 118
        %v8002 = vpop.permute.xlu0 %8001
        %8003 = vrot.lane.b32.xlu0 %v7992, 118
        %v8004 = vpop.permute.xlu0 %8003
        %8005 = vrot.lane.b32.xlu0 %v7993, 118
        %v8006 = vpop.permute.xlu0 %8005
        %8007 = vrot.lane.b32.xlu0 %v7994, 118
        %v8008 = vpop.permute.xlu0 %8007
        %8009 = vrot.lane.b32.xlu0 %v7995, 118
        %v8010 = vpop.permute.xlu0 %8009
        %8011 = vrot.lane.b32.xlu0 %v7996, 118
        %v8012 = vpop.permute.xlu0 %8011
        %v8013 = vrot.slane %v7998, 4
        %v8014 = vrot.slane %v8000, 4
        %v8015 = vrot.slane %v8002, 4
        %v8016 = vrot.slane %v8004, 4
        %v8017 = vrot.slane %v8006, 4
        %v8018 = vrot.slane %v8008, 4
        %v8019 = vrot.slane %v8010, 4
        %v8020 = vrot.slane %v8012, 4
        %v8021 = vsel %vm1080, %v8013, %v8014
        %v8022 = vsel %vm2841, %v7998, %v8021
        %v8023 = vsel %vm1080, %v8014, %v8015
        %v8024 = vsel %vm2841, %v8000, %v8023
        %v8025 = vsel %vm1080, %v8015, %v8016
        %v8026 = vsel %vm2841, %v8002, %v8025
        %v8027 = vsel %vm2841, %v8004, %v8016
        %v8028 = vsel %vm1080, %v8017, %v8018
        %v8029 = vsel %vm2841, %v8006, %v8028
        %v8030 = vsel %vm1080, %v8018, %v8019
        %v8031 = vsel %vm2841, %v8008, %v8030
        %v8032 = vsel %vm1080, %v8019, %v8020
        %v8033 = vsel %vm2841, %v8010, %v8032
        %v8034 = vsel %vm2841, %v8012, %v8020
        %8043 = vst [vmem:[#allocation5 + $0x380] sm:$0xff] %v8022
        %8044 = vst [vmem:[#allocation5 + $0x388] sm:$0xff] %v8024
        %8045 = vst [vmem:[#allocation5 + $0x390] sm:$0xff] %v8026
        %8046 = vst [vmem:[#allocation5 + $0x398] sm:$0xf] %v8027
        %8047 = vst [vmem:[#allocation5 + $0x39c] sm:$0xff] %v8029
        %8048 = vst [vmem:[#allocation5 + $0x3a4] sm:$0xff] %v8031
        %8049 = vst [vmem:[#allocation5 + $0x3ac] sm:$0xff] %v8033
        %8050 = vst [vmem:[#allocation5 + $0x3b4] sm:$0xf] %v8034
        %8051 = vrot.lane.b32.xlu0 %v7835, 127
        %v8052 = vpop.permute.xlu0 %8051
        %8053 = vrot.lane.b32.xlu0 %v7842, 127
        %v8054 = vpop.permute.xlu0 %8053
        %8055 = vrot.lane.b32.xlu0 %v7836, 127
        %v8056 = vpop.permute.xlu0 %8055
        %8057 = vrot.lane.b32.xlu0 %v7843, 127
        %v8058 = vpop.permute.xlu0 %8057
        %8059 = vrot.lane.b32.xlu0 %v7837, 127
        %v8060 = vpop.permute.xlu0 %8059
        %8061 = vrot.lane.b32.xlu0 %v7844, 127
        %v8062 = vpop.permute.xlu0 %8061
        %8063 = vrot.lane.b32.xlu0 %v7838, 127
        %v8064 = vpop.permute.xlu0 %8063
        %8065 = vrot.lane.b32.xlu0 %v7845, 127
        %v8066 = vpop.permute.xlu0 %8065
        %8067 = vrot.lane.b32.xlu0 %v7839, 127
        %v8068 = vpop.permute.xlu0 %8067
        %8069 = vrot.lane.b32.xlu0 %v7846, 127
        %v8070 = vpop.permute.xlu0 %8069
        %8071 = vrot.lane.b32.xlu0 %v7840, 127
        %v8072 = vpop.permute.xlu0 %8071
        %8073 = vrot.lane.b32.xlu0 %v7847, 127
        %v8074 = vpop.permute.xlu0 %8073
        %8075 = vrot.lane.b32.xlu0 %v7841, 127
        %v8076 = vpop.permute.xlu0 %8075
        %8077 = vrot.lane.b32.xlu0 %v7848, 127
        %v8078 = vpop.permute.xlu0 %8077
        %v8079 = vsel %vm1140, %v8072, %v8076
        %v8080 = vsel %vm1140, %v8074, %v8078
        %v8081 = vsel %vm1140, %v8068, %v8072
        %v8082 = vsel %vm1140, %v8070, %v8074
        %v8083 = vsel %vm1140, %v8064, %v8068
        %v8084 = vsel %vm1140, %v8066, %v8070
        %v8085 = vsel %vm1140, %v8060, %v8064
        %v8086 = vsel %vm1140, %v8062, %v8066
        %v8087 = vsel %vm1140, %v8056, %v8060
        %v8088 = vsel %vm1140, %v8058, %v8062
        %v8089 = vsel %vm1140, %v8052, %v8056
        %v8090 = vsel %vm1140, %v8054, %v8058
        %v8091 = vsel %vm1140, %v8076, %v8052
        %v8092 = vsel %vm1140, %v8078, %v8054
        %v8093 = vpack.c.bf16 %v8090, %v8089
        %v8094 = vpack.c.bf16 %v8088, %v8087
        %v8095 = vpack.c.bf16 %v8086, %v8085
        %v8096 = vpack.c.bf16 %v8084, %v8083
        %v8097 = vpack.c.bf16 %v8082, %v8081
        %v8098 = vpack.c.bf16 %v8080, %v8079
        %v8099 = vpack.c.bf16 %v8092, %v8091
        %v8107 = vunpack.c.l.b16 %v8093
        %v8108 = vunpack.c.l.b16 %v8094
        %v8109 = vunpack.c.l.b16 %v8095
        %v8110 = vunpack.c.l.b16 %v8096
        %v8111 = vunpack.c.l.b16 %v8097
        %v8112 = vunpack.c.l.b16 %v8098
        %v8113 = vunpack.c.l.b16 %v8099
        %v8114 = vunpack.c.h.b16 %v8093
        %v8115 = vunpack.c.h.b16 %v8094
        %v8116 = vunpack.c.h.b16 %v8095
        %v8117 = vunpack.c.h.b16 %v8096
        %v8118 = vunpack.c.h.b16 %v8097
        %v8119 = vunpack.c.h.b16 %v8098
        %v8120 = vunpack.c.h.b16 %v8099
        %v8121 = vpack.c.b16 %v8108, %v8107
        %v8122 = vpack.c.b16 %v8110, %v8109
        %v8123 = vpack.c.b16 %v8112, %v8111
        %v8124 = vpack.c.b16 %v8113, %v8113
        %v8125 = vpack.c.b16 %v8115, %v8114
        %v8126 = vpack.c.b16 %v8117, %v8116
        %v8127 = vpack.c.b16 %v8119, %v8118
        %v8128 = vpack.c.b16 %v8120, %v8120
        %8137 = vst [vmem:[#allocation5 + $0x3b8] sm:$0xff] %v8121
        %8138 = vst [vmem:[#allocation5 + $0x3c0] sm:$0xff] %v8122
        %8139 = vst [vmem:[#allocation5 + $0x3c8] sm:$0xff] %v8123
        %8140 = vst [vmem:[#allocation5 + $0x3d0] sm:$0xf] %v8124
        %8141 = vst [vmem:[#allocation5 + $0x3d4] sm:$0xff] %v8125
        %8142 = vst [vmem:[#allocation5 + $0x3dc] sm:$0xff] %v8126
        %8143 = vst [vmem:[#allocation5 + $0x3e4] sm:$0xff] %v8127
        %8144 = vst [vmem:[#allocation5 + $0x3ec] sm:$0xf] %v8128
        %v8145 = vld [vmem:[#allocation3 + $0x8] sm:$0xff]
        %v8146 = vld [vmem:[#allocation3 + $0x10] sm:$0xff]
        %v8147 = vld [vmem:[#allocation3 + $0x18] sm:$0xff]
        %v8148 = vld [vmem:[#allocation3 + $0x20] sm:$0xff]
        %v8149 = vld [vmem:[#allocation3 + $0x28] sm:$0xff]
        %v8150 = vld [vmem:[#allocation3 + $0x30] sm:$0xff]
        %v8151 = vld [vmem:[#allocation3 + $0x38] sm:$0xff]
        %v8152 = vld [vmem:[#allocation3 + $0x40] sm:$0xff]
        %v8153 = vld [vmem:[#allocation3 + $0x50] sm:$0xff]
        %v8154 = vld [vmem:[#allocation3 + $0x58] sm:$0xff]
        %v8155 = vld [vmem:[#allocation3 + $0x60] sm:$0xff]
        %v8156 = vld [vmem:[#allocation3 + $0x68] sm:$0xff]
        %v8157 = vld [vmem:[#allocation3 + $0x70] sm:$0xff]
        %v8158 = vld [vmem:[#allocation3 + $0x78] sm:$0xff]
        %v8159 = vld [vmem:[#allocation3 + $0x80] sm:$0xff]
        %v8160 = vld [vmem:[#allocation3 + $0x88] sm:$0xff]
        %8177 = vrot.lane.b32.xlu0 %v8145, 38
        %v8178 = vpop.permute.xlu0 %8177
        %8179 = vrot.lane.b32.xlu0 %v8146, 38
        %v8180 = vpop.permute.xlu0 %8179
        %8181 = vrot.lane.b32.xlu0 %v8147, 38
        %v8182 = vpop.permute.xlu0 %8181
        %8183 = vrot.lane.b32.xlu0 %v8148, 38
        %v8184 = vpop.permute.xlu0 %8183
        %8185 = vrot.lane.b32.xlu0 %v8149, 38
        %v8186 = vpop.permute.xlu0 %8185
        %8187 = vrot.lane.b32.xlu0 %v8150, 38
        %v8188 = vpop.permute.xlu0 %8187
        %8189 = vrot.lane.b32.xlu0 %v8151, 38
        %v8190 = vpop.permute.xlu0 %8189
        %8191 = vrot.lane.b32.xlu0 %v8152, 38
        %v8192 = vpop.permute.xlu0 %8191
        %8193 = vrot.lane.b32.xlu0 %v8153, 38
        %v8194 = vpop.permute.xlu0 %8193
        %8195 = vrot.lane.b32.xlu0 %v8154, 38
        %v8196 = vpop.permute.xlu0 %8195
        %8197 = vrot.lane.b32.xlu0 %v8155, 38
        %v8198 = vpop.permute.xlu0 %8197
        %8199 = vrot.lane.b32.xlu0 %v8156, 38
        %v8200 = vpop.permute.xlu0 %8199
        %8201 = vrot.lane.b32.xlu0 %v8157, 38
        %v8202 = vpop.permute.xlu0 %8201
        %8203 = vrot.lane.b32.xlu0 %v8158, 38
        %v8204 = vpop.permute.xlu0 %8203
        %8205 = vrot.lane.b32.xlu0 %v8159, 38
        %v8206 = vpop.permute.xlu0 %8205
        %8207 = vrot.lane.b32.xlu0 %v8160, 38
        %v8208 = vpop.permute.xlu0 %8207
        %v8209 = vsel %vm3029, %v8178, %v8180
        %v8210 = vsel %vm3029, %v8180, %v8182
        %v8211 = vsel %vm3029, %v8182, %v8184
        %v8212 = vsel %vm3029, %v8184, %v8186
        %v8213 = vsel %vm3029, %v8186, %v8188
        %v8214 = vsel %vm3029, %v8188, %v8190
        %v8215 = vsel %vm3029, %v8190, %v8192
        %v8216 = vsel %vm3029, %v8194, %v8196
        %v8217 = vsel %vm3029, %v8196, %v8198
        %v8218 = vsel %vm3029, %v8198, %v8200
        %v8219 = vsel %vm3029, %v8200, %v8202
        %v8220 = vsel %vm3029, %v8202, %v8204
        %v8221 = vsel %vm3029, %v8204, %v8206
        %v8222 = vsel %vm3029, %v8206, %v8208
        %8237 = vrot.lane.b32.xlu0 %v8209, 1
        %v8238 = vpop.permute.xlu0 %8237
        %8239 = vrot.lane.b32.xlu0 %v8216, 1
        %v8240 = vpop.permute.xlu0 %8239
        %8241 = vrot.lane.b32.xlu0 %v8210, 1
        %v8242 = vpop.permute.xlu0 %8241
        %8243 = vrot.lane.b32.xlu0 %v8217, 1
        %v8244 = vpop.permute.xlu0 %8243
        %8245 = vrot.lane.b32.xlu0 %v8211, 1
        %v8246 = vpop.permute.xlu0 %8245
        %8247 = vrot.lane.b32.xlu0 %v8218, 1
        %v8248 = vpop.permute.xlu0 %8247
        %8249 = vrot.lane.b32.xlu0 %v8212, 1
        %v8250 = vpop.permute.xlu0 %8249
        %8251 = vrot.lane.b32.xlu0 %v8219, 1
        %v8252 = vpop.permute.xlu0 %8251
        %8253 = vrot.lane.b32.xlu0 %v8213, 1
        %v8254 = vpop.permute.xlu0 %8253
        %8255 = vrot.lane.b32.xlu0 %v8220, 1
        %v8256 = vpop.permute.xlu0 %8255
        %8257 = vrot.lane.b32.xlu0 %v8214, 1
        %v8258 = vpop.permute.xlu0 %8257
        %8259 = vrot.lane.b32.xlu0 %v8221, 1
        %v8260 = vpop.permute.xlu0 %8259
        %8261 = vrot.lane.b32.xlu0 %v8215, 1
        %v8262 = vpop.permute.xlu0 %8261
        %8263 = vrot.lane.b32.xlu0 %v8222, 1
        %v8264 = vpop.permute.xlu0 %8263
        %v8265 = vsel %vm949, %v8258, %v8262
        %v8266 = vsel %vm949, %v8260, %v8264
        %v8267 = vsel %vm949, %v8254, %v8258
        %v8268 = vsel %vm949, %v8256, %v8260
        %v8269 = vsel %vm949, %v8250, %v8254
        %v8270 = vsel %vm949, %v8252, %v8256
        %v8271 = vsel %vm949, %v8246, %v8250
        %v8272 = vsel %vm949, %v8248, %v8252
        %v8273 = vsel %vm949, %v8242, %v8246
        %v8274 = vsel %vm949, %v8244, %v8248
        %v8275 = vsel %vm949, %v8238, %v8242
        %v8276 = vsel %vm949, %v8240, %v8244
        %v8277 = vsel %vm949, %v8262, %v8238
        %v8278 = vsel %vm949, %v8264, %v8240
        %v8279 = vpack.c.bf16 %v8278, %v8277
        %v8280 = vpack.c.bf16 %v8276, %v8275
        %v8281 = vpack.c.bf16 %v8274, %v8273
        %v8282 = vpack.c.bf16 %v8272, %v8271
        %v8283 = vpack.c.bf16 %v8270, %v8269
        %v8284 = vpack.c.bf16 %v8268, %v8267
        %v8285 = vpack.c.bf16 %v8266, %v8265
        %v8293 = vunpack.c.l.b16 %v8279
        %v8294 = vunpack.c.l.b16 %v8280
        %v8295 = vunpack.c.l.b16 %v8281
        %v8296 = vunpack.c.l.b16 %v8282
        %v8297 = vunpack.c.l.b16 %v8283
        %v8298 = vunpack.c.l.b16 %v8284
        %v8299 = vunpack.c.l.b16 %v8285
        %v8300 = vunpack.c.h.b16 %v8279
        %v8301 = vunpack.c.h.b16 %v8280
        %v8302 = vunpack.c.h.b16 %v8281
        %v8303 = vunpack.c.h.b16 %v8282
        %v8304 = vunpack.c.h.b16 %v8283
        %v8305 = vunpack.c.h.b16 %v8284
        %v8306 = vunpack.c.h.b16 %v8285
        %v8307 = vpack.c.b16 %v8294, %v8293
        %v8308 = vpack.c.b16 %v8296, %v8295
        %v8309 = vpack.c.b16 %v8298, %v8297
        %v8310 = vpack.c.b16 %v8299, %v8299
        %v8311 = vpack.c.b16 %v8301, %v8300
        %v8312 = vpack.c.b16 %v8303, %v8302
        %v8313 = vpack.c.b16 %v8305, %v8304
        %v8314 = vpack.c.b16 %v8306, %v8306
        %8323 = vst [vmem:[#allocation5 + $0x3f0] sm:$0xff] %v8307
        %8324 = vst [vmem:[#allocation5 + $0x3f8] sm:$0xff] %v8308
        %8325 = vst [vmem:[#allocation5 + $0x400] sm:$0xff] %v8309
        %8326 = vst [vmem:[#allocation5 + $0x408] sm:$0xf] %v8310
        %8327 = vst [vmem:[#allocation5 + $0x40c] sm:$0xff] %v8311
        %8328 = vst [vmem:[#allocation5 + $0x414] sm:$0xff] %v8312
        %8329 = vst [vmem:[#allocation5 + $0x41c] sm:$0xff] %v8313
        %8330 = vst [vmem:[#allocation5 + $0x424] sm:$0xf] %v8314
        %v8331 = vpack.c.bf16 %v8153, %v8145
        %v8332 = vpack.c.bf16 %v8154, %v8146
        %v8333 = vpack.c.bf16 %v8155, %v8147
        %v8334 = vpack.c.bf16 %v8156, %v8148
        %v8335 = vpack.c.bf16 %v8157, %v8149
        %v8336 = vpack.c.bf16 %v8158, %v8150
        %v8337 = vpack.c.bf16 %v8159, %v8151
        %v8338 = vpack.c.bf16 %v8160, %v8152
        %v8347 = vunpack.c.l.b16 %v8331
        %v8348 = vunpack.c.l.b16 %v8332
        %v8349 = vunpack.c.l.b16 %v8333
        %v8350 = vunpack.c.l.b16 %v8334
        %v8351 = vunpack.c.l.b16 %v8335
        %v8352 = vunpack.c.l.b16 %v8336
        %v8353 = vunpack.c.l.b16 %v8337
        %v8354 = vunpack.c.l.b16 %v8338
        %v8355 = vunpack.c.h.b16 %v8331
        %v8356 = vunpack.c.h.b16 %v8332
        %v8357 = vunpack.c.h.b16 %v8333
        %v8358 = vunpack.c.h.b16 %v8334
        %v8359 = vunpack.c.h.b16 %v8335
        %v8360 = vunpack.c.h.b16 %v8336
        %v8361 = vunpack.c.h.b16 %v8337
        %v8362 = vunpack.c.h.b16 %v8338
        %v8363 = vpack.c.b16 %v8348, %v8347
        %v8364 = vpack.c.b16 %v8350, %v8349
        %v8365 = vpack.c.b16 %v8352, %v8351
        %v8366 = vpack.c.b16 %v8354, %v8353
        %v8367 = vpack.c.b16 %v8356, %v8355
        %v8368 = vpack.c.b16 %v8358, %v8357
        %v8369 = vpack.c.b16 %v8360, %v8359
        %v8370 = vpack.c.b16 %v8362, %v8361
        %8371 = vrot.lane.b32.xlu0 %v8363, 38
        %v8372 = vpop.permute.xlu0 %8371
        %8373 = vrot.lane.b32.xlu0 %v8364, 38
        %v8374 = vpop.permute.xlu0 %8373
        %8375 = vrot.lane.b32.xlu0 %v8365, 38
        %v8376 = vpop.permute.xlu0 %8375
        %8377 = vrot.lane.b32.xlu0 %v8366, 38
        %v8378 = vpop.permute.xlu0 %8377
        %8379 = vrot.lane.b32.xlu0 %v8367, 38
        %v8380 = vpop.permute.xlu0 %8379
        %8381 = vrot.lane.b32.xlu0 %v8368, 38
        %v8382 = vpop.permute.xlu0 %8381
        %8383 = vrot.lane.b32.xlu0 %v8369, 38
        %v8384 = vpop.permute.xlu0 %8383
        %8385 = vrot.lane.b32.xlu0 %v8370, 38
        %v8386 = vpop.permute.xlu0 %8385
        %v8387 = vrot.slane %v8372, 4
        %v8388 = vrot.slane %v8374, 4
        %v8389 = vrot.slane %v8376, 4
        %v8390 = vrot.slane %v8378, 4
        %v8391 = vrot.slane %v8380, 4
        %v8392 = vrot.slane %v8382, 4
        %v8393 = vrot.slane %v8384, 4
        %v8394 = vrot.slane %v8386, 4
        %v8395 = vsel %vm1080, %v8387, %v8388
        %v8396 = vsel %vm3217, %v8372, %v8395
        %v8397 = vsel %vm1080, %v8388, %v8389
        %v8398 = vsel %vm3217, %v8374, %v8397
        %v8399 = vsel %vm1080, %v8389, %v8390
        %v8400 = vsel %vm3217, %v8376, %v8399
        %v8401 = vsel %vm3217, %v8378, %v8390
        %v8402 = vsel %vm1080, %v8391, %v8392
        %v8403 = vsel %vm3217, %v8380, %v8402
        %v8404 = vsel %vm1080, %v8392, %v8393
        %v8405 = vsel %vm3217, %v8382, %v8404
        %v8406 = vsel %vm1080, %v8393, %v8394
        %v8407 = vsel %vm3217, %v8384, %v8406
        %v8408 = vsel %vm3217, %v8386, %v8394
        %8417 = vst [vmem:[#allocation5 + $0x428] sm:$0xff] %v8396
        %8418 = vst [vmem:[#allocation5 + $0x430] sm:$0xff] %v8398
        %8419 = vst [vmem:[#allocation5 + $0x438] sm:$0xff] %v8400
        %8420 = vst [vmem:[#allocation5 + $0x440] sm:$0xf] %v8401
        %8421 = vst [vmem:[#allocation5 + $0x444] sm:$0xff] %v8403
        %8422 = vst [vmem:[#allocation5 + $0x44c] sm:$0xff] %v8405
        %8423 = vst [vmem:[#allocation5 + $0x454] sm:$0xff] %v8407
        %8424 = vst [vmem:[#allocation5 + $0x45c] sm:$0xf] %v8408
        %8425 = vrot.lane.b32.xlu0 %v8209, 127
        %v8426 = vpop.permute.xlu0 %8425
        %8427 = vrot.lane.b32.xlu0 %v8216, 127
        %v8428 = vpop.permute.xlu0 %8427
        %8429 = vrot.lane.b32.xlu0 %v8210, 127
        %v8430 = vpop.permute.xlu0 %8429
        %8431 = vrot.lane.b32.xlu0 %v8217, 127
        %v8432 = vpop.permute.xlu0 %8431
        %8433 = vrot.lane.b32.xlu0 %v8211, 127
        %v8434 = vpop.permute.xlu0 %8433
        %8435 = vrot.lane.b32.xlu0 %v8218, 127
        %v8436 = vpop.permute.xlu0 %8435
        %8437 = vrot.lane.b32.xlu0 %v8212, 127
        %v8438 = vpop.permute.xlu0 %8437
        %8439 = vrot.lane.b32.xlu0 %v8219, 127
        %v8440 = vpop.permute.xlu0 %8439
        %8441 = vrot.lane.b32.xlu0 %v8213, 127
        %v8442 = vpop.permute.xlu0 %8441
        %8443 = vrot.lane.b32.xlu0 %v8220, 127
        %v8444 = vpop.permute.xlu0 %8443
        %8445 = vrot.lane.b32.xlu0 %v8214, 127
        %v8446 = vpop.permute.xlu0 %8445
        %8447 = vrot.lane.b32.xlu0 %v8221, 127
        %v8448 = vpop.permute.xlu0 %8447
        %8449 = vrot.lane.b32.xlu0 %v8215, 127
        %v8450 = vpop.permute.xlu0 %8449
        %8451 = vrot.lane.b32.xlu0 %v8222, 127
        %v8452 = vpop.permute.xlu0 %8451
        %v8453 = vsel %vm1140, %v8446, %v8450
        %v8454 = vsel %vm1140, %v8448, %v8452
        %v8455 = vsel %vm1140, %v8442, %v8446
        %v8456 = vsel %vm1140, %v8444, %v8448
        %v8457 = vsel %vm1140, %v8438, %v8442
        %v8458 = vsel %vm1140, %v8440, %v8444
        %v8459 = vsel %vm1140, %v8434, %v8438
        %v8460 = vsel %vm1140, %v8436, %v8440
        %v8461 = vsel %vm1140, %v8430, %v8434
        %v8462 = vsel %vm1140, %v8432, %v8436
        %v8463 = vsel %vm1140, %v8426, %v8430
        %v8464 = vsel %vm1140, %v8428, %v8432
        %v8465 = vsel %vm1140, %v8450, %v8426
        %v8466 = vsel %vm1140, %v8452, %v8428
        %v8467 = vpack.c.bf16 %v8464, %v8463
        %v8468 = vpack.c.bf16 %v8462, %v8461
        %v8469 = vpack.c.bf16 %v8460, %v8459
        %v8470 = vpack.c.bf16 %v8458, %v8457
        %v8471 = vpack.c.bf16 %v8456, %v8455
        %v8472 = vpack.c.bf16 %v8454, %v8453
        %v8473 = vpack.c.bf16 %v8466, %v8465
        %v8481 = vunpack.c.l.b16 %v8467
        %v8482 = vunpack.c.l.b16 %v8468
        %v8483 = vunpack.c.l.b16 %v8469
        %v8484 = vunpack.c.l.b16 %v8470
        %v8485 = vunpack.c.l.b16 %v8471
        %v8486 = vunpack.c.l.b16 %v8472
        %v8487 = vunpack.c.l.b16 %v8473
        %v8488 = vunpack.c.h.b16 %v8467
        %v8489 = vunpack.c.h.b16 %v8468
        %v8490 = vunpack.c.h.b16 %v8469
        %v8491 = vunpack.c.h.b16 %v8470
        %v8492 = vunpack.c.h.b16 %v8471
        %v8493 = vunpack.c.h.b16 %v8472
        %v8494 = vunpack.c.h.b16 %v8473
        %v8495 = vpack.c.b16 %v8482, %v8481
        %v8496 = vpack.c.b16 %v8484, %v8483
        %v8497 = vpack.c.b16 %v8486, %v8485
        %v8498 = vpack.c.b16 %v8487, %v8487
        %v8499 = vpack.c.b16 %v8489, %v8488
        %v8500 = vpack.c.b16 %v8491, %v8490
        %v8501 = vpack.c.b16 %v8493, %v8492
        %v8502 = vpack.c.b16 %v8494, %v8494
        %8511 = vst [vmem:[#allocation5 + $0x460] sm:$0xff] %v8495
        %8512 = vst [vmem:[#allocation5 + $0x468] sm:$0xff] %v8496
        %8513 = vst [vmem:[#allocation5 + $0x470] sm:$0xff] %v8497
        %8514 = vst [vmem:[#allocation5 + $0x478] sm:$0xf] %v8498
        %8515 = vst [vmem:[#allocation5 + $0x47c] sm:$0xff] %v8499
        %8516 = vst [vmem:[#allocation5 + $0x484] sm:$0xff] %v8500
        %8517 = vst [vmem:[#allocation5 + $0x48c] sm:$0xff] %v8501
        %8518 = vst [vmem:[#allocation5 + $0x494] sm:$0xf] %v8502
        %v8519 = vld [vmem:[#allocation3 + $0x8] sm:$0xff]
        %v8520 = vld [vmem:[#allocation3 + $0x10] sm:$0xff]
        %v8521 = vld [vmem:[#allocation3 + $0x18] sm:$0xff]
        %v8522 = vld [vmem:[#allocation3 + $0x20] sm:$0xff]
        %v8523 = vld [vmem:[#allocation3 + $0x28] sm:$0xff]
        %v8524 = vld [vmem:[#allocation3 + $0x30] sm:$0xff]
        %v8525 = vld [vmem:[#allocation3 + $0x38] sm:$0xff]
        %v8526 = vld [vmem:[#allocation3 + $0x40] sm:$0xff]
        %v8527 = vld [vmem:[#allocation3 + $0x50] sm:$0xff]
        %v8528 = vld [vmem:[#allocation3 + $0x58] sm:$0xff]
        %v8529 = vld [vmem:[#allocation3 + $0x60] sm:$0xff]
        %v8530 = vld [vmem:[#allocation3 + $0x68] sm:$0xff]
        %v8531 = vld [vmem:[#allocation3 + $0x70] sm:$0xff]
        %v8532 = vld [vmem:[#allocation3 + $0x78] sm:$0xff]
        %v8533 = vld [vmem:[#allocation3 + $0x80] sm:$0xff]
        %v8534 = vld [vmem:[#allocation3 + $0x88] sm:$0xff]
        %8551 = vrot.lane.b32.xlu0 %v8519, 28
        %v8552 = vpop.permute.xlu0 %8551
        %8553 = vrot.lane.b32.xlu0 %v8520, 28
        %v8554 = vpop.permute.xlu0 %8553
        %8555 = vrot.lane.b32.xlu0 %v8521, 28
        %v8556 = vpop.permute.xlu0 %8555
        %8557 = vrot.lane.b32.xlu0 %v8522, 28
        %v8558 = vpop.permute.xlu0 %8557
        %8559 = vrot.lane.b32.xlu0 %v8523, 28
        %v8560 = vpop.permute.xlu0 %8559
        %8561 = vrot.lane.b32.xlu0 %v8524, 28
        %v8562 = vpop.permute.xlu0 %8561
        %8563 = vrot.lane.b32.xlu0 %v8525, 28
        %v8564 = vpop.permute.xlu0 %8563
        %8565 = vrot.lane.b32.xlu0 %v8526, 28
        %v8566 = vpop.permute.xlu0 %8565
        %8567 = vrot.lane.b32.xlu0 %v8527, 28
        %v8568 = vpop.permute.xlu0 %8567
        %8569 = vrot.lane.b32.xlu0 %v8528, 28
        %v8570 = vpop.permute.xlu0 %8569
        %8571 = vrot.lane.b32.xlu0 %v8529, 28
        %v8572 = vpop.permute.xlu0 %8571
        %8573 = vrot.lane.b32.xlu0 %v8530, 28
        %v8574 = vpop.permute.xlu0 %8573
        %8575 = vrot.lane.b32.xlu0 %v8531, 28
        %v8576 = vpop.permute.xlu0 %8575
        %8577 = vrot.lane.b32.xlu0 %v8532, 28
        %v8578 = vpop.permute.xlu0 %8577
        %8579 = vrot.lane.b32.xlu0 %v8533, 28
        %v8580 = vpop.permute.xlu0 %8579
        %8581 = vrot.lane.b32.xlu0 %v8534, 28
        %v8582 = vpop.permute.xlu0 %8581
        %v8583 = vsel %vm3405, %v8552, %v8554
        %v8584 = vsel %vm3405, %v8554, %v8556
        %v8585 = vsel %vm3405, %v8556, %v8558
        %v8586 = vsel %vm3405, %v8558, %v8560
        %v8587 = vsel %vm3405, %v8560, %v8562
        %v8588 = vsel %vm3405, %v8562, %v8564
        %v8589 = vsel %vm3405, %v8564, %v8566
        %v8590 = vsel %vm3405, %v8568, %v8570
        %v8591 = vsel %vm3405, %v8570, %v8572
        %v8592 = vsel %vm3405, %v8572, %v8574
        %v8593 = vsel %vm3405, %v8574, %v8576
        %v8594 = vsel %vm3405, %v8576, %v8578
        %v8595 = vsel %vm3405, %v8578, %v8580
        %v8596 = vsel %vm3405, %v8580, %v8582
        %8611 = vrot.lane.b32.xlu0 %v8583, 1
        %v8612 = vpop.permute.xlu0 %8611
        %8613 = vrot.lane.b32.xlu0 %v8590, 1
        %v8614 = vpop.permute.xlu0 %8613
        %8615 = vrot.lane.b32.xlu0 %v8584, 1
        %v8616 = vpop.permute.xlu0 %8615
        %8617 = vrot.lane.b32.xlu0 %v8591, 1
        %v8618 = vpop.permute.xlu0 %8617
        %8619 = vrot.lane.b32.xlu0 %v8585, 1
        %v8620 = vpop.permute.xlu0 %8619
        %8621 = vrot.lane.b32.xlu0 %v8592, 1
        %v8622 = vpop.permute.xlu0 %8621
        %8623 = vrot.lane.b32.xlu0 %v8586, 1
        %v8624 = vpop.permute.xlu0 %8623
        %8625 = vrot.lane.b32.xlu0 %v8593, 1
        %v8626 = vpop.permute.xlu0 %8625
        %8627 = vrot.lane.b32.xlu0 %v8587, 1
        %v8628 = vpop.permute.xlu0 %8627
        %8629 = vrot.lane.b32.xlu0 %v8594, 1
        %v8630 = vpop.permute.xlu0 %8629
        %8631 = vrot.lane.b32.xlu0 %v8588, 1
        %v8632 = vpop.permute.xlu0 %8631
        %8633 = vrot.lane.b32.xlu0 %v8595, 1
        %v8634 = vpop.permute.xlu0 %8633
        %8635 = vrot.lane.b32.xlu0 %v8589, 1
        %v8636 = vpop.permute.xlu0 %8635
        %8637 = vrot.lane.b32.xlu0 %v8596, 1
        %v8638 = vpop.permute.xlu0 %8637
        %v8639 = vsel %vm949, %v8632, %v8636
        %v8640 = vsel %vm949, %v8634, %v8638
        %v8641 = vsel %vm949, %v8628, %v8632
        %v8642 = vsel %vm949, %v8630, %v8634
        %v8643 = vsel %vm949, %v8624, %v8628
        %v8644 = vsel %vm949, %v8626, %v8630
        %v8645 = vsel %vm949, %v8620, %v8624
        %v8646 = vsel %vm949, %v8622, %v8626
        %v8647 = vsel %vm949, %v8616, %v8620
        %v8648 = vsel %vm949, %v8618, %v8622
        %v8649 = vsel %vm949, %v8612, %v8616
        %v8650 = vsel %vm949, %v8614, %v8618
        %v8651 = vsel %vm949, %v8636, %v8612
        %v8652 = vsel %vm949, %v8638, %v8614
        %v8653 = vpack.c.bf16 %v8652, %v8651
        %v8654 = vpack.c.bf16 %v8650, %v8649
        %v8655 = vpack.c.bf16 %v8648, %v8647
        %v8656 = vpack.c.bf16 %v8646, %v8645
        %v8657 = vpack.c.bf16 %v8644, %v8643
        %v8658 = vpack.c.bf16 %v8642, %v8641
        %v8659 = vpack.c.bf16 %v8640, %v8639
        %v8667 = vunpack.c.l.b16 %v8653
        %v8668 = vunpack.c.l.b16 %v8654
        %v8669 = vunpack.c.l.b16 %v8655
        %v8670 = vunpack.c.l.b16 %v8656
        %v8671 = vunpack.c.l.b16 %v8657
        %v8672 = vunpack.c.l.b16 %v8658
        %v8673 = vunpack.c.l.b16 %v8659
        %v8674 = vunpack.c.h.b16 %v8653
        %v8675 = vunpack.c.h.b16 %v8654
        %v8676 = vunpack.c.h.b16 %v8655
        %v8677 = vunpack.c.h.b16 %v8656
        %v8678 = vunpack.c.h.b16 %v8657
        %v8679 = vunpack.c.h.b16 %v8658
        %v8680 = vunpack.c.h.b16 %v8659
        %v8681 = vpack.c.b16 %v8668, %v8667
        %v8682 = vpack.c.b16 %v8670, %v8669
        %v8683 = vpack.c.b16 %v8672, %v8671
        %v8684 = vpack.c.b16 %v8673, %v8673
        %v8685 = vpack.c.b16 %v8675, %v8674
        %v8686 = vpack.c.b16 %v8677, %v8676
        %v8687 = vpack.c.b16 %v8679, %v8678
        %v8688 = vpack.c.b16 %v8680, %v8680
        %8697 = vst [vmem:[#allocation5 + $0x498] sm:$0xff] %v8681
        %8698 = vst [vmem:[#allocation5 + $0x4a0] sm:$0xff] %v8682
        %8699 = vst [vmem:[#allocation5 + $0x4a8] sm:$0xff] %v8683
        %8700 = vst [vmem:[#allocation5 + $0x4b0] sm:$0xf] %v8684
        %8701 = vst [vmem:[#allocation5 + $0x4b4] sm:$0xff] %v8685
        %8702 = vst [vmem:[#allocation5 + $0x4bc] sm:$0xff] %v8686
        %8703 = vst [vmem:[#allocation5 + $0x4c4] sm:$0xff] %v8687
        %8704 = vst [vmem:[#allocation5 + $0x4cc] sm:$0xf] %v8688
        %v8705 = vpack.c.bf16 %v8527, %v8519
        %v8706 = vpack.c.bf16 %v8528, %v8520
        %v8707 = vpack.c.bf16 %v8529, %v8521
        %v8708 = vpack.c.bf16 %v8530, %v8522
        %v8709 = vpack.c.bf16 %v8531, %v8523
        %v8710 = vpack.c.bf16 %v8532, %v8524
        %v8711 = vpack.c.bf16 %v8533, %v8525
        %v8712 = vpack.c.bf16 %v8534, %v8526
        %v8721 = vunpack.c.l.b16 %v8705
        %v8722 = vunpack.c.l.b16 %v8706
        %v8723 = vunpack.c.l.b16 %v8707
        %v8724 = vunpack.c.l.b16 %v8708
        %v8725 = vunpack.c.l.b16 %v8709
        %v8726 = vunpack.c.l.b16 %v8710
        %v8727 = vunpack.c.l.b16 %v8711
        %v8728 = vunpack.c.l.b16 %v8712
        %v8729 = vunpack.c.h.b16 %v8705
        %v8730 = vunpack.c.h.b16 %v8706
        %v8731 = vunpack.c.h.b16 %v8707
        %v8732 = vunpack.c.h.b16 %v8708
        %v8733 = vunpack.c.h.b16 %v8709
        %v8734 = vunpack.c.h.b16 %v8710
        %v8735 = vunpack.c.h.b16 %v8711
        %v8736 = vunpack.c.h.b16 %v8712
        %v8737 = vpack.c.b16 %v8722, %v8721
        %v8738 = vpack.c.b16 %v8724, %v8723
        %v8739 = vpack.c.b16 %v8726, %v8725
        %v8740 = vpack.c.b16 %v8728, %v8727
        %v8741 = vpack.c.b16 %v8730, %v8729
        %v8742 = vpack.c.b16 %v8732, %v8731
        %v8743 = vpack.c.b16 %v8734, %v8733
        %v8744 = vpack.c.b16 %v8736, %v8735
        %8745 = vrot.lane.b32.xlu0 %v8737, 28
        %v8746 = vpop.permute.xlu0 %8745
        %8747 = vrot.lane.b32.xlu0 %v8738, 28
        %v8748 = vpop.permute.xlu0 %8747
        %8749 = vrot.lane.b32.xlu0 %v8739, 28
        %v8750 = vpop.permute.xlu0 %8749
        %8751 = vrot.lane.b32.xlu0 %v8740, 28
        %v8752 = vpop.permute.xlu0 %8751
        %8753 = vrot.lane.b32.xlu0 %v8741, 28
        %v8754 = vpop.permute.xlu0 %8753
        %8755 = vrot.lane.b32.xlu0 %v8742, 28
        %v8756 = vpop.permute.xlu0 %8755
        %8757 = vrot.lane.b32.xlu0 %v8743, 28
        %v8758 = vpop.permute.xlu0 %8757
        %8759 = vrot.lane.b32.xlu0 %v8744, 28
        %v8760 = vpop.permute.xlu0 %8759
        %v8761 = vrot.slane %v8746, 4
        %v8762 = vrot.slane %v8748, 4
        %v8763 = vrot.slane %v8750, 4
        %v8764 = vrot.slane %v8752, 4
        %v8765 = vrot.slane %v8754, 4
        %v8766 = vrot.slane %v8756, 4
        %v8767 = vrot.slane %v8758, 4
        %v8768 = vrot.slane %v8760, 4
        %v8769 = vsel %vm1080, %v8761, %v8762
        %v8770 = vsel %vm3593, %v8746, %v8769
        %v8771 = vsel %vm1080, %v8762, %v8763
        %v8772 = vsel %vm3593, %v8748, %v8771
        %v8773 = vsel %vm1080, %v8763, %v8764
        %v8774 = vsel %vm3593, %v8750, %v8773
        %v8775 = vsel %vm3593, %v8752, %v8764
        %v8776 = vsel %vm1080, %v8765, %v8766
        %v8777 = vsel %vm3593, %v8754, %v8776
        %v8778 = vsel %vm1080, %v8766, %v8767
        %v8779 = vsel %vm3593, %v8756, %v8778
        %v8780 = vsel %vm1080, %v8767, %v8768
        %v8781 = vsel %vm3593, %v8758, %v8780
        %v8782 = vsel %vm3593, %v8760, %v8768
        %8791 = vst [vmem:[#allocation5 + $0x4d0] sm:$0xff] %v8770
        %8792 = vst [vmem:[#allocation5 + $0x4d8] sm:$0xff] %v8772
        %8793 = vst [vmem:[#allocation5 + $0x4e0] sm:$0xff] %v8774
        %8794 = vst [vmem:[#allocation5 + $0x4e8] sm:$0xf] %v8775
        %8795 = vst [vmem:[#allocation5 + $0x4ec] sm:$0xff] %v8777
        %8796 = vst [vmem:[#allocation5 + $0x4f4] sm:$0xff] %v8779
        %8797 = vst [vmem:[#allocation5 + $0x4fc] sm:$0xff] %v8781
        %8798 = vst [vmem:[#allocation5 + $0x504] sm:$0xf] %v8782
        %8799 = vrot.lane.b32.xlu0 %v8583, 127
        %v8800 = vpop.permute.xlu0 %8799
        %8801 = vrot.lane.b32.xlu0 %v8590, 127
        %v8802 = vpop.permute.xlu0 %8801
        %8803 = vrot.lane.b32.xlu0 %v8584, 127
        %v8804 = vpop.permute.xlu0 %8803
        %8805 = vrot.lane.b32.xlu0 %v8591, 127
        %v8806 = vpop.permute.xlu0 %8805
        %8807 = vrot.lane.b32.xlu0 %v8585, 127
        %v8808 = vpop.permute.xlu0 %8807
        %8809 = vrot.lane.b32.xlu0 %v8592, 127
        %v8810 = vpop.permute.xlu0 %8809
        %8811 = vrot.lane.b32.xlu0 %v8586, 127
        %v8812 = vpop.permute.xlu0 %8811
        %8813 = vrot.lane.b32.xlu0 %v8593, 127
        %v8814 = vpop.permute.xlu0 %8813
        %8815 = vrot.lane.b32.xlu0 %v8587, 127
        %v8816 = vpop.permute.xlu0 %8815
        %8817 = vrot.lane.b32.xlu0 %v8594, 127
        %v8818 = vpop.permute.xlu0 %8817
        %8819 = vrot.lane.b32.xlu0 %v8588, 127
        %v8820 = vpop.permute.xlu0 %8819
        %8821 = vrot.lane.b32.xlu0 %v8595, 127
        %v8822 = vpop.permute.xlu0 %8821
        %8823 = vrot.lane.b32.xlu0 %v8589, 127
        %v8824 = vpop.permute.xlu0 %8823
        %8825 = vrot.lane.b32.xlu0 %v8596, 127
        %v8826 = vpop.permute.xlu0 %8825
        %v8827 = vsel %vm1140, %v8820, %v8824
        %v8828 = vsel %vm1140, %v8822, %v8826
        %v8829 = vsel %vm1140, %v8816, %v8820
        %v8830 = vsel %vm1140, %v8818, %v8822
        %v8831 = vsel %vm1140, %v8812, %v8816
        %v8832 = vsel %vm1140, %v8814, %v8818
        %v8833 = vsel %vm1140, %v8808, %v8812
        %v8834 = vsel %vm1140, %v8810, %v8814
        %v8835 = vsel %vm1140, %v8804, %v8808
        %v8836 = vsel %vm1140, %v8806, %v8810
        %v8837 = vsel %vm1140, %v8800, %v8804
        %v8838 = vsel %vm1140, %v8802, %v8806
        %v8839 = vsel %vm1140, %v8824, %v8800
        %v8840 = vsel %vm1140, %v8826, %v8802
        %v8841 = vpack.c.bf16 %v8838, %v8837
        %v8842 = vpack.c.bf16 %v8836, %v8835
        %v8843 = vpack.c.bf16 %v8834, %v8833
        %v8844 = vpack.c.bf16 %v8832, %v8831
        %v8845 = vpack.c.bf16 %v8830, %v8829
        %v8846 = vpack.c.bf16 %v8828, %v8827
        %v8847 = vpack.c.bf16 %v8840, %v8839
        %v8855 = vunpack.c.l.b16 %v8841
        %v8856 = vunpack.c.l.b16 %v8842
        %v8857 = vunpack.c.l.b16 %v8843
        %v8858 = vunpack.c.l.b16 %v8844
        %v8859 = vunpack.c.l.b16 %v8845
        %v8860 = vunpack.c.l.b16 %v8846
        %v8861 = vunpack.c.l.b16 %v8847
        %v8862 = vunpack.c.h.b16 %v8841
        %v8863 = vunpack.c.h.b16 %v8842
        %v8864 = vunpack.c.h.b16 %v8843
        %v8865 = vunpack.c.h.b16 %v8844
        %v8866 = vunpack.c.h.b16 %v8845
        %v8867 = vunpack.c.h.b16 %v8846
        %v8868 = vunpack.c.h.b16 %v8847
        %v8869 = vpack.c.b16 %v8856, %v8855
        %v8870 = vpack.c.b16 %v8858, %v8857
        %v8871 = vpack.c.b16 %v8860, %v8859
        %v8872 = vpack.c.b16 %v8861, %v8861
        %v8873 = vpack.c.b16 %v8863, %v8862
        %v8874 = vpack.c.b16 %v8865, %v8864
        %v8875 = vpack.c.b16 %v8867, %v8866
        %v8876 = vpack.c.b16 %v8868, %v8868
        %8885 = vst [vmem:[#allocation5 + $0x508] sm:$0xff] %v8869
        %8886 = vst [vmem:[#allocation5 + $0x510] sm:$0xff] %v8870
        %8887 = vst [vmem:[#allocation5 + $0x518] sm:$0xff] %v8871
        %8888 = vst [vmem:[#allocation5 + $0x520] sm:$0xf] %v8872
        %8889 = vst [vmem:[#allocation5 + $0x524] sm:$0xff] %v8873
        %8890 = vst [vmem:[#allocation5 + $0x52c] sm:$0xff] %v8874
        %8891 = vst [vmem:[#allocation5 + $0x534] sm:$0xff] %v8875
        %8892 = vst [vmem:[#allocation5 + $0x53c] sm:$0xf] %v8876
        %v8893 = vld [vmem:[#allocation3 + $0x8] sm:$0xff]
        %v8894 = vld [vmem:[#allocation3 + $0x10] sm:$0xff]
        %v8895 = vld [vmem:[#allocation3 + $0x18] sm:$0xff]
        %v8896 = vld [vmem:[#allocation3 + $0x20] sm:$0xff]
        %v8897 = vld [vmem:[#allocation3 + $0x28] sm:$0xff]
        %v8898 = vld [vmem:[#allocation3 + $0x30] sm:$0xff]
        %v8899 = vld [vmem:[#allocation3 + $0x38] sm:$0xff]
        %v8900 = vld [vmem:[#allocation3 + $0x40] sm:$0xff]
        %v8901 = vld [vmem:[#allocation3 + $0x50] sm:$0xff]
        %v8902 = vld [vmem:[#allocation3 + $0x58] sm:$0xff]
        %v8903 = vld [vmem:[#allocation3 + $0x60] sm:$0xff]
        %v8904 = vld [vmem:[#allocation3 + $0x68] sm:$0xff]
        %v8905 = vld [vmem:[#allocation3 + $0x70] sm:$0xff]
        %v8906 = vld [vmem:[#allocation3 + $0x78] sm:$0xff]
        %v8907 = vld [vmem:[#allocation3 + $0x80] sm:$0xff]
        %v8908 = vld [vmem:[#allocation3 + $0x88] sm:$0xff]
        %8925 = vrot.lane.b32.xlu0 %v8893, 18
        %v8926 = vpop.permute.xlu0 %8925
        %8927 = vrot.lane.b32.xlu0 %v8894, 18
        %v8928 = vpop.permute.xlu0 %8927
        %8929 = vrot.lane.b32.xlu0 %v8895, 18
        %v8930 = vpop.permute.xlu0 %8929
        %8931 = vrot.lane.b32.xlu0 %v8896, 18
        %v8932 = vpop.permute.xlu0 %8931
        %8933 = vrot.lane.b32.xlu0 %v8897, 18
        %v8934 = vpop.permute.xlu0 %8933
        %8935 = vrot.lane.b32.xlu0 %v8898, 18
        %v8936 = vpop.permute.xlu0 %8935
        %8937 = vrot.lane.b32.xlu0 %v8899, 18
        %v8938 = vpop.permute.xlu0 %8937
        %8939 = vrot.lane.b32.xlu0 %v8900, 18
        %v8940 = vpop.permute.xlu0 %8939
        %8941 = vrot.lane.b32.xlu0 %v8901, 18
        %v8942 = vpop.permute.xlu0 %8941
        %8943 = vrot.lane.b32.xlu0 %v8902, 18
        %v8944 = vpop.permute.xlu0 %8943
        %8945 = vrot.lane.b32.xlu0 %v8903, 18
        %v8946 = vpop.permute.xlu0 %8945
        %8947 = vrot.lane.b32.xlu0 %v8904, 18
        %v8948 = vpop.permute.xlu0 %8947
        %8949 = vrot.lane.b32.xlu0 %v8905, 18
        %v8950 = vpop.permute.xlu0 %8949
        %8951 = vrot.lane.b32.xlu0 %v8906, 18
        %v8952 = vpop.permute.xlu0 %8951
        %8953 = vrot.lane.b32.xlu0 %v8907, 18
        %v8954 = vpop.permute.xlu0 %8953
        %8955 = vrot.lane.b32.xlu0 %v8908, 18
        %v8956 = vpop.permute.xlu0 %8955
        %v8957 = vsel %vm3781, %v8926, %v8928
        %v8958 = vsel %vm3781, %v8928, %v8930
        %v8959 = vsel %vm3781, %v8930, %v8932
        %v8960 = vsel %vm3781, %v8932, %v8934
        %v8961 = vsel %vm3781, %v8934, %v8936
        %v8962 = vsel %vm3781, %v8936, %v8938
        %v8963 = vsel %vm3781, %v8938, %v8940
        %v8964 = vsel %vm3781, %v8942, %v8944
        %v8965 = vsel %vm3781, %v8944, %v8946
        %v8966 = vsel %vm3781, %v8946, %v8948
        %v8967 = vsel %vm3781, %v8948, %v8950
        %v8968 = vsel %vm3781, %v8950, %v8952
        %v8969 = vsel %vm3781, %v8952, %v8954
        %v8970 = vsel %vm3781, %v8954, %v8956
        %8985 = vrot.lane.b32.xlu0 %v8957, 1
        %v8986 = vpop.permute.xlu0 %8985
        %8987 = vrot.lane.b32.xlu0 %v8964, 1
        %v8988 = vpop.permute.xlu0 %8987
        %8989 = vrot.lane.b32.xlu0 %v8958, 1
        %v8990 = vpop.permute.xlu0 %8989
        %8991 = vrot.lane.b32.xlu0 %v8965, 1
        %v8992 = vpop.permute.xlu0 %8991
        %8993 = vrot.lane.b32.xlu0 %v8959, 1
        %v8994 = vpop.permute.xlu0 %8993
        %8995 = vrot.lane.b32.xlu0 %v8966, 1
        %v8996 = vpop.permute.xlu0 %8995
        %8997 = vrot.lane.b32.xlu0 %v8960, 1
        %v8998 = vpop.permute.xlu0 %8997
        %8999 = vrot.lane.b32.xlu0 %v8967, 1
        %v9000 = vpop.permute.xlu0 %8999
        %9001 = vrot.lane.b32.xlu0 %v8961, 1
        %v9002 = vpop.permute.xlu0 %9001
        %9003 = vrot.lane.b32.xlu0 %v8968, 1
        %v9004 = vpop.permute.xlu0 %9003
        %9005 = vrot.lane.b32.xlu0 %v8962, 1
        %v9006 = vpop.permute.xlu0 %9005
        %9007 = vrot.lane.b32.xlu0 %v8969, 1
        %v9008 = vpop.permute.xlu0 %9007
        %9009 = vrot.lane.b32.xlu0 %v8963, 1
        %v9010 = vpop.permute.xlu0 %9009
        %9011 = vrot.lane.b32.xlu0 %v8970, 1
        %v9012 = vpop.permute.xlu0 %9011
        %v9013 = vsel %vm949, %v9006, %v9010
        %v9014 = vsel %vm949, %v9008, %v9012
        %v9015 = vsel %vm949, %v9002, %v9006
        %v9016 = vsel %vm949, %v9004, %v9008
        %v9017 = vsel %vm949, %v8998, %v9002
        %v9018 = vsel %vm949, %v9000, %v9004
        %v9019 = vsel %vm949, %v8994, %v8998
        %v9020 = vsel %vm949, %v8996, %v9000
        %v9021 = vsel %vm949, %v8990, %v8994
        %v9022 = vsel %vm949, %v8992, %v8996
        %v9023 = vsel %vm949, %v8986, %v8990
        %v9024 = vsel %vm949, %v8988, %v8992
        %v9025 = vsel %vm949, %v9010, %v8986
        %v9026 = vsel %vm949, %v9012, %v8988
        %v9027 = vpack.c.bf16 %v9026, %v9025
        %v9028 = vpack.c.bf16 %v9024, %v9023
        %v9029 = vpack.c.bf16 %v9022, %v9021
        %v9030 = vpack.c.bf16 %v9020, %v9019
        %v9031 = vpack.c.bf16 %v9018, %v9017
        %v9032 = vpack.c.bf16 %v9016, %v9015
        %v9033 = vpack.c.bf16 %v9014, %v9013
        %v9041 = vunpack.c.l.b16 %v9027
        %v9042 = vunpack.c.l.b16 %v9028
        %v9043 = vunpack.c.l.b16 %v9029
        %v9044 = vunpack.c.l.b16 %v9030
        %v9045 = vunpack.c.l.b16 %v9031
        %v9046 = vunpack.c.l.b16 %v9032
        %v9047 = vunpack.c.l.b16 %v9033
        %v9048 = vunpack.c.h.b16 %v9027
        %v9049 = vunpack.c.h.b16 %v9028
        %v9050 = vunpack.c.h.b16 %v9029
        %v9051 = vunpack.c.h.b16 %v9030
        %v9052 = vunpack.c.h.b16 %v9031
        %v9053 = vunpack.c.h.b16 %v9032
        %v9054 = vunpack.c.h.b16 %v9033
        %v9055 = vpack.c.b16 %v9042, %v9041
        %v9056 = vpack.c.b16 %v9044, %v9043
        %v9057 = vpack.c.b16 %v9046, %v9045
        %v9058 = vpack.c.b16 %v9047, %v9047
        %v9059 = vpack.c.b16 %v9049, %v9048
        %v9060 = vpack.c.b16 %v9051, %v9050
        %v9061 = vpack.c.b16 %v9053, %v9052
        %v9062 = vpack.c.b16 %v9054, %v9054
        %9071 = vst [vmem:[#allocation5 + $0x540] sm:$0xff] %v9055
        %9072 = vst [vmem:[#allocation5 + $0x548] sm:$0xff] %v9056
        %9073 = vst [vmem:[#allocation5 + $0x550] sm:$0xff] %v9057
        %9074 = vst [vmem:[#allocation5 + $0x558] sm:$0xf] %v9058
        %9075 = vst [vmem:[#allocation5 + $0x55c] sm:$0xff] %v9059
        %9076 = vst [vmem:[#allocation5 + $0x564] sm:$0xff] %v9060
        %9077 = vst [vmem:[#allocation5 + $0x56c] sm:$0xff] %v9061
        %9078 = vst [vmem:[#allocation5 + $0x574] sm:$0xf] %v9062
        %v9079 = vpack.c.bf16 %v8901, %v8893
        %v9080 = vpack.c.bf16 %v8902, %v8894
        %v9081 = vpack.c.bf16 %v8903, %v8895
        %v9082 = vpack.c.bf16 %v8904, %v8896
        %v9083 = vpack.c.bf16 %v8905, %v8897
        %v9084 = vpack.c.bf16 %v8906, %v8898
        %v9085 = vpack.c.bf16 %v8907, %v8899
        %v9086 = vpack.c.bf16 %v8908, %v8900
        %v9095 = vunpack.c.l.b16 %v9079
        %v9096 = vunpack.c.l.b16 %v9080
        %v9097 = vunpack.c.l.b16 %v9081
        %v9098 = vunpack.c.l.b16 %v9082
        %v9099 = vunpack.c.l.b16 %v9083
        %v9100 = vunpack.c.l.b16 %v9084
        %v9101 = vunpack.c.l.b16 %v9085
        %v9102 = vunpack.c.l.b16 %v9086
        %v9103 = vunpack.c.h.b16 %v9079
        %v9104 = vunpack.c.h.b16 %v9080
        %v9105 = vunpack.c.h.b16 %v9081
        %v9106 = vunpack.c.h.b16 %v9082
        %v9107 = vunpack.c.h.b16 %v9083
        %v9108 = vunpack.c.h.b16 %v9084
        %v9109 = vunpack.c.h.b16 %v9085
        %v9110 = vunpack.c.h.b16 %v9086
        %v9111 = vpack.c.b16 %v9096, %v9095
        %v9112 = vpack.c.b16 %v9098, %v9097
        %v9113 = vpack.c.b16 %v9100, %v9099
        %v9114 = vpack.c.b16 %v9102, %v9101
        %v9115 = vpack.c.b16 %v9104, %v9103
        %v9116 = vpack.c.b16 %v9106, %v9105
        %v9117 = vpack.c.b16 %v9108, %v9107
        %v9118 = vpack.c.b16 %v9110, %v9109
        %9119 = vrot.lane.b32.xlu0 %v9111, 18
        %v9120 = vpop.permute.xlu0 %9119
        %9121 = vrot.lane.b32.xlu0 %v9112, 18
        %v9122 = vpop.permute.xlu0 %9121
        %9123 = vrot.lane.b32.xlu0 %v9113, 18
        %v9124 = vpop.permute.xlu0 %9123
        %9125 = vrot.lane.b32.xlu0 %v9114, 18
        %v9126 = vpop.permute.xlu0 %9125
        %9127 = vrot.lane.b32.xlu0 %v9115, 18
        %v9128 = vpop.permute.xlu0 %9127
        %9129 = vrot.lane.b32.xlu0 %v9116, 18
        %v9130 = vpop.permute.xlu0 %9129
        %9131 = vrot.lane.b32.xlu0 %v9117, 18
        %v9132 = vpop.permute.xlu0 %9131
        %9133 = vrot.lane.b32.xlu0 %v9118, 18
        %v9134 = vpop.permute.xlu0 %9133
        %v9135 = vrot.slane %v9120, 4
        %v9136 = vrot.slane %v9122, 4
        %v9137 = vrot.slane %v9124, 4
        %v9138 = vrot.slane %v9126, 4
        %v9139 = vrot.slane %v9128, 4
        %v9140 = vrot.slane %v9130, 4
        %v9141 = vrot.slane %v9132, 4
        %v9142 = vrot.slane %v9134, 4
        %v9143 = vsel %vm1080, %v9135, %v9136
        %v9144 = vsel %vm3969, %v9120, %v9143
        %v9145 = vsel %vm1080, %v9136, %v9137
        %v9146 = vsel %vm3969, %v9122, %v9145
        %v9147 = vsel %vm1080, %v9137, %v9138
        %v9148 = vsel %vm3969, %v9124, %v9147
        %v9149 = vsel %vm3969, %v9126, %v9138
        %v9150 = vsel %vm1080, %v9139, %v9140
        %v9151 = vsel %vm3969, %v9128, %v9150
        %v9152 = vsel %vm1080, %v9140, %v9141
        %v9153 = vsel %vm3969, %v9130, %v9152
        %v9154 = vsel %vm1080, %v9141, %v9142
        %v9155 = vsel %vm3969, %v9132, %v9154
        %v9156 = vsel %vm3969, %v9134, %v9142
        %9165 = vst [vmem:[#allocation5 + $0x578] sm:$0xff] %v9144
        %9166 = vst [vmem:[#allocation5 + $0x580] sm:$0xff] %v9146
        %9167 = vst [vmem:[#allocation5 + $0x588] sm:$0xff] %v9148
        %9168 = vst [vmem:[#allocation5 + $0x590] sm:$0xf] %v9149
        %9169 = vst [vmem:[#allocation5 + $0x594] sm:$0xff] %v9151
        %9170 = vst [vmem:[#allocation5 + $0x59c] sm:$0xff] %v9153
        %9171 = vst [vmem:[#allocation5 + $0x5a4] sm:$0xff] %v9155
        %9172 = vst [vmem:[#allocation5 + $0x5ac] sm:$0xf] %v9156
        %9173 = vrot.lane.b32.xlu0 %v8957, 127
        %v9174 = vpop.permute.xlu0 %9173
        %9175 = vrot.lane.b32.xlu0 %v8964, 127
        %v9176 = vpop.permute.xlu0 %9175
        %9177 = vrot.lane.b32.xlu0 %v8958, 127
        %v9178 = vpop.permute.xlu0 %9177
        %9179 = vrot.lane.b32.xlu0 %v8965, 127
        %v9180 = vpop.permute.xlu0 %9179
        %9181 = vrot.lane.b32.xlu0 %v8959, 127
        %v9182 = vpop.permute.xlu0 %9181
        %9183 = vrot.lane.b32.xlu0 %v8966, 127
        %v9184 = vpop.permute.xlu0 %9183
        %9185 = vrot.lane.b32.xlu0 %v8960, 127
        %v9186 = vpop.permute.xlu0 %9185
        %9187 = vrot.lane.b32.xlu0 %v8967, 127
        %v9188 = vpop.permute.xlu0 %9187
        %9189 = vrot.lane.b32.xlu0 %v8961, 127
        %v9190 = vpop.permute.xlu0 %9189
        %9191 = vrot.lane.b32.xlu0 %v8968, 127
        %v9192 = vpop.permute.xlu0 %9191
        %9193 = vrot.lane.b32.xlu0 %v8962, 127
        %v9194 = vpop.permute.xlu0 %9193
        %9195 = vrot.lane.b32.xlu0 %v8969, 127
        %v9196 = vpop.permute.xlu0 %9195
        %9197 = vrot.lane.b32.xlu0 %v8963, 127
        %v9198 = vpop.permute.xlu0 %9197
        %9199 = vrot.lane.b32.xlu0 %v8970, 127
        %v9200 = vpop.permute.xlu0 %9199
        %v9201 = vsel %vm1140, %v9194, %v9198
        %v9202 = vsel %vm1140, %v9196, %v9200
        %v9203 = vsel %vm1140, %v9190, %v9194
        %v9204 = vsel %vm1140, %v9192, %v9196
        %v9205 = vsel %vm1140, %v9186, %v9190
        %v9206 = vsel %vm1140, %v9188, %v9192
        %v9207 = vsel %vm1140, %v9182, %v9186
        %v9208 = vsel %vm1140, %v9184, %v9188
        %v9209 = vsel %vm1140, %v9178, %v9182
        %v9210 = vsel %vm1140, %v9180, %v9184
        %v9211 = vsel %vm1140, %v9174, %v9178
        %v9212 = vsel %vm1140, %v9176, %v9180
        %v9213 = vsel %vm1140, %v9198, %v9174
        %v9214 = vsel %vm1140, %v9200, %v9176
        %v9215 = vpack.c.bf16 %v9212, %v9211
        %v9216 = vpack.c.bf16 %v9210, %v9209
        %v9217 = vpack.c.bf16 %v9208, %v9207
        %v9218 = vpack.c.bf16 %v9206, %v9205
        %v9219 = vpack.c.bf16 %v9204, %v9203
        %v9220 = vpack.c.bf16 %v9202, %v9201
        %v9221 = vpack.c.bf16 %v9214, %v9213
        %v9229 = vunpack.c.l.b16 %v9215
        %v9230 = vunpack.c.l.b16 %v9216
        %v9231 = vunpack.c.l.b16 %v9217
        %v9232 = vunpack.c.l.b16 %v9218
        %v9233 = vunpack.c.l.b16 %v9219
        %v9234 = vunpack.c.l.b16 %v9220
        %v9235 = vunpack.c.l.b16 %v9221
        %v9236 = vunpack.c.h.b16 %v9215
        %v9237 = vunpack.c.h.b16 %v9216
        %v9238 = vunpack.c.h.b16 %v9217
        %v9239 = vunpack.c.h.b16 %v9218
        %v9240 = vunpack.c.h.b16 %v9219
        %v9241 = vunpack.c.h.b16 %v9220
        %v9242 = vunpack.c.h.b16 %v9221
        %v9243 = vpack.c.b16 %v9230, %v9229
        %v9244 = vpack.c.b16 %v9232, %v9231
        %v9245 = vpack.c.b16 %v9234, %v9233
        %v9246 = vpack.c.b16 %v9235, %v9235
        %v9247 = vpack.c.b16 %v9237, %v9236
        %v9248 = vpack.c.b16 %v9239, %v9238
        %v9249 = vpack.c.b16 %v9241, %v9240
        %v9250 = vpack.c.b16 %v9242, %v9242
        %9259 = vst [vmem:[#allocation5 + $0x5b0] sm:$0xff] %v9243
        %9260 = vst [vmem:[#allocation5 + $0x5b8] sm:$0xff] %v9244
        %9261 = vst [vmem:[#allocation5 + $0x5c0] sm:$0xff] %v9245
        %9262 = vst [vmem:[#allocation5 + $0x5c8] sm:$0xf] %v9246
        %9263 = vst [vmem:[#allocation5 + $0x5cc] sm:$0xff] %v9247
        %9264 = vst [vmem:[#allocation5 + $0x5d4] sm:$0xff] %v9248
        %9265 = vst [vmem:[#allocation5 + $0x5dc] sm:$0xff] %v9249
        %9266 = vst [vmem:[#allocation5 + $0x5e4] sm:$0xf] %v9250
        %v9267 = vld [vmem:[%s8] sm:$0xff]
        %v9268 = vld [vmem:[%s8 + $0x8] sm:$0xff]
        %v9269 = vld [vmem:[#allocation5] sm:$0xff]
        %v9270 = vld [vmem:[#allocation5 + $0x8] sm:$0xff]
        %v9271 = vld [vmem:[#allocation5 + $0x10] sm:$0xff]
        %v9272 = vld [vmem:[#allocation5 + $0x18] sm:$0xf]
        %v9273 = vld [vmem:[#allocation5 + $0x1c] sm:$0xff]
        %v9274 = vld [vmem:[#allocation5 + $0x24] sm:$0xff]
        %v9275 = vld [vmem:[#allocation5 + $0x2c] sm:$0xff]
        %v9276 = vld [vmem:[#allocation5 + $0x34] sm:$0xf]
        %v9277 = vld [vmem:[#allocation5 + $0x38] sm:$0xff]
        %v9278 = vld [vmem:[#allocation5 + $0x40] sm:$0xff]
        %v9279 = vld [vmem:[#allocation5 + $0x48] sm:$0xff]
        %v9280 = vld [vmem:[#allocation5 + $0x50] sm:$0xf]
        %v9281 = vld [vmem:[#allocation5 + $0x54] sm:$0xff]
        %v9282 = vld [vmem:[#allocation5 + $0x5c] sm:$0xff]
        %v9283 = vld [vmem:[#allocation5 + $0x64] sm:$0xff]
        %v9284 = vld [vmem:[#allocation5 + $0x6c] sm:$0xf]
        %v9285 = vld [vmem:[#allocation5 + $0x70] sm:$0xff]
        %v9286 = vld [vmem:[#allocation5 + $0x78] sm:$0xff]
        %v9287 = vld [vmem:[#allocation5 + $0x80] sm:$0xff]
        %v9288 = vld [vmem:[#allocation5 + $0x88] sm:$0xf]
        %v9289 = vld [vmem:[#allocation5 + $0x8c] sm:$0xff]
        %v9290 = vld [vmem:[#allocation5 + $0x94] sm:$0xff]
        %v9291 = vld [vmem:[#allocation5 + $0x9c] sm:$0xff]
        %v9292 = vld [vmem:[#allocation5 + $0xa4] sm:$0xf]
        %v9293 = vld [vmem:[#allocation5 + $0xa8] sm:$0xff]
        %v9294 = vld [vmem:[#allocation5 + $0xb0] sm:$0xff]
        %v9295 = vld [vmem:[#allocation5 + $0xb8] sm:$0xff]
        %v9296 = vld [vmem:[#allocation5 + $0xc0] sm:$0xf]
        %v9297 = vld [vmem:[#allocation5 + $0xc4] sm:$0xff]
        %v9298 = vld [vmem:[#allocation5 + $0xcc] sm:$0xff]
        %v9299 = vld [vmem:[#allocation5 + $0xd4] sm:$0xff]
        %v9300 = vld [vmem:[#allocation5 + $0xdc] sm:$0xf]
        %v9301 = vld [vmem:[#allocation5 + $0xe0] sm:$0xff]
        %v9302 = vld [vmem:[#allocation5 + $0xe8] sm:$0xff]
        %v9303 = vld [vmem:[#allocation5 + $0xf0] sm:$0xff]
        %v9304 = vld [vmem:[#allocation5 + $0xf8] sm:$0xf]
        %v9305 = vld [vmem:[#allocation5 + $0xfc] sm:$0xff]
        %v9306 = vld [vmem:[#allocation5 + $0x104] sm:$0xff]
        %v9307 = vld [vmem:[#allocation5 + $0x10c] sm:$0xff]
        %v9308 = vld [vmem:[#allocation5 + $0x114] sm:$0xf]
        %v9309 = vld [vmem:[#allocation5 + $0x118] sm:$0xff]
        %v9310 = vld [vmem:[#allocation5 + $0x120] sm:$0xff]
        %v9311 = vld [vmem:[#allocation5 + $0x128] sm:$0xff]
        %v9312 = vld [vmem:[#allocation5 + $0x130] sm:$0xf]
        %v9313 = vld [vmem:[#allocation5 + $0x134] sm:$0xff]
        %v9314 = vld [vmem:[#allocation5 + $0x13c] sm:$0xff]
        %v9315 = vld [vmem:[#allocation5 + $0x144] sm:$0xff]
        %v9316 = vld [vmem:[#allocation5 + $0x14c] sm:$0xf]
        %v9317 = vld [vmem:[#allocation5 + $0x150] sm:$0xff]
        %v9318 = vld [vmem:[#allocation5 + $0x158] sm:$0xff]
        %v9319 = vld [vmem:[#allocation5 + $0x160] sm:$0xff]
        %v9320 = vld [vmem:[#allocation5 + $0x168] sm:$0xf]
        %v9321 = vld [vmem:[#allocation5 + $0x16c] sm:$0xff]
        %v9322 = vld [vmem:[#allocation5 + $0x174] sm:$0xff]
        %v9323 = vld [vmem:[#allocation5 + $0x17c] sm:$0xff]
        %v9324 = vld [vmem:[#allocation5 + $0x184] sm:$0xf]
        %v9325 = vld [vmem:[#allocation5 + $0x188] sm:$0xff]
        %v9326 = vld [vmem:[#allocation5 + $0x190] sm:$0xff]
        %v9327 = vld [vmem:[#allocation5 + $0x198] sm:$0xff]
        %v9328 = vld [vmem:[#allocation5 + $0x1a0] sm:$0xf]
        %v9329 = vld [vmem:[#allocation5 + $0x1a4] sm:$0xff]
        %v9330 = vld [vmem:[#allocation5 + $0x1ac] sm:$0xff]
        %v9331 = vld [vmem:[#allocation5 + $0x1b4] sm:$0xff]
        %v9332 = vld [vmem:[#allocation5 + $0x1bc] sm:$0xf]
        %v9333 = vld [vmem:[#allocation5 + $0x1c0] sm:$0xff]
        %v9334 = vld [vmem:[#allocation5 + $0x1c8] sm:$0xff]
        %v9335 = vld [vmem:[#allocation5 + $0x1d0] sm:$0xff]
        %v9336 = vld [vmem:[#allocation5 + $0x1d8] sm:$0xf]
        %v9337 = vld [vmem:[#allocation5 + $0x1dc] sm:$0xff]
        %v9338 = vld [vmem:[#allocation5 + $0x1e4] sm:$0xff]
        %v9339 = vld [vmem:[#allocation5 + $0x1ec] sm:$0xff]
        %v9340 = vld [vmem:[#allocation5 + $0x1f4] sm:$0xf]
        %v9341 = vld [vmem:[#allocation5 + $0x1f8] sm:$0xff]
        %v9342 = vld [vmem:[#allocation5 + $0x200] sm:$0xff]
        %v9343 = vld [vmem:[#allocation5 + $0x208] sm:$0xff]
        %v9344 = vld [vmem:[#allocation5 + $0x210] sm:$0xf]
        %v9345 = vld [vmem:[#allocation5 + $0x214] sm:$0xff]
        %v9346 = vld [vmem:[#allocation5 + $0x21c] sm:$0xff]
        %v9347 = vld [vmem:[#allocation5 + $0x224] sm:$0xff]
        %v9348 = vld [vmem:[#allocation5 + $0x22c] sm:$0xf]
        %v9349 = vld [vmem:[#allocation5 + $0x230] sm:$0xff]
        %v9350 = vld [vmem:[#allocation5 + $0x238] sm:$0xff]
        %v9351 = vld [vmem:[#allocation5 + $0x240] sm:$0xff]
        %v9352 = vld [vmem:[#allocation5 + $0x248] sm:$0xf]
        %v9353 = vld [vmem:[#allocation5 + $0x24c] sm:$0xff]
        %v9354 = vld [vmem:[#allocation5 + $0x254] sm:$0xff]
        %v9355 = vld [vmem:[#allocation5 + $0x25c] sm:$0xff]
        %v9356 = vld [vmem:[#allocation5 + $0x264] sm:$0xf]
        %v9357 = vld [vmem:[#allocation5 + $0x268] sm:$0xff]
        %v9358 = vld [vmem:[#allocation5 + $0x270] sm:$0xff]
        %v9359 = vld [vmem:[#allocation5 + $0x278] sm:$0xff]
        %v9360 = vld [vmem:[#allocation5 + $0x280] sm:$0xf]
        %v9361 = vld [vmem:[#allocation5 + $0x284] sm:$0xff]
        %v9362 = vld [vmem:[#allocation5 + $0x28c] sm:$0xff]
        %v9363 = vld [vmem:[#allocation5 + $0x294] sm:$0xff]
        %v9364 = vld [vmem:[#allocation5 + $0x29c] sm:$0xf]
        %v9365 = vld [vmem:[#allocation5 + $0x2a0] sm:$0xff]
        %v9366 = vld [vmem:[#allocation5 + $0x2a8] sm:$0xff]
        %v9367 = vld [vmem:[#allocation5 + $0x2b0] sm:$0xff]
        %v9368 = vld [vmem:[#allocation5 + $0x2b8] sm:$0xf]
        %v9369 = vld [vmem:[#allocation5 + $0x2bc] sm:$0xff]
        %v9370 = vld [vmem:[#allocation5 + $0x2c4] sm:$0xff]
        %v9371 = vld [vmem:[#allocation5 + $0x2cc] sm:$0xff]
        %v9372 = vld [vmem:[#allocation5 + $0x2d4] sm:$0xf]
        %v9373 = vld [vmem:[#allocation5 + $0x2d8] sm:$0xff]
        %v9374 = vld [vmem:[#allocation5 + $0x2e0] sm:$0xff]
        %v9375 = vld [vmem:[#allocation5 + $0x2e8] sm:$0xff]
        %v9376 = vld [vmem:[#allocation5 + $0x2f0] sm:$0xf]
        %v9377 = vld [vmem:[#allocation5 + $0x2f4] sm:$0xff]
        %v9378 = vld [vmem:[#allocation5 + $0x2fc] sm:$0xff]
        %v9379 = vld [vmem:[#allocation5 + $0x304] sm:$0xff]
        %v9380 = vld [vmem:[#allocation5 + $0x30c] sm:$0xf]
        %v9381 = vld [vmem:[#allocation5 + $0x310] sm:$0xff]
        %v9382 = vld [vmem:[#allocation5 + $0x318] sm:$0xff]
        %v9383 = vld [vmem:[#allocation5 + $0x320] sm:$0xff]
        %v9384 = vld [vmem:[#allocation5 + $0x328] sm:$0xf]
        %v9385 = vld [vmem:[#allocation5 + $0x32c] sm:$0xff]
        %v9386 = vld [vmem:[#allocation5 + $0x334] sm:$0xff]
        %v9387 = vld [vmem:[#allocation5 + $0x33c] sm:$0xff]
        %v9388 = vld [vmem:[#allocation5 + $0x344] sm:$0xf]
        %v9389 = vld [vmem:[#allocation5 + $0x348] sm:$0xff]
        %v9390 = vld [vmem:[#allocation5 + $0x350] sm:$0xff]
        %v9391 = vld [vmem:[#allocation5 + $0x358] sm:$0xff]
        %v9392 = vld [vmem:[#allocation5 + $0x360] sm:$0xf]
        %v9393 = vld [vmem:[#allocation5 + $0x364] sm:$0xff]
        %v9394 = vld [vmem:[#allocation5 + $0x36c] sm:$0xff]
        %v9395 = vld [vmem:[#allocation5 + $0x374] sm:$0xff]
        %v9396 = vld [vmem:[#allocation5 + $0x37c] sm:$0xf]
        %v9397 = vld [vmem:[#allocation5 + $0x380] sm:$0xff]
        %v9398 = vld [vmem:[#allocation5 + $0x388] sm:$0xff]
        %v9399 = vld [vmem:[#allocation5 + $0x390] sm:$0xff]
        %v9400 = vld [vmem:[#allocation5 + $0x398] sm:$0xf]
        %v9401 = vld [vmem:[#allocation5 + $0x39c] sm:$0xff]
        %v9402 = vld [vmem:[#allocation5 + $0x3a4] sm:$0xff]
        %v9403 = vld [vmem:[#allocation5 + $0x3ac] sm:$0xff]
        %v9404 = vld [vmem:[#allocation5 + $0x3b4] sm:$0xf]
        %v9405 = vld [vmem:[#allocation5 + $0x3b8] sm:$0xff]
        %v9406 = vld [vmem:[#allocation5 + $0x3c0] sm:$0xff]
        %v9407 = vld [vmem:[#allocation5 + $0x3c8] sm:$0xff]
        %v9408 = vld [vmem:[#allocation5 + $0x3d0] sm:$0xf]
        %v9409 = vld [vmem:[#allocation5 + $0x3d4] sm:$0xff]
        %v9410 = vld [vmem:[#allocation5 + $0x3dc] sm:$0xff]
        %v9411 = vld [vmem:[#allocation5 + $0x3e4] sm:$0xff]
        %v9412 = vld [vmem:[#allocation5 + $0x3ec] sm:$0xf]
        %v9413 = vld [vmem:[#allocation5 + $0x3f0] sm:$0xff]
        %v9414 = vld [vmem:[#allocation5 + $0x3f8] sm:$0xff]
        %v9415 = vld [vmem:[#allocation5 + $0x400] sm:$0xff]
        %v9416 = vld [vmem:[#allocation5 + $0x408] sm:$0xf]
        %v9417 = vld [vmem:[#allocation5 + $0x40c] sm:$0xff]
        %v9418 = vld [vmem:[#allocation5 + $0x414] sm:$0xff]
        %v9419 = vld [vmem:[#allocation5 + $0x41c] sm:$0xff]
        %v9420 = vld [vmem:[#allocation5 + $0x424] sm:$0xf]
        %v9421 = vld [vmem:[#allocation5 + $0x428] sm:$0xff]
        %v9422 = vld [vmem:[#allocation5 + $0x430] sm:$0xff]
        %v9423 = vld [vmem:[#allocation5 + $0x438] sm:$0xff]
        %v9424 = vld [vmem:[#allocation5 + $0x440] sm:$0xf]
        %v9425 = vld [vmem:[#allocation5 + $0x444] sm:$0xff]
        %v9426 = vld [vmem:[#allocation5 + $0x44c] sm:$0xff]
        %v9427 = vld [vmem:[#allocation5 + $0x454] sm:$0xff]
        %v9428 = vld [vmem:[#allocation5 + $0x45c] sm:$0xf]
        %v9429 = vld [vmem:[#allocation5 + $0x460] sm:$0xff]
        %v9430 = vld [vmem:[#allocation5 + $0x468] sm:$0xff]
        %v9431 = vld [vmem:[#allocation5 + $0x470] sm:$0xff]
        %v9432 = vld [vmem:[#allocation5 + $0x478] sm:$0xf]
        %v9433 = vld [vmem:[#allocation5 + $0x47c] sm:$0xff]
        %v9434 = vld [vmem:[#allocation5 + $0x484] sm:$0xff]
        %v9435 = vld [vmem:[#allocation5 + $0x48c] sm:$0xff]
        %v9436 = vld [vmem:[#allocation5 + $0x494] sm:$0xf]
        %v9437 = vld [vmem:[#allocation5 + $0x498] sm:$0xff]
        %v9438 = vld [vmem:[#allocation5 + $0x4a0] sm:$0xff]
        %v9439 = vld [vmem:[#allocation5 + $0x4a8] sm:$0xff]
        %v9440 = vld [vmem:[#allocation5 + $0x4b0] sm:$0xf]
        %v9441 = vld [vmem:[#allocation5 + $0x4b4] sm:$0xff]
        %v9442 = vld [vmem:[#allocation5 + $0x4bc] sm:$0xff]
        %v9443 = vld [vmem:[#allocation5 + $0x4c4] sm:$0xff]
        %v9444 = vld [vmem:[#allocation5 + $0x4cc] sm:$0xf]
        %v9445 = vld [vmem:[#allocation5 + $0x4d0] sm:$0xff]
        %v9446 = vld [vmem:[#allocation5 + $0x4d8] sm:$0xff]
        %v9447 = vld [vmem:[#allocation5 + $0x4e0] sm:$0xff]
        %v9448 = vld [vmem:[#allocation5 + $0x4e8] sm:$0xf]
        %v9449 = vld [vmem:[#allocation5 + $0x4ec] sm:$0xff]
        %v9450 = vld [vmem:[#allocation5 + $0x4f4] sm:$0xff]
        %v9451 = vld [vmem:[#allocation5 + $0x4fc] sm:$0xff]
        %v9452 = vld [vmem:[#allocation5 + $0x504] sm:$0xf]
        %v9453 = vld [vmem:[#allocation5 + $0x508] sm:$0xff]
        %v9454 = vld [vmem:[#allocation5 + $0x510] sm:$0xff]
        %v9455 = vld [vmem:[#allocation5 + $0x518] sm:$0xff]
        %v9456 = vld [vmem:[#allocation5 + $0x520] sm:$0xf]
        %v9457 = vld [vmem:[#allocation5 + $0x524] sm:$0xff]
        %v9458 = vld [vmem:[#allocation5 + $0x52c] sm:$0xff]
        %v9459 = vld [vmem:[#allocation5 + $0x534] sm:$0xff]
        %v9460 = vld [vmem:[#allocation5 + $0x53c] sm:$0xf]
        %v9461 = vld [vmem:[#allocation5 + $0x540] sm:$0xff]
        %v9462 = vld [vmem:[#allocation5 + $0x548] sm:$0xff]
        %v9463 = vld [vmem:[#allocation5 + $0x550] sm:$0xff]
        %v9464 = vld [vmem:[#allocation5 + $0x558] sm:$0xf]
        %v9465 = vld [vmem:[#allocation5 + $0x55c] sm:$0xff]
        %v9466 = vld [vmem:[#allocation5 + $0x564] sm:$0xff]
        %v9467 = vld [vmem:[#allocation5 + $0x56c] sm:$0xff]
        %v9468 = vld [vmem:[#allocation5 + $0x574] sm:$0xf]
        %v9469 = vld [vmem:[#allocation5 + $0x578] sm:$0xff]
        %v9470 = vld [vmem:[#allocation5 + $0x580] sm:$0xff]
        %v9471 = vld [vmem:[#allocation5 + $0x588] sm:$0xff]
        %v9472 = vld [vmem:[#allocation5 + $0x590] sm:$0xf]
        %v9473 = vld [vmem:[#allocation5 + $0x594] sm:$0xff]
        %v9474 = vld [vmem:[#allocation5 + $0x59c] sm:$0xff]
        %v9475 = vld [vmem:[#allocation5 + $0x5a4] sm:$0xff]
        %v9476 = vld [vmem:[#allocation5 + $0x5ac] sm:$0xf]
        %v9477 = vld [vmem:[#allocation5 + $0x5b0] sm:$0xff]
        %v9478 = vld [vmem:[#allocation5 + $0x5b8] sm:$0xff]
        %v9479 = vld [vmem:[#allocation5 + $0x5c0] sm:$0xff]
        %v9480 = vld [vmem:[#allocation5 + $0x5c8] sm:$0xf]
        %v9481 = vld [vmem:[#allocation5 + $0x5cc] sm:$0xff]
        %v9482 = vld [vmem:[#allocation5 + $0x5d4] sm:$0xff]
        %v9483 = vld [vmem:[#allocation5 + $0x5dc] sm:$0xff]
        %v9484 = vld [vmem:[#allocation5 + $0x5e4] sm:$0xf]
        %v9485 = vld [vmem:[%s9] sm:$0xff]
        %9487 = vset.pattern.permute.xlu0 0
        %9488 = vperm.xlu0 %9487, %v9485
        %v9489 = vpop.permute.xlu0 %9488
        %v9493 = vunpack.c.l.b16 %v9267
        %v9494 = vunpack.c.h.b16 %v9267
        %v9495 = vunpack.c.l.b16 %v9268
        %v9496 = vunpack.c.h.b16 %v9268
        %v9497 = vpack.c.b16 %v9493, %v9493
        %v9498 = vpack.c.b16 %v9494, %v9494
        %v9499 = vpack.c.b16 %v9495, %v9495
        %v9500 = vpack.c.b16 %v9496, %v9496
        %v9720 = vunpack.c.l.b16 %v9269
        %v9721 = vunpack.c.h.b16 %v9269
        %v9722 = vunpack.c.l.b16 %v9270
        %v9723 = vunpack.c.h.b16 %v9270
        %v9724 = vunpack.c.l.b16 %v9271
        %v9725 = vunpack.c.h.b16 %v9271
        %v9726 = vunpack.c.l.b16 %v9272
        %v9727 = vunpack.c.l.b16 %v9273
        %v9728 = vunpack.c.h.b16 %v9273
        %v9729 = vunpack.c.l.b16 %v9274
        %v9730 = vunpack.c.h.b16 %v9274
        %v9731 = vunpack.c.l.b16 %v9275
        %v9732 = vunpack.c.h.b16 %v9275
        %v9733 = vunpack.c.l.b16 %v9276
        %v9734 = vunpack.c.l.b16 %v9277
        %v9735 = vunpack.c.h.b16 %v9277
        %v9736 = vunpack.c.l.b16 %v9278
        %v9737 = vunpack.c.h.b16 %v9278
        %v9738 = vunpack.c.l.b16 %v9279
        %v9739 = vunpack.c.h.b16 %v9279
        %v9740 = vunpack.c.l.b16 %v9280
        %v9741 = vunpack.c.l.b16 %v9281
        %v9742 = vunpack.c.h.b16 %v9281
        %v9743 = vunpack.c.l.b16 %v9282
        %v9744 = vunpack.c.h.b16 %v9282
        %v9745 = vunpack.c.l.b16 %v9283
        %v9746 = vunpack.c.h.b16 %v9283
        %v9747 = vunpack.c.l.b16 %v9284
        %v9748 = vunpack.c.l.b16 %v9285
        %v9749 = vunpack.c.h.b16 %v9285
        %v9750 = vunpack.c.l.b16 %v9286
        %v9751 = vunpack.c.h.b16 %v9286
        %v9752 = vunpack.c.l.b16 %v9287
        %v9753 = vunpack.c.h.b16 %v9287
        %v9754 = vunpack.c.l.b16 %v9288
        %v9755 = vunpack.c.l.b16 %v9289
        %v9756 = vunpack.c.h.b16 %v9289
        %v9757 = vunpack.c.l.b16 %v9290
        %v9758 = vunpack.c.h.b16 %v9290
        %v9759 = vunpack.c.l.b16 %v9291
        %v9760 = vunpack.c.h.b16 %v9291
        %v9761 = vunpack.c.l.b16 %v9292
        %v9762 = vunpack.c.l.b16 %v9293
        %v9763 = vunpack.c.h.b16 %v9293
        %v9764 = vunpack.c.l.b16 %v9294
        %v9765 = vunpack.c.h.b16 %v9294
        %v9766 = vunpack.c.l.b16 %v9295
        %v9767 = vunpack.c.h.b16 %v9295
        %v9768 = vunpack.c.l.b16 %v9296
        %v9769 = vunpack.c.l.b16 %v9297
        %v9770 = vunpack.c.h.b16 %v9297
        %v9771 = vunpack.c.l.b16 %v9298
        %v9772 = vunpack.c.h.b16 %v9298
        %v9773 = vunpack.c.l.b16 %v9299
        %v9774 = vunpack.c.h.b16 %v9299
        %v9775 = vunpack.c.l.b16 %v9300
        %v9776 = vunpack.c.l.b16 %v9301
        %v9777 = vunpack.c.h.b16 %v9301
        %v9778 = vunpack.c.l.b16 %v9302
        %v9779 = vunpack.c.h.b16 %v9302
        %v9780 = vunpack.c.l.b16 %v9303
        %v9781 = vunpack.c.h.b16 %v9303
        %v9782 = vunpack.c.l.b16 %v9304
        %v9783 = vunpack.c.l.b16 %v9305
        %v9784 = vunpack.c.h.b16 %v9305
        %v9785 = vunpack.c.l.b16 %v9306
        %v9786 = vunpack.c.h.b16 %v9306
        %v9787 = vunpack.c.l.b16 %v9307
        %v9788 = vunpack.c.h.b16 %v9307
        %v9789 = vunpack.c.l.b16 %v9308
        %v9790 = vunpack.c.l.b16 %v9309
        %v9791 = vunpack.c.h.b16 %v9309
        %v9792 = vunpack.c.l.b16 %v9310
        %v9793 = vunpack.c.h.b16 %v9310
        %v9794 = vunpack.c.l.b16 %v9311
        %v9795 = vunpack.c.h.b16 %v9311
        %v9796 = vunpack.c.l.b16 %v9312
        %v9797 = vunpack.c.l.b16 %v9313
        %v9798 = vunpack.c.h.b16 %v9313
        %v9799 = vunpack.c.l.b16 %v9314
        %v9800 = vunpack.c.h.b16 %v9314
        %v9801 = vunpack.c.l.b16 %v9315
        %v9802 = vunpack.c.h.b16 %v9315
        %v9803 = vunpack.c.l.b16 %v9316
        %v9804 = vunpack.c.l.b16 %v9317
        %v9805 = vunpack.c.h.b16 %v9317
        %v9806 = vunpack.c.l.b16 %v9318
        %v9807 = vunpack.c.h.b16 %v9318
        %v9808 = vunpack.c.l.b16 %v9319
        %v9809 = vunpack.c.h.b16 %v9319
        %v9810 = vunpack.c.l.b16 %v9320
        %v9811 = vunpack.c.l.b16 %v9321
        %v9812 = vunpack.c.h.b16 %v9321
        %v9813 = vunpack.c.l.b16 %v9322
        %v9814 = vunpack.c.h.b16 %v9322
        %v9815 = vunpack.c.l.b16 %v9323
        %v9816 = vunpack.c.h.b16 %v9323
        %v9817 = vunpack.c.l.b16 %v9324
        %v9818 = vunpack.c.l.b16 %v9325
        %v9819 = vunpack.c.h.b16 %v9325
        %v9820 = vunpack.c.l.b16 %v9326
        %v9821 = vunpack.c.h.b16 %v9326
        %v9822 = vunpack.c.l.b16 %v9327
        %v9823 = vunpack.c.h.b16 %v9327
        %v9824 = vunpack.c.l.b16 %v9328
        %v9825 = vunpack.c.l.b16 %v9329
        %v9826 = vunpack.c.h.b16 %v9329
        %v9827 = vunpack.c.l.b16 %v9330
        %v9828 = vunpack.c.h.b16 %v9330
        %v9829 = vunpack.c.l.b16 %v9331
        %v9830 = vunpack.c.h.b16 %v9331
        %v9831 = vunpack.c.l.b16 %v9332
        %v9832 = vunpack.c.l.b16 %v9333
        %v9833 = vunpack.c.h.b16 %v9333
        %v9834 = vunpack.c.l.b16 %v9334
        %v9835 = vunpack.c.h.b16 %v9334
        %v9836 = vunpack.c.l.b16 %v9335
        %v9837 = vunpack.c.h.b16 %v9335
        %v9838 = vunpack.c.l.b16 %v9336
        %v9839 = vunpack.c.l.b16 %v9337
        %v9840 = vunpack.c.h.b16 %v9337
        %v9841 = vunpack.c.l.b16 %v9338
        %v9842 = vunpack.c.h.b16 %v9338
        %v9843 = vunpack.c.l.b16 %v9339
        %v9844 = vunpack.c.h.b16 %v9339
        %v9845 = vunpack.c.l.b16 %v9340
        %v9846 = vunpack.c.l.b16 %v9341
        %v9847 = vunpack.c.h.b16 %v9341
        %v9848 = vunpack.c.l.b16 %v9342
        %v9849 = vunpack.c.h.b16 %v9342
        %v9850 = vunpack.c.l.b16 %v9343
        %v9851 = vunpack.c.h.b16 %v9343
        %v9852 = vunpack.c.l.b16 %v9344
        %v9853 = vunpack.c.l.b16 %v9345
        %v9854 = vunpack.c.h.b16 %v9345
        %v9855 = vunpack.c.l.b16 %v9346
        %v9856 = vunpack.c.h.b16 %v9346
        %v9857 = vunpack.c.l.b16 %v9347
        %v9858 = vunpack.c.h.b16 %v9347
        %v9859 = vunpack.c.l.b16 %v9348
        %v9860 = vunpack.c.l.b16 %v9349
        %v9861 = vunpack.c.h.b16 %v9349
        %v9862 = vunpack.c.l.b16 %v9350
        %v9863 = vunpack.c.h.b16 %v9350
        %v9864 = vunpack.c.l.b16 %v9351
        %v9865 = vunpack.c.h.b16 %v9351
        %v9866 = vunpack.c.l.b16 %v9352
        %v9867 = vunpack.c.l.b16 %v9353
        %v9868 = vunpack.c.h.b16 %v9353
        %v9869 = vunpack.c.l.b16 %v9354
        %v9870 = vunpack.c.h.b16 %v9354
        %v9871 = vunpack.c.l.b16 %v9355
        %v9872 = vunpack.c.h.b16 %v9355
        %v9873 = vunpack.c.l.b16 %v9356
        %v9874 = vunpack.c.l.b16 %v9357
        %v9875 = vunpack.c.h.b16 %v9357
        %v9876 = vunpack.c.l.b16 %v9358
        %v9877 = vunpack.c.h.b16 %v9358
        %v9878 = vunpack.c.l.b16 %v9359
        %v9879 = vunpack.c.h.b16 %v9359
        %v9880 = vunpack.c.l.b16 %v9360
        %v9881 = vunpack.c.l.b16 %v9361
        %v9882 = vunpack.c.h.b16 %v9361
        %v9883 = vunpack.c.l.b16 %v9362
        %v9884 = vunpack.c.h.b16 %v9362
        %v9885 = vunpack.c.l.b16 %v9363
        %v9886 = vunpack.c.h.b16 %v9363
        %v9887 = vunpack.c.l.b16 %v9364
        %v9888 = vunpack.c.l.b16 %v9365
        %v9889 = vunpack.c.h.b16 %v9365
        %v9890 = vunpack.c.l.b16 %v9366
        %v9891 = vunpack.c.h.b16 %v9366
        %v9892 = vunpack.c.l.b16 %v9367
        %v9893 = vunpack.c.h.b16 %v9367
        %v9894 = vunpack.c.l.b16 %v9368
        %v9895 = vunpack.c.l.b16 %v9369
        %v9896 = vunpack.c.h.b16 %v9369
        %v9897 = vunpack.c.l.b16 %v9370
        %v9898 = vunpack.c.h.b16 %v9370
        %v9899 = vunpack.c.l.b16 %v9371
        %v9900 = vunpack.c.h.b16 %v9371
        %v9901 = vunpack.c.l.b16 %v9372
        %v9902 = vunpack.c.l.b16 %v9373
        %v9903 = vunpack.c.h.b16 %v9373
        %v9904 = vunpack.c.l.b16 %v9374
        %v9905 = vunpack.c.h.b16 %v9374
        %v9906 = vunpack.c.l.b16 %v9375
        %v9907 = vunpack.c.h.b16 %v9375
        %v9908 = vunpack.c.l.b16 %v9376
        %v9909 = vunpack.c.l.b16 %v9377
        %v9910 = vunpack.c.h.b16 %v9377
        %v9911 = vunpack.c.l.b16 %v9378
        %v9912 = vunpack.c.h.b16 %v9378
        %v9913 = vunpack.c.l.b16 %v9379
        %v9914 = vunpack.c.h.b16 %v9379
        %v9915 = vunpack.c.l.b16 %v9380
        %v9916 = vunpack.c.l.b16 %v9381
        %v9917 = vunpack.c.h.b16 %v9381
        %v9918 = vunpack.c.l.b16 %v9382
        %v9919 = vunpack.c.h.b16 %v9382
        %v9920 = vunpack.c.l.b16 %v9383
        %v9921 = vunpack.c.h.b16 %v9383
        %v9922 = vunpack.c.l.b16 %v9384
        %v9923 = vunpack.c.l.b16 %v9385
        %v9924 = vunpack.c.h.b16 %v9385
        %v9925 = vunpack.c.l.b16 %v9386
        %v9926 = vunpack.c.h.b16 %v9386
        %v9927 = vunpack.c.l.b16 %v9387
        %v9928 = vunpack.c.h.b16 %v9387
        %v9929 = vunpack.c.l.b16 %v9388
        %v9930 = vunpack.c.l.b16 %v9389
        %v9931 = vunpack.c.h.b16 %v9389
        %v9932 = vunpack.c.l.b16 %v9390
        %v9933 = vunpack.c.h.b16 %v9390
        %v9934 = vunpack.c.l.b16 %v9391
        %v9935 = vunpack.c.h.b16 %v9391
        %v9936 = vunpack.c.l.b16 %v9392
        %v9937 = vunpack.c.l.b16 %v9393
        %v9938 = vunpack.c.h.b16 %v9393
        %v9939 = vunpack.c.l.b16 %v9394
        %v9940 = vunpack.c.h.b16 %v9394
        %v9941 = vunpack.c.l.b16 %v9395
        %v9942 = vunpack.c.h.b16 %v9395
        %v9943 = vunpack.c.l.b16 %v9396
        %v9944 = vunpack.c.l.b16 %v9397
        %v9945 = vunpack.c.h.b16 %v9397
        %v9946 = vunpack.c.l.b16 %v9398
        %v9947 = vunpack.c.h.b16 %v9398
        %v9948 = vunpack.c.l.b16 %v9399
        %v9949 = vunpack.c.h.b16 %v9399
        %v9950 = vunpack.c.l.b16 %v9400
        %v9951 = vunpack.c.l.b16 %v9401
        %v9952 = vunpack.c.h.b16 %v9401
        %v9953 = vunpack.c.l.b16 %v9402
        %v9954 = vunpack.c.h.b16 %v9402
        %v9955 = vunpack.c.l.b16 %v9403
        %v9956 = vunpack.c.h.b16 %v9403
        %v9957 = vunpack.c.l.b16 %v9404
        %v9958 = vunpack.c.l.b16 %v9405
        %v9959 = vunpack.c.h.b16 %v9405
        %v9960 = vunpack.c.l.b16 %v9406
        %v9961 = vunpack.c.h.b16 %v9406
        %v9962 = vunpack.c.l.b16 %v9407
        %v9963 = vunpack.c.h.b16 %v9407
        %v9964 = vunpack.c.l.b16 %v9408
        %v9965 = vunpack.c.l.b16 %v9409
        %v9966 = vunpack.c.h.b16 %v9409
        %v9967 = vunpack.c.l.b16 %v9410
        %v9968 = vunpack.c.h.b16 %v9410
        %v9969 = vunpack.c.l.b16 %v9411
        %v9970 = vunpack.c.h.b16 %v9411
        %v9971 = vunpack.c.l.b16 %v9412
        %v9972 = vunpack.c.l.b16 %v9413
        %v9973 = vunpack.c.h.b16 %v9413
        %v9974 = vunpack.c.l.b16 %v9414
        %v9975 = vunpack.c.h.b16 %v9414
        %v9976 = vunpack.c.l.b16 %v9415
        %v9977 = vunpack.c.h.b16 %v9415
        %v9978 = vunpack.c.l.b16 %v9416
        %v9979 = vunpack.c.l.b16 %v9417
        %v9980 = vunpack.c.h.b16 %v9417
        %v9981 = vunpack.c.l.b16 %v9418
        %v9982 = vunpack.c.h.b16 %v9418
        %v9983 = vunpack.c.l.b16 %v9419
        %v9984 = vunpack.c.h.b16 %v9419
        %v9985 = vunpack.c.l.b16 %v9420
        %v9986 = vunpack.c.l.b16 %v9421
        %v9987 = vunpack.c.h.b16 %v9421
        %v9988 = vunpack.c.l.b16 %v9422
        %v9989 = vunpack.c.h.b16 %v9422
        %v9990 = vunpack.c.l.b16 %v9423
        %v9991 = vunpack.c.h.b16 %v9423
        %v9992 = vunpack.c.l.b16 %v9424
        %v9993 = vunpack.c.l.b16 %v9425
        %v9994 = vunpack.c.h.b16 %v9425
        %v9995 = vunpack.c.l.b16 %v9426
        %v9996 = vunpack.c.h.b16 %v9426
        %v9997 = vunpack.c.l.b16 %v9427
        %v9998 = vunpack.c.h.b16 %v9427
        %v9999 = vunpack.c.l.b16 %v9428
        %v10000 = vunpack.c.l.b16 %v9429
        %v10001 = vunpack.c.h.b16 %v9429
        %v10002 = vunpack.c.l.b16 %v9430
        %v10003 = vunpack.c.h.b16 %v9430
        %v10004 = vunpack.c.l.b16 %v9431
        %v10005 = vunpack.c.h.b16 %v9431
        %v10006 = vunpack.c.l.b16 %v9432
        %v10007 = vunpack.c.l.b16 %v9433
        %v10008 = vunpack.c.h.b16 %v9433
        %v10009 = vunpack.c.l.b16 %v9434
        %v10010 = vunpack.c.h.b16 %v9434
        %v10011 = vunpack.c.l.b16 %v9435
        %v10012 = vunpack.c.h.b16 %v9435
        %v10013 = vunpack.c.l.b16 %v9436
        %v10014 = vunpack.c.l.b16 %v9437
        %v10015 = vunpack.c.h.b16 %v9437
        %v10016 = vunpack.c.l.b16 %v9438
        %v10017 = vunpack.c.h.b16 %v9438
        %v10018 = vunpack.c.l.b16 %v9439
        %v10019 = vunpack.c.h.b16 %v9439
        %v10020 = vunpack.c.l.b16 %v9440
        %v10021 = vunpack.c.l.b16 %v9441
        %v10022 = vunpack.c.h.b16 %v9441
        %v10023 = vunpack.c.l.b16 %v9442
        %v10024 = vunpack.c.h.b16 %v9442
        %v10025 = vunpack.c.l.b16 %v9443
        %v10026 = vunpack.c.h.b16 %v9443
        %v10027 = vunpack.c.l.b16 %v9444
        %v10028 = vunpack.c.l.b16 %v9445
        %v10029 = vunpack.c.h.b16 %v9445
        %v10030 = vunpack.c.l.b16 %v9446
        %v10031 = vunpack.c.h.b16 %v9446
        %v10032 = vunpack.c.l.b16 %v9447
        %v10033 = vunpack.c.h.b16 %v9447
        %v10034 = vunpack.c.l.b16 %v9448
        %v10035 = vunpack.c.l.b16 %v9449
        %v10036 = vunpack.c.h.b16 %v9449
        %v10037 = vunpack.c.l.b16 %v9450
        %v10038 = vunpack.c.h.b16 %v9450
        %v10039 = vunpack.c.l.b16 %v9451
        %v10040 = vunpack.c.h.b16 %v9451
        %v10041 = vunpack.c.l.b16 %v9452
        %v10042 = vunpack.c.l.b16 %v9453
        %v10043 = vunpack.c.h.b16 %v9453
        %v10044 = vunpack.c.l.b16 %v9454
        %v10045 = vunpack.c.h.b16 %v9454
        %v10046 = vunpack.c.l.b16 %v9455
        %v10047 = vunpack.c.h.b16 %v9455
        %v10048 = vunpack.c.l.b16 %v9456
        %v10049 = vunpack.c.l.b16 %v9457
        %v10050 = vunpack.c.h.b16 %v9457
        %v10051 = vunpack.c.l.b16 %v9458
        %v10052 = vunpack.c.h.b16 %v9458
        %v10053 = vunpack.c.l.b16 %v9459
        %v10054 = vunpack.c.h.b16 %v9459
        %v10055 = vunpack.c.l.b16 %v9460
        %v10056 = vunpack.c.l.b16 %v9461
        %v10057 = vunpack.c.h.b16 %v9461
        %v10058 = vunpack.c.l.b16 %v9462
        %v10059 = vunpack.c.h.b16 %v9462
        %v10060 = vunpack.c.l.b16 %v9463
        %v10061 = vunpack.c.h.b16 %v9463
        %v10062 = vunpack.c.l.b16 %v9464
        %v10063 = vunpack.c.l.b16 %v9465
        %v10064 = vunpack.c.h.b16 %v9465
        %v10065 = vunpack.c.l.b16 %v9466
        %v10066 = vunpack.c.h.b16 %v9466
        %v10067 = vunpack.c.l.b16 %v9467
        %v10068 = vunpack.c.h.b16 %v9467
        %v10069 = vunpack.c.l.b16 %v9468
        %v10070 = vunpack.c.l.b16 %v9469
        %v10071 = vunpack.c.h.b16 %v9469
        %v10072 = vunpack.c.l.b16 %v9470
        %v10073 = vunpack.c.h.b16 %v9470
        %v10074 = vunpack.c.l.b16 %v9471
        %v10075 = vunpack.c.h.b16 %v9471
        %v10076 = vunpack.c.l.b16 %v9472
        %v10077 = vunpack.c.l.b16 %v9473
        %v10078 = vunpack.c.h.b16 %v9473
        %v10079 = vunpack.c.l.b16 %v9474
        %v10080 = vunpack.c.h.b16 %v9474
        %v10081 = vunpack.c.l.b16 %v9475
        %v10082 = vunpack.c.h.b16 %v9475
        %v10083 = vunpack.c.l.b16 %v9476
        %v10084 = vunpack.c.l.b16 %v9477
        %v10085 = vunpack.c.h.b16 %v9477
        %v10086 = vunpack.c.l.b16 %v9478
        %v10087 = vunpack.c.h.b16 %v9478
        %v10088 = vunpack.c.l.b16 %v9479
        %v10089 = vunpack.c.h.b16 %v9479
        %v10090 = vunpack.c.l.b16 %v9480
        %v10091 = vunpack.c.l.b16 %v9481
        %v10092 = vunpack.c.h.b16 %v9481
        %v10093 = vunpack.c.l.b16 %v9482
        %v10094 = vunpack.c.h.b16 %v9482
        %v10095 = vunpack.c.l.b16 %v9483
        %v10096 = vunpack.c.h.b16 %v9483
        %v10097 = vunpack.c.l.b16 %v9484
        %v10098 = vpack.c.b16 %v9727, %v9720
        %v10099 = vpack.c.b16 %v9728, %v9721
        %v10100 = vpack.c.b16 %v9729, %v9722
        %v10101 = vpack.c.b16 %v9730, %v9723
        %v10102 = vpack.c.b16 %v9731, %v9724
        %v10103 = vpack.c.b16 %v9732, %v9725
        %v10104 = vpack.c.b16 %v9733, %v9726
        %v10105 = vpack.c.b16 %v9741, %v9734
        %v10106 = vpack.c.b16 %v9742, %v9735
        %v10107 = vpack.c.b16 %v9743, %v9736
        %v10108 = vpack.c.b16 %v9744, %v9737
        %v10109 = vpack.c.b16 %v9745, %v9738
        %v10110 = vpack.c.b16 %v9746, %v9739
        %v10111 = vpack.c.b16 %v9747, %v9740
        %v10112 = vpack.c.b16 %v9755, %v9748
        %v10113 = vpack.c.b16 %v9756, %v9749
        %v10114 = vpack.c.b16 %v9757, %v9750
        %v10115 = vpack.c.b16 %v9758, %v9751
        %v10116 = vpack.c.b16 %v9759, %v9752
        %v10117 = vpack.c.b16 %v9760, %v9753
        %v10118 = vpack.c.b16 %v9761, %v9754
        %v10119 = vpack.c.b16 %v9769, %v9762
        %v10120 = vpack.c.b16 %v9770, %v9763
        %v10121 = vpack.c.b16 %v9771, %v9764
        %v10122 = vpack.c.b16 %v9772, %v9765
        %v10123 = vpack.c.b16 %v9773, %v9766
        %v10124 = vpack.c.b16 %v9774, %v9767
        %v10125 = vpack.c.b16 %v9775, %v9768
        %v10126 = vpack.c.b16 %v9783, %v9776
        %v10127 = vpack.c.b16 %v9784, %v9777
        %v10128 = vpack.c.b16 %v9785, %v9778
        %v10129 = vpack.c.b16 %v9786, %v9779
        %v10130 = vpack.c.b16 %v9787, %v9780
        %v10131 = vpack.c.b16 %v9788, %v9781
        %v10132 = vpack.c.b16 %v9789, %v9782
        %v10133 = vpack.c.b16 %v9797, %v9790
        %v10134 = vpack.c.b16 %v9798, %v9791
        %v10135 = vpack.c.b16 %v9799, %v9792
        %v10136 = vpack.c.b16 %v9800, %v9793
        %v10137 = vpack.c.b16 %v9801, %v9794
        %v10138 = vpack.c.b16 %v9802, %v9795
        %v10139 = vpack.c.b16 %v9803, %v9796
        %v10140 = vpack.c.b16 %v9811, %v9804
        %v10141 = vpack.c.b16 %v9812, %v9805
        %v10142 = vpack.c.b16 %v9813, %v9806
        %v10143 = vpack.c.b16 %v9814, %v9807
        %v10144 = vpack.c.b16 %v9815, %v9808
        %v10145 = vpack.c.b16 %v9816, %v9809
        %v10146 = vpack.c.b16 %v9817, %v9810
        %v10147 = vpack.c.b16 %v9825, %v9818
        %v10148 = vpack.c.b16 %v9826, %v9819
        %v10149 = vpack.c.b16 %v9827, %v9820
        %v10150 = vpack.c.b16 %v9828, %v9821
        %v10151 = vpack.c.b16 %v9829, %v9822
        %v10152 = vpack.c.b16 %v9830, %v9823
        %v10153 = vpack.c.b16 %v9831, %v9824
        %v10154 = vpack.c.b16 %v9839, %v9832
        %v10155 = vpack.c.b16 %v9840, %v9833
        %v10156 = vpack.c.b16 %v9841, %v9834
        %v10157 = vpack.c.b16 %v9842, %v9835
        %v10158 = vpack.c.b16 %v9843, %v9836
        %v10159 = vpack.c.b16 %v9844, %v9837
        %v10160 = vpack.c.b16 %v9845, %v9838
        %v10161 = vpack.c.b16 %v9853, %v9846
        %v10162 = vpack.c.b16 %v9854, %v9847
        %v10163 = vpack.c.b16 %v9855, %v9848
        %v10164 = vpack.c.b16 %v9856, %v9849
        %v10165 = vpack.c.b16 %v9857, %v9850
        %v10166 = vpack.c.b16 %v9858, %v9851
        %v10167 = vpack.c.b16 %v9859, %v9852
        %v10168 = vpack.c.b16 %v9867, %v9860
        %v10169 = vpack.c.b16 %v9868, %v9861
        %v10170 = vpack.c.b16 %v9869, %v9862
        %v10171 = vpack.c.b16 %v9870, %v9863
        %v10172 = vpack.c.b16 %v9871, %v9864
        %v10173 = vpack.c.b16 %v9872, %v9865
        %v10174 = vpack.c.b16 %v9873, %v9866
        %v10175 = vpack.c.b16 %v9881, %v9874
        %v10176 = vpack.c.b16 %v9882, %v9875
        %v10177 = vpack.c.b16 %v9883, %v9876
        %v10178 = vpack.c.b16 %v9884, %v9877
        %v10179 = vpack.c.b16 %v9885, %v9878
        %v10180 = vpack.c.b16 %v9886, %v9879
        %v10181 = vpack.c.b16 %v9887, %v9880
        %v10182 = vpack.c.b16 %v9895, %v9888
        %v10183 = vpack.c.b16 %v9896, %v9889
        %v10184 = vpack.c.b16 %v9897, %v9890
        %v10185 = vpack.c.b16 %v9898, %v9891
        %v10186 = vpack.c.b16 %v9899, %v9892
        %v10187 = vpack.c.b16 %v9900, %v9893
        %v10188 = vpack.c.b16 %v9901, %v9894
        %v10189 = vpack.c.b16 %v9909, %v9902
        %v10190 = vpack.c.b16 %v9910, %v9903
        %v10191 = vpack.c.b16 %v9911, %v9904
        %v10192 = vpack.c.b16 %v9912, %v9905
        %v10193 = vpack.c.b16 %v9913, %v9906
        %v10194 = vpack.c.b16 %v9914, %v9907
        %v10195 = vpack.c.b16 %v9915, %v9908
        %v10196 = vpack.c.b16 %v9923, %v9916
        %v10197 = vpack.c.b16 %v9924, %v9917
        %v10198 = vpack.c.b16 %v9925, %v9918
        %v10199 = vpack.c.b16 %v9926, %v9919
        %v10200 = vpack.c.b16 %v9927, %v9920
        %v10201 = vpack.c.b16 %v9928, %v9921
        %v10202 = vpack.c.b16 %v9929, %v9922
        %v10203 = vpack.c.b16 %v9937, %v9930
        %v10204 = vpack.c.b16 %v9938, %v9931
        %v10205 = vpack.c.b16 %v9939, %v9932
        %v10206 = vpack.c.b16 %v9940, %v9933
        %v10207 = vpack.c.b16 %v9941, %v9934
        %v10208 = vpack.c.b16 %v9942, %v9935
        %v10209 = vpack.c.b16 %v9943, %v9936
        %v10210 = vpack.c.b16 %v9951, %v9944
        %v10211 = vpack.c.b16 %v9952, %v9945
        %v10212 = vpack.c.b16 %v9953, %v9946
        %v10213 = vpack.c.b16 %v9954, %v9947
        %v10214 = vpack.c.b16 %v9955, %v9948
        %v10215 = vpack.c.b16 %v9956, %v9949
        %v10216 = vpack.c.b16 %v9957, %v9950
        %v10217 = vpack.c.b16 %v9965, %v9958
        %v10218 = vpack.c.b16 %v9966, %v9959
        %v10219 = vpack.c.b16 %v9967, %v9960
        %v10220 = vpack.c.b16 %v9968, %v9961
        %v10221 = vpack.c.b16 %v9969, %v9962
        %v10222 = vpack.c.b16 %v9970, %v9963
        %v10223 = vpack.c.b16 %v9971, %v9964
        %v10224 = vpack.c.b16 %v9979, %v9972
        %v10225 = vpack.c.b16 %v9980, %v9973
        %v10226 = vpack.c.b16 %v9981, %v9974
        %v10227 = vpack.c.b16 %v9982, %v9975
        %v10228 = vpack.c.b16 %v9983, %v9976
        %v10229 = vpack.c.b16 %v9984, %v9977
        %v10230 = vpack.c.b16 %v9985, %v9978
        %v10231 = vpack.c.b16 %v9993, %v9986
        %v10232 = vpack.c.b16 %v9994, %v9987
        %v10233 = vpack.c.b16 %v9995, %v9988
        %v10234 = vpack.c.b16 %v9996, %v9989
        %v10235 = vpack.c.b16 %v9997, %v9990
        %v10236 = vpack.c.b16 %v9998, %v9991
        %v10237 = vpack.c.b16 %v9999, %v9992
        %v10238 = vpack.c.b16 %v10007, %v10000
        %v10239 = vpack.c.b16 %v10008, %v10001
        %v10240 = vpack.c.b16 %v10009, %v10002
        %v10241 = vpack.c.b16 %v10010, %v10003
        %v10242 = vpack.c.b16 %v10011, %v10004
        %v10243 = vpack.c.b16 %v10012, %v10005
        %v10244 = vpack.c.b16 %v10013, %v10006
        %v10245 = vpack.c.b16 %v10021, %v10014
        %v10246 = vpack.c.b16 %v10022, %v10015
        %v10247 = vpack.c.b16 %v10023, %v10016
        %v10248 = vpack.c.b16 %v10024, %v10017
        %v10249 = vpack.c.b16 %v10025, %v10018
        %v10250 = vpack.c.b16 %v10026, %v10019
        %v10251 = vpack.c.b16 %v10027, %v10020
        %v10252 = vpack.c.b16 %v10035, %v10028
        %v10253 = vpack.c.b16 %v10036, %v10029
        %v10254 = vpack.c.b16 %v10037, %v10030
        %v10255 = vpack.c.b16 %v10038, %v10031
        %v10256 = vpack.c.b16 %v10039, %v10032
        %v10257 = vpack.c.b16 %v10040, %v10033
        %v10258 = vpack.c.b16 %v10041, %v10034
        %v10259 = vpack.c.b16 %v10049, %v10042
        %v10260 = vpack.c.b16 %v10050, %v10043
        %v10261 = vpack.c.b16 %v10051, %v10044
        %v10262 = vpack.c.b16 %v10052, %v10045
        %v10263 = vpack.c.b16 %v10053, %v10046
        %v10264 = vpack.c.b16 %v10054, %v10047
        %v10265 = vpack.c.b16 %v10055, %v10048
        %v10266 = vpack.c.b16 %v10063, %v10056
        %v10267 = vpack.c.b16 %v10064, %v10057
        %v10268 = vpack.c.b16 %v10065, %v10058
        %v10269 = vpack.c.b16 %v10066, %v10059
        %v10270 = vpack.c.b16 %v10067, %v10060
        %v10271 = vpack.c.b16 %v10068, %v10061
        %v10272 = vpack.c.b16 %v10069, %v10062
        %v10273 = vpack.c.b16 %v10077, %v10070
        %v10274 = vpack.c.b16 %v10078, %v10071
        %v10275 = vpack.c.b16 %v10079, %v10072
        %v10276 = vpack.c.b16 %v10080, %v10073
        %v10277 = vpack.c.b16 %v10081, %v10074
        %v10278 = vpack.c.b16 %v10082, %v10075
        %v10279 = vpack.c.b16 %v10083, %v10076
        %v10280 = vpack.c.b16 %v10091, %v10084
        %v10281 = vpack.c.b16 %v10092, %v10085
        %v10282 = vpack.c.b16 %v10093, %v10086
        %v10283 = vpack.c.b16 %v10094, %v10087
        %v10284 = vpack.c.b16 %v10095, %v10088
        %v10285 = vpack.c.b16 %v10096, %v10089
        %v10286 = vpack.c.b16 %v10097, %v10090
        %v10477 = vsel %vm5316, %v9500, 0
        %10479 = vmatprep.subr.bf16.mxu0 %v10148
        %10480 = vmatpush1.bf16.msra.mxu0 %v10147
        %10481 = vmatprep.subr.bf16.mxu0 %v10141
        %10482 = vmatpush1.bf16.msra.mxu0 %v10140
        %10483 = vmatprep.subr.bf16.mxu0 %v10134
        %10484 = vmatpush1.bf16.msra.mxu0 %v10133
        %10485 = vmatprep.subr.bf16.mxu0 %v10127
        %10486 = vmatpush1.bf16.msra.mxu0 %v10126
        %10487 = vmatprep.subr.bf16.mxu0 %v10120
        %10488 = vmatpush1.bf16.msra.mxu0 %v10119
        %10489 = vmatprep.subr.bf16.mxu0 %v10113
        %10490 = vmatpush1.bf16.msra.mxu0 %v10112
        %10491 = vmatprep.subr.bf16.mxu0 %v10106
        %10492 = vmatpush1.bf16.msra.mxu0 %v10105
        %10493 = vmatprep.subr.bf16.mxu0 %v10099
        %10494 = vmatpush1.bf16.msra.mxu0 %v10098
        %10495 = vmatprep.subr.bf16.mxu0 %v10204
        %10496 = vmatpush2.bf16.msra.mxu0 %v10203
        %10497 = vmatprep.subr.bf16.mxu0 %v10197
        %10498 = vmatpush2.bf16.msra.mxu0 %v10196
        %10499 = vmatprep.subr.bf16.mxu0 %v10190
        %10500 = vmatpush2.bf16.msra.mxu0 %v10189
        %10501 = vmatprep.subr.bf16.mxu0 %v10183
        %10502 = vmatpush2.bf16.msra.mxu0 %v10182
        %10503 = vmatprep.subr.bf16.mxu0 %v10176
        %10504 = vmatpush2.bf16.msra.mxu0 %v10175
        %10505 = vmatprep.subr.bf16.mxu0 %v10169
        %10506 = vmatpush2.bf16.msra.mxu0 %v10168
        %10507 = vmatprep.subr.bf16.mxu0 %v10162
        %10508 = vmatpush2.bf16.msra.mxu0 %v10161
        %10509 = vmatprep.subr.bf16.mxu0 %v10155
        %10510 = vmatpush2.bf16.msra.mxu0 %v10154
        %10511 = vmatprep.mubr.bf16.mxu0 %v9498
        %10512 = vmatmul.mubr.bf16.gmra.mxu0 %v9497
        %v10513 = vpop.f32.mrf.mxu0
        %v10514 = vadd.f32 %v9489, %v10513
        %v10515 = vpop.f32.mrf.mxu0
        %v10516 = vadd.f32 %v9489, %v10515
        %v10517 = vpop.f32.mrf.mxu0
        %v10518 = vpop.f32.mrf.mxu0
        %10519 = vdwg.mxu0
        %10520 = vmatprep.subr.bf16.mxu0 %v10260
        %10521 = vmatpush1.bf16.msra.mxu0 %v10259
        %10522 = vmatprep.subr.bf16.mxu0 %v10253
        %10523 = vmatpush1.bf16.msra.mxu0 %v10252
        %10524 = vmatprep.subr.bf16.mxu0 %v10246
        %10525 = vmatpush1.bf16.msra.mxu0 %v10245
        %10526 = vmatprep.subr.bf16.mxu0 %v10239
        %10527 = vmatpush1.bf16.msra.mxu0 %v10238
        %10528 = vmatprep.subr.bf16.mxu0 %v10232
        %10529 = vmatpush1.bf16.msra.mxu0 %v10231
        %10530 = vmatprep.subr.bf16.mxu0 %v10225
        %10531 = vmatpush1.bf16.msra.mxu0 %v10224
        %10532 = vmatprep.subr.bf16.mxu0 %v10218
        %10533 = vmatpush1.bf16.msra.mxu0 %v10217
        %10534 = vmatprep.subr.bf16.mxu0 %v10211
        %10535 = vmatpush1.bf16.msra.mxu0 %v10210
        %10536 = vmatprep.subr.bf16.mxu0 0
        %10537 = vmatpush2.bf16.msra.mxu0 0
        %10538 = vmatprep.subr.bf16.mxu0 0
        %10539 = vmatpush2.bf16.msra.mxu0 0
        %10540 = vmatprep.subr.bf16.mxu0 0
        %10541 = vmatpush2.bf16.msra.mxu0 0
        %10542 = vmatprep.subr.bf16.mxu0 0
        %10543 = vmatpush2.bf16.msra.mxu0 0
        %10544 = vmatprep.subr.bf16.mxu0 0
        %10545 = vmatpush2.bf16.msra.mxu0 0
        %10546 = vmatprep.subr.bf16.mxu0 %v10281
        %10547 = vmatpush2.bf16.msra.mxu0 %v10280
        %10548 = vmatprep.subr.bf16.mxu0 %v10274
        %10549 = vmatpush2.bf16.msra.mxu0 %v10273
        %10550 = vmatprep.subr.bf16.mxu0 %v10267
        %10551 = vmatpush2.bf16.msra.mxu0 %v10266
        %10552 = vmatprep.mubr.bf16.mxu0 %v10477
        %10553 = vmatmul.mubr.bf16.gmra.mxu0 %v9499
        %v10554 = vpop.f32.mrf.mxu0
        %v10555 = vadd.f32 %v10514, %v10554
        %v10556 = vpop.f32.mrf.mxu0
        %v10557 = vadd.f32 %v10516, %v10556
        %v10558 = vpop.f32.mrf.mxu0
        %v10559 = vpop.f32.mrf.mxu0
        %10560 = vdwg.mxu0
        %10561 = vmatprep.subr.bf16.mxu0 %v10150
        %10562 = vmatpush1.bf16.msra.mxu0 %v10149
        %10563 = vmatprep.subr.bf16.mxu0 %v10143
        %10564 = vmatpush1.bf16.msra.mxu0 %v10142
        %10565 = vmatprep.subr.bf16.mxu0 %v10136
        %10566 = vmatpush1.bf16.msra.mxu0 %v10135
        %10567 = vmatprep.subr.bf16.mxu0 %v10129
        %10568 = vmatpush1.bf16.msra.mxu0 %v10128
        %10569 = vmatprep.subr.bf16.mxu0 %v10122
        %10570 = vmatpush1.bf16.msra.mxu0 %v10121
        %10571 = vmatprep.subr.bf16.mxu0 %v10115
        %10572 = vmatpush1.bf16.msra.mxu0 %v10114
        %10573 = vmatprep.subr.bf16.mxu0 %v10108
        %10574 = vmatpush1.bf16.msra.mxu0 %v10107
        %10575 = vmatprep.subr.bf16.mxu0 %v10101
        %10576 = vmatpush1.bf16.msra.mxu0 %v10100
        %10577 = vmatprep.subr.bf16.mxu0 %v10206
        %10578 = vmatpush2.bf16.msra.mxu0 %v10205
        %10579 = vmatprep.subr.bf16.mxu0 %v10199
        %10580 = vmatpush2.bf16.msra.mxu0 %v10198
        %10581 = vmatprep.subr.bf16.mxu0 %v10192
        %10582 = vmatpush2.bf16.msra.mxu0 %v10191
        %10583 = vmatprep.subr.bf16.mxu0 %v10185
        %10584 = vmatpush2.bf16.msra.mxu0 %v10184
        %10585 = vmatprep.subr.bf16.mxu0 %v10178
        %10586 = vmatpush2.bf16.msra.mxu0 %v10177
        %10587 = vmatprep.subr.bf16.mxu0 %v10171
        %10588 = vmatpush2.bf16.msra.mxu0 %v10170
        %10589 = vmatprep.subr.bf16.mxu0 %v10164
        %10590 = vmatpush2.bf16.msra.mxu0 %v10163
        %10591 = vmatprep.subr.bf16.mxu0 %v10157
        %10592 = vmatpush2.bf16.msra.mxu0 %v10156
        %10593 = vmatprep.mubr.bf16.mxu0 %v9498
        %10594 = vmatmul.mubr.bf16.gmra.mxu0 %v9497
        %v10595 = vpop.f32.mrf.mxu0
        %v10596 = vadd.f32 %v9489, %v10595
        %v10597 = vpop.f32.mrf.mxu0
        %v10598 = vadd.f32 %v9489, %v10597
        %v10599 = vpop.f32.mrf.mxu0
        %v10600 = vpop.f32.mrf.mxu0
        %10601 = vdwg.mxu0
        %10602 = vmatprep.subr.bf16.mxu0 %v10262
        %10603 = vmatpush1.bf16.msra.mxu0 %v10261
        %10604 = vmatprep.subr.bf16.mxu0 %v10255
        %10605 = vmatpush1.bf16.msra.mxu0 %v10254
        %10606 = vmatprep.subr.bf16.mxu0 %v10248
        %10607 = vmatpush1.bf16.msra.mxu0 %v10247
        %10608 = vmatprep.subr.bf16.mxu0 %v10241
        %10609 = vmatpush1.bf16.msra.mxu0 %v10240
        %10610 = vmatprep.subr.bf16.mxu0 %v10234
        %10611 = vmatpush1.bf16.msra.mxu0 %v10233
        %10612 = vmatprep.subr.bf16.mxu0 %v10227
        %10613 = vmatpush1.bf16.msra.mxu0 %v10226
        %10614 = vmatprep.subr.bf16.mxu0 %v10220
        %10615 = vmatpush1.bf16.msra.mxu0 %v10219
        %10616 = vmatprep.subr.bf16.mxu0 %v10213
        %10617 = vmatpush1.bf16.msra.mxu0 %v10212
        %10618 = vmatprep.subr.bf16.mxu0 0
        %10619 = vmatpush2.bf16.msra.mxu0 0
        %10620 = vmatprep.subr.bf16.mxu0 0
        %10621 = vmatpush2.bf16.msra.mxu0 0
        %10622 = vmatprep.subr.bf16.mxu0 0
        %10623 = vmatpush2.bf16.msra.mxu0 0
        %10624 = vmatprep.subr.bf16.mxu0 0
        %10625 = vmatpush2.bf16.msra.mxu0 0
        %10626 = vmatprep.subr.bf16.mxu0 0
        %10627 = vmatpush2.bf16.msra.mxu0 0
        %10628 = vmatprep.subr.bf16.mxu0 %v10283
        %10629 = vmatpush2.bf16.msra.mxu0 %v10282
        %10630 = vmatprep.subr.bf16.mxu0 %v10276
        %10631 = vmatpush2.bf16.msra.mxu0 %v10275
        %10632 = vmatprep.subr.bf16.mxu0 %v10269
        %10633 = vmatpush2.bf16.msra.mxu0 %v10268
        %10634 = vmatprep.mubr.bf16.mxu0 %v10477
        %10635 = vmatmul.mubr.bf16.gmra.mxu0 %v9499
        %v10636 = vpop.f32.mrf.mxu0
        %v10637 = vadd.f32 %v10596, %v10636
        %v10638 = vpop.f32.mrf.mxu0
        %v10639 = vadd.f32 %v10598, %v10638
        %v10640 = vpop.f32.mrf.mxu0
        %v10641 = vpop.f32.mrf.mxu0
        %10642 = vdwg.mxu0
        %10643 = vmatprep.subr.bf16.mxu0 %v10152
        %10644 = vmatpush1.bf16.msra.mxu0 %v10151
        %10645 = vmatprep.subr.bf16.mxu0 %v10145
        %10646 = vmatpush1.bf16.msra.mxu0 %v10144
        %10647 = vmatprep.subr.bf16.mxu0 %v10138
        %10648 = vmatpush1.bf16.msra.mxu0 %v10137
        %10649 = vmatprep.subr.bf16.mxu0 %v10131
        %10650 = vmatpush1.bf16.msra.mxu0 %v10130
        %10651 = vmatprep.subr.bf16.mxu0 %v10124
        %10652 = vmatpush1.bf16.msra.mxu0 %v10123
        %10653 = vmatprep.subr.bf16.mxu0 %v10117
        %10654 = vmatpush1.bf16.msra.mxu0 %v10116
        %10655 = vmatprep.subr.bf16.mxu0 %v10110
        %10656 = vmatpush1.bf16.msra.mxu0 %v10109
        %10657 = vmatprep.subr.bf16.mxu0 %v10103
        %10658 = vmatpush1.bf16.msra.mxu0 %v10102
        %10659 = vmatprep.subr.bf16.mxu0 %v10208
        %10660 = vmatpush2.bf16.msra.mxu0 %v10207
        %10661 = vmatprep.subr.bf16.mxu0 %v10201
        %10662 = vmatpush2.bf16.msra.mxu0 %v10200
        %10663 = vmatprep.subr.bf16.mxu0 %v10194
        %10664 = vmatpush2.bf16.msra.mxu0 %v10193
        %10665 = vmatprep.subr.bf16.mxu0 %v10187
        %10666 = vmatpush2.bf16.msra.mxu0 %v10186
        %10667 = vmatprep.subr.bf16.mxu0 %v10180
        %10668 = vmatpush2.bf16.msra.mxu0 %v10179
        %10669 = vmatprep.subr.bf16.mxu0 %v10173
        %10670 = vmatpush2.bf16.msra.mxu0 %v10172
        %10671 = vmatprep.subr.bf16.mxu0 %v10166
        %10672 = vmatpush2.bf16.msra.mxu0 %v10165
        %10673 = vmatprep.subr.bf16.mxu0 %v10159
        %10674 = vmatpush2.bf16.msra.mxu0 %v10158
        %10675 = vmatprep.mubr.bf16.mxu0 %v9498
        %10676 = vmatmul.mubr.bf16.gmra.mxu0 %v9497
        %v10677 = vpop.f32.mrf.mxu0
        %v10678 = vadd.f32 %v9489, %v10677
        %v10679 = vpop.f32.mrf.mxu0
        %v10680 = vadd.f32 %v9489, %v10679
        %v10681 = vpop.f32.mrf.mxu0
        %v10682 = vpop.f32.mrf.mxu0
        %10683 = vdwg.mxu0
        %10684 = vmatprep.subr.bf16.mxu0 %v10264
        %10685 = vmatpush1.bf16.msra.mxu0 %v10263
        %10686 = vmatprep.subr.bf16.mxu0 %v10257
        %10687 = vmatpush1.bf16.msra.mxu0 %v10256
        %10688 = vmatprep.subr.bf16.mxu0 %v10250
        %10689 = vmatpush1.bf16.msra.mxu0 %v10249
        %10690 = vmatprep.subr.bf16.mxu0 %v10243
        %10691 = vmatpush1.bf16.msra.mxu0 %v10242
        %10692 = vmatprep.subr.bf16.mxu0 %v10236
        %10693 = vmatpush1.bf16.msra.mxu0 %v10235
        %10694 = vmatprep.subr.bf16.mxu0 %v10229
        %10695 = vmatpush1.bf16.msra.mxu0 %v10228
        %10696 = vmatprep.subr.bf16.mxu0 %v10222
        %10697 = vmatpush1.bf16.msra.mxu0 %v10221
        %10698 = vmatprep.subr.bf16.mxu0 %v10215
        %10699 = vmatpush1.bf16.msra.mxu0 %v10214
        %10700 = vmatprep.subr.bf16.mxu0 0
        %10701 = vmatpush2.bf16.msra.mxu0 0
        %10702 = vmatprep.subr.bf16.mxu0 0
        %10703 = vmatpush2.bf16.msra.mxu0 0
        %10704 = vmatprep.subr.bf16.mxu0 0
        %10705 = vmatpush2.bf16.msra.mxu0 0
        %10706 = vmatprep.subr.bf16.mxu0 0
        %10707 = vmatpush2.bf16.msra.mxu0 0
        %10708 = vmatprep.subr.bf16.mxu0 0
        %10709 = vmatpush2.bf16.msra.mxu0 0
        %10710 = vmatprep.subr.bf16.mxu0 %v10285
        %10711 = vmatpush2.bf16.msra.mxu0 %v10284
        %10712 = vmatprep.subr.bf16.mxu0 %v10278
        %10713 = vmatpush2.bf16.msra.mxu0 %v10277
        %10714 = vmatprep.subr.bf16.mxu0 %v10271
        %10715 = vmatpush2.bf16.msra.mxu0 %v10270
        %10716 = vmatprep.mubr.bf16.mxu0 %v10477
        %10717 = vmatmul.mubr.bf16.gmra.mxu0 %v9499
        %v10718 = vpop.f32.mrf.mxu0
        %v10719 = vadd.f32 %v10678, %v10718
        %v10720 = vpop.f32.mrf.mxu0
        %v10721 = vadd.f32 %v10680, %v10720
        %v10722 = vpop.f32.mrf.mxu0
        %v10723 = vpop.f32.mrf.mxu0
        %10724 = vdwg.mxu0
        %10725 = vmatprep.subr.bf16.mxu0 0
        %10726 = vmatpush1.bf16.msra.mxu0 %v10153
        %10727 = vmatprep.subr.bf16.mxu0 0
        %10728 = vmatpush1.bf16.msra.mxu0 %v10146
        %10729 = vmatprep.subr.bf16.mxu0 0
        %10730 = vmatpush1.bf16.msra.mxu0 %v10139
        %10731 = vmatprep.subr.bf16.mxu0 0
        %10732 = vmatpush1.bf16.msra.mxu0 %v10132
        %10733 = vmatprep.subr.bf16.mxu0 0
        %10734 = vmatpush1.bf16.msra.mxu0 %v10125
        %10735 = vmatprep.subr.bf16.mxu0 0
        %10736 = vmatpush1.bf16.msra.mxu0 %v10118
        %10737 = vmatprep.subr.bf16.mxu0 0
        %10738 = vmatpush1.bf16.msra.mxu0 %v10111
        %10739 = vmatprep.subr.bf16.mxu0 0
        %10740 = vmatpush1.bf16.msra.mxu0 %v10104
        %10741 = vmatprep.subr.bf16.mxu0 0
        %10742 = vmatpush2.bf16.msra.mxu0 %v10209
        %10743 = vmatprep.subr.bf16.mxu0 0
        %10744 = vmatpush2.bf16.msra.mxu0 %v10202
        %10745 = vmatprep.subr.bf16.mxu0 0
        %10746 = vmatpush2.bf16.msra.mxu0 %v10195
        %10747 = vmatprep.subr.bf16.mxu0 0
        %10748 = vmatpush2.bf16.msra.mxu0 %v10188
        %10749 = vmatprep.subr.bf16.mxu0 0
        %10750 = vmatpush2.bf16.msra.mxu0 %v10181
        %10751 = vmatprep.subr.bf16.mxu0 0
        %10752 = vmatpush2.bf16.msra.mxu0 %v10174
        %10753 = vmatprep.subr.bf16.mxu0 0
        %10754 = vmatpush2.bf16.msra.mxu0 %v10167
        %10755 = vmatprep.subr.bf16.mxu0 0
        %10756 = vmatpush2.bf16.msra.mxu0 %v10160
        %10757 = vmatprep.mubr.bf16.mxu0 %v9498
        %10758 = vmatmul.mubr.bf16.gmra.mxu0 %v9497
        %v10759 = vpop.f32.mrf.mxu0
        %v10760 = vadd.f32 %v9489, %v10759
        %v10761 = vpop.f32.mrf.mxu0
        %v10762 = vpop.f32.mrf.mxu0
        %v10763 = vpop.f32.mrf.mxu0
        %10764 = vdwg.mxu0
        %10765 = vmatprep.subr.bf16.mxu0 0
        %10766 = vmatpush1.bf16.msra.mxu0 %v10265
        %10767 = vmatprep.subr.bf16.mxu0 0
        %10768 = vmatpush1.bf16.msra.mxu0 %v10258
        %10769 = vmatprep.subr.bf16.mxu0 0
        %10770 = vmatpush1.bf16.msra.mxu0 %v10251
        %10771 = vmatprep.subr.bf16.mxu0 0
        %10772 = vmatpush1.bf16.msra.mxu0 %v10244
        %10773 = vmatprep.subr.bf16.mxu0 0
        %10774 = vmatpush1.bf16.msra.mxu0 %v10237
        %10775 = vmatprep.subr.bf16.mxu0 0
        %10776 = vmatpush1.bf16.msra.mxu0 %v10230
        %10777 = vmatprep.subr.bf16.mxu0 0
        %10778 = vmatpush1.bf16.msra.mxu0 %v10223
        %10779 = vmatprep.subr.bf16.mxu0 0
        %10780 = vmatpush1.bf16.msra.mxu0 %v10216
        %10781 = vmatprep.subr.bf16.mxu0 0
        %10782 = vmatpush2.bf16.msra.mxu0 0
        %10783 = vmatprep.subr.bf16.mxu0 0
        %10784 = vmatpush2.bf16.msra.mxu0 0
        %10785 = vmatprep.subr.bf16.mxu0 0
        %10786 = vmatpush2.bf16.msra.mxu0 0
        %10787 = vmatprep.subr.bf16.mxu0 0
        %10788 = vmatpush2.bf16.msra.mxu0 0
        %10789 = vmatprep.subr.bf16.mxu0 0
        %10790 = vmatpush2.bf16.msra.mxu0 0
        %10791 = vmatprep.subr.bf16.mxu0 0
        %10792 = vmatpush2.bf16.msra.mxu0 %v10286
        %10793 = vmatprep.subr.bf16.mxu0 0
        %10794 = vmatpush2.bf16.msra.mxu0 %v10279
        %10795 = vmatprep.subr.bf16.mxu0 0
        %10796 = vmatpush2.bf16.msra.mxu0 %v10272
        %10797 = vmatprep.mubr.bf16.mxu0 %v10477
        %10798 = vmatmul.mubr.bf16.gmra.mxu0 %v9499
        %v10799 = vpop.f32.mrf.mxu0
        %v10800 = vadd.f32 %v10760, %v10799
        %v10801 = vpop.f32.mrf.mxu0
        %v10802 = vpop.f32.mrf.mxu0
        %v10803 = vpop.f32.mrf.mxu0
        %10804 = vdwg.mxu0
        %10805 = vst [vmem:[%s377] sm:$0xff] %v10555
        %10806 = vst [vmem:[%s377 + $0x8] sm:$0xff] %v10557
        %10807 = vst [vmem:[%s377 + $0x10] sm:$0xff] %v10637
        %10808 = vst [vmem:[%s377 + $0x18] sm:$0xff] %v10639
        %10809 = vst [vmem:[%s377 + $0x20] sm:$0xff] %v10719
        %10810 = vst [vmem:[%s377 + $0x28] sm:$0xff] %v10721
        %10811 = vst [vmem:[%s377 + $0x30] sm:$0xff] %v10800
        %s10812 = sand.u32 %s250, 1
        %s10813 = scalar_lea.sflag [#allocation8], %s10812
        %s10814 = sand.u32 %s250, 1
        %s10815 = smul.addr %s10814, 56
        %s10816 = scalar_lea.vmem [#allocation9], %s10815
        // Predicated region
        $region65: #{tpu_custom_call.1} parent=59 // pred_check
          %p10817 = pneg %p260
        $region66: #{tpu_custom_call.1} parent=59 // pred_check_branch
          %10819 = sbr.rel (%p10817) target = $region68
        $region67: #{tpu_custom_call.1} parent=59 // pred_region
          %s10821 = ssub.s32 896, 896
          %10822 = vsyncadd %s10813, %s10821
          %s10823 = smul.addr %s27, 7
          %s10824 = smul.addr %s10823, 128
          %s10825 = scalar_lea.hbm %s10, %s10824
          %s10827 = sshll.u32 %s10816, 4
          %s10828 = int_to_ptr.vmem [resolvable:$true] %s10827
          %10830 = dma.vmem_to_hbm [thread:$0]  %s10828, 896, %s10825, %s10813
        $region68: #{tpu_custom_call.1} parent=59 // pred_fallthru
          _
      $region60: #{tpu_custom_call.1} parent=5 // pred_fallthru
        _
      %p10831 = scmp.le.s32.totalorder 2, %s22
      // Predicated region
      $region69: #{tpu_custom_call.1} parent=5 // pred_check
        %p10832 = pneg %p10831
      $region70: #{tpu_custom_call.1} parent=5 // pred_check_branch
        %10834 = sbr.rel (%p10832) target = $region72
      $region71: #{tpu_custom_call.1} parent=5 // pred_region
        %s10835 = ssub.s32 %s22, 2
        // Predicated region
        $region73: #{tpu_custom_call.1} parent=71 // pred_check
          %p10836 = pneg %p266
        $region74: #{tpu_custom_call.1} parent=71 // pred_check_branch
          %10838 = sbr.rel (%p10836) target = $region76
        $region75: #{tpu_custom_call.1} parent=71 // pred_region
          %s10839 = sand.u32 %s251, 1
          %s10840 = scalar_lea.sflag [#allocation8], %s10839
          %s10841 = sand.u32 %s251, 1
          %s10842 = smul.addr %s10841, 56
          %s10843 = scalar_lea.vmem [#allocation9], %s10842
          %10844 = dma.done %s10840, 896
        $region76: #{tpu_custom_call.1} parent=71 // pred_fallthru
          _
      $region72: #{tpu_custom_call.1} parent=5 // pred_fallthru
        _
    $region6: #{tpu_custom_call.1} parent=1 // loop_footer
      %s26 = sadd.s32 1, %s22
    $region7: #{tpu_custom_call.1} parent=1 // loop_footer_branch
      %21 = sbr.rel target = $region3
    $region8: #{tpu_custom_call.1} parent=1 // loop_exit
      _
    %10845 = vsyncpa [#allocation7], 1
    %s10846 = scalar_lea.sflag [#allocation7], 1
    %10847 = vsyncpa %s10846, 1
    %10848 = vsyncpa [#allocation8], 1
    %s10849 = scalar_lea.sflag [#allocation8], 1
    %10850 = vsyncpa %s10849, 1

</llo_original>
